<compile_context>
chip_gen: v6e
topology: v6e:2x2x1
jax: 0.10.0
libtpu: 0.0.40
codegen_flags: <defaults>
</compile_context>

<pallas_src>
import functools

import jax
import jax.numpy as jnp
from jax.experimental import pallas as pl
from jax.experimental.pallas import tpu as pltpu


def _round_up(x, m):
    return (x + m - 1) // m * m


LANE = 128
TM = 256          # sublane tile for matmul M and elementwise M (multiple of 16 for bf16)
TN_MAX = 256      # lane tile (multiple of 128)
TK_MAX = 512      # reduction tile (multiple of 128)
_VMEM_LIMIT = 32 * 1024 * 1024   # safe on v5e/v6e (128 MiB) and v7x (64 MiB)


# --------------------------------------------------------------------------
# Tiled matmul with fused epilogue (activation, per-column scale, BN stats)
# --------------------------------------------------------------------------
def _mm_kernel(a_ref, b_ref, cs_ref, o_ref, *rest, act, nk, want_stats):
    if want_stats:
        stats_ref, acc_ref = rest
    else:
        (acc_ref,) = rest

    @pl.when(pl.program_id(2) == 0)
    def _():
        acc_ref[...] = jnp.zeros_like(acc_ref)

    acc_ref[...] += jnp.dot(a_ref[...], b_ref[...],
                            preferred_element_type=jnp.float32)

    @pl.when(pl.program_id(2) == nk - 1)
    def _():
        acc = acc_ref[...] * cs_ref[...]          # fused per-column scale
        if act == "relu":
            acc = jnp.maximum(acc, 0.0)
        elif act == "relu6":
            acc = jnp.clip(acc, 0.0, 6.0)
        o_ref[...] = acc
        if want_stats:
            s = jnp.sum(acc, axis=0, keepdims=True)
            s2 = jnp.sum(acc * acc, axis=0, keepdims=True)
            pad = jnp.zeros((6, acc.shape[1]), jnp.float32)
            stats_ref[...] = jnp.concatenate([s, s2, pad], axis=0)


def matmul_fused(a, b, act="none", col_scale=None, want_stats=False):
    """(M,K)@(K,N) on the MXU (bf16 operands, f32 accumulation).

    Returns the (Mp, Np) zero-row-padded f32 result; if `want_stats`, also
    returns per-column sum and sum-of-squares over the real M rows (padded
    rows are exactly zero, so they never perturb the sums)."""
    M, K = a.shape
    K2, N = b.shape
    assert K == K2
    tm = TM
    tn = min(TN_MAX, _round_up(N, LANE))
    tk = min(TK_MAX, _round_up(K, LANE))
    Mp, Kp, Np = _round_up(M, tm), _round_up(K, tk), _round_up(N, tn)
    nm, nn, nk = Mp // tm, Np // tn, Kp // tk

    a_p = jnp.pad(a.astype(jnp.bfloat16), ((0, Mp - M), (0, Kp - K)))
    b_p = jnp.pad(b.astype(jnp.bfloat16), ((0, Kp - K), (0, Np - N)))
    if col_scale is None:
        cs = jnp.ones((1, Np), jnp.float32)
    else:
        cs = jnp.pad(col_scale.astype(jnp.float32).reshape(1, N),
                     ((0, 0), (0, Np - N)))

    out_shape = jax.ShapeDtypeStruct((Mp, Np), jnp.float32)
    out_spec = pl.BlockSpec((tm, tn), lambda i, j, k: (i, j))
    if want_stats:
        out_shape = (out_shape,
                     jax.ShapeDtypeStruct((nm * 8, Np), jnp.float32))
        out_spec = (out_spec, pl.BlockSpec((8, tn), lambda i, j, k: (i, j)))

    cost = pl.CostEstimate(
        flops=2 * Mp * Kp * Np,
        transcendentals=0,
        bytes_accessed=2 * (Mp * Kp + Kp * Np) + 4 * Mp * Np,
    )

    outs = pl.pallas_call(
        functools.partial(_mm_kernel, act=act, nk=nk, want_stats=want_stats),
        out_shape=out_shape,
        grid=(nm, nn, nk),
        in_specs=[
            pl.BlockSpec((tm, tk), lambda i, j, k: (i, k)),
            pl.BlockSpec((tk, tn), lambda i, j, k: (k, j)),
            pl.BlockSpec((1, tn), lambda i, j, k: (0, j)),
        ],
        out_specs=out_spec,
        scratch_shapes=[pltpu.VMEM((tm, tn), jnp.float32)],
        compiler_params=pltpu.CompilerParams(
            dimension_semantics=("parallel", "parallel", "arbitrary"),
            vmem_limit_bytes=_VMEM_LIMIT,
        ),
        cost_estimate=cost,
    )(a_p, b_p, cs)

    if want_stats:
        out, st = outs
        st = st.reshape(nm, 8, Np).sum(axis=0)     # tiny JAX reduce of partials
        return out, st[0], st[1]
    return outs


# --------------------------------------------------------------------------
# BatchNorm helpers (training-mode batch stats, gamma=1 / beta=0)
# --------------------------------------------------------------------------
def bn_params(col_sum, col_sumsq, m_real, eps=1e-5):
    mean = col_sum / m_real
    # clamp tiny negative values from E[x^2]-mean^2 cancellation
    var = jnp.maximum(col_sumsq / m_real - mean * mean, 0.0)
    invstd = jax.lax.rsqrt(var + eps)
    return invstd.reshape(1, -1), (-mean * invstd).reshape(1, -1)


def _bn_act_kernel(x_ref, s_ref, b_ref, o_ref, *, act):
    y = x_ref[...] * s_ref[...] + b_ref[...]
    if act == "relu6":
        y = jnp.clip(y, 0.0, 6.0)
    elif act == "relu":
        y = jnp.maximum(y, 0.0)
    o_ref[...] = y


def bn_apply(x_p, scale, bias, act="none"):
    """Streamed, M-tiled BN apply (+ optional activation) on a padded buffer."""
    Mp, Cp = x_p.shape
    nm = Mp // TM
    vec = pl.BlockSpec((1, Cp), lambda i: (0, 0))
    return pl.pallas_call(
        functools.partial(_bn_act_kernel, act=act),
        out_shape=jax.ShapeDtypeStruct((Mp, Cp), jnp.float32),
        grid=(nm,),
        in_specs=[pl.BlockSpec((TM, Cp), lambda i: (i, 0)), vec, vec],
        out_specs=pl.BlockSpec((TM, Cp), lambda i: (i, 0)),
        compiler_params=pltpu.CompilerParams(
            dimension_semantics=("parallel",),
            vmem_limit_bytes=_VMEM_LIMIT,
        ),
    )(x_p, scale, bias)


def _bn_add_relu6_kernel(a_ref, sa_ref, ba_ref, b_ref, sb_ref, bb_ref,
                         o_ref, *rest, m_real, want_stats):
    y = (a_ref[...] * sa_ref[...] + ba_ref[...]
         + b_ref[...] * sb_ref[...] + bb_ref[...])
    y = jnp.clip(y, 0.0, 6.0)
    o_ref[...] = y
    if want_stats:
        (stats_ref,) = rest
        tm, cp = y.shape
        row = (jax.lax.broadcasted_iota(jnp.int32, (tm, cp), 0)
               + pl.program_id(0) * tm)
        ym = jnp.where(row < m_real, y, 0.0)       # mask padded rows in stats
        s = jnp.sum(ym, axis=0, keepdims=True)
        s2 = jnp.sum(ym * ym, axis=0, keepdims=True)
        pad = jnp.zeros((6, cp), jnp.float32)
        stats_ref[...] = jnp.concatenate([s, s2, pad], axis=0)


def bn_add_relu6(a_p, sa, ba, b_p, sb, bb, m_real, want_stats=False):
    """Fused bn2(conv2) + bn(shortcut) + residual add + relu6 (+ output stats)."""
    Mp, Cp = a_p.shape
    nm = Mp // TM
    out_shape = jax.ShapeDtypeStruct((Mp, Cp), jnp.float32)
    out_spec = pl.BlockSpec((TM, Cp), lambda i: (i, 0))
    if want_stats:
        out_shape = (out_shape, jax.ShapeDtypeStruct((nm * 8, Cp), jnp.float32))
        out_spec = (out_spec, pl.BlockSpec((8, Cp), lambda i: (i, 0)))
    vec = pl.BlockSpec((1, Cp), lambda i: (0, 0))
    outs = pl.pallas_call(
        functools.partial(_bn_add_relu6_kernel, m_real=m_real,
                          want_stats=want_stats),
        out_shape=out_shape,
        grid=(nm,),
        in_specs=[pl.BlockSpec((TM, Cp), lambda i: (i, 0)), vec, vec,
                  pl.BlockSpec((TM, Cp), lambda i: (i, 0)), vec, vec],
        out_specs=out_spec,
        compiler_params=pltpu.CompilerParams(
            dimension_semantics=("parallel",),
            vmem_limit_bytes=_VMEM_LIMIT,
        ),
    )(a_p, sa, ba, b_p, sb, bb)
    if want_stats:
        y, st = outs
        st = st.reshape(nm, 8, Cp).sum(axis=0)
        return y, st[0], st[1]
    return outs


# --------------------------------------------------------------------------
# Global average pooling (streamed reduction, no kron matmul)
# --------------------------------------------------------------------------
def _gap_kernel(x_ref, o_ref, *, inv_hw):
    s = jnp.sum(x_ref[...], axis=1, keepdims=True) * inv_hw       # (1,1,Cp)
    pad = jnp.zeros((1, 7, s.shape[2]), jnp.float32)
    o_ref[...] = jnp.concatenate([s, pad], axis=1)


def global_avg_pool(x_nhwc):
    B, H, W, C = x_nhwc.shape
    HW = H * W
    HWp, Cp = _round_up(HW, 8), _round_up(C, LANE)
    x2 = jnp.pad(x_nhwc.reshape(B, HW, C).astype(jnp.float32),
                 ((0, 0), (0, HWp - HW), (0, Cp - C)))
    out = pl.pallas_call(
        functools.partial(_gap_kernel, inv_hw=1.0 / float(HW)),
        out_shape=jax.ShapeDtypeStruct((B, 8, Cp), jnp.float32),
        grid=(B,),
        in_specs=[pl.BlockSpec((1, HWp, Cp), lambda b: (b, 0, 0))],
        out_specs=pl.BlockSpec((1, 8, Cp), lambda b: (b, 0, 0)),
        compiler_params=pltpu.CompilerParams(
            dimension_semantics=("parallel",),
            vmem_limit_bytes=_VMEM_LIMIT,
        ),
    )(x2)
    return out[:, 0, :C]                                           # (B, C)


# --------------------------------------------------------------------------
# Conv via patch extraction + Pallas matmul
# --------------------------------------------------------------------------
def _im2col(x, kh, kw, stride, pad):
    # TODO(synk): for large activations, fold the kh*kw taps into the matmul's
    # K-reduction grid via BlockSpec index_map offsets instead of
    # materializing patches in HBM.
    if pad > 0:
        x = jnp.pad(x, ((0, 0), (pad, pad), (pad, pad), (0, 0)))
    B, H, W, C = x.shape
    Ho = (H - kh) // stride + 1
    Wo = (W - kw) // stride + 1
    cols = []
    for i in range(kh):
        for j in range(kw):
            cols.append(x[:, i:i + stride * (Ho - 1) + 1:stride,
                             j:j + stride * (Wo - 1) + 1:stride, :])
    patches = jnp.concatenate(cols, axis=-1)            # (B,Ho,Wo,kh*kw*C)
    return patches.reshape(B * Ho * Wo, kh * kw * C), (B, Ho, Wo)


def conv2d(x, w, stride=1, pad=0, act="none", want_stats=False):
    # x: (B,H,W,Cin), w: (kh,kw,Cin,Cout), bias-free (matches nn.Conv2d(bias=False))
    kh, kw, cin, cout = w.shape
    patches, (B, Ho, Wo) = _im2col(x, kh, kw, stride, pad)
    res = matmul_fused(patches, w.reshape(kh * kw * cin, cout),
                       act=act, want_stats=want_stats)
    dims = (B, Ho, Wo, cout)
    if want_stats:
        out_p, s, s2 = res
        return out_p, dims, s, s2
    return res, dims


def unpad_nhwc(x_p, dims):
    B, H, W, C = dims
    return x_p[:B * H * W, :C].reshape(B, H, W, C)


# --------------------------------------------------------------------------
# Model
# --------------------------------------------------------------------------
def basic_block(x, p, emit_out_stats=False):
    B, H, W, C = x.shape
    M = B * H * W
    # conv1 -> bn1 -> relu6 (BN stats ride the conv matmul epilogue)
    o1, d1, s1, q1 = conv2d(x, p["conv1"], stride=1, pad=1, want_stats=True)
    sc1, b1 = bn_params(s1, q1, M)
    x1 = unpad_nhwc(bn_apply(o1, sc1, b1, act="relu6"), d1)
    # conv2 -> bn2 (apply deferred into the fused residual kernel)
    o2, d2, s2, q2 = conv2d(x1, p["conv2"], stride=1, pad=1, want_stats=True)
    sc2, b2 = bn_params(s2, q2, M)
    # 1x1 shortcut conv -> bn
    os_, ds, ss, qs = conv2d(x, p["conv_sc"], stride=1, pad=0, want_stats=True)
    scs, bs = bn_params(ss, qs, M)
    # fused: bn2(conv2) + bn(shortcut) + add + relu6 (+ stats of the result)
    res = bn_add_relu6(o2, sc2, b2, os_, scs, bs, m_real=M,
                       want_stats=emit_out_stats)
    if emit_out_stats:
        y, sy, qy = res
        return y, d2, sy, qy
    return res, d2


def resnet_forward(params, x_nchw):
    x = jnp.transpose(x_nchw, (0, 2, 3, 1)).astype(jnp.float32)    # NCHW->NHWC
    for blk in params["layers"]:
        # stem conv (stride 2, no padding) with fused ReLU
        op, dims = conv2d(x, blk["stem_conv"], stride=2, pad=0, act="relu")
        x = unpad_nhwc(op, dims)
        B, H, W, C = x.shape
        M = B * H * W
        # BasicBlock 1 (emits stats of its output for the standalone BN)
        yp, dims, sy, qy = basic_block(x, blk["bb1"], emit_out_stats=True)
        scy, by = bn_params(sy, qy, M)
        x = unpad_nhwc(bn_apply(yp, scy, by, act="none"), dims)    # nn.BatchNorm2d
        # BasicBlock 2
        yp, dims = basic_block(x, blk["bb2"])
        x = unpad_nhwc(yp, dims)

    pooled = global_avg_pool(x)                        # (B, hidden_sizes[-1])

    w_label, w_closs = params["w_label"], params["w_closs"]
    B = pooled.shape[0]
    w_norm = jnp.sqrt(jnp.sum(w_label * w_label, axis=0))          # per-class
    # label = (pooled @ w_label) / ||w_label||, fused as a per-column scale
    label = matmul_fused(pooled, w_label,
                         col_scale=1.0 / w_norm)[:B, :w_label.shape[1]]
    closs = matmul_fused(pooled, w_closs, act="relu")[:B, :w_closs.shape[1]]
    return closs, label


def init_params(key, num_feats, hidden_sizes, num_classes, feat_dim):
    sizes = [num_feats] + list(hidden_sizes) + [num_classes]
    keys = iter(jax.random.split(key, 8 * len(hidden_sizes) + 2))

    def conv_w(kh, kw, ci, co):
        return 0.1 * jax.random.normal(next(keys), (kh, kw, ci, co), jnp.float32)

    layers = []
    for idx, ch in enumerate(hidden_sizes):
        cin, cout = sizes[idx], sizes[idx + 1]          # cout == ch
        layers.append({
            "stem_conv": conv_w(3, 3, cin, cout),
            "bb1": {"conv1": conv_w(3, 3, ch, ch),
                    "conv2": conv_w(3, 3, ch, ch),
                    "conv_sc": conv_w(1, 1, ch, ch)},
            "bb2": {"conv1": conv_w(3, 3, ch, ch),
                    "conv2": conv_w(3, 3, ch, ch),
                    "conv_sc": conv_w(1, 1, ch, ch)},
        })
    hidden_last = hidden_sizes[-1]
    return {
        "layers": layers,
        "w_label": 0.1 * jax.random.normal(next(keys), (hidden_last, num_classes), jnp.float32),
        "w_closs": 0.1 * jax.random.normal(next(keys), (hidden_last, feat_dim), jnp.float32),
    }


if __name__ == "__main__":
    key = jax.random.PRNGKey(0)
    kp, kx = jax.random.split(key)

    num_feats, hidden_sizes, num_classes, feat_dim = 3, [8, 16], 10, 10
    params = init_params(kp, num_feats, hidden_sizes, num_classes, feat_dim)

    # PyTorch-style NCHW input
    x = jax.random.normal(kx, (2, 3, 32, 32), jnp.float32)

    closs, label = jax.jit(resnet_forward)(params, x)
    jax.block_until_ready((closs, label))
    assert closs.shape == (2, feat_dim) and label.shape == (2, num_classes)
    print("KERNEL_OK")
</pallas_src>

<mosaic_0001>
module attributes {stable_mosaic.version = 11 : i64} {
  func.func @_mm_kernel(%arg0: i32, %arg1: i32, %arg2: i32, %arg3: memref<256x128xbf16, #tpu.memory_space<vmem>>, %arg4: memref<128x128xbf16, #tpu.memory_space<vmem>>, %arg5: memref<1x128xf32, #tpu.memory_space<vmem>>, %arg6: memref<256x128xf32, #tpu.memory_space<vmem>>, %arg7: memref<256x128xf32, #tpu.memory_space<vmem>>) attributes {dimension_semantics = [#tpu.dimension_semantics<parallel>, #tpu.dimension_semantics<parallel>, #tpu.dimension_semantics<arbitrary>], iteration_bounds = array<i64: 2, 1, 1>, scalar_prefetch = 0 : i64, scratch_operands = 1 : i64, tpu.core_type = #tpu.core_type<tc>, window_params = [{transform_indices = @transform_0, window_bounds = array<i64: 256, 128>}, {transform_indices = @transform_1, window_bounds = array<i64: 128, 128>}, {transform_indices = @transform_2, window_bounds = array<i64: 1, 128>}, {transform_indices = @transform_3, window_bounds = array<i64: 256, 128>}]} {
    %c0_i32 = arith.constant 0 : i32
    %0 = arith.cmpi eq, %arg2, %c0_i32 : i32
    %1 = arith.extui %0 : i1 to i32
    %c0_i32_0 = arith.constant 0 : i32
    %2 = arith.cmpi ne, %1, %c0_i32_0 : i32
    scf.if %2 {
      %cst_10 = arith.constant 0.000000e+00 : f32
      %12 = vector.broadcast %cst_10 : f32 to vector<256x128xf32>
      %c0_11 = arith.constant 0 : index
      %c0_12 = arith.constant 0 : index
      %13 = vector.load %arg7[%c0_11, %c0_12] : memref<256x128xf32, #tpu.memory_space<vmem>>, vector<256x128xf32>
      tpu.vector_store %arg7[%c0_11, %c0_12], %12 {strides = array<i32>} : memref<256x128xf32, #tpu.memory_space<vmem>>, vector<256x128xf32>,
    } else {
    }
    %c0 = arith.constant 0 : index
    %c0_1 = arith.constant 0 : index
    %3 = vector.load %arg7[%c0, %c0_1] : memref<256x128xf32, #tpu.memory_space<vmem>>, vector<256x128xf32>
    %c0_2 = arith.constant 0 : index
    %c0_3 = arith.constant 0 : index
    %4 = vector.load %arg3[%c0_2, %c0_3] : memref<256x128xbf16, #tpu.memory_space<vmem>>, vector<256x128xbf16>
    %c0_4 = arith.constant 0 : index
    %c0_5 = arith.constant 0 : index
    %5 = vector.load %arg4[%c0_4, %c0_5] : memref<128x128xbf16, #tpu.memory_space<vmem>>, vector<128x128xbf16>
    %cst = arith.constant dense<0.000000e+00> : vector<256x128xf32>
    %6 = tpu.matmul %4, %5, %cst {dimension_numbers = #tpu.dot_dimension_numbers<[1], [0], [0], [1], [0, 0, 1, 1], [], []>} : vector<256x128xbf16>, vector<128x128xbf16>, vector<256x128xf32> -> vector<256x128xf32>
    %7 = arith.addf %3, %6 : vector<256x128xf32>
    %c0_6 = arith.constant 0 : index
    %c0_7 = arith.constant 0 : index
    %8 = vector.load %arg7[%c0_6, %c0_7] : memref<256x128xf32, #tpu.memory_space<vmem>>, vector<256x128xf32>
    tpu.vector_store %arg7[%c0_6, %c0_7], %7 {strides = array<i32>} : memref<256x128xf32, #tpu.memory_space<vmem>>, vector<256x128xf32>,
    %c0_i32_8 = arith.constant 0 : i32
    %9 = arith.cmpi eq, %arg2, %c0_i32_8 : i32
    %10 = arith.extui %9 : i1 to i32
    %c0_i32_9 = arith.constant 0 : i32
    %11 = arith.cmpi ne, %10, %c0_i32_9 : i32
    scf.if %11 {
      %c0_10 = arith.constant 0 : index
      %c0_11 = arith.constant 0 : index
      %12 = vector.load %arg7[%c0_10, %c0_11] : memref<256x128xf32, #tpu.memory_space<vmem>>, vector<256x128xf32>
      %c0_12 = arith.constant 0 : index
      %c0_13 = arith.constant 0 : index
      %13 = vector.load %arg5[%c0_12, %c0_13] : memref<1x128xf32, #tpu.memory_space<vmem>>, vector<1x128xf32>
      %14 = vector.broadcast %13 : vector<1x128xf32> to vector<256x128xf32>
      %15 = arith.mulf %12, %14 : vector<256x128xf32>
      %cst_14 = arith.constant 0.000000e+00 : f32
      %16 = vector.broadcast %cst_14 : f32 to vector<256x128xf32>
      %17 = arith.maximumf %15, %16 : vector<256x128xf32>
      %c0_15 = arith.constant 0 : index
      %c0_16 = arith.constant 0 : index
      %18 = vector.load %arg6[%c0_15, %c0_16] : memref<256x128xf32, #tpu.memory_space<vmem>>, vector<256x128xf32>
      tpu.vector_store %arg6[%c0_15, %c0_16], %17 {strides = array<i32>} : memref<256x128xf32, #tpu.memory_space<vmem>>, vector<256x128xf32>,
    } else {
    }
    return
  }
  func.func @transform_0(%arg0: i32, %arg1: i32, %arg2: i32) -> (i32, i32) {
    %c0_i32 = arith.constant 0 : i32
    return %arg0, %arg2 : i32, i32
  }
  func.func @transform_1(%arg0: i32, %arg1: i32, %arg2: i32) -> (i32, i32) {
    %c0_i32 = arith.constant 0 : i32
    return %arg2, %arg1 : i32, i32
  }
  func.func @transform_2(%arg0: i32, %arg1: i32, %arg2: i32) -> (i32, i32) {
    %c0_i32 = arith.constant 0 : i32
    %c0_i32_0 = arith.constant 0 : i32
    return %c0_i32, %arg1 : i32, i32
  }
  func.func @transform_3(%arg0: i32, %arg1: i32, %arg2: i32) -> (i32, i32) {
    %c0_i32 = arith.constant 0 : i32
    return %arg0, %arg1 : i32, i32
  }
}

module attributes {stable_mosaic.version = 11 : i64} {
  func.func @_mm_kernel(%arg0: i32, %arg1: i32, %arg2: i32, %arg3: memref<256x128xbf16, #tpu.memory_space<vmem>>, %arg4: memref<128x128xbf16, #tpu.memory_space<vmem>>, %arg5: memref<1x128xf32, #tpu.memory_space<vmem>>, %arg6: memref<256x128xf32, #tpu.memory_space<vmem>>, %arg7: memref<8x128xf32, #tpu.memory_space<vmem>>, %arg8: memref<256x128xf32, #tpu.memory_space<vmem>>) attributes {dimension_semantics = [#tpu.dimension_semantics<parallel>, #tpu.dimension_semantics<parallel>, #tpu.dimension_semantics<arbitrary>], iteration_bounds = array<i64: 2, 1, 1>, scalar_prefetch = 0 : i64, scratch_operands = 1 : i64, tpu.core_type = #tpu.core_type<tc>, window_params = [{transform_indices = @transform_0, window_bounds = array<i64: 256, 128>}, {transform_indices = @transform_1, window_bounds = array<i64: 128, 128>}, {transform_indices = @transform_2, window_bounds = array<i64: 1, 128>}, {transform_indices = @transform_3, window_bounds = array<i64: 256, 128>}, {transform_indices = @transform_4, window_bounds = array<i64: 8, 128>}]} {
    %c0_i32 = arith.constant 0 : i32
    %0 = arith.cmpi eq, %arg2, %c0_i32 : i32
    %1 = arith.extui %0 : i1 to i32
    %c0_i32_0 = arith.constant 0 : i32
    %2 = arith.cmpi ne, %1, %c0_i32_0 : i32
    scf.if %2 {
      %cst_10 = arith.constant 0.000000e+00 : f32
      %12 = vector.broadcast %cst_10 : f32 to vector<256x128xf32>
      %c0_11 = arith.constant 0 : index
      %c0_12 = arith.constant 0 : index
      %13 = vector.load %arg8[%c0_11, %c0_12] : memref<256x128xf32, #tpu.memory_space<vmem>>, vector<256x128xf32>
      tpu.vector_store %arg8[%c0_11, %c0_12], %12 {strides = array<i32>} : memref<256x128xf32, #tpu.memory_space<vmem>>, vector<256x128xf32>,
    } else {
    }
    %c0 = arith.constant 0 : index
    %c0_1 = arith.constant 0 : index
    %3 = vector.load %arg8[%c0, %c0_1] : memref<256x128xf32, #tpu.memory_space<vmem>>, vector<256x128xf32>
    %c0_2 = arith.constant 0 : index
    %c0_3 = arith.constant 0 : index
    %4 = vector.load %arg3[%c0_2, %c0_3] : memref<256x128xbf16, #tpu.memory_space<vmem>>, vector<256x128xbf16>
    %c0_4 = arith.constant 0 : index
    %c0_5 = arith.constant 0 : index
    %5 = vector.load %arg4[%c0_4, %c0_5] : memref<128x128xbf16, #tpu.memory_space<vmem>>, vector<128x128xbf16>
    %cst = arith.constant dense<0.000000e+00> : vector<256x128xf32>
    %6 = tpu.matmul %4, %5, %cst {dimension_numbers = #tpu.dot_dimension_numbers<[1], [0], [0], [1], [0, 0, 1, 1], [], []>} : vector<256x128xbf16>, vector<128x128xbf16>, vector<256x128xf32> -> vector<256x128xf32>
    %7 = arith.addf %3, %6 : vector<256x128xf32>
    %c0_6 = arith.constant 0 : index
    %c0_7 = arith.constant 0 : index
    %8 = vector.load %arg8[%c0_6, %c0_7] : memref<256x128xf32, #tpu.memory_space<vmem>>, vector<256x128xf32>
    tpu.vector_store %arg8[%c0_6, %c0_7], %7 {strides = array<i32>} : memref<256x128xf32, #tpu.memory_space<vmem>>, vector<256x128xf32>,
    %c0_i32_8 = arith.constant 0 : i32
    %9 = arith.cmpi eq, %arg2, %c0_i32_8 : i32
    %10 = arith.extui %9 : i1 to i32
    %c0_i32_9 = arith.constant 0 : i32
    %11 = arith.cmpi ne, %10, %c0_i32_9 : i32
    scf.if %11 {
      %c0_10 = arith.constant 0 : index
      %c0_11 = arith.constant 0 : index
      %12 = vector.load %arg8[%c0_10, %c0_11] : memref<256x128xf32, #tpu.memory_space<vmem>>, vector<256x128xf32>
      %c0_12 = arith.constant 0 : index
      %c0_13 = arith.constant 0 : index
      %13 = vector.load %arg5[%c0_12, %c0_13] : memref<1x128xf32, #tpu.memory_space<vmem>>, vector<1x128xf32>
      %14 = vector.broadcast %13 : vector<1x128xf32> to vector<256x128xf32>
      %15 = arith.mulf %12, %14 : vector<256x128xf32>
      %c0_14 = arith.constant 0 : index
      %c0_15 = arith.constant 0 : index
      %16 = vector.load %arg6[%c0_14, %c0_15] : memref<256x128xf32, #tpu.memory_space<vmem>>, vector<256x128xf32>
      tpu.vector_store %arg6[%c0_14, %c0_15], %15 {strides = array<i32>} : memref<256x128xf32, #tpu.memory_space<vmem>>, vector<256x128xf32>,
      %cst_16 = arith.constant dense<0.000000e+00> : vector<128xf32>
      %17 = vector.multi_reduction <add>, %15, %cst_16 [0] : vector<256x128xf32> to vector<128xf32>
      %18 = vector.shape_cast %17 : vector<128xf32> to vector<1x128xf32>
      %19 = arith.mulf %15, %15 : vector<256x128xf32>
      %cst_17 = arith.constant dense<0.000000e+00> : vector<128xf32>
      %20 = vector.multi_reduction <add>, %19, %cst_17 [0] : vector<256x128xf32> to vector<128xf32>
      %21 = vector.shape_cast %20 : vector<128xf32> to vector<1x128xf32>
      %cst_18 = arith.constant 0.000000e+00 : f32
      %22 = vector.broadcast %cst_18 : f32 to vector<6x128xf32>
      %23 = tpu.concatenate %18, %21, %22 in 0 : vector<1x128xf32>, vector<1x128xf32>, vector<6x128xf32> -> vector<8x128xf32>
      %c0_19 = arith.constant 0 : index
      %c0_20 = arith.constant 0 : index
      %24 = vector.load %arg7[%c0_19, %c0_20] : memref<8x128xf32, #tpu.memory_space<vmem>>, vector<8x128xf32>
      tpu.vector_store %arg7[%c0_19, %c0_20], %23 {strides = array<i32>} : memref<8x128xf32, #tpu.memory_space<vmem>>, vector<8x128xf32>,
    } else {
    }
    return
  }
  func.func @transform_0(%arg0: i32, %arg1: i32, %arg2: i32) -> (i32, i32) {
    %c0_i32 = arith.constant 0 : i32
    return %arg0, %arg2 : i32, i32
  }
  func.func @transform_1(%arg0: i32, %arg1: i32, %arg2: i32) -> (i32, i32) {
    %c0_i32 = arith.constant 0 : i32
    return %arg2, %arg1 : i32, i32
  }
  func.func @transform_2(%arg0: i32, %arg1: i32, %arg2: i32) -> (i32, i32) {
    %c0_i32 = arith.constant 0 : i32
    %c0_i32_0 = arith.constant 0 : i32
    return %c0_i32, %arg1 : i32, i32
  }
  func.func @transform_3(%arg0: i32, %arg1: i32, %arg2: i32) -> (i32, i32) {
    %c0_i32 = arith.constant 0 : i32
    return %arg0, %arg1 : i32, i32
  }
  func.func @transform_4(%arg0: i32, %arg1: i32, %arg2: i32) -> (i32, i32) {
    %c0_i32 = arith.constant 0 : i32
    return %arg0, %arg1 : i32, i32
  }
}

module attributes {stable_mosaic.version = 11 : i64} {
  func.func @_bn_act_kernel(%arg0: i32, %arg1: memref<256x128xf32, #tpu.memory_space<vmem>>, %arg2: memref<1x128xf32, #tpu.memory_space<vmem>>, %arg3: memref<1x128xf32, #tpu.memory_space<vmem>>, %arg4: memref<256x128xf32, #tpu.memory_space<vmem>>) attributes {dimension_semantics = [#tpu.dimension_semantics<parallel>], iteration_bounds = array<i64: 2>, scalar_prefetch = 0 : i64, scratch_operands = 0 : i64, tpu.core_type = #tpu.core_type<tc>, window_params = [{transform_indices = @transform_0, window_bounds = array<i64: 256, 128>}, {pipeline_mode = #tpu.pipeline_mode<synchronous>, transform_indices = @transform_1, window_bounds = array<i64: 1, 128>}, {pipeline_mode = #tpu.pipeline_mode<synchronous>, transform_indices = @transform_2, window_bounds = array<i64: 1, 128>}, {transform_indices = @transform_3, window_bounds = array<i64: 256, 128>}]} {
    %c0 = arith.constant 0 : index
    %c0_0 = arith.constant 0 : index
    %0 = vector.load %arg1[%c0, %c0_0] : memref<256x128xf32, #tpu.memory_space<vmem>>, vector<256x128xf32>
    %c0_1 = arith.constant 0 : index
    %c0_2 = arith.constant 0 : index
    %1 = vector.load %arg2[%c0_1, %c0_2] : memref<1x128xf32, #tpu.memory_space<vmem>>, vector<1x128xf32>
    %2 = vector.broadcast %1 : vector<1x128xf32> to vector<256x128xf32>
    %3 = arith.mulf %0, %2 : vector<256x128xf32>
    %c0_3 = arith.constant 0 : index
    %c0_4 = arith.constant 0 : index
    %4 = vector.load %arg3[%c0_3, %c0_4] : memref<1x128xf32, #tpu.memory_space<vmem>>, vector<1x128xf32>
    %5 = vector.broadcast %4 : vector<1x128xf32> to vector<256x128xf32>
    %6 = arith.addf %3, %5 : vector<256x128xf32>
    %cst = arith.constant 0.000000e+00 : f32
    %cst_5 = arith.constant 6.000000e+00 : f32
    %7 = vector.broadcast %cst : f32 to vector<256x128xf32>
    %8 = arith.maximumf %7, %6 : vector<256x128xf32>
    %9 = vector.broadcast %cst_5 : f32 to vector<256x128xf32>
    %10 = arith.minimumf %9, %8 : vector<256x128xf32>
    %c0_6 = arith.constant 0 : index
    %c0_7 = arith.constant 0 : index
    %11 = vector.load %arg4[%c0_6, %c0_7] : memref<256x128xf32, #tpu.memory_space<vmem>>, vector<256x128xf32>
    tpu.vector_store %arg4[%c0_6, %c0_7], %10 {strides = array<i32>} : memref<256x128xf32, #tpu.memory_space<vmem>>, vector<256x128xf32>,
    return
  }
  func.func @transform_0(%arg0: i32) -> (i32, i32) {
    %c0_i32 = arith.constant 0 : i32
    %c0_i32_0 = arith.constant 0 : i32
    return %arg0, %c0_i32 : i32, i32
  }
  func.func @transform_1(%arg0: i32) -> (i32, i32) {
    %c0_i32 = arith.constant 0 : i32
    %c0_i32_0 = arith.constant 0 : i32
    %c0_i32_1 = arith.constant 0 : i32
    return %c0_i32, %c0_i32_0 : i32, i32
  }
  func.func @transform_2(%arg0: i32) -> (i32, i32) {
    %c0_i32 = arith.constant 0 : i32
    %c0_i32_0 = arith.constant 0 : i32
    %c0_i32_1 = arith.constant 0 : i32
    return %c0_i32, %c0_i32_0 : i32, i32
  }
  func.func @transform_3(%arg0: i32) -> (i32, i32) {
    %c0_i32 = arith.constant 0 : i32
    %c0_i32_0 = arith.constant 0 : i32
    return %arg0, %c0_i32 : i32, i32
  }
}

module attributes {stable_mosaic.version = 11 : i64} {
  func.func @_bn_add_relu6_kernel(%arg0: i32, %arg1: memref<256x128xf32, #tpu.memory_space<vmem>>, %arg2: memref<1x128xf32, #tpu.memory_space<vmem>>, %arg3: memref<1x128xf32, #tpu.memory_space<vmem>>, %arg4: memref<256x128xf32, #tpu.memory_space<vmem>>, %arg5: memref<1x128xf32, #tpu.memory_space<vmem>>, %arg6: memref<1x128xf32, #tpu.memory_space<vmem>>, %arg7: memref<256x128xf32, #tpu.memory_space<vmem>>, %arg8: memref<8x128xf32, #tpu.memory_space<vmem>>) attributes {dimension_semantics = [#tpu.dimension_semantics<parallel>], iteration_bounds = array<i64: 2>, scalar_prefetch = 0 : i64, scratch_operands = 0 : i64, tpu.core_type = #tpu.core_type<tc>, window_params = [{transform_indices = @transform_0, window_bounds = array<i64: 256, 128>}, {pipeline_mode = #tpu.pipeline_mode<synchronous>, transform_indices = @transform_1, window_bounds = array<i64: 1, 128>}, {pipeline_mode = #tpu.pipeline_mode<synchronous>, transform_indices = @transform_2, window_bounds = array<i64: 1, 128>}, {transform_indices = @transform_3, window_bounds = array<i64: 256, 128>}, {pipeline_mode = #tpu.pipeline_mode<synchronous>, transform_indices = @transform_4, window_bounds = array<i64: 1, 128>}, {pipeline_mode = #tpu.pipeline_mode<synchronous>, transform_indices = @transform_5, window_bounds = array<i64: 1, 128>}, {transform_indices = @transform_6, window_bounds = array<i64: 256, 128>}, {transform_indices = @transform_7, window_bounds = array<i64: 8, 128>}]} {
    %c0 = arith.constant 0 : index
    %c0_0 = arith.constant 0 : index
    %0 = vector.load %arg1[%c0, %c0_0] : memref<256x128xf32, #tpu.memory_space<vmem>>, vector<256x128xf32>
    %c0_1 = arith.constant 0 : index
    %c0_2 = arith.constant 0 : index
    %1 = vector.load %arg2[%c0_1, %c0_2] : memref<1x128xf32, #tpu.memory_space<vmem>>, vector<1x128xf32>
    %2 = vector.broadcast %1 : vector<1x128xf32> to vector<256x128xf32>
    %3 = arith.mulf %0, %2 : vector<256x128xf32>
    %c0_3 = arith.constant 0 : index
    %c0_4 = arith.constant 0 : index
    %4 = vector.load %arg3[%c0_3, %c0_4] : memref<1x128xf32, #tpu.memory_space<vmem>>, vector<1x128xf32>
    %5 = vector.broadcast %4 : vector<1x128xf32> to vector<256x128xf32>
    %6 = arith.addf %3, %5 : vector<256x128xf32>
    %c0_5 = arith.constant 0 : index
    %c0_6 = arith.constant 0 : index
    %7 = vector.load %arg4[%c0_5, %c0_6] : memref<256x128xf32, #tpu.memory_space<vmem>>, vector<256x128xf32>
    %c0_7 = arith.constant 0 : index
    %c0_8 = arith.constant 0 : index
    %8 = vector.load %arg5[%c0_7, %c0_8] : memref<1x128xf32, #tpu.memory_space<vmem>>, vector<1x128xf32>
    %9 = vector.broadcast %8 : vector<1x128xf32> to vector<256x128xf32>
    %10 = arith.mulf %7, %9 : vector<256x128xf32>
    %11 = arith.addf %6, %10 : vector<256x128xf32>
    %c0_9 = arith.constant 0 : index
    %c0_10 = arith.constant 0 : index
    %12 = vector.load %arg6[%c0_9, %c0_10] : memref<1x128xf32, #tpu.memory_space<vmem>>, vector<1x128xf32>
    %13 = vector.broadcast %12 : vector<1x128xf32> to vector<256x128xf32>
    %14 = arith.addf %11, %13 : vector<256x128xf32>
    %cst = arith.constant 0.000000e+00 : f32
    %cst_11 = arith.constant 6.000000e+00 : f32
    %15 = vector.broadcast %cst : f32 to vector<256x128xf32>
    %16 = arith.maximumf %15, %14 : vector<256x128xf32>
    %17 = vector.broadcast %cst_11 : f32 to vector<256x128xf32>
    %18 = arith.minimumf %17, %16 : vector<256x128xf32>
    %c0_12 = arith.constant 0 : index
    %c0_13 = arith.constant 0 : index
    %19 = vector.load %arg7[%c0_12, %c0_13] : memref<256x128xf32, #tpu.memory_space<vmem>>, vector<256x128xf32>
    tpu.vector_store %arg7[%c0_12, %c0_13], %18 {strides = array<i32>} : memref<256x128xf32, #tpu.memory_space<vmem>>, vector<256x128xf32>,
    %20 = tpu.iota {dimensions = array<i32: 0>} : vector<256x128xi32>
    %c256_i32 = arith.constant 256 : i32
    %21 = arith.muli %arg0, %c256_i32 : i32
    %22 = vector.broadcast %21 : i32 to vector<256x128xi32>
    %23 = arith.addi %20, %22 : vector<256x128xi32>
    %c450_i32 = arith.constant 450 : i32
    %24 = vector.broadcast %c450_i32 : i32 to vector<256x128xi32>
    %25 = arith.cmpi slt, %23, %24 : vector<256x128xi32>
    %cst_14 = arith.constant 0.000000e+00 : f32
    %26 = vector.broadcast %cst_14 : f32 to vector<256x128xf32>
    %27 = arith.select %25, %18, %26 : vector<256x128xi1>, vector<256x128xf32>
    %cst_15 = arith.constant dense<0.000000e+00> : vector<128xf32>
    %28 = vector.multi_reduction <add>, %27, %cst_15 [0] : vector<256x128xf32> to vector<128xf32>
    %29 = vector.shape_cast %28 : vector<128xf32> to vector<1x128xf32>
    %30 = arith.mulf %27, %27 : vector<256x128xf32>
    %cst_16 = arith.constant dense<0.000000e+00> : vector<128xf32>
    %31 = vector.multi_reduction <add>, %30, %cst_16 [0] : vector<256x128xf32> to vector<128xf32>
    %32 = vector.shape_cast %31 : vector<128xf32> to vector<1x128xf32>
    %cst_17 = arith.constant 0.000000e+00 : f32
    %33 = vector.broadcast %cst_17 : f32 to vector<6x128xf32>
    %34 = tpu.concatenate %29, %32, %33 in 0 : vector<1x128xf32>, vector<1x128xf32>, vector<6x128xf32> -> vector<8x128xf32>
    %c0_18 = arith.constant 0 : index
    %c0_19 = arith.constant 0 : index
    %35 = vector.load %arg8[%c0_18, %c0_19] : memref<8x128xf32, #tpu.memory_space<vmem>>, vector<8x128xf32>
    tpu.vector_store %arg8[%c0_18, %c0_19], %34 {strides = array<i32>} : memref<8x128xf32, #tpu.memory_space<vmem>>, vector<8x128xf32>,
    return
  }
  func.func @transform_0(%arg0: i32) -> (i32, i32) {
    %c0_i32 = arith.constant 0 : i32
    %c0_i32_0 = arith.constant 0 : i32
    return %arg0, %c0_i32 : i32, i32
  }
  func.func @transform_1(%arg0: i32) -> (i32, i32) {
    %c0_i32 = arith.constant 0 : i32
    %c0_i32_0 = arith.constant 0 : i32
    %c0_i32_1 = arith.constant 0 : i32
    return %c0_i32, %c0_i32_0 : i32, i32
  }
  func.func @transform_2(%arg0: i32) -> (i32, i32) {
    %c0_i32 = arith.constant 0 : i32
    %c0_i32_0 = arith.constant 0 : i32
    %c0_i32_1 = arith.constant 0 : i32
    return %c0_i32, %c0_i32_0 : i32, i32
  }
  func.func @transform_3(%arg0: i32) -> (i32, i32) {
    %c0_i32 = arith.constant 0 : i32
    %c0_i32_0 = arith.constant 0 : i32
    return %arg0, %c0_i32 : i32, i32
  }
  func.func @transform_4(%arg0: i32) -> (i32, i32) {
    %c0_i32 = arith.constant 0 : i32
    %c0_i32_0 = arith.constant 0 : i32
    %c0_i32_1 = arith.constant 0 : i32
    return %c0_i32, %c0_i32_0 : i32, i32
  }
  func.func @transform_5(%arg0: i32) -> (i32, i32) {
    %c0_i32 = arith.constant 0 : i32
    %c0_i32_0 = arith.constant 0 : i32
    %c0_i32_1 = arith.constant 0 : i32
    return %c0_i32, %c0_i32_0 : i32, i32
  }
  func.func @transform_6(%arg0: i32) -> (i32, i32) {
    %c0_i32 = arith.constant 0 : i32
    %c0_i32_0 = arith.constant 0 : i32
    return %arg0, %c0_i32 : i32, i32
  }
  func.func @transform_7(%arg0: i32) -> (i32, i32) {
    %c0_i32 = arith.constant 0 : i32
    %c0_i32_0 = arith.constant 0 : i32
    return %arg0, %c0_i32 : i32, i32
  }
}

module attributes {stable_mosaic.version = 11 : i64} {
  func.func @_bn_act_kernel(%arg0: i32, %arg1: memref<256x128xf32, #tpu.memory_space<vmem>>, %arg2: memref<1x128xf32, #tpu.memory_space<vmem>>, %arg3: memref<1x128xf32, #tpu.memory_space<vmem>>, %arg4: memref<256x128xf32, #tpu.memory_space<vmem>>) attributes {dimension_semantics = [#tpu.dimension_semantics<parallel>], iteration_bounds = array<i64: 2>, scalar_prefetch = 0 : i64, scratch_operands = 0 : i64, tpu.core_type = #tpu.core_type<tc>, window_params = [{transform_indices = @transform_0, window_bounds = array<i64: 256, 128>}, {pipeline_mode = #tpu.pipeline_mode<synchronous>, transform_indices = @transform_1, window_bounds = array<i64: 1, 128>}, {pipeline_mode = #tpu.pipeline_mode<synchronous>, transform_indices = @transform_2, window_bounds = array<i64: 1, 128>}, {transform_indices = @transform_3, window_bounds = array<i64: 256, 128>}]} {
    %c0 = arith.constant 0 : index
    %c0_0 = arith.constant 0 : index
    %0 = vector.load %arg1[%c0, %c0_0] : memref<256x128xf32, #tpu.memory_space<vmem>>, vector<256x128xf32>
    %c0_1 = arith.constant 0 : index
    %c0_2 = arith.constant 0 : index
    %1 = vector.load %arg2[%c0_1, %c0_2] : memref<1x128xf32, #tpu.memory_space<vmem>>, vector<1x128xf32>
    %2 = vector.broadcast %1 : vector<1x128xf32> to vector<256x128xf32>
    %3 = arith.mulf %0, %2 : vector<256x128xf32>
    %c0_3 = arith.constant 0 : index
    %c0_4 = arith.constant 0 : index
    %4 = vector.load %arg3[%c0_3, %c0_4] : memref<1x128xf32, #tpu.memory_space<vmem>>, vector<1x128xf32>
    %5 = vector.broadcast %4 : vector<1x128xf32> to vector<256x128xf32>
    %6 = arith.addf %3, %5 : vector<256x128xf32>
    %c0_5 = arith.constant 0 : index
    %c0_6 = arith.constant 0 : index
    %7 = vector.load %arg4[%c0_5, %c0_6] : memref<256x128xf32, #tpu.memory_space<vmem>>, vector<256x128xf32>
    tpu.vector_store %arg4[%c0_5, %c0_6], %6 {strides = array<i32>} : memref<256x128xf32, #tpu.memory_space<vmem>>, vector<256x128xf32>,
    return
  }
  func.func @transform_0(%arg0: i32) -> (i32, i32) {
    %c0_i32 = arith.constant 0 : i32
    %c0_i32_0 = arith.constant 0 : i32
    return %arg0, %c0_i32 : i32, i32
  }
  func.func @transform_1(%arg0: i32) -> (i32, i32) {
    %c0_i32 = arith.constant 0 : i32
    %c0_i32_0 = arith.constant 0 : i32
    %c0_i32_1 = arith.constant 0 : i32
    return %c0_i32, %c0_i32_0 : i32, i32
  }
  func.func @transform_2(%arg0: i32) -> (i32, i32) {
    %c0_i32 = arith.constant 0 : i32
    %c0_i32_0 = arith.constant 0 : i32
    %c0_i32_1 = arith.constant 0 : i32
    return %c0_i32, %c0_i32_0 : i32, i32
  }
  func.func @transform_3(%arg0: i32) -> (i32, i32) {
    %c0_i32 = arith.constant 0 : i32
    %c0_i32_0 = arith.constant 0 : i32
    return %arg0, %c0_i32 : i32, i32
  }
}

module attributes {stable_mosaic.version = 11 : i64} {
  func.func @_bn_add_relu6_kernel(%arg0: i32, %arg1: memref<256x128xf32, #tpu.memory_space<vmem>>, %arg2: memref<1x128xf32, #tpu.memory_space<vmem>>, %arg3: memref<1x128xf32, #tpu.memory_space<vmem>>, %arg4: memref<256x128xf32, #tpu.memory_space<vmem>>, %arg5: memref<1x128xf32, #tpu.memory_space<vmem>>, %arg6: memref<1x128xf32, #tpu.memory_space<vmem>>, %arg7: memref<256x128xf32, #tpu.memory_space<vmem>>) attributes {dimension_semantics = [#tpu.dimension_semantics<parallel>], iteration_bounds = array<i64: 2>, scalar_prefetch = 0 : i64, scratch_operands = 0 : i64, tpu.core_type = #tpu.core_type<tc>, window_params = [{transform_indices = @transform_0, window_bounds = array<i64: 256, 128>}, {pipeline_mode = #tpu.pipeline_mode<synchronous>, transform_indices = @transform_1, window_bounds = array<i64: 1, 128>}, {pipeline_mode = #tpu.pipeline_mode<synchronous>, transform_indices = @transform_2, window_bounds = array<i64: 1, 128>}, {transform_indices = @transform_3, window_bounds = array<i64: 256, 128>}, {pipeline_mode = #tpu.pipeline_mode<synchronous>, transform_indices = @transform_4, window_bounds = array<i64: 1, 128>}, {pipeline_mode = #tpu.pipeline_mode<synchronous>, transform_indices = @transform_5, window_bounds = array<i64: 1, 128>}, {transform_indices = @transform_6, window_bounds = array<i64: 256, 128>}]} {
    %c0 = arith.constant 0 : index
    %c0_0 = arith.constant 0 : index
    %0 = vector.load %arg1[%c0, %c0_0] : memref<256x128xf32, #tpu.memory_space<vmem>>, vector<256x128xf32>
    %c0_1 = arith.constant 0 : index
    %c0_2 = arith.constant 0 : index
    %1 = vector.load %arg2[%c0_1, %c0_2] : memref<1x128xf32, #tpu.memory_space<vmem>>, vector<1x128xf32>
    %2 = vector.broadcast %1 : vector<1x128xf32> to vector<256x128xf32>
    %3 = arith.mulf %0, %2 : vector<256x128xf32>
    %c0_3 = arith.constant 0 : index
    %c0_4 = arith.constant 0 : index
    %4 = vector.load %arg3[%c0_3, %c0_4] : memref<1x128xf32, #tpu.memory_space<vmem>>, vector<1x128xf32>
    %5 = vector.broadcast %4 : vector<1x128xf32> to vector<256x128xf32>
    %6 = arith.addf %3, %5 : vector<256x128xf32>
    %c0_5 = arith.constant 0 : index
    %c0_6 = arith.constant 0 : index
    %7 = vector.load %arg4[%c0_5, %c0_6] : memref<256x128xf32, #tpu.memory_space<vmem>>, vector<256x128xf32>
    %c0_7 = arith.constant 0 : index
    %c0_8 = arith.constant 0 : index
    %8 = vector.load %arg5[%c0_7, %c0_8] : memref<1x128xf32, #tpu.memory_space<vmem>>, vector<1x128xf32>
    %9 = vector.broadcast %8 : vector<1x128xf32> to vector<256x128xf32>
    %10 = arith.mulf %7, %9 : vector<256x128xf32>
    %11 = arith.addf %6, %10 : vector<256x128xf32>
    %c0_9 = arith.constant 0 : index
    %c0_10 = arith.constant 0 : index
    %12 = vector.load %arg6[%c0_9, %c0_10] : memref<1x128xf32, #tpu.memory_space<vmem>>, vector<1x128xf32>
    %13 = vector.broadcast %12 : vector<1x128xf32> to vector<256x128xf32>
    %14 = arith.addf %11, %13 : vector<256x128xf32>
    %cst = arith.constant 0.000000e+00 : f32
    %cst_11 = arith.constant 6.000000e+00 : f32
    %15 = vector.broadcast %cst : f32 to vector<256x128xf32>
    %16 = arith.maximumf %15, %14 : vector<256x128xf32>
    %17 = vector.broadcast %cst_11 : f32 to vector<256x128xf32>
    %18 = arith.minimumf %17, %16 : vector<256x128xf32>
    %c0_12 = arith.constant 0 : index
    %c0_13 = arith.constant 0 : index
    %19 = vector.load %arg7[%c0_12, %c0_13] : memref<256x128xf32, #tpu.memory_space<vmem>>, vector<256x128xf32>
    tpu.vector_store %arg7[%c0_12, %c0_13], %18 {strides = array<i32>} : memref<256x128xf32, #tpu.memory_space<vmem>>, vector<256x128xf32>,
    return
  }
  func.func @transform_0(%arg0: i32) -> (i32, i32) {
    %c0_i32 = arith.constant 0 : i32
    %c0_i32_0 = arith.constant 0 : i32
    return %arg0, %c0_i32 : i32, i32
  }
  func.func @transform_1(%arg0: i32) -> (i32, i32) {
    %c0_i32 = arith.constant 0 : i32
    %c0_i32_0 = arith.constant 0 : i32
    %c0_i32_1 = arith.constant 0 : i32
    return %c0_i32, %c0_i32_0 : i32, i32
  }
  func.func @transform_2(%arg0: i32) -> (i32, i32) {
    %c0_i32 = arith.constant 0 : i32
    %c0_i32_0 = arith.constant 0 : i32
    %c0_i32_1 = arith.constant 0 : i32
    return %c0_i32, %c0_i32_0 : i32, i32
  }
  func.func @transform_3(%arg0: i32) -> (i32, i32) {
    %c0_i32 = arith.constant 0 : i32
    %c0_i32_0 = arith.constant 0 : i32
    return %arg0, %c0_i32 : i32, i32
  }
  func.func @transform_4(%arg0: i32) -> (i32, i32) {
    %c0_i32 = arith.constant 0 : i32
    %c0_i32_0 = arith.constant 0 : i32
    %c0_i32_1 = arith.constant 0 : i32
    return %c0_i32, %c0_i32_0 : i32, i32
  }
  func.func @transform_5(%arg0: i32) -> (i32, i32) {
    %c0_i32 = arith.constant 0 : i32
    %c0_i32_0 = arith.constant 0 : i32
    %c0_i32_1 = arith.constant 0 : i32
    return %c0_i32, %c0_i32_0 : i32, i32
  }
  func.func @transform_6(%arg0: i32) -> (i32, i32) {
    %c0_i32 = arith.constant 0 : i32
    %c0_i32_0 = arith.constant 0 : i32
    return %arg0, %c0_i32 : i32, i32
  }
}

module attributes {stable_mosaic.version = 11 : i64} {
  func.func @_mm_kernel(%arg0: i32, %arg1: i32, %arg2: i32, %arg3: memref<256x128xbf16, #tpu.memory_space<vmem>>, %arg4: memref<128x128xbf16, #tpu.memory_space<vmem>>, %arg5: memref<1x128xf32, #tpu.memory_space<vmem>>, %arg6: memref<256x128xf32, #tpu.memory_space<vmem>>, %arg7: memref<256x128xf32, #tpu.memory_space<vmem>>) attributes {dimension_semantics = [#tpu.dimension_semantics<parallel>, #tpu.dimension_semantics<parallel>, #tpu.dimension_semantics<arbitrary>], iteration_bounds = array<i64: 1, 1, 1>, scalar_prefetch = 0 : i64, scratch_operands = 1 : i64, tpu.core_type = #tpu.core_type<tc>, window_params = [{transform_indices = @transform_0, window_bounds = array<i64: 256, 128>}, {transform_indices = @transform_1, window_bounds = array<i64: 128, 128>}, {transform_indices = @transform_2, window_bounds = array<i64: 1, 128>}, {transform_indices = @transform_3, window_bounds = array<i64: 256, 128>}]} {
    %c0_i32 = arith.constant 0 : i32
    %0 = arith.cmpi eq, %arg2, %c0_i32 : i32
    %1 = arith.extui %0 : i1 to i32
    %c0_i32_0 = arith.constant 0 : i32
    %2 = arith.cmpi ne, %1, %c0_i32_0 : i32
    scf.if %2 {
      %cst_10 = arith.constant 0.000000e+00 : f32
      %12 = vector.broadcast %cst_10 : f32 to vector<256x128xf32>
      %c0_11 = arith.constant 0 : index
      %c0_12 = arith.constant 0 : index
      %13 = vector.load %arg7[%c0_11, %c0_12] : memref<256x128xf32, #tpu.memory_space<vmem>>, vector<256x128xf32>
      tpu.vector_store %arg7[%c0_11, %c0_12], %12 {strides = array<i32>} : memref<256x128xf32, #tpu.memory_space<vmem>>, vector<256x128xf32>,
    } else {
    }
    %c0 = arith.constant 0 : index
    %c0_1 = arith.constant 0 : index
    %3 = vector.load %arg7[%c0, %c0_1] : memref<256x128xf32, #tpu.memory_space<vmem>>, vector<256x128xf32>
    %c0_2 = arith.constant 0 : index
    %c0_3 = arith.constant 0 : index
    %4 = vector.load %arg3[%c0_2, %c0_3] : memref<256x128xbf16, #tpu.memory_space<vmem>>, vector<256x128xbf16>
    %c0_4 = arith.constant 0 : index
    %c0_5 = arith.constant 0 : index
    %5 = vector.load %arg4[%c0_4, %c0_5] : memref<128x128xbf16, #tpu.memory_space<vmem>>, vector<128x128xbf16>
    %cst = arith.constant dense<0.000000e+00> : vector<256x128xf32>
    %6 = tpu.matmul %4, %5, %cst {dimension_numbers = #tpu.dot_dimension_numbers<[1], [0], [0], [1], [0, 0, 1, 1], [], []>} : vector<256x128xbf16>, vector<128x128xbf16>, vector<256x128xf32> -> vector<256x128xf32>
    %7 = arith.addf %3, %6 : vector<256x128xf32>
    %c0_6 = arith.constant 0 : index
    %c0_7 = arith.constant 0 : index
    %8 = vector.load %arg7[%c0_6, %c0_7] : memref<256x128xf32, #tpu.memory_space<vmem>>, vector<256x128xf32>
    tpu.vector_store %arg7[%c0_6, %c0_7], %7 {strides = array<i32>} : memref<256x128xf32, #tpu.memory_space<vmem>>, vector<256x128xf32>,
    %c0_i32_8 = arith.constant 0 : i32
    %9 = arith.cmpi eq, %arg2, %c0_i32_8 : i32
    %10 = arith.extui %9 : i1 to i32
    %c0_i32_9 = arith.constant 0 : i32
    %11 = arith.cmpi ne, %10, %c0_i32_9 : i32
    scf.if %11 {
      %c0_10 = arith.constant 0 : index
      %c0_11 = arith.constant 0 : index
      %12 = vector.load %arg7[%c0_10, %c0_11] : memref<256x128xf32, #tpu.memory_space<vmem>>, vector<256x128xf32>
      %c0_12 = arith.constant 0 : index
      %c0_13 = arith.constant 0 : index
      %13 = vector.load %arg5[%c0_12, %c0_13] : memref<1x128xf32, #tpu.memory_space<vmem>>, vector<1x128xf32>
      %14 = vector.broadcast %13 : vector<1x128xf32> to vector<256x128xf32>
      %15 = arith.mulf %12, %14 : vector<256x128xf32>
      %cst_14 = arith.constant 0.000000e+00 : f32
      %16 = vector.broadcast %cst_14 : f32 to vector<256x128xf32>
      %17 = arith.maximumf %15, %16 : vector<256x128xf32>
      %c0_15 = arith.constant 0 : index
      %c0_16 = arith.constant 0 : index
      %18 = vector.load %arg6[%c0_15, %c0_16] : memref<256x128xf32, #tpu.memory_space<vmem>>, vector<256x128xf32>
      tpu.vector_store %arg6[%c0_15, %c0_16], %17 {strides = array<i32>} : memref<256x128xf32, #tpu.memory_space<vmem>>, vector<256x128xf32>,
    } else {
    }
    return
  }
  func.func @transform_0(%arg0: i32, %arg1: i32, %arg2: i32) -> (i32, i32) {
    %c0_i32 = arith.constant 0 : i32
    return %arg0, %arg2 : i32, i32
  }
  func.func @transform_1(%arg0: i32, %arg1: i32, %arg2: i32) -> (i32, i32) {
    %c0_i32 = arith.constant 0 : i32
    return %arg2, %arg1 : i32, i32
  }
  func.func @transform_2(%arg0: i32, %arg1: i32, %arg2: i32) -> (i32, i32) {
    %c0_i32 = arith.constant 0 : i32
    %c0_i32_0 = arith.constant 0 : i32
    return %c0_i32, %arg1 : i32, i32
  }
  func.func @transform_3(%arg0: i32, %arg1: i32, %arg2: i32) -> (i32, i32) {
    %c0_i32 = arith.constant 0 : i32
    return %arg0, %arg1 : i32, i32
  }
}

module attributes {stable_mosaic.version = 11 : i64} {
  func.func @_mm_kernel(%arg0: i32, %arg1: i32, %arg2: i32, %arg3: memref<256x256xbf16, #tpu.memory_space<vmem>>, %arg4: memref<256x128xbf16, #tpu.memory_space<vmem>>, %arg5: memref<1x128xf32, #tpu.memory_space<vmem>>, %arg6: memref<256x128xf32, #tpu.memory_space<vmem>>, %arg7: memref<8x128xf32, #tpu.memory_space<vmem>>, %arg8: memref<256x128xf32, #tpu.memory_space<vmem>>) attributes {dimension_semantics = [#tpu.dimension_semantics<parallel>, #tpu.dimension_semantics<parallel>, #tpu.dimension_semantics<arbitrary>], iteration_bounds = array<i64: 1, 1, 1>, scalar_prefetch = 0 : i64, scratch_operands = 1 : i64, tpu.core_type = #tpu.core_type<tc>, window_params = [{transform_indices = @transform_0, window_bounds = array<i64: 256, 256>}, {transform_indices = @transform_1, window_bounds = array<i64: 256, 128>}, {transform_indices = @transform_2, window_bounds = array<i64: 1, 128>}, {transform_indices = @transform_3, window_bounds = array<i64: 256, 128>}, {transform_indices = @transform_4, window_bounds = array<i64: 8, 128>}]} {
    %c0_i32 = arith.constant 0 : i32
    %0 = arith.cmpi eq, %arg2, %c0_i32 : i32
    %1 = arith.extui %0 : i1 to i32
    %c0_i32_0 = arith.constant 0 : i32
    %2 = arith.cmpi ne, %1, %c0_i32_0 : i32
    scf.if %2 {
      %cst_10 = arith.constant 0.000000e+00 : f32
      %12 = vector.broadcast %cst_10 : f32 to vector<256x128xf32>
      %c0_11 = arith.constant 0 : index
      %c0_12 = arith.constant 0 : index
      %13 = vector.load %arg8[%c0_11, %c0_12] : memref<256x128xf32, #tpu.memory_space<vmem>>, vector<256x128xf32>
      tpu.vector_store %arg8[%c0_11, %c0_12], %12 {strides = array<i32>} : memref<256x128xf32, #tpu.memory_space<vmem>>, vector<256x128xf32>,
    } else {
    }
    %c0 = arith.constant 0 : index
    %c0_1 = arith.constant 0 : index
    %3 = vector.load %arg8[%c0, %c0_1] : memref<256x128xf32, #tpu.memory_space<vmem>>, vector<256x128xf32>
    %c0_2 = arith.constant 0 : index
    %c0_3 = arith.constant 0 : index
    %4 = vector.load %arg3[%c0_2, %c0_3] : memref<256x256xbf16, #tpu.memory_space<vmem>>, vector<256x256xbf16>
    %c0_4 = arith.constant 0 : index
    %c0_5 = arith.constant 0 : index
    %5 = vector.load %arg4[%c0_4, %c0_5] : memref<256x128xbf16, #tpu.memory_space<vmem>>, vector<256x128xbf16>
    %cst = arith.constant dense<0.000000e+00> : vector<256x128xf32>
    %6 = tpu.matmul %4, %5, %cst {dimension_numbers = #tpu.dot_dimension_numbers<[1], [0], [0], [1], [0, 0, 1, 1], [], []>} : vector<256x256xbf16>, vector<256x128xbf16>, vector<256x128xf32> -> vector<256x128xf32>
    %7 = arith.addf %3, %6 : vector<256x128xf32>
    %c0_6 = arith.constant 0 : index
    %c0_7 = arith.constant 0 : index
    %8 = vector.load %arg8[%c0_6, %c0_7] : memref<256x128xf32, #tpu.memory_space<vmem>>, vector<256x128xf32>
    tpu.vector_store %arg8[%c0_6, %c0_7], %7 {strides = array<i32>} : memref<256x128xf32, #tpu.memory_space<vmem>>, vector<256x128xf32>,
    %c0_i32_8 = arith.constant 0 : i32
    %9 = arith.cmpi eq, %arg2, %c0_i32_8 : i32
    %10 = arith.extui %9 : i1 to i32
    %c0_i32_9 = arith.constant 0 : i32
    %11 = arith.cmpi ne, %10, %c0_i32_9 : i32
    scf.if %11 {
      %c0_10 = arith.constant 0 : index
      %c0_11 = arith.constant 0 : index
      %12 = vector.load %arg8[%c0_10, %c0_11] : memref<256x128xf32, #tpu.memory_space<vmem>>, vector<256x128xf32>
      %c0_12 = arith.constant 0 : index
      %c0_13 = arith.constant 0 : index
      %13 = vector.load %arg5[%c0_12, %c0_13] : memref<1x128xf32, #tpu.memory_space<vmem>>, vector<1x128xf32>
      %14 = vector.broadcast %13 : vector<1x128xf32> to vector<256x128xf32>
      %15 = arith.mulf %12, %14 : vector<256x128xf32>
      %c0_14 = arith.constant 0 : index
      %c0_15 = arith.constant 0 : index
      %16 = vector.load %arg6[%c0_14, %c0_15] : memref<256x128xf32, #tpu.memory_space<vmem>>, vector<256x128xf32>
      tpu.vector_store %arg6[%c0_14, %c0_15], %15 {strides = array<i32>} : memref<256x128xf32, #tpu.memory_space<vmem>>, vector<256x128xf32>,
      %cst_16 = arith.constant dense<0.000000e+00> : vector<128xf32>
      %17 = vector.multi_reduction <add>, %15, %cst_16 [0] : vector<256x128xf32> to vector<128xf32>
      %18 = vector.shape_cast %17 : vector<128xf32> to vector<1x128xf32>
      %19 = arith.mulf %15, %15 : vector<256x128xf32>
      %cst_17 = arith.constant dense<0.000000e+00> : vector<128xf32>
      %20 = vector.multi_reduction <add>, %19, %cst_17 [0] : vector<256x128xf32> to vector<128xf32>
      %21 = vector.shape_cast %20 : vector<128xf32> to vector<1x128xf32>
      %cst_18 = arith.constant 0.000000e+00 : f32
      %22 = vector.broadcast %cst_18 : f32 to vector<6x128xf32>
      %23 = tpu.concatenate %18, %21, %22 in 0 : vector<1x128xf32>, vector<1x128xf32>, vector<6x128xf32> -> vector<8x128xf32>
      %c0_19 = arith.constant 0 : index
      %c0_20 = arith.constant 0 : index
      %24 = vector.load %arg7[%c0_19, %c0_20] : memref<8x128xf32, #tpu.memory_space<vmem>>, vector<8x128xf32>
      tpu.vector_store %arg7[%c0_19, %c0_20], %23 {strides = array<i32>} : memref<8x128xf32, #tpu.memory_space<vmem>>, vector<8x128xf32>,
    } else {
    }
    return
  }
  func.func @transform_0(%arg0: i32, %arg1: i32, %arg2: i32) -> (i32, i32) {
    %c0_i32 = arith.constant 0 : i32
    return %arg0, %arg2 : i32, i32
  }
  func.func @transform_1(%arg0: i32, %arg1: i32, %arg2: i32) -> (i32, i32) {
    %c0_i32 = arith.constant 0 : i32
    return %arg2, %arg1 : i32, i32
  }
  func.func @transform_2(%arg0: i32, %arg1: i32, %arg2: i32) -> (i32, i32) {
    %c0_i32 = arith.constant 0 : i32
    %c0_i32_0 = arith.constant 0 : i32
    return %c0_i32, %arg1 : i32, i32
  }
  func.func @transform_3(%arg0: i32, %arg1: i32, %arg2: i32) -> (i32, i32) {
    %c0_i32 = arith.constant 0 : i32
    return %arg0, %arg1 : i32, i32
  }
  func.func @transform_4(%arg0: i32, %arg1: i32, %arg2: i32) -> (i32, i32) {
    %c0_i32 = arith.constant 0 : i32
    return %arg0, %arg1 : i32, i32
  }
}

module attributes {stable_mosaic.version = 11 : i64} {
  func.func @_bn_act_kernel(%arg0: i32, %arg1: memref<256x128xf32, #tpu.memory_space<vmem>>, %arg2: memref<1x128xf32, #tpu.memory_space<vmem>>, %arg3: memref<1x128xf32, #tpu.memory_space<vmem>>, %arg4: memref<256x128xf32, #tpu.memory_space<vmem>>) attributes {dimension_semantics = [#tpu.dimension_semantics<parallel>], iteration_bounds = array<i64: 1>, scalar_prefetch = 0 : i64, scratch_operands = 0 : i64, tpu.core_type = #tpu.core_type<tc>, window_params = [{transform_indices = @transform_0, window_bounds = array<i64: 256, 128>}, {pipeline_mode = #tpu.pipeline_mode<synchronous>, transform_indices = @transform_1, window_bounds = array<i64: 1, 128>}, {pipeline_mode = #tpu.pipeline_mode<synchronous>, transform_indices = @transform_2, window_bounds = array<i64: 1, 128>}, {transform_indices = @transform_3, window_bounds = array<i64: 256, 128>}]} {
    %c0 = arith.constant 0 : index
    %c0_0 = arith.constant 0 : index
    %0 = vector.load %arg1[%c0, %c0_0] : memref<256x128xf32, #tpu.memory_space<vmem>>, vector<256x128xf32>
    %c0_1 = arith.constant 0 : index
    %c0_2 = arith.constant 0 : index
    %1 = vector.load %arg2[%c0_1, %c0_2] : memref<1x128xf32, #tpu.memory_space<vmem>>, vector<1x128xf32>
    %2 = vector.broadcast %1 : vector<1x128xf32> to vector<256x128xf32>
    %3 = arith.mulf %0, %2 : vector<256x128xf32>
    %c0_3 = arith.constant 0 : index
    %c0_4 = arith.constant 0 : index
    %4 = vector.load %arg3[%c0_3, %c0_4] : memref<1x128xf32, #tpu.memory_space<vmem>>, vector<1x128xf32>
    %5 = vector.broadcast %4 : vector<1x128xf32> to vector<256x128xf32>
    %6 = arith.addf %3, %5 : vector<256x128xf32>
    %cst = arith.constant 0.000000e+00 : f32
    %cst_5 = arith.constant 6.000000e+00 : f32
    %7 = vector.broadcast %cst : f32 to vector<256x128xf32>
    %8 = arith.maximumf %7, %6 : vector<256x128xf32>
    %9 = vector.broadcast %cst_5 : f32 to vector<256x128xf32>
    %10 = arith.minimumf %9, %8 : vector<256x128xf32>
    %c0_6 = arith.constant 0 : index
    %c0_7 = arith.constant 0 : index
    %11 = vector.load %arg4[%c0_6, %c0_7] : memref<256x128xf32, #tpu.memory_space<vmem>>, vector<256x128xf32>
    tpu.vector_store %arg4[%c0_6, %c0_7], %10 {strides = array<i32>} : memref<256x128xf32, #tpu.memory_space<vmem>>, vector<256x128xf32>,
    return
  }
  func.func @transform_0(%arg0: i32) -> (i32, i32) {
    %c0_i32 = arith.constant 0 : i32
    %c0_i32_0 = arith.constant 0 : i32
    return %arg0, %c0_i32 : i32, i32
  }
  func.func @transform_1(%arg0: i32) -> (i32, i32) {
    %c0_i32 = arith.constant 0 : i32
    %c0_i32_0 = arith.constant 0 : i32
    %c0_i32_1 = arith.constant 0 : i32
    return %c0_i32, %c0_i32_0 : i32, i32
  }
  func.func @transform_2(%arg0: i32) -> (i32, i32) {
    %c0_i32 = arith.constant 0 : i32
    %c0_i32_0 = arith.constant 0 : i32
    %c0_i32_1 = arith.constant 0 : i32
    return %c0_i32, %c0_i32_0 : i32, i32
  }
  func.func @transform_3(%arg0: i32) -> (i32, i32) {
    %c0_i32 = arith.constant 0 : i32
    %c0_i32_0 = arith.constant 0 : i32
    return %arg0, %c0_i32 : i32, i32
  }
}

module attributes {stable_mosaic.version = 11 : i64} {
  func.func @_mm_kernel(%arg0: i32, %arg1: i32, %arg2: i32, %arg3: memref<256x128xbf16, #tpu.memory_space<vmem>>, %arg4: memref<128x128xbf16, #tpu.memory_space<vmem>>, %arg5: memref<1x128xf32, #tpu.memory_space<vmem>>, %arg6: memref<256x128xf32, #tpu.memory_space<vmem>>, %arg7: memref<8x128xf32, #tpu.memory_space<vmem>>, %arg8: memref<256x128xf32, #tpu.memory_space<vmem>>) attributes {dimension_semantics = [#tpu.dimension_semantics<parallel>, #tpu.dimension_semantics<parallel>, #tpu.dimension_semantics<arbitrary>], iteration_bounds = array<i64: 1, 1, 1>, scalar_prefetch = 0 : i64, scratch_operands = 1 : i64, tpu.core_type = #tpu.core_type<tc>, window_params = [{transform_indices = @transform_0, window_bounds = array<i64: 256, 128>}, {transform_indices = @transform_1, window_bounds = array<i64: 128, 128>}, {transform_indices = @transform_2, window_bounds = array<i64: 1, 128>}, {transform_indices = @transform_3, window_bounds = array<i64: 256, 128>}, {transform_indices = @transform_4, window_bounds = array<i64: 8, 128>}]} {
    %c0_i32 = arith.constant 0 : i32
    %0 = arith.cmpi eq, %arg2, %c0_i32 : i32
    %1 = arith.extui %0 : i1 to i32
    %c0_i32_0 = arith.constant 0 : i32
    %2 = arith.cmpi ne, %1, %c0_i32_0 : i32
    scf.if %2 {
      %cst_10 = arith.constant 0.000000e+00 : f32
      %12 = vector.broadcast %cst_10 : f32 to vector<256x128xf32>
      %c0_11 = arith.constant 0 : index
      %c0_12 = arith.constant 0 : index
      %13 = vector.load %arg8[%c0_11, %c0_12] : memref<256x128xf32, #tpu.memory_space<vmem>>, vector<256x128xf32>
      tpu.vector_store %arg8[%c0_11, %c0_12], %12 {strides = array<i32>} : memref<256x128xf32, #tpu.memory_space<vmem>>, vector<256x128xf32>,
    } else {
    }
    %c0 = arith.constant 0 : index
    %c0_1 = arith.constant 0 : index
    %3 = vector.load %arg8[%c0, %c0_1] : memref<256x128xf32, #tpu.memory_space<vmem>>, vector<256x128xf32>
    %c0_2 = arith.constant 0 : index
    %c0_3 = arith.constant 0 : index
    %4 = vector.load %arg3[%c0_2, %c0_3] : memref<256x128xbf16, #tpu.memory_space<vmem>>, vector<256x128xbf16>
    %c0_4 = arith.constant 0 : index
    %c0_5 = arith.constant 0 : index
    %5 = vector.load %arg4[%c0_4, %c0_5] : memref<128x128xbf16, #tpu.memory_space<vmem>>, vector<128x128xbf16>
    %cst = arith.constant dense<0.000000e+00> : vector<256x128xf32>
    %6 = tpu.matmul %4, %5, %cst {dimension_numbers = #tpu.dot_dimension_numbers<[1], [0], [0], [1], [0, 0, 1, 1], [], []>} : vector<256x128xbf16>, vector<128x128xbf16>, vector<256x128xf32> -> vector<256x128xf32>
    %7 = arith.addf %3, %6 : vector<256x128xf32>
    %c0_6 = arith.constant 0 : index
    %c0_7 = arith.constant 0 : index
    %8 = vector.load %arg8[%c0_6, %c0_7] : memref<256x128xf32, #tpu.memory_space<vmem>>, vector<256x128xf32>
    tpu.vector_store %arg8[%c0_6, %c0_7], %7 {strides = array<i32>} : memref<256x128xf32, #tpu.memory_space<vmem>>, vector<256x128xf32>,
    %c0_i32_8 = arith.constant 0 : i32
    %9 = arith.cmpi eq, %arg2, %c0_i32_8 : i32
    %10 = arith.extui %9 : i1 to i32
    %c0_i32_9 = arith.constant 0 : i32
    %11 = arith.cmpi ne, %10, %c0_i32_9 : i32
    scf.if %11 {
      %c0_10 = arith.constant 0 : index
      %c0_11 = arith.constant 0 : index
      %12 = vector.load %arg8[%c0_10, %c0_11] : memref<256x128xf32, #tpu.memory_space<vmem>>, vector<256x128xf32>
      %c0_12 = arith.constant 0 : index
      %c0_13 = arith.constant 0 : index
      %13 = vector.load %arg5[%c0_12, %c0_13] : memref<1x128xf32, #tpu.memory_space<vmem>>, vector<1x128xf32>
      %14 = vector.broadcast %13 : vector<1x128xf32> to vector<256x128xf32>
      %15 = arith.mulf %12, %14 : vector<256x128xf32>
      %c0_14 = arith.constant 0 : index
      %c0_15 = arith.constant 0 : index
      %16 = vector.load %arg6[%c0_14, %c0_15] : memref<256x128xf32, #tpu.memory_space<vmem>>, vector<256x128xf32>
      tpu.vector_store %arg6[%c0_14, %c0_15], %15 {strides = array<i32>} : memref<256x128xf32, #tpu.memory_space<vmem>>, vector<256x128xf32>,
      %cst_16 = arith.constant dense<0.000000e+00> : vector<128xf32>
      %17 = vector.multi_reduction <add>, %15, %cst_16 [0] : vector<256x128xf32> to vector<128xf32>
      %18 = vector.shape_cast %17 : vector<128xf32> to vector<1x128xf32>
      %19 = arith.mulf %15, %15 : vector<256x128xf32>
      %cst_17 = arith.constant dense<0.000000e+00> : vector<128xf32>
      %20 = vector.multi_reduction <add>, %19, %cst_17 [0] : vector<256x128xf32> to vector<128xf32>
      %21 = vector.shape_cast %20 : vector<128xf32> to vector<1x128xf32>
      %cst_18 = arith.constant 0.000000e+00 : f32
      %22 = vector.broadcast %cst_18 : f32 to vector<6x128xf32>
      %23 = tpu.concatenate %18, %21, %22 in 0 : vector<1x128xf32>, vector<1x128xf32>, vector<6x128xf32> -> vector<8x128xf32>
      %c0_19 = arith.constant 0 : index
      %c0_20 = arith.constant 0 : index
      %24 = vector.load %arg7[%c0_19, %c0_20] : memref<8x128xf32, #tpu.memory_space<vmem>>, vector<8x128xf32>
      tpu.vector_store %arg7[%c0_19, %c0_20], %23 {strides = array<i32>} : memref<8x128xf32, #tpu.memory_space<vmem>>, vector<8x128xf32>,
    } else {
    }
    return
  }
  func.func @transform_0(%arg0: i32, %arg1: i32, %arg2: i32) -> (i32, i32) {
    %c0_i32 = arith.constant 0 : i32
    return %arg0, %arg2 : i32, i32
  }
  func.func @transform_1(%arg0: i32, %arg1: i32, %arg2: i32) -> (i32, i32) {
    %c0_i32 = arith.constant 0 : i32
    return %arg2, %arg1 : i32, i32
  }
  func.func @transform_2(%arg0: i32, %arg1: i32, %arg2: i32) -> (i32, i32) {
    %c0_i32 = arith.constant 0 : i32
    %c0_i32_0 = arith.constant 0 : i32
    return %c0_i32, %arg1 : i32, i32
  }
  func.func @transform_3(%arg0: i32, %arg1: i32, %arg2: i32) -> (i32, i32) {
    %c0_i32 = arith.constant 0 : i32
    return %arg0, %arg1 : i32, i32
  }
  func.func @transform_4(%arg0: i32, %arg1: i32, %arg2: i32) -> (i32, i32) {
    %c0_i32 = arith.constant 0 : i32
    return %arg0, %arg1 : i32, i32
  }
}

module attributes {stable_mosaic.version = 11 : i64} {
  func.func @_bn_add_relu6_kernel(%arg0: i32, %arg1: memref<256x128xf32, #tpu.memory_space<vmem>>, %arg2: memref<1x128xf32, #tpu.memory_space<vmem>>, %arg3: memref<1x128xf32, #tpu.memory_space<vmem>>, %arg4: memref<256x128xf32, #tpu.memory_space<vmem>>, %arg5: memref<1x128xf32, #tpu.memory_space<vmem>>, %arg6: memref<1x128xf32, #tpu.memory_space<vmem>>, %arg7: memref<256x128xf32, #tpu.memory_space<vmem>>, %arg8: memref<8x128xf32, #tpu.memory_space<vmem>>) attributes {dimension_semantics = [#tpu.dimension_semantics<parallel>], iteration_bounds = array<i64: 1>, scalar_prefetch = 0 : i64, scratch_operands = 0 : i64, tpu.core_type = #tpu.core_type<tc>, window_params = [{transform_indices = @transform_0, window_bounds = array<i64: 256, 128>}, {pipeline_mode = #tpu.pipeline_mode<synchronous>, transform_indices = @transform_1, window_bounds = array<i64: 1, 128>}, {pipeline_mode = #tpu.pipeline_mode<synchronous>, transform_indices = @transform_2, window_bounds = array<i64: 1, 128>}, {transform_indices = @transform_3, window_bounds = array<i64: 256, 128>}, {pipeline_mode = #tpu.pipeline_mode<synchronous>, transform_indices = @transform_4, window_bounds = array<i64: 1, 128>}, {pipeline_mode = #tpu.pipeline_mode<synchronous>, transform_indices = @transform_5, window_bounds = array<i64: 1, 128>}, {transform_indices = @transform_6, window_bounds = array<i64: 256, 128>}, {transform_indices = @transform_7, window_bounds = array<i64: 8, 128>}]} {
    %c0 = arith.constant 0 : index
    %c0_0 = arith.constant 0 : index
    %0 = vector.load %arg1[%c0, %c0_0] : memref<256x128xf32, #tpu.memory_space<vmem>>, vector<256x128xf32>
    %c0_1 = arith.constant 0 : index
    %c0_2 = arith.constant 0 : index
    %1 = vector.load %arg2[%c0_1, %c0_2] : memref<1x128xf32, #tpu.memory_space<vmem>>, vector<1x128xf32>
    %2 = vector.broadcast %1 : vector<1x128xf32> to vector<256x128xf32>
    %3 = arith.mulf %0, %2 : vector<256x128xf32>
    %c0_3 = arith.constant 0 : index
    %c0_4 = arith.constant 0 : index
    %4 = vector.load %arg3[%c0_3, %c0_4] : memref<1x128xf32, #tpu.memory_space<vmem>>, vector<1x128xf32>
    %5 = vector.broadcast %4 : vector<1x128xf32> to vector<256x128xf32>
    %6 = arith.addf %3, %5 : vector<256x128xf32>
    %c0_5 = arith.constant 0 : index
    %c0_6 = arith.constant 0 : index
    %7 = vector.load %arg4[%c0_5, %c0_6] : memref<256x128xf32, #tpu.memory_space<vmem>>, vector<256x128xf32>
    %c0_7 = arith.constant 0 : index
    %c0_8 = arith.constant 0 : index
    %8 = vector.load %arg5[%c0_7, %c0_8] : memref<1x128xf32, #tpu.memory_space<vmem>>, vector<1x128xf32>
    %9 = vector.broadcast %8 : vector<1x128xf32> to vector<256x128xf32>
    %10 = arith.mulf %7, %9 : vector<256x128xf32>
    %11 = arith.addf %6, %10 : vector<256x128xf32>
    %c0_9 = arith.constant 0 : index
    %c0_10 = arith.constant 0 : index
    %12 = vector.load %arg6[%c0_9, %c0_10] : memref<1x128xf32, #tpu.memory_space<vmem>>, vector<1x128xf32>
    %13 = vector.broadcast %12 : vector<1x128xf32> to vector<256x128xf32>
    %14 = arith.addf %11, %13 : vector<256x128xf32>
    %cst = arith.constant 0.000000e+00 : f32
    %cst_11 = arith.constant 6.000000e+00 : f32
    %15 = vector.broadcast %cst : f32 to vector<256x128xf32>
    %16 = arith.maximumf %15, %14 : vector<256x128xf32>
    %17 = vector.broadcast %cst_11 : f32 to vector<256x128xf32>
    %18 = arith.minimumf %17, %16 : vector<256x128xf32>
    %c0_12 = arith.constant 0 : index
    %c0_13 = arith.constant 0 : index
    %19 = vector.load %arg7[%c0_12, %c0_13] : memref<256x128xf32, #tpu.memory_space<vmem>>, vector<256x128xf32>
    tpu.vector_store %arg7[%c0_12, %c0_13], %18 {strides = array<i32>} : memref<256x128xf32, #tpu.memory_space<vmem>>, vector<256x128xf32>,
    %20 = tpu.iota {dimensions = array<i32: 0>} : vector<256x128xi32>
    %c256_i32 = arith.constant 256 : i32
    %21 = arith.muli %arg0, %c256_i32 : i32
    %22 = vector.broadcast %21 : i32 to vector<256x128xi32>
    %23 = arith.addi %20, %22 : vector<256x128xi32>
    %c98_i32 = arith.constant 98 : i32
    %24 = vector.broadcast %c98_i32 : i32 to vector<256x128xi32>
    %25 = arith.cmpi slt, %23, %24 : vector<256x128xi32>
    %cst_14 = arith.constant 0.000000e+00 : f32
    %26 = vector.broadcast %cst_14 : f32 to vector<256x128xf32>
    %27 = arith.select %25, %18, %26 : vector<256x128xi1>, vector<256x128xf32>
    %cst_15 = arith.constant dense<0.000000e+00> : vector<128xf32>
    %28 = vector.multi_reduction <add>, %27, %cst_15 [0] : vector<256x128xf32> to vector<128xf32>
    %29 = vector.shape_cast %28 : vector<128xf32> to vector<1x128xf32>
    %30 = arith.mulf %27, %27 : vector<256x128xf32>
    %cst_16 = arith.constant dense<0.000000e+00> : vector<128xf32>
    %31 = vector.multi_reduction <add>, %30, %cst_16 [0] : vector<256x128xf32> to vector<128xf32>
    %32 = vector.shape_cast %31 : vector<128xf32> to vector<1x128xf32>
    %cst_17 = arith.constant 0.000000e+00 : f32
    %33 = vector.broadcast %cst_17 : f32 to vector<6x128xf32>
    %34 = tpu.concatenate %29, %32, %33 in 0 : vector<1x128xf32>, vector<1x128xf32>, vector<6x128xf32> -> vector<8x128xf32>
    %c0_18 = arith.constant 0 : index
    %c0_19 = arith.constant 0 : index
    %35 = vector.load %arg8[%c0_18, %c0_19] : memref<8x128xf32, #tpu.memory_space<vmem>>, vector<8x128xf32>
    tpu.vector_store %arg8[%c0_18, %c0_19], %34 {strides = array<i32>} : memref<8x128xf32, #tpu.memory_space<vmem>>, vector<8x128xf32>,
    return
  }
  func.func @transform_0(%arg0: i32) -> (i32, i32) {
    %c0_i32 = arith.constant 0 : i32
    %c0_i32_0 = arith.constant 0 : i32
    return %arg0, %c0_i32 : i32, i32
  }
  func.func @transform_1(%arg0: i32) -> (i32, i32) {
    %c0_i32 = arith.constant 0 : i32
    %c0_i32_0 = arith.constant 0 : i32
    %c0_i32_1 = arith.constant 0 : i32
    return %c0_i32, %c0_i32_0 : i32, i32
  }
  func.func @transform_2(%arg0: i32) -> (i32, i32) {
    %c0_i32 = arith.constant 0 : i32
    %c0_i32_0 = arith.constant 0 : i32
    %c0_i32_1 = arith.constant 0 : i32
    return %c0_i32, %c0_i32_0 : i32, i32
  }
  func.func @transform_3(%arg0: i32) -> (i32, i32) {
    %c0_i32 = arith.constant 0 : i32
    %c0_i32_0 = arith.constant 0 : i32
    return %arg0, %c0_i32 : i32, i32
  }
  func.func @transform_4(%arg0: i32) -> (i32, i32) {
    %c0_i32 = arith.constant 0 : i32
    %c0_i32_0 = arith.constant 0 : i32
    %c0_i32_1 = arith.constant 0 : i32
    return %c0_i32, %c0_i32_0 : i32, i32
  }
  func.func @transform_5(%arg0: i32) -> (i32, i32) {
    %c0_i32 = arith.constant 0 : i32
    %c0_i32_0 = arith.constant 0 : i32
    %c0_i32_1 = arith.constant 0 : i32
    return %c0_i32, %c0_i32_0 : i32, i32
  }
  func.func @transform_6(%arg0: i32) -> (i32, i32) {
    %c0_i32 = arith.constant 0 : i32
    %c0_i32_0 = arith.constant 0 : i32
    return %arg0, %c0_i32 : i32, i32
  }
  func.func @transform_7(%arg0: i32) -> (i32, i32) {
    %c0_i32 = arith.constant 0 : i32
    %c0_i32_0 = arith.constant 0 : i32
    return %arg0, %c0_i32 : i32, i32
  }
}

module attributes {stable_mosaic.version = 11 : i64} {
  func.func @_bn_act_kernel(%arg0: i32, %arg1: memref<256x128xf32, #tpu.memory_space<vmem>>, %arg2: memref<1x128xf32, #tpu.memory_space<vmem>>, %arg3: memref<1x128xf32, #tpu.memory_space<vmem>>, %arg4: memref<256x128xf32, #tpu.memory_space<vmem>>) attributes {dimension_semantics = [#tpu.dimension_semantics<parallel>], iteration_bounds = array<i64: 1>, scalar_prefetch = 0 : i64, scratch_operands = 0 : i64, tpu.core_type = #tpu.core_type<tc>, window_params = [{transform_indices = @transform_0, window_bounds = array<i64: 256, 128>}, {pipeline_mode = #tpu.pipeline_mode<synchronous>, transform_indices = @transform_1, window_bounds = array<i64: 1, 128>}, {pipeline_mode = #tpu.pipeline_mode<synchronous>, transform_indices = @transform_2, window_bounds = array<i64: 1, 128>}, {transform_indices = @transform_3, window_bounds = array<i64: 256, 128>}]} {
    %c0 = arith.constant 0 : index
    %c0_0 = arith.constant 0 : index
    %0 = vector.load %arg1[%c0, %c0_0] : memref<256x128xf32, #tpu.memory_space<vmem>>, vector<256x128xf32>
    %c0_1 = arith.constant 0 : index
    %c0_2 = arith.constant 0 : index
    %1 = vector.load %arg2[%c0_1, %c0_2] : memref<1x128xf32, #tpu.memory_space<vmem>>, vector<1x128xf32>
    %2 = vector.broadcast %1 : vector<1x128xf32> to vector<256x128xf32>
    %3 = arith.mulf %0, %2 : vector<256x128xf32>
    %c0_3 = arith.constant 0 : index
    %c0_4 = arith.constant 0 : index
    %4 = vector.load %arg3[%c0_3, %c0_4] : memref<1x128xf32, #tpu.memory_space<vmem>>, vector<1x128xf32>
    %5 = vector.broadcast %4 : vector<1x128xf32> to vector<256x128xf32>
    %6 = arith.addf %3, %5 : vector<256x128xf32>
    %c0_5 = arith.constant 0 : index
    %c0_6 = arith.constant 0 : index
    %7 = vector.load %arg4[%c0_5, %c0_6] : memref<256x128xf32, #tpu.memory_space<vmem>>, vector<256x128xf32>
    tpu.vector_store %arg4[%c0_5, %c0_6], %6 {strides = array<i32>} : memref<256x128xf32, #tpu.memory_space<vmem>>, vector<256x128xf32>,
    return
  }
  func.func @transform_0(%arg0: i32) -> (i32, i32) {
    %c0_i32 = arith.constant 0 : i32
    %c0_i32_0 = arith.constant 0 : i32
    return %arg0, %c0_i32 : i32, i32
  }
  func.func @transform_1(%arg0: i32) -> (i32, i32) {
    %c0_i32 = arith.constant 0 : i32
    %c0_i32_0 = arith.constant 0 : i32
    %c0_i32_1 = arith.constant 0 : i32
    return %c0_i32, %c0_i32_0 : i32, i32
  }
  func.func @transform_2(%arg0: i32) -> (i32, i32) {
    %c0_i32 = arith.constant 0 : i32
    %c0_i32_0 = arith.constant 0 : i32
    %c0_i32_1 = arith.constant 0 : i32
    return %c0_i32, %c0_i32_0 : i32, i32
  }
  func.func @transform_3(%arg0: i32) -> (i32, i32) {
    %c0_i32 = arith.constant 0 : i32
    %c0_i32_0 = arith.constant 0 : i32
    return %arg0, %c0_i32 : i32, i32
  }
}

module attributes {stable_mosaic.version = 11 : i64} {
  func.func @_bn_add_relu6_kernel(%arg0: i32, %arg1: memref<256x128xf32, #tpu.memory_space<vmem>>, %arg2: memref<1x128xf32, #tpu.memory_space<vmem>>, %arg3: memref<1x128xf32, #tpu.memory_space<vmem>>, %arg4: memref<256x128xf32, #tpu.memory_space<vmem>>, %arg5: memref<1x128xf32, #tpu.memory_space<vmem>>, %arg6: memref<1x128xf32, #tpu.memory_space<vmem>>, %arg7: memref<256x128xf32, #tpu.memory_space<vmem>>) attributes {dimension_semantics = [#tpu.dimension_semantics<parallel>], iteration_bounds = array<i64: 1>, scalar_prefetch = 0 : i64, scratch_operands = 0 : i64, tpu.core_type = #tpu.core_type<tc>, window_params = [{transform_indices = @transform_0, window_bounds = array<i64: 256, 128>}, {pipeline_mode = #tpu.pipeline_mode<synchronous>, transform_indices = @transform_1, window_bounds = array<i64: 1, 128>}, {pipeline_mode = #tpu.pipeline_mode<synchronous>, transform_indices = @transform_2, window_bounds = array<i64: 1, 128>}, {transform_indices = @transform_3, window_bounds = array<i64: 256, 128>}, {pipeline_mode = #tpu.pipeline_mode<synchronous>, transform_indices = @transform_4, window_bounds = array<i64: 1, 128>}, {pipeline_mode = #tpu.pipeline_mode<synchronous>, transform_indices = @transform_5, window_bounds = array<i64: 1, 128>}, {transform_indices = @transform_6, window_bounds = array<i64: 256, 128>}]} {
    %c0 = arith.constant 0 : index
    %c0_0 = arith.constant 0 : index
    %0 = vector.load %arg1[%c0, %c0_0] : memref<256x128xf32, #tpu.memory_space<vmem>>, vector<256x128xf32>
    %c0_1 = arith.constant 0 : index
    %c0_2 = arith.constant 0 : index
    %1 = vector.load %arg2[%c0_1, %c0_2] : memref<1x128xf32, #tpu.memory_space<vmem>>, vector<1x128xf32>
    %2 = vector.broadcast %1 : vector<1x128xf32> to vector<256x128xf32>
    %3 = arith.mulf %0, %2 : vector<256x128xf32>
    %c0_3 = arith.constant 0 : index
    %c0_4 = arith.constant 0 : index
    %4 = vector.load %arg3[%c0_3, %c0_4] : memref<1x128xf32, #tpu.memory_space<vmem>>, vector<1x128xf32>
    %5 = vector.broadcast %4 : vector<1x128xf32> to vector<256x128xf32>
    %6 = arith.addf %3, %5 : vector<256x128xf32>
    %c0_5 = arith.constant 0 : index
    %c0_6 = arith.constant 0 : index
    %7 = vector.load %arg4[%c0_5, %c0_6] : memref<256x128xf32, #tpu.memory_space<vmem>>, vector<256x128xf32>
    %c0_7 = arith.constant 0 : index
    %c0_8 = arith.constant 0 : index
    %8 = vector.load %arg5[%c0_7, %c0_8] : memref<1x128xf32, #tpu.memory_space<vmem>>, vector<1x128xf32>
    %9 = vector.broadcast %8 : vector<1x128xf32> to vector<256x128xf32>
    %10 = arith.mulf %7, %9 : vector<256x128xf32>
    %11 = arith.addf %6, %10 : vector<256x128xf32>
    %c0_9 = arith.constant 0 : index
    %c0_10 = arith.constant 0 : index
    %12 = vector.load %arg6[%c0_9, %c0_10] : memref<1x128xf32, #tpu.memory_space<vmem>>, vector<1x128xf32>
    %13 = vector.broadcast %12 : vector<1x128xf32> to vector<256x128xf32>
    %14 = arith.addf %11, %13 : vector<256x128xf32>
    %cst = arith.constant 0.000000e+00 : f32
    %cst_11 = arith.constant 6.000000e+00 : f32
    %15 = vector.broadcast %cst : f32 to vector<256x128xf32>
    %16 = arith.maximumf %15, %14 : vector<256x128xf32>
    %17 = vector.broadcast %cst_11 : f32 to vector<256x128xf32>
    %18 = arith.minimumf %17, %16 : vector<256x128xf32>
    %c0_12 = arith.constant 0 : index
    %c0_13 = arith.constant 0 : index
    %19 = vector.load %arg7[%c0_12, %c0_13] : memref<256x128xf32, #tpu.memory_space<vmem>>, vector<256x128xf32>
    tpu.vector_store %arg7[%c0_12, %c0_13], %18 {strides = array<i32>} : memref<256x128xf32, #tpu.memory_space<vmem>>, vector<256x128xf32>,
    return
  }
  func.func @transform_0(%arg0: i32) -> (i32, i32) {
    %c0_i32 = arith.constant 0 : i32
    %c0_i32_0 = arith.constant 0 : i32
    return %arg0, %c0_i32 : i32, i32
  }
  func.func @transform_1(%arg0: i32) -> (i32, i32) {
    %c0_i32 = arith.constant 0 : i32
    %c0_i32_0 = arith.constant 0 : i32
    %c0_i32_1 = arith.constant 0 : i32
    return %c0_i32, %c0_i32_0 : i32, i32
  }
  func.func @transform_2(%arg0: i32) -> (i32, i32) {
    %c0_i32 = arith.constant 0 : i32
    %c0_i32_0 = arith.constant 0 : i32
    %c0_i32_1 = arith.constant 0 : i32
    return %c0_i32, %c0_i32_0 : i32, i32
  }
  func.func @transform_3(%arg0: i32) -> (i32, i32) {
    %c0_i32 = arith.constant 0 : i32
    %c0_i32_0 = arith.constant 0 : i32
    return %arg0, %c0_i32 : i32, i32
  }
  func.func @transform_4(%arg0: i32) -> (i32, i32) {
    %c0_i32 = arith.constant 0 : i32
    %c0_i32_0 = arith.constant 0 : i32
    %c0_i32_1 = arith.constant 0 : i32
    return %c0_i32, %c0_i32_0 : i32, i32
  }
  func.func @transform_5(%arg0: i32) -> (i32, i32) {
    %c0_i32 = arith.constant 0 : i32
    %c0_i32_0 = arith.constant 0 : i32
    %c0_i32_1 = arith.constant 0 : i32
    return %c0_i32, %c0_i32_0 : i32, i32
  }
  func.func @transform_6(%arg0: i32) -> (i32, i32) {
    %c0_i32 = arith.constant 0 : i32
    %c0_i32_0 = arith.constant 0 : i32
    return %arg0, %c0_i32 : i32, i32
  }
}

module attributes {stable_mosaic.version = 11 : i64} {
  func.func @_gap_kernel(%arg0: i32, %arg1: memref<1x56x128xf32, #tpu.memory_space<vmem>>, %arg2: memref<1x8x128xf32, #tpu.memory_space<vmem>>) attributes {dimension_semantics = [#tpu.dimension_semantics<parallel>], iteration_bounds = array<i64: 2>, scalar_prefetch = 0 : i64, scratch_operands = 0 : i64, tpu.core_type = #tpu.core_type<tc>, window_params = [{transform_indices = @transform_0, window_bounds = array<i64: 1, 56, 128>}, {transform_indices = @transform_1, window_bounds = array<i64: 1, 8, 128>}]} {
    %c0 = arith.constant 0 : index
    %c0_0 = arith.constant 0 : index
    %c0_1 = arith.constant 0 : index
    %0 = vector.load %arg1[%c0, %c0_0, %c0_1] : memref<1x56x128xf32, #tpu.memory_space<vmem>>, vector<1x56x128xf32>
    %cst = arith.constant dense<0.000000e+00> : vector<1x128xf32>
    %1 = vector.multi_reduction <add>, %0, %cst [1] : vector<1x56x128xf32> to vector<1x128xf32>
    %2 = vector.shape_cast %1 : vector<1x128xf32> to vector<1x1x128xf32>
    %cst_2 = arith.constant 0.0204081628 : f32
    %3 = vector.broadcast %cst_2 : f32 to vector<1x1x128xf32>
    %4 = arith.mulf %2, %3 : vector<1x1x128xf32>
    %cst_3 = arith.constant 0.000000e+00 : f32
    %5 = vector.broadcast %cst_3 : f32 to vector<1x7x128xf32>
    %6 = tpu.concatenate %4, %5 in 1 : vector<1x1x128xf32>, vector<1x7x128xf32> -> vector<1x8x128xf32>
    %c0_4 = arith.constant 0 : index
    %c0_5 = arith.constant 0 : index
    %c0_6 = arith.constant 0 : index
    %7 = vector.load %arg2[%c0_4, %c0_5, %c0_6] : memref<1x8x128xf32, #tpu.memory_space<vmem>>, vector<1x8x128xf32>
    tpu.vector_store %arg2[%c0_4, %c0_5, %c0_6], %6 {strides = array<i32>} : memref<1x8x128xf32, #tpu.memory_space<vmem>>, vector<1x8x128xf32>,
    return
  }
  func.func @transform_0(%arg0: i32) -> (i32, i32, i32) {
    %c0_i32 = arith.constant 0 : i32
    %c0_i32_0 = arith.constant 0 : i32
    %c0_i32_1 = arith.constant 0 : i32
    return %arg0, %c0_i32, %c0_i32_0 : i32, i32, i32
  }
  func.func @transform_1(%arg0: i32) -> (i32, i32, i32) {
    %c0_i32 = arith.constant 0 : i32
    %c0_i32_0 = arith.constant 0 : i32
    %c0_i32_1 = arith.constant 0 : i32
    return %arg0, %c0_i32, %c0_i32_0 : i32, i32, i32
  }
}

module attributes {stable_mosaic.version = 11 : i64} {
  func.func @_mm_kernel(%arg0: i32, %arg1: i32, %arg2: i32, %arg3: memref<256x128xbf16, #tpu.memory_space<vmem>>, %arg4: memref<128x128xbf16, #tpu.memory_space<vmem>>, %arg5: memref<1x128xf32, #tpu.memory_space<vmem>>, %arg6: memref<256x128xf32, #tpu.memory_space<vmem>>, %arg7: memref<256x128xf32, #tpu.memory_space<vmem>>) attributes {dimension_semantics = [#tpu.dimension_semantics<parallel>, #tpu.dimension_semantics<parallel>, #tpu.dimension_semantics<arbitrary>], iteration_bounds = array<i64: 1, 1, 1>, scalar_prefetch = 0 : i64, scratch_operands = 1 : i64, tpu.core_type = #tpu.core_type<tc>, window_params = [{transform_indices = @transform_0, window_bounds = array<i64: 256, 128>}, {transform_indices = @transform_1, window_bounds = array<i64: 128, 128>}, {transform_indices = @transform_2, window_bounds = array<i64: 1, 128>}, {transform_indices = @transform_3, window_bounds = array<i64: 256, 128>}]} {
    %c0_i32 = arith.constant 0 : i32
    %0 = arith.cmpi eq, %arg2, %c0_i32 : i32
    %1 = arith.extui %0 : i1 to i32
    %c0_i32_0 = arith.constant 0 : i32
    %2 = arith.cmpi ne, %1, %c0_i32_0 : i32
    scf.if %2 {
      %cst_10 = arith.constant 0.000000e+00 : f32
      %12 = vector.broadcast %cst_10 : f32 to vector<256x128xf32>
      %c0_11 = arith.constant 0 : index
      %c0_12 = arith.constant 0 : index
      %13 = vector.load %arg7[%c0_11, %c0_12] : memref<256x128xf32, #tpu.memory_space<vmem>>, vector<256x128xf32>
      tpu.vector_store %arg7[%c0_11, %c0_12], %12 {strides = array<i32>} : memref<256x128xf32, #tpu.memory_space<vmem>>, vector<256x128xf32>,
    } else {
    }
    %c0 = arith.constant 0 : index
    %c0_1 = arith.constant 0 : index
    %3 = vector.load %arg7[%c0, %c0_1] : memref<256x128xf32, #tpu.memory_space<vmem>>, vector<256x128xf32>
    %c0_2 = arith.constant 0 : index
    %c0_3 = arith.constant 0 : index
    %4 = vector.load %arg3[%c0_2, %c0_3] : memref<256x128xbf16, #tpu.memory_space<vmem>>, vector<256x128xbf16>
    %c0_4 = arith.constant 0 : index
    %c0_5 = arith.constant 0 : index
    %5 = vector.load %arg4[%c0_4, %c0_5] : memref<128x128xbf16, #tpu.memory_space<vmem>>, vector<128x128xbf16>
    %cst = arith.constant dense<0.000000e+00> : vector<256x128xf32>
    %6 = tpu.matmul %4, %5, %cst {dimension_numbers = #tpu.dot_dimension_numbers<[1], [0], [0], [1], [0, 0, 1, 1], [], []>} : vector<256x128xbf16>, vector<128x128xbf16>, vector<256x128xf32> -> vector<256x128xf32>
    %7 = arith.addf %3, %6 : vector<256x128xf32>
    %c0_6 = arith.constant 0 : index
    %c0_7 = arith.constant 0 : index
    %8 = vector.load %arg7[%c0_6, %c0_7] : memref<256x128xf32, #tpu.memory_space<vmem>>, vector<256x128xf32>
    tpu.vector_store %arg7[%c0_6, %c0_7], %7 {strides = array<i32>} : memref<256x128xf32, #tpu.memory_space<vmem>>, vector<256x128xf32>,
    %c0_i32_8 = arith.constant 0 : i32
    %9 = arith.cmpi eq, %arg2, %c0_i32_8 : i32
    %10 = arith.extui %9 : i1 to i32
    %c0_i32_9 = arith.constant 0 : i32
    %11 = arith.cmpi ne, %10, %c0_i32_9 : i32
    scf.if %11 {
      %c0_10 = arith.constant 0 : index
      %c0_11 = arith.constant 0 : index
      %12 = vector.load %arg7[%c0_10, %c0_11] : memref<256x128xf32, #tpu.memory_space<vmem>>, vector<256x128xf32>
      %c0_12 = arith.constant 0 : index
      %c0_13 = arith.constant 0 : index
      %13 = vector.load %arg5[%c0_12, %c0_13] : memref<1x128xf32, #tpu.memory_space<vmem>>, vector<1x128xf32>
      %14 = vector.broadcast %13 : vector<1x128xf32> to vector<256x128xf32>
      %15 = arith.mulf %12, %14 : vector<256x128xf32>
      %c0_14 = arith.constant 0 : index
      %c0_15 = arith.constant 0 : index
      %16 = vector.load %arg6[%c0_14, %c0_15] : memref<256x128xf32, #tpu.memory_space<vmem>>, vector<256x128xf32>
      tpu.vector_store %arg6[%c0_14, %c0_15], %15 {strides = array<i32>} : memref<256x128xf32, #tpu.memory_space<vmem>>, vector<256x128xf32>,
    } else {
    }
    return
  }
  func.func @transform_0(%arg0: i32, %arg1: i32, %arg2: i32) -> (i32, i32) {
    %c0_i32 = arith.constant 0 : i32
    return %arg0, %arg2 : i32, i32
  }
  func.func @transform_1(%arg0: i32, %arg1: i32, %arg2: i32) -> (i32, i32) {
    %c0_i32 = arith.constant 0 : i32
    return %arg2, %arg1 : i32, i32
  }
  func.func @transform_2(%arg0: i32, %arg1: i32, %arg2: i32) -> (i32, i32) {
    %c0_i32 = arith.constant 0 : i32
    %c0_i32_0 = arith.constant 0 : i32
    return %c0_i32, %arg1 : i32, i32
  }
  func.func @transform_3(%arg0: i32, %arg1: i32, %arg2: i32) -> (i32, i32) {
    %c0_i32 = arith.constant 0 : i32
    return %arg0, %arg1 : i32, i32
  }
}

</mosaic_0001>

<llo_original>
// kernel: resnet_forward.27
$region0: #{resnet_forward.27}
  #allocation0 [shape = 'u32[]', space=smem, size = 0x4, offset = 0x4, fixed_abs, tag = 'smem constant byte address 0x4 - core index']
  #allocation1 [shape = 'u32[144,128]{1,0:T(1,128)}', space=vmem, size = 0x12000, scoped, tag = 'internal scratch']
  #allocation2 [shape = 'f32[256,128]{1,0:T(8,128)}', space=vmem, size = 0x20000, scoped, tag = 'scratch operand']
  %s0 = inlined_call_operand.vmem [shape: bf16[512,128], index: 0, kind: input, shape index: {}]
  %s1 = inlined_call_operand.vmem [shape: bf16[128,128], index: 1, kind: input, shape index: {}]
  %s2 = inlined_call_operand.vmem [shape: f32[1,128], index: 2, kind: input, shape index: {}]
  %s3 = inlined_call_operand.vmem [shape: f32[512,128], index: 3, kind: output, shape index: {}]
  %s4 = sld [smem:[#allocation0]]
  $region53: #{resnet_forward.27} parent=0
    _
  %s6 = ssub.s32 1, %s4
  %s7 = scalar_select 0, %s6, %s4
  loop: start=0, step=1, limit=4
  $region2: #{resnet_forward.27} parent=0 // loop_pre_header
    _
  $region3: #{resnet_forward.27} parent=0 // loop_header
    %s9 = sphi 0, %s13
    %p10 = scmp.ge.s32.totalorder %s9, 4
    %s16 = sphi 0, %s35
    %s17 = sphi 0, %s31
    %s18 = sphi 0, %s27
    %s19 = sphi 0, %s16
    %s20 = sphi 0, %s17
    %s21 = sphi 0, %s18
    %s22 = sphi 0, %s19
    %s23 = sphi 0, %s20
    %s24 = sphi 0, %s21
    %s40 = sphi 0, %s42
    %s43 = sphi 0, %s40
    %s44 = sphi 0, %s43
    %s60 = sphi 0, %s44
    %s68 = sphi 0, %s70
    %s71 = sphi 0, %s68
    %s72 = sphi 0, %s71
    %s88 = sphi 0, %s72
    %s94 = sphi 0, %s96
    %s97 = sphi 0, %s94
    %s98 = sphi 0, %s97
    %s114 = sphi 0, %s98
    %s122 = sphi 0, %s124
    %s125 = sphi 0, %s122
    %s126 = sphi 0, %s125
    %s142 = sphi 0, %s126
  $region4: #{resnet_forward.27} parent=0 // loop_header_branch
    %12 = sbr.rel (%p10) target = $region8
  $region5: #{resnet_forward.27} parent=0 // loop_body
    %s14 = ssub.s32 %s9, 1
    %s15 = ssub.s32 %s9, 2
    %s25 = sadd.s32 1, %s18
    %p26 = scmp.ge.s32.totalorder %s25, 1
    %s27 = scalar_select %p26, 0, %s25
    %s28 = sadd.s32 1, %s17
    %s29 = scalar_select %p26, %s28, %s17
    %p30 = scmp.ge.s32.totalorder %s29, 1
    %s31 = scalar_select %p30, 0, %s29
    %s32 = sadd.s32 1, %s16
    %s33 = scalar_select %p30, %s32, %s16
    %p34 = scmp.ge.s32.totalorder %s33, 2
    %s35 = scalar_select %p34, 0, %s33
    %s36 = ssub.s32 %s16, %s35
    %s37 = ssub.s32 %s18, %s27
    %s38 = sor.u32 %s36, %s37
    %p39 = scmp.eq.s32.totalorder %s38, 0
    %s41 = sadd.s32 %s40, 1
    %s42 = scalar_select %p39, %s40, %s41
    %p45 = pneg %p39
    %p46 = scmp.eq.s32.totalorder %s9, 1
    %p47 = por %p45, %p46
    %p48 = scmp.ne.s32.totalorder %s40, %s43
    %p49 = scmp.eq.s32.totalorder %s9, 0
    %p50 = por %p48, %p49
    %p51 = scmp.ne.s32.totalorder %s40, %s43
    %p52 = scmp.eq.s32.totalorder %s14, 1
    %p53 = por %p51, %p52
    %p54 = scmp.ne.s32.totalorder %s43, %s44
    %p55 = scmp.eq.s32.totalorder %s14, 0
    %p56 = por %p54, %p55
    %p57 = scmp.ne.s32.totalorder %s43, %s44
    %p58 = scmp.eq.s32.totalorder %s15, 1
    %p59 = por %p57, %p58
    %p61 = scmp.ne.s32.totalorder %s44, %s60
    %p62 = scmp.eq.s32.totalorder %s15, 0
    %p63 = por %p61, %p62
    %s64 = ssub.s32 %s18, %s27
    %s65 = ssub.s32 %s17, %s31
    %s66 = sor.u32 %s64, %s65
    %p67 = scmp.eq.s32.totalorder %s66, 0
    %s69 = sadd.s32 %s68, 1
    %s70 = scalar_select %p67, %s68, %s69
    %p73 = pneg %p67
    %p74 = scmp.eq.s32.totalorder %s9, 1
    %p75 = por %p73, %p74
    %p76 = scmp.ne.s32.totalorder %s68, %s71
    %p77 = scmp.eq.s32.totalorder %s9, 0
    %p78 = por %p76, %p77
    %p79 = scmp.ne.s32.totalorder %s68, %s71
    %p80 = scmp.eq.s32.totalorder %s14, 1
    %p81 = por %p79, %p80
    %p82 = scmp.ne.s32.totalorder %s71, %s72
    %p83 = scmp.eq.s32.totalorder %s14, 0
    %p84 = por %p82, %p83
    %p85 = scmp.ne.s32.totalorder %s71, %s72
    %p86 = scmp.eq.s32.totalorder %s15, 1
    %p87 = por %p85, %p86
    %p89 = scmp.ne.s32.totalorder %s72, %s88
    %p90 = scmp.eq.s32.totalorder %s15, 0
    %p91 = por %p89, %p90
    %s92 = ssub.s32 %s17, %s31
    %p93 = scmp.eq.s32.totalorder %s92, 0
    %s95 = sadd.s32 %s94, 1
    %s96 = scalar_select %p93, %s94, %s95
    %p99 = pneg %p93
    %p100 = scmp.eq.s32.totalorder %s9, 1
    %p101 = por %p99, %p100
    %p102 = scmp.ne.s32.totalorder %s94, %s97
    %p103 = scmp.eq.s32.totalorder %s9, 0
    %p104 = por %p102, %p103
    %p105 = scmp.ne.s32.totalorder %s94, %s97
    %p106 = scmp.eq.s32.totalorder %s14, 1
    %p107 = por %p105, %p106
    %p108 = scmp.ne.s32.totalorder %s97, %s98
    %p109 = scmp.eq.s32.totalorder %s14, 0
    %p110 = por %p108, %p109
    %p111 = scmp.ne.s32.totalorder %s97, %s98
    %p112 = scmp.eq.s32.totalorder %s15, 1
    %p113 = por %p111, %p112
    %p115 = scmp.ne.s32.totalorder %s98, %s114
    %p116 = scmp.eq.s32.totalorder %s15, 0
    %p117 = por %p115, %p116
    %s118 = ssub.s32 %s16, %s35
    %s119 = ssub.s32 %s17, %s31
    %s120 = sor.u32 %s118, %s119
    %p121 = scmp.eq.s32.totalorder %s120, 0
    %s123 = sadd.s32 %s122, 1
    %s124 = scalar_select %p121, %s122, %s123
    %p127 = pneg %p121
    %p128 = scmp.eq.s32.totalorder %s9, 1
    %p129 = por %p127, %p128
    %p130 = scmp.ne.s32.totalorder %s122, %s125
    %p131 = scmp.eq.s32.totalorder %s9, 0
    %p132 = por %p130, %p131
    %p133 = scmp.ne.s32.totalorder %s122, %s125
    %p134 = scmp.eq.s32.totalorder %s14, 1
    %p135 = por %p133, %p134
    %p136 = scmp.ne.s32.totalorder %s125, %s126
    %p137 = scmp.eq.s32.totalorder %s14, 0
    %p138 = por %p136, %p137
    %p139 = scmp.ne.s32.totalorder %s125, %s126
    %p140 = scmp.eq.s32.totalorder %s15, 1
    %p141 = por %p139, %p140
    %p143 = scmp.ne.s32.totalorder %s126, %s142
    %p144 = scmp.eq.s32.totalorder %s15, 0
    %p145 = por %p143, %p144
    %p146 = scmp.le.s32.totalorder 1, %s9
    %p147 = scmp.lt.s32.totalorder %s9, 3
    %p148 = pnand %p146, %p147
    %p149 = pneg %p148
    // Predicated region
    $region9: #{resnet_forward.27} parent=5 // pred_check
      _
    $region10: #{resnet_forward.27} parent=5 // pred_check_branch
      %151 = sbr.rel (%p148) target = $region12
    $region11: #{resnet_forward.27} parent=5 // pred_region
      %s152 = ssub.s32 %s9, 1
      // Predicated region
      $region13: #{resnet_forward.27} parent=11 // pred_check
        %p153 = pneg %p84
      $region14: #{resnet_forward.27} parent=11 // pred_check_branch
        %155 = sbr.rel (%p153) target = $region16
      $region15: #{resnet_forward.27} parent=11 // pred_region
        %s156 = smul.u32 16, %s21
        %p157 = scmp.lt.s32.totalorder %s156, 15
        %s158 = scalar_select %p157, %s156, 15
        %p159 = scmp.lt.s32.totalorder %s20, 0
        %s160 = scalar_select %p159, %s20, 0
        %s161 = sadd.s32 %s160, %s158
        %s162 = smul.addr %s161, 4
        %s163 = scalar_lea.vmem %s1, %s162
        %s164 = smul.u32 16, %s21
      $region16: #{resnet_forward.27} parent=11 // pred_fallthru
        _
      // Predicated region
      $region17: #{resnet_forward.27} parent=11 // pred_check
        %p165 = pneg %p110
      $region18: #{resnet_forward.27} parent=11 // pred_check_branch
        %167 = sbr.rel (%p165) target = $region20
      $region19: #{resnet_forward.27} parent=11 // pred_region
        %p168 = scmp.lt.s32.totalorder %s20, 0
        %s169 = scalar_select %p168, %s20, 0
        %s170 = scalar_lea.vmem %s2, %s169
      $region20: #{resnet_forward.27} parent=11 // pred_fallthru
        _
    $region12: #{resnet_forward.27} parent=5 // pred_fallthru
      _
    %p171 = scmp.lt.s32.totalorder %s9, 2
    // Predicated region
    $region21: #{resnet_forward.27} parent=5 // pred_check
      %p172 = pneg %p171
    $region22: #{resnet_forward.27} parent=5 // pred_check_branch
      %174 = sbr.rel (%p172) target = $region24
    $region23: #{resnet_forward.27} parent=5 // pred_region
      // Predicated region
      $region25: #{resnet_forward.27} parent=23 // pred_check
        %p175 = pneg %p50
      $region26: #{resnet_forward.27} parent=23 // pred_check_branch
        %177 = sbr.rel (%p175) target = $region28
      $region27: #{resnet_forward.27} parent=23 // pred_region
        %s178 = smul.u32 32, %s16
        %p179 = scmp.lt.s32.totalorder %s178, 63
        %s180 = scalar_select %p179, %s178, 63
        %p181 = scmp.lt.s32.totalorder %s18, 0
        %s182 = scalar_select %p181, %s18, 0
        %s183 = sadd.s32 %s182, %s180
        %s184 = smul.addr %s183, 4
        %s185 = scalar_lea.vmem %s0, %s184
        %s186 = smul.u32 32, %s16
      $region28: #{resnet_forward.27} parent=23 // pred_fallthru
        _
    $region24: #{resnet_forward.27} parent=5 // pred_fallthru
      _
    %p187 = scmp.le.s32.totalorder 1, %s9
    %p188 = scmp.lt.s32.totalorder %s9, 3
    %p189 = pnand %p187, %p188
    %p190 = pneg %p189
    // Predicated region
    $region29: #{resnet_forward.27} parent=5 // pred_check
      _
    $region30: #{resnet_forward.27} parent=5 // pred_check_branch
      %192 = sbr.rel (%p189) target = $region32
    $region31: #{resnet_forward.27} parent=5 // pred_region
      %s193 = ssub.s32 %s9, 1
      %s194 = smul.u32 32, %s19
      %p195 = scmp.lt.s32.totalorder %s194, 63
      %s196 = scalar_select %p195, %s194, 63
      %p197 = scmp.lt.s32.totalorder %s21, 0
      %s198 = scalar_select %p197, %s21, 0
      %s199 = sadd.s32 %s198, %s196
      %s200 = smul.addr %s199, 4
      %s201 = scalar_lea.vmem %s0, %s200
      %p202 = pneg %p56
      %p203 = pneg %p53
      %s204 = smul.u32 16, %s21
      %p205 = scmp.lt.s32.totalorder %s204, 15
      %s206 = scalar_select %p205, %s204, 15
      %p207 = scmp.lt.s32.totalorder %s20, 0
      %s208 = scalar_select %p207, %s20, 0
      %s209 = sadd.s32 %s208, %s206
      %s210 = smul.addr %s209, 4
      %s211 = scalar_lea.vmem %s1, %s210
      %p212 = pneg %p84
      %p213 = pneg %p81
      %p214 = scmp.lt.s32.totalorder %s20, 0
      %s215 = scalar_select %p214, %s20, 0
      %s216 = scalar_lea.vmem %s2, %s215
      %p217 = pneg %p110
      %p218 = pneg %p107
      %p219 = pneg %p138
      %p220 = pneg %p135
      %s221 = smul.u32 32, %s19
      %p222 = scmp.lt.s32.totalorder %s221, 63
      %s223 = scalar_select %p222, %s221, 63
      %p224 = scmp.lt.s32.totalorder %s20, 0
      %s225 = scalar_select %p224, %s20, 0
      %s226 = sadd.s32 %s225, %s223
      %s227 = smul.addr %s226, 8
      %s228 = scalar_lea.vmem %s3, %s227
      %s229 = smul.u32 32, %s19
      %p230 = scmp.lt.s32.totalorder %s229, 63
      %s231 = scalar_select %p230, %s229, 63
      %p232 = scmp.lt.s32.totalorder %s21, 0
      %s233 = scalar_select %p232, %s21, 0
      %s234 = sadd.s32 %s233, %s231
      %s235 = smul.addr %s234, 4
      %s236 = scalar_lea.vmem %s0, %s235
      %s237 = smul.u32 32, %s19
      %s238 = smul.u32 16, %s21
      %p239 = scmp.lt.s32.totalorder %s238, 15
      %s240 = scalar_select %p239, %s238, 15
      %p241 = scmp.lt.s32.totalorder %s20, 0
      %s242 = scalar_select %p241, %s20, 0
      %s243 = sadd.s32 %s242, %s240
      %s244 = smul.addr %s243, 4
      %s245 = scalar_lea.vmem %s1, %s244
      %s246 = smul.u32 16, %s21
      %p247 = scmp.lt.s32.totalorder %s20, 0
      %s248 = scalar_select %p247, %s20, 0
      %s249 = scalar_lea.vmem %s2, %s248
      %s250 = smul.u32 32, %s19
      %p251 = scmp.lt.s32.totalorder %s250, 63
      %s252 = scalar_select %p251, %s250, 63
      %p253 = scmp.lt.s32.totalorder %s20, 0
      %s254 = scalar_select %p253, %s20, 0
      %s255 = sadd.s32 %s254, %s252
      %s256 = smul.addr %s255, 8
      %s257 = scalar_lea.vmem %s3, %s256
      %s258 = smul.u32 32, %s19
      %p260 = scmp.eq.s32.totalorder %s21, 0
      // Predicated region
      $region33: #{resnet_forward.27} parent=31 // pred_check
        %p261 = pneg %p260
      $region34: #{resnet_forward.27} parent=31 // pred_check_branch
        %263 = sbr.rel (%p261) target = $region36
      $region35: #{resnet_forward.27} parent=31 // pred_region
        %264 = vst [vmem:[#allocation2] sm:$0xff] 0.0
        %265 = vst [vmem:[#allocation2 + $0x8] sm:$0xff] 0.0
        %266 = vst [vmem:[#allocation2 + $0x10] sm:$0xff] 0.0
        %267 = vst [vmem:[#allocation2 + $0x18] sm:$0xff] 0.0
        %268 = vst [vmem:[#allocation2 + $0x20] sm:$0xff] 0.0
        %269 = vst [vmem:[#allocation2 + $0x28] sm:$0xff] 0.0
        %270 = vst [vmem:[#allocation2 + $0x30] sm:$0xff] 0.0
        %271 = vst [vmem:[#allocation2 + $0x38] sm:$0xff] 0.0
        %272 = vst [vmem:[#allocation2 + $0x40] sm:$0xff] 0.0
        %273 = vst [vmem:[#allocation2 + $0x48] sm:$0xff] 0.0
        %274 = vst [vmem:[#allocation2 + $0x50] sm:$0xff] 0.0
        %275 = vst [vmem:[#allocation2 + $0x58] sm:$0xff] 0.0
        %276 = vst [vmem:[#allocation2 + $0x60] sm:$0xff] 0.0
        %277 = vst [vmem:[#allocation2 + $0x68] sm:$0xff] 0.0
        %278 = vst [vmem:[#allocation2 + $0x70] sm:$0xff] 0.0
        %279 = vst [vmem:[#allocation2 + $0x78] sm:$0xff] 0.0
        %280 = vst [vmem:[#allocation2 + $0x80] sm:$0xff] 0.0
        %281 = vst [vmem:[#allocation2 + $0x88] sm:$0xff] 0.0
        %282 = vst [vmem:[#allocation2 + $0x90] sm:$0xff] 0.0
        %283 = vst [vmem:[#allocation2 + $0x98] sm:$0xff] 0.0
        %284 = vst [vmem:[#allocation2 + $0xa0] sm:$0xff] 0.0
        %285 = vst [vmem:[#allocation2 + $0xa8] sm:$0xff] 0.0
        %286 = vst [vmem:[#allocation2 + $0xb0] sm:$0xff] 0.0
        %287 = vst [vmem:[#allocation2 + $0xb8] sm:$0xff] 0.0
        %288 = vst [vmem:[#allocation2 + $0xc0] sm:$0xff] 0.0
        %289 = vst [vmem:[#allocation2 + $0xc8] sm:$0xff] 0.0
        %290 = vst [vmem:[#allocation2 + $0xd0] sm:$0xff] 0.0
        %291 = vst [vmem:[#allocation2 + $0xd8] sm:$0xff] 0.0
        %292 = vst [vmem:[#allocation2 + $0xe0] sm:$0xff] 0.0
        %293 = vst [vmem:[#allocation2 + $0xe8] sm:$0xff] 0.0
        %294 = vst [vmem:[#allocation2 + $0xf0] sm:$0xff] 0.0
        %295 = vst [vmem:[#allocation2 + $0xf8] sm:$0xff] 0.0
      $region36: #{resnet_forward.27} parent=31 // pred_fallthru
        _
      %v296 = vld [vmem:[#allocation2] sm:$0xff]
      %v297 = vld [vmem:[#allocation2 + $0x8] sm:$0xff]
      %v298 = vld [vmem:[#allocation2 + $0x10] sm:$0xff]
      %v299 = vld [vmem:[#allocation2 + $0x18] sm:$0xff]
      %v300 = vld [vmem:[#allocation2 + $0x20] sm:$0xff]
      %v301 = vld [vmem:[#allocation2 + $0x28] sm:$0xff]
      %v302 = vld [vmem:[#allocation2 + $0x30] sm:$0xff]
      %v303 = vld [vmem:[#allocation2 + $0x38] sm:$0xff]
      %v304 = vld [vmem:[#allocation2 + $0x40] sm:$0xff]
      %v305 = vld [vmem:[#allocation2 + $0x48] sm:$0xff]
      %v306 = vld [vmem:[#allocation2 + $0x50] sm:$0xff]
      %v307 = vld [vmem:[#allocation2 + $0x58] sm:$0xff]
      %v308 = vld [vmem:[#allocation2 + $0x60] sm:$0xff]
      %v309 = vld [vmem:[#allocation2 + $0x68] sm:$0xff]
      %v310 = vld [vmem:[#allocation2 + $0x70] sm:$0xff]
      %v311 = vld [vmem:[#allocation2 + $0x78] sm:$0xff]
      %v312 = vld [vmem:[#allocation2 + $0x80] sm:$0xff]
      %v313 = vld [vmem:[#allocation2 + $0x88] sm:$0xff]
      %v314 = vld [vmem:[#allocation2 + $0x90] sm:$0xff]
      %v315 = vld [vmem:[#allocation2 + $0x98] sm:$0xff]
      %v316 = vld [vmem:[#allocation2 + $0xa0] sm:$0xff]
      %v317 = vld [vmem:[#allocation2 + $0xa8] sm:$0xff]
      %v318 = vld [vmem:[#allocation2 + $0xb0] sm:$0xff]
      %v319 = vld [vmem:[#allocation2 + $0xb8] sm:$0xff]
      %v320 = vld [vmem:[#allocation2 + $0xc0] sm:$0xff]
      %v321 = vld [vmem:[#allocation2 + $0xc8] sm:$0xff]
      %v322 = vld [vmem:[#allocation2 + $0xd0] sm:$0xff]
      %v323 = vld [vmem:[#allocation2 + $0xd8] sm:$0xff]
      %v324 = vld [vmem:[#allocation2 + $0xe0] sm:$0xff]
      %v325 = vld [vmem:[#allocation2 + $0xe8] sm:$0xff]
      %v326 = vld [vmem:[#allocation2 + $0xf0] sm:$0xff]
      %v327 = vld [vmem:[#allocation2 + $0xf8] sm:$0xff]
      %v328 = vld [vmem:[%s236] sm:$0xf]
      %v329 = vld [vmem:[%s236 + $0x4] sm:$0xf]
      %v330 = vld [vmem:[%s236 + $0x8] sm:$0xf]
      %v331 = vld [vmem:[%s236 + $0xc] sm:$0xf]
      %v332 = vld [vmem:[%s236 + $0x10] sm:$0xf]
      %v333 = vld [vmem:[%s236 + $0x14] sm:$0xf]
      %v334 = vld [vmem:[%s236 + $0x18] sm:$0xf]
      %v335 = vld [vmem:[%s236 + $0x1c] sm:$0xf]
      %v336 = vld [vmem:[%s236 + $0x20] sm:$0xf]
      %v337 = vld [vmem:[%s236 + $0x24] sm:$0xf]
      %v338 = vld [vmem:[%s236 + $0x28] sm:$0xf]
      %v339 = vld [vmem:[%s236 + $0x2c] sm:$0xf]
      %v340 = vld [vmem:[%s236 + $0x30] sm:$0xf]
      %v341 = vld [vmem:[%s236 + $0x34] sm:$0xf]
      %v342 = vld [vmem:[%s236 + $0x38] sm:$0xf]
      %v343 = vld [vmem:[%s236 + $0x3c] sm:$0xf]
      %v344 = vld [vmem:[%s236 + $0x40] sm:$0xf]
      %v345 = vld [vmem:[%s236 + $0x44] sm:$0xf]
      %v346 = vld [vmem:[%s236 + $0x48] sm:$0xf]
      %v347 = vld [vmem:[%s236 + $0x4c] sm:$0xf]
      %v348 = vld [vmem:[%s236 + $0x50] sm:$0xf]
      %v349 = vld [vmem:[%s236 + $0x54] sm:$0xf]
      %v350 = vld [vmem:[%s236 + $0x58] sm:$0xf]
      %v351 = vld [vmem:[%s236 + $0x5c] sm:$0xf]
      %v352 = vld [vmem:[%s236 + $0x60] sm:$0xf]
      %v353 = vld [vmem:[%s236 + $0x64] sm:$0xf]
      %v354 = vld [vmem:[%s236 + $0x68] sm:$0xf]
      %v355 = vld [vmem:[%s236 + $0x6c] sm:$0xf]
      %v356 = vld [vmem:[%s236 + $0x70] sm:$0xf]
      %v357 = vld [vmem:[%s236 + $0x74] sm:$0xf]
      %v358 = vld [vmem:[%s236 + $0x78] sm:$0xf]
      %v359 = vld [vmem:[%s236 + $0x7c] sm:$0xf]
      %v360 = vld [vmem:[%s245] sm:$0xf]
      %v361 = vld [vmem:[%s245 + $0x4] sm:$0xf]
      %v362 = vld [vmem:[%s245 + $0x8] sm:$0xf]
      %v363 = vld [vmem:[%s245 + $0xc] sm:$0xf]
      %v364 = vld [vmem:[%s245 + $0x10] sm:$0xf]
      %v365 = vld [vmem:[%s245 + $0x14] sm:$0xf]
      %v366 = vld [vmem:[%s245 + $0x18] sm:$0xf]
      %v367 = vld [vmem:[%s245 + $0x1c] sm:$0xf]
      %v368 = vld [vmem:[%s245 + $0x20] sm:$0xf]
      %v369 = vld [vmem:[%s245 + $0x24] sm:$0xf]
      %v370 = vld [vmem:[%s245 + $0x28] sm:$0xf]
      %v371 = vld [vmem:[%s245 + $0x2c] sm:$0xf]
      %v372 = vld [vmem:[%s245 + $0x30] sm:$0xf]
      %v373 = vld [vmem:[%s245 + $0x34] sm:$0xf]
      %v374 = vld [vmem:[%s245 + $0x38] sm:$0xf]
      %v375 = vld [vmem:[%s245 + $0x3c] sm:$0xf]
      %v408 = vunpack.c.l.b16 %v328
      %v409 = vunpack.c.l.b16 %v329
      %v410 = vunpack.c.l.b16 %v330
      %v411 = vunpack.c.l.b16 %v331
      %v412 = vunpack.c.l.b16 %v332
      %v413 = vunpack.c.l.b16 %v333
      %v414 = vunpack.c.l.b16 %v334
      %v415 = vunpack.c.l.b16 %v335
      %v416 = vunpack.c.l.b16 %v336
      %v417 = vunpack.c.l.b16 %v337
      %v418 = vunpack.c.l.b16 %v338
      %v419 = vunpack.c.l.b16 %v339
      %v420 = vunpack.c.l.b16 %v340
      %v421 = vunpack.c.l.b16 %v341
      %v422 = vunpack.c.l.b16 %v342
      %v423 = vunpack.c.l.b16 %v343
      %v424 = vunpack.c.l.b16 %v344
      %v425 = vunpack.c.l.b16 %v345
      %v426 = vunpack.c.l.b16 %v346
      %v427 = vunpack.c.l.b16 %v347
      %v428 = vunpack.c.l.b16 %v348
      %v429 = vunpack.c.l.b16 %v349
      %v430 = vunpack.c.l.b16 %v350
      %v431 = vunpack.c.l.b16 %v351
      %v432 = vunpack.c.l.b16 %v352
      %v433 = vunpack.c.l.b16 %v353
      %v434 = vunpack.c.l.b16 %v354
      %v435 = vunpack.c.l.b16 %v355
      %v436 = vunpack.c.l.b16 %v356
      %v437 = vunpack.c.l.b16 %v357
      %v438 = vunpack.c.l.b16 %v358
      %v439 = vunpack.c.l.b16 %v359
      %v440 = vpack.c.b16 %v409, %v408
      %v441 = vpack.c.b16 %v411, %v410
      %v442 = vpack.c.b16 %v413, %v412
      %v443 = vpack.c.b16 %v415, %v414
      %v444 = vpack.c.b16 %v417, %v416
      %v445 = vpack.c.b16 %v419, %v418
      %v446 = vpack.c.b16 %v421, %v420
      %v447 = vpack.c.b16 %v423, %v422
      %v448 = vpack.c.b16 %v425, %v424
      %v449 = vpack.c.b16 %v427, %v426
      %v450 = vpack.c.b16 %v429, %v428
      %v451 = vpack.c.b16 %v431, %v430
      %v452 = vpack.c.b16 %v433, %v432
      %v453 = vpack.c.b16 %v435, %v434
      %v454 = vpack.c.b16 %v437, %v436
      %v455 = vpack.c.b16 %v439, %v438
      %v488 = vunpack.c.l.b16 %v360
      %v489 = vunpack.c.l.b16 %v361
      %v490 = vunpack.c.l.b16 %v362
      %v491 = vunpack.c.l.b16 %v363
      %v492 = vunpack.c.l.b16 %v364
      %v493 = vunpack.c.l.b16 %v365
      %v494 = vunpack.c.l.b16 %v366
      %v495 = vunpack.c.l.b16 %v367
      %v496 = vunpack.c.l.b16 %v368
      %v497 = vunpack.c.l.b16 %v369
      %v498 = vunpack.c.l.b16 %v370
      %v499 = vunpack.c.l.b16 %v371
      %v500 = vunpack.c.l.b16 %v372
      %v501 = vunpack.c.l.b16 %v373
      %v502 = vunpack.c.l.b16 %v374
      %v503 = vunpack.c.l.b16 %v375
      %v504 = vpack.c.b16 %v489, %v488
      %v505 = vpack.c.b16 %v491, %v490
      %v506 = vpack.c.b16 %v493, %v492
      %v507 = vpack.c.b16 %v495, %v494
      %v508 = vpack.c.b16 %v497, %v496
      %v509 = vpack.c.b16 %v499, %v498
      %v510 = vpack.c.b16 %v501, %v500
      %v511 = vpack.c.b16 %v503, %v502
      %520 = vmatprep.subr.bf16.mxu0 0
      %521 = vmatpush1.bf16.msra.mxu0 %v511
      %522 = vmatprep.subr.bf16.mxu0 0
      %523 = vmatpush1.bf16.msra.mxu0 %v510
      %524 = vmatprep.subr.bf16.mxu0 0
      %525 = vmatpush1.bf16.msra.mxu0 %v509
      %526 = vmatprep.subr.bf16.mxu0 0
      %527 = vmatpush1.bf16.msra.mxu0 %v508
      %528 = vmatprep.subr.bf16.mxu0 0
      %529 = vmatpush1.bf16.msra.mxu0 %v507
      %530 = vmatprep.subr.bf16.mxu0 0
      %531 = vmatpush1.bf16.msra.mxu0 %v506
      %532 = vmatprep.subr.bf16.mxu0 0
      %533 = vmatpush1.bf16.msra.mxu0 %v505
      %534 = vmatprep.subr.bf16.mxu0 0
      %535 = vmatpush1.bf16.msra.mxu0 %v504
      %536 = vmatprep.subr.bf16.mxu0 0
      %537 = vmatpush2.bf16.msra.mxu0 0
      %538 = vmatprep.subr.bf16.mxu0 0
      %539 = vmatpush2.bf16.msra.mxu0 0
      %540 = vmatprep.subr.bf16.mxu0 0
      %541 = vmatpush2.bf16.msra.mxu0 0
      %542 = vmatprep.subr.bf16.mxu0 0
      %543 = vmatpush2.bf16.msra.mxu0 0
      %544 = vmatprep.subr.bf16.mxu0 0
      %545 = vmatpush2.bf16.msra.mxu0 0
      %546 = vmatprep.subr.bf16.mxu0 0
      %547 = vmatpush2.bf16.msra.mxu0 0
      %548 = vmatprep.subr.bf16.mxu0 0
      %549 = vmatpush2.bf16.msra.mxu0 0
      %550 = vmatprep.subr.bf16.mxu0 0
      %551 = vmatpush2.bf16.msra.mxu0 0
      %552 = vmatprep.mubr.bf16.mxu0 0
      %553 = vmatmul.mubr.bf16.gmra.mxu0 %v440
      %v554 = vpop.f32.mrf.mxu0
      %v555 = vadd.f32 0.0, %v554
      %v556 = vpop.f32.mrf.mxu0
      %v557 = vpop.f32.mrf.mxu0
      %v558 = vadd.f32 0.0, %v557
      %v559 = vpop.f32.mrf.mxu0
      %560 = vmatprep.mubr.bf16.mxu0 0
      %561 = vmatmul.mubr.bf16.gmra.mxu0 %v441
      %v562 = vpop.f32.mrf.mxu0
      %v563 = vadd.f32 0.0, %v562
      %v564 = vpop.f32.mrf.mxu0
      %v565 = vpop.f32.mrf.mxu0
      %v566 = vadd.f32 0.0, %v565
      %v567 = vpop.f32.mrf.mxu0
      %568 = vmatprep.mubr.bf16.mxu0 0
      %569 = vmatmul.mubr.bf16.gmra.mxu0 %v442
      %v570 = vpop.f32.mrf.mxu0
      %v571 = vadd.f32 0.0, %v570
      %v572 = vpop.f32.mrf.mxu0
      %v573 = vpop.f32.mrf.mxu0
      %v574 = vadd.f32 0.0, %v573
      %v575 = vpop.f32.mrf.mxu0
      %576 = vmatprep.mubr.bf16.mxu0 0
      %577 = vmatmul.mubr.bf16.gmra.mxu0 %v443
      %v578 = vpop.f32.mrf.mxu0
      %v579 = vadd.f32 0.0, %v578
      %v580 = vpop.f32.mrf.mxu0
      %v581 = vpop.f32.mrf.mxu0
      %v582 = vadd.f32 0.0, %v581
      %v583 = vpop.f32.mrf.mxu0
      %584 = vmatprep.mubr.bf16.mxu0 0
      %585 = vmatmul.mubr.bf16.gmra.mxu0 %v444
      %v586 = vpop.f32.mrf.mxu0
      %v587 = vadd.f32 0.0, %v586
      %v588 = vpop.f32.mrf.mxu0
      %v589 = vpop.f32.mrf.mxu0
      %v590 = vadd.f32 0.0, %v589
      %v591 = vpop.f32.mrf.mxu0
      %592 = vmatprep.mubr.bf16.mxu0 0
      %593 = vmatmul.mubr.bf16.gmra.mxu0 %v445
      %v594 = vpop.f32.mrf.mxu0
      %v595 = vadd.f32 0.0, %v594
      %v596 = vpop.f32.mrf.mxu0
      %v597 = vpop.f32.mrf.mxu0
      %v598 = vadd.f32 0.0, %v597
      %v599 = vpop.f32.mrf.mxu0
      %600 = vmatprep.mubr.bf16.mxu0 0
      %601 = vmatmul.mubr.bf16.gmra.mxu0 %v446
      %v602 = vpop.f32.mrf.mxu0
      %v603 = vadd.f32 0.0, %v602
      %v604 = vpop.f32.mrf.mxu0
      %v605 = vpop.f32.mrf.mxu0
      %v606 = vadd.f32 0.0, %v605
      %v607 = vpop.f32.mrf.mxu0
      %608 = vmatprep.mubr.bf16.mxu0 0
      %609 = vmatmul.mubr.bf16.gmra.mxu0 %v447
      %v610 = vpop.f32.mrf.mxu0
      %v611 = vadd.f32 0.0, %v610
      %v612 = vpop.f32.mrf.mxu0
      %v613 = vpop.f32.mrf.mxu0
      %v614 = vadd.f32 0.0, %v613
      %v615 = vpop.f32.mrf.mxu0
      %616 = vmatprep.mubr.bf16.mxu0 0
      %617 = vmatmul.mubr.bf16.gmra.mxu0 %v448
      %v618 = vpop.f32.mrf.mxu0
      %v619 = vadd.f32 0.0, %v618
      %v620 = vpop.f32.mrf.mxu0
      %v621 = vpop.f32.mrf.mxu0
      %v622 = vadd.f32 0.0, %v621
      %v623 = vpop.f32.mrf.mxu0
      %624 = vmatprep.mubr.bf16.mxu0 0
      %625 = vmatmul.mubr.bf16.gmra.mxu0 %v449
      %v626 = vpop.f32.mrf.mxu0
      %v627 = vadd.f32 0.0, %v626
      %v628 = vpop.f32.mrf.mxu0
      %v629 = vpop.f32.mrf.mxu0
      %v630 = vadd.f32 0.0, %v629
      %v631 = vpop.f32.mrf.mxu0
      %632 = vmatprep.mubr.bf16.mxu0 0
      %633 = vmatmul.mubr.bf16.gmra.mxu0 %v450
      %v634 = vpop.f32.mrf.mxu0
      %v635 = vadd.f32 0.0, %v634
      %v636 = vpop.f32.mrf.mxu0
      %v637 = vpop.f32.mrf.mxu0
      %v638 = vadd.f32 0.0, %v637
      %v639 = vpop.f32.mrf.mxu0
      %640 = vmatprep.mubr.bf16.mxu0 0
      %641 = vmatmul.mubr.bf16.gmra.mxu0 %v451
      %v642 = vpop.f32.mrf.mxu0
      %v643 = vadd.f32 0.0, %v642
      %v644 = vpop.f32.mrf.mxu0
      %v645 = vpop.f32.mrf.mxu0
      %v646 = vadd.f32 0.0, %v645
      %v647 = vpop.f32.mrf.mxu0
      %648 = vmatprep.mubr.bf16.mxu0 0
      %649 = vmatmul.mubr.bf16.gmra.mxu0 %v452
      %v650 = vpop.f32.mrf.mxu0
      %v651 = vadd.f32 0.0, %v650
      %v652 = vpop.f32.mrf.mxu0
      %v653 = vpop.f32.mrf.mxu0
      %v654 = vadd.f32 0.0, %v653
      %v655 = vpop.f32.mrf.mxu0
      %656 = vmatprep.mubr.bf16.mxu0 0
      %657 = vmatmul.mubr.bf16.gmra.mxu0 %v453
      %v658 = vpop.f32.mrf.mxu0
      %v659 = vadd.f32 0.0, %v658
      %v660 = vpop.f32.mrf.mxu0
      %v661 = vpop.f32.mrf.mxu0
      %v662 = vadd.f32 0.0, %v661
      %v663 = vpop.f32.mrf.mxu0
      %664 = vmatprep.mubr.bf16.mxu0 0
      %665 = vmatmul.mubr.bf16.gmra.mxu0 %v454
      %v666 = vpop.f32.mrf.mxu0
      %v667 = vadd.f32 0.0, %v666
      %v668 = vpop.f32.mrf.mxu0
      %v669 = vpop.f32.mrf.mxu0
      %v670 = vadd.f32 0.0, %v669
      %v671 = vpop.f32.mrf.mxu0
      %672 = vmatprep.mubr.bf16.mxu0 0
      %673 = vmatmul.mubr.bf16.gmra.mxu0 %v455
      %v674 = vpop.f32.mrf.mxu0
      %v675 = vadd.f32 0.0, %v674
      %v676 = vpop.f32.mrf.mxu0
      %v677 = vpop.f32.mrf.mxu0
      %v678 = vadd.f32 0.0, %v677
      %v679 = vpop.f32.mrf.mxu0
      %680 = vdwg.mxu0
      %v681 = vadd.f32 %v296, %v555
      %v682 = vadd.f32 %v297, %v558
      %v683 = vadd.f32 %v298, %v563
      %v684 = vadd.f32 %v299, %v566
      %v685 = vadd.f32 %v300, %v571
      %v686 = vadd.f32 %v301, %v574
      %v687 = vadd.f32 %v302, %v579
      %v688 = vadd.f32 %v303, %v582
      %v689 = vadd.f32 %v304, %v587
      %v690 = vadd.f32 %v305, %v590
      %v691 = vadd.f32 %v306, %v595
      %v692 = vadd.f32 %v307, %v598
      %v693 = vadd.f32 %v308, %v603
      %v694 = vadd.f32 %v309, %v606
      %v695 = vadd.f32 %v310, %v611
      %v696 = vadd.f32 %v311, %v614
      %v697 = vadd.f32 %v312, %v619
      %v698 = vadd.f32 %v313, %v622
      %v699 = vadd.f32 %v314, %v627
      %v700 = vadd.f32 %v315, %v630
      %v701 = vadd.f32 %v316, %v635
      %v702 = vadd.f32 %v317, %v638
      %v703 = vadd.f32 %v318, %v643
      %v704 = vadd.f32 %v319, %v646
      %v705 = vadd.f32 %v320, %v651
      %v706 = vadd.f32 %v321, %v654
      %v707 = vadd.f32 %v322, %v659
      %v708 = vadd.f32 %v323, %v662
      %v709 = vadd.f32 %v324, %v667
      %v710 = vadd.f32 %v325, %v670
      %v711 = vadd.f32 %v326, %v675
      %v712 = vadd.f32 %v327, %v678
      %713 = vst [vmem:[#allocation2] sm:$0xff] %v681
      %714 = vst [vmem:[#allocation2 + $0x8] sm:$0xff] %v682
      %715 = vst [vmem:[#allocation2 + $0x10] sm:$0xff] %v683
      %716 = vst [vmem:[#allocation2 + $0x18] sm:$0xff] %v684
      %717 = vst [vmem:[#allocation2 + $0x20] sm:$0xff] %v685
      %718 = vst [vmem:[#allocation2 + $0x28] sm:$0xff] %v686
      %719 = vst [vmem:[#allocation2 + $0x30] sm:$0xff] %v687
      %720 = vst [vmem:[#allocation2 + $0x38] sm:$0xff] %v688
      %721 = vst [vmem:[#allocation2 + $0x40] sm:$0xff] %v689
      %722 = vst [vmem:[#allocation2 + $0x48] sm:$0xff] %v690
      %723 = vst [vmem:[#allocation2 + $0x50] sm:$0xff] %v691
      %724 = vst [vmem:[#allocation2 + $0x58] sm:$0xff] %v692
      %725 = vst [vmem:[#allocation2 + $0x60] sm:$0xff] %v693
      %726 = vst [vmem:[#allocation2 + $0x68] sm:$0xff] %v694
      %727 = vst [vmem:[#allocation2 + $0x70] sm:$0xff] %v695
      %728 = vst [vmem:[#allocation2 + $0x78] sm:$0xff] %v696
      %729 = vst [vmem:[#allocation2 + $0x80] sm:$0xff] %v697
      %730 = vst [vmem:[#allocation2 + $0x88] sm:$0xff] %v698
      %731 = vst [vmem:[#allocation2 + $0x90] sm:$0xff] %v699
      %732 = vst [vmem:[#allocation2 + $0x98] sm:$0xff] %v700
      %733 = vst [vmem:[#allocation2 + $0xa0] sm:$0xff] %v701
      %734 = vst [vmem:[#allocation2 + $0xa8] sm:$0xff] %v702
      %735 = vst [vmem:[#allocation2 + $0xb0] sm:$0xff] %v703
      %736 = vst [vmem:[#allocation2 + $0xb8] sm:$0xff] %v704
      %737 = vst [vmem:[#allocation2 + $0xc0] sm:$0xff] %v705
      %738 = vst [vmem:[#allocation2 + $0xc8] sm:$0xff] %v706
      %739 = vst [vmem:[#allocation2 + $0xd0] sm:$0xff] %v707
      %740 = vst [vmem:[#allocation2 + $0xd8] sm:$0xff] %v708
      %741 = vst [vmem:[#allocation2 + $0xe0] sm:$0xff] %v709
      %742 = vst [vmem:[#allocation2 + $0xe8] sm:$0xff] %v710
      %743 = vst [vmem:[#allocation2 + $0xf0] sm:$0xff] %v711
      %744 = vst [vmem:[#allocation2 + $0xf8] sm:$0xff] %v712
      // Predicated region
      $region37: #{resnet_forward.27} parent=31 // pred_check
        %p745 = pneg %p260
      $region38: #{resnet_forward.27} parent=31 // pred_check_branch
        %747 = sbr.rel (%p745) target = $region40
      $region39: #{resnet_forward.27} parent=31 // pred_region
        %v748 = vld [vmem:[#allocation2] sm:$0xff]
        %v749 = vld [vmem:[#allocation2 + $0x8] sm:$0xff]
        %v750 = vld [vmem:[#allocation2 + $0x10] sm:$0xff]
        %v751 = vld [vmem:[#allocation2 + $0x18] sm:$0xff]
        %v752 = vld [vmem:[#allocation2 + $0x20] sm:$0xff]
        %v753 = vld [vmem:[#allocation2 + $0x28] sm:$0xff]
        %v754 = vld [vmem:[#allocation2 + $0x30] sm:$0xff]
        %v755 = vld [vmem:[#allocation2 + $0x38] sm:$0xff]
        %v756 = vld [vmem:[#allocation2 + $0x40] sm:$0xff]
        %v757 = vld [vmem:[#allocation2 + $0x48] sm:$0xff]
        %v758 = vld [vmem:[#allocation2 + $0x50] sm:$0xff]
        %v759 = vld [vmem:[#allocation2 + $0x58] sm:$0xff]
        %v760 = vld [vmem:[#allocation2 + $0x60] sm:$0xff]
        %v761 = vld [vmem:[#allocation2 + $0x68] sm:$0xff]
        %v762 = vld [vmem:[#allocation2 + $0x70] sm:$0xff]
        %v763 = vld [vmem:[#allocation2 + $0x78] sm:$0xff]
        %v764 = vld [vmem:[#allocation2 + $0x80] sm:$0xff]
        %v765 = vld [vmem:[#allocation2 + $0x88] sm:$0xff]
        %v766 = vld [vmem:[#allocation2 + $0x90] sm:$0xff]
        %v767 = vld [vmem:[#allocation2 + $0x98] sm:$0xff]
        %v768 = vld [vmem:[#allocation2 + $0xa0] sm:$0xff]
        %v769 = vld [vmem:[#allocation2 + $0xa8] sm:$0xff]
        %v770 = vld [vmem:[#allocation2 + $0xb0] sm:$0xff]
        %v771 = vld [vmem:[#allocation2 + $0xb8] sm:$0xff]
        %v772 = vld [vmem:[#allocation2 + $0xc0] sm:$0xff]
        %v773 = vld [vmem:[#allocation2 + $0xc8] sm:$0xff]
        %v774 = vld [vmem:[#allocation2 + $0xd0] sm:$0xff]
        %v775 = vld [vmem:[#allocation2 + $0xd8] sm:$0xff]
        %v776 = vld [vmem:[#allocation2 + $0xe0] sm:$0xff]
        %v777 = vld [vmem:[#allocation2 + $0xe8] sm:$0xff]
        %v778 = vld [vmem:[#allocation2 + $0xf0] sm:$0xff]
        %v779 = vld [vmem:[#allocation2 + $0xf8] sm:$0xff]
        %v780 = vld [vmem:[%s249] sm:$0x1]
        %v782 = vlaneseq
        %v783 = vshrl.u32 %v782, 7
        %v784 = vsub.s32 0, %v783
        %v785 = vrot.slane %v780, %v784
        %v787 = vmul.f32 %v748, %v785
        %v788 = vmul.f32 %v749, %v785
        %v789 = vmul.f32 %v750, %v785
        %v790 = vmul.f32 %v751, %v785
        %v791 = vmul.f32 %v752, %v785
        %v792 = vmul.f32 %v753, %v785
        %v793 = vmul.f32 %v754, %v785
        %v794 = vmul.f32 %v755, %v785
        %v795 = vmul.f32 %v756, %v785
        %v796 = vmul.f32 %v757, %v785
        %v797 = vmul.f32 %v758, %v785
        %v798 = vmul.f32 %v759, %v785
        %v799 = vmul.f32 %v760, %v785
        %v800 = vmul.f32 %v761, %v785
        %v801 = vmul.f32 %v762, %v785
        %v802 = vmul.f32 %v763, %v785
        %v803 = vmul.f32 %v764, %v785
        %v804 = vmul.f32 %v765, %v785
        %v805 = vmul.f32 %v766, %v785
        %v806 = vmul.f32 %v767, %v785
        %v807 = vmul.f32 %v768, %v785
        %v808 = vmul.f32 %v769, %v785
        %v809 = vmul.f32 %v770, %v785
        %v810 = vmul.f32 %v771, %v785
        %v811 = vmul.f32 %v772, %v785
        %v812 = vmul.f32 %v773, %v785
        %v813 = vmul.f32 %v774, %v785
        %v814 = vmul.f32 %v775, %v785
        %v815 = vmul.f32 %v776, %v785
        %v816 = vmul.f32 %v777, %v785
        %v817 = vmul.f32 %v778, %v785
        %v818 = vmul.f32 %v779, %v785
        %v819 = vmax.f32 %v787, 0.0
        %v820 = vmax.f32 %v788, 0.0
        %v821 = vmax.f32 %v789, 0.0
        %v822 = vmax.f32 %v790, 0.0
        %v823 = vmax.f32 %v791, 0.0
        %v824 = vmax.f32 %v792, 0.0
        %v825 = vmax.f32 %v793, 0.0
        %v826 = vmax.f32 %v794, 0.0
        %v827 = vmax.f32 %v795, 0.0
        %v828 = vmax.f32 %v796, 0.0
        %v829 = vmax.f32 %v797, 0.0
        %v830 = vmax.f32 %v798, 0.0
        %v831 = vmax.f32 %v799, 0.0
        %v832 = vmax.f32 %v800, 0.0
        %v833 = vmax.f32 %v801, 0.0
        %v834 = vmax.f32 %v802, 0.0
        %v835 = vmax.f32 %v803, 0.0
        %v836 = vmax.f32 %v804, 0.0
        %v837 = vmax.f32 %v805, 0.0
        %v838 = vmax.f32 %v806, 0.0
        %v839 = vmax.f32 %v807, 0.0
        %v840 = vmax.f32 %v808, 0.0
        %v841 = vmax.f32 %v809, 0.0
        %v842 = vmax.f32 %v810, 0.0
        %v843 = vmax.f32 %v811, 0.0
        %v844 = vmax.f32 %v812, 0.0
        %v845 = vmax.f32 %v813, 0.0
        %v846 = vmax.f32 %v814, 0.0
        %v847 = vmax.f32 %v815, 0.0
        %v848 = vmax.f32 %v816, 0.0
        %v849 = vmax.f32 %v817, 0.0
        %v850 = vmax.f32 %v818, 0.0
        %851 = vst [vmem:[%s257] sm:$0xff] %v819
        %852 = vst [vmem:[%s257 + $0x8] sm:$0xff] %v820
        %853 = vst [vmem:[%s257 + $0x10] sm:$0xff] %v821
        %854 = vst [vmem:[%s257 + $0x18] sm:$0xff] %v822
        %855 = vst [vmem:[%s257 + $0x20] sm:$0xff] %v823
        %856 = vst [vmem:[%s257 + $0x28] sm:$0xff] %v824
        %857 = vst [vmem:[%s257 + $0x30] sm:$0xff] %v825
        %858 = vst [vmem:[%s257 + $0x38] sm:$0xff] %v826
        %859 = vst [vmem:[%s257 + $0x40] sm:$0xff] %v827
        %860 = vst [vmem:[%s257 + $0x48] sm:$0xff] %v828
        %861 = vst [vmem:[%s257 + $0x50] sm:$0xff] %v829
        %862 = vst [vmem:[%s257 + $0x58] sm:$0xff] %v830
        %863 = vst [vmem:[%s257 + $0x60] sm:$0xff] %v831
        %864 = vst [vmem:[%s257 + $0x68] sm:$0xff] %v832
        %865 = vst [vmem:[%s257 + $0x70] sm:$0xff] %v833
        %866 = vst [vmem:[%s257 + $0x78] sm:$0xff] %v834
        %867 = vst [vmem:[%s257 + $0x80] sm:$0xff] %v835
        %868 = vst [vmem:[%s257 + $0x88] sm:$0xff] %v836
        %869 = vst [vmem:[%s257 + $0x90] sm:$0xff] %v837
        %870 = vst [vmem:[%s257 + $0x98] sm:$0xff] %v838
        %871 = vst [vmem:[%s257 + $0xa0] sm:$0xff] %v839
        %872 = vst [vmem:[%s257 + $0xa8] sm:$0xff] %v840
        %873 = vst [vmem:[%s257 + $0xb0] sm:$0xff] %v841
        %874 = vst [vmem:[%s257 + $0xb8] sm:$0xff] %v842
        %875 = vst [vmem:[%s257 + $0xc0] sm:$0xff] %v843
        %876 = vst [vmem:[%s257 + $0xc8] sm:$0xff] %v844
        %877 = vst [vmem:[%s257 + $0xd0] sm:$0xff] %v845
        %878 = vst [vmem:[%s257 + $0xd8] sm:$0xff] %v846
        %879 = vst [vmem:[%s257 + $0xe0] sm:$0xff] %v847
        %880 = vst [vmem:[%s257 + $0xe8] sm:$0xff] %v848
        %881 = vst [vmem:[%s257 + $0xf0] sm:$0xff] %v849
        %882 = vst [vmem:[%s257 + $0xf8] sm:$0xff] %v850
      $region40: #{resnet_forward.27} parent=31 // pred_fallthru
        _
      %s883 = smul.u32 32, %s19
      %p884 = scmp.lt.s32.totalorder %s883, 63
      %s885 = scalar_select %p884, %s883, 63
      %p886 = scmp.lt.s32.totalorder %s20, 0
      %s887 = scalar_select %p886, %s20, 0
      %s888 = sadd.s32 %s887, %s885
      %s889 = smul.addr %s888, 8
      %s890 = scalar_lea.vmem %s3, %s889
      // Predicated region
      $region41: #{resnet_forward.27} parent=31 // pred_check
        %p891 = pneg %p135
      $region42: #{resnet_forward.27} parent=31 // pred_check_branch
        %893 = sbr.rel (%p891) target = $region44
      $region43: #{resnet_forward.27} parent=31 // pred_region
        %s894 = smul.u32 32, %s19
      $region44: #{resnet_forward.27} parent=31 // pred_fallthru
        _
    $region32: #{resnet_forward.27} parent=5 // pred_fallthru
      _
    %p895 = scmp.le.s32.totalorder 2, %s9
    // Predicated region
    $region45: #{resnet_forward.27} parent=5 // pred_check
      %p896 = pneg %p895
    $region46: #{resnet_forward.27} parent=5 // pred_check_branch
      %898 = sbr.rel (%p896) target = $region48
    $region47: #{resnet_forward.27} parent=5 // pred_region
      %s899 = ssub.s32 %s9, 2
      // Predicated region
      $region49: #{resnet_forward.27} parent=47 // pred_check
        %p900 = pneg %p141
      $region50: #{resnet_forward.27} parent=47 // pred_check_branch
        %902 = sbr.rel (%p900) target = $region52
      $region51: #{resnet_forward.27} parent=47 // pred_region
        %s903 = smul.u32 32, %s22
        %p904 = scmp.lt.s32.totalorder %s903, 63
        %s905 = scalar_select %p904, %s903, 63
        %p906 = scmp.lt.s32.totalorder %s23, 0
        %s907 = scalar_select %p906, %s23, 0
        %s908 = sadd.s32 %s907, %s905
        %s909 = smul.addr %s908, 8
        %s910 = scalar_lea.vmem %s3, %s909
      $region52: #{resnet_forward.27} parent=47 // pred_fallthru
        _
    $region48: #{resnet_forward.27} parent=5 // pred_fallthru
      _
  $region6: #{resnet_forward.27} parent=0 // loop_footer
    %s13 = sadd.s32 1, %s9
  $region7: #{resnet_forward.27} parent=0 // loop_footer_branch
    %8 = sbr.rel target = $region3
  $region8: #{resnet_forward.27} parent=0 // loop_exit
    _

// kernel: resnet_forward.29
$region0: #{resnet_forward.29}
  #allocation0 [shape = 'u32[]', space=smem, size = 0x4, offset = 0x4, fixed_abs, tag = 'smem constant byte address 0x4 - core index']
  #allocation1 [shape = 'u32[144,128]{1,0:T(1,128)}', space=vmem, size = 0x12000, scoped, tag = 'internal scratch']
  %s0 = inlined_call_operand.vmem [shape: f32[512,128], index: 0, kind: input, shape index: {}]
  %s1 = inlined_call_operand.vmem [shape: f32[1,128], index: 1, kind: input, shape index: {}]
  %s2 = inlined_call_operand.vmem [shape: f32[1,128], index: 2, kind: input, shape index: {}]
  %s3 = inlined_call_operand.vmem [shape: f32[512,128], index: 3, kind: output, shape index: {}]
  %s4 = sld [smem:[#allocation0]]
  $region45: #{resnet_forward.29} parent=0
    _
  %s6 = ssub.s32 1, %s4
  %s7 = scalar_select 0, %s6, %s4
  loop: start=0, step=1, limit=4
  $region2: #{resnet_forward.29} parent=0 // loop_pre_header
    _
  $region3: #{resnet_forward.29} parent=0 // loop_header
    %s9 = sphi 0, %s13
    %p10 = scmp.ge.s32.totalorder %s9, 4
    %s19 = sphi 0, %s21
    %s22 = sphi 0, %s19
    %s23 = sphi 0, %s22
    %s39 = sphi 0, %s23
    %s43 = sphi 0, %s43
    %s45 = sphi 0, %s43
    %s46 = sphi 0, %s45
    %s60 = sphi 0, %s46
    %s64 = sphi 0, %s64
    %s66 = sphi 0, %s64
    %s67 = sphi 0, %s66
    %s81 = sphi 0, %s67
    %s87 = sphi 0, %s89
    %s90 = sphi 0, %s87
    %s91 = sphi 0, %s90
    %s107 = sphi 0, %s91
  $region4: #{resnet_forward.29} parent=0 // loop_header_branch
    %12 = sbr.rel (%p10) target = $region8
  $region5: #{resnet_forward.29} parent=0 // loop_body
    %s14 = ssub.s32 %s9, 1
    %s15 = ssub.s32 %s9, 2
    %s16 = sadd.s32 %s9, 1
    %s17 = ssub.s32 %s9, %s16
    %p18 = scmp.eq.s32.totalorder %s17, 0
    %s20 = sadd.s32 %s19, 1
    %s21 = scalar_select %p18, %s19, %s20
    %p24 = pneg %p18
    %p25 = scmp.eq.s32.totalorder %s9, 1
    %p26 = por %p24, %p25
    %p27 = scmp.ne.s32.totalorder %s19, %s22
    %p28 = scmp.eq.s32.totalorder %s9, 0
    %p29 = por %p27, %p28
    %p30 = scmp.ne.s32.totalorder %s19, %s22
    %p31 = scmp.eq.s32.totalorder %s14, 1
    %p32 = por %p30, %p31
    %p33 = scmp.ne.s32.totalorder %s22, %s23
    %p34 = scmp.eq.s32.totalorder %s14, 0
    %p35 = por %p33, %p34
    %p36 = scmp.ne.s32.totalorder %s22, %s23
    %p37 = scmp.eq.s32.totalorder %s15, 1
    %p38 = por %p36, %p37
    %p40 = scmp.ne.s32.totalorder %s23, %s39
    %p41 = scmp.eq.s32.totalorder %s15, 0
    %p42 = por %p40, %p41
    %s44 = sadd.s32 %s43, 1
    %p47 = scmp.eq.s32.totalorder %s9, 1
    %p48 = scmp.ne.s32.totalorder %s43, %s45
    %p49 = scmp.eq.s32.totalorder %s9, 0
    %p50 = por %p48, %p49
    %p51 = scmp.ne.s32.totalorder %s43, %s45
    %p52 = scmp.eq.s32.totalorder %s14, 1
    %p53 = por %p51, %p52
    %p54 = scmp.ne.s32.totalorder %s45, %s46
    %p55 = scmp.eq.s32.totalorder %s14, 0
    %p56 = por %p54, %p55
    %p57 = scmp.ne.s32.totalorder %s45, %s46
    %p58 = scmp.eq.s32.totalorder %s15, 1
    %p59 = por %p57, %p58
    %p61 = scmp.ne.s32.totalorder %s46, %s60
    %p62 = scmp.eq.s32.totalorder %s15, 0
    %p63 = por %p61, %p62
    %s65 = sadd.s32 %s64, 1
    %p68 = scmp.eq.s32.totalorder %s9, 1
    %p69 = scmp.ne.s32.totalorder %s64, %s66
    %p70 = scmp.eq.s32.totalorder %s9, 0
    %p71 = por %p69, %p70
    %p72 = scmp.ne.s32.totalorder %s64, %s66
    %p73 = scmp.eq.s32.totalorder %s14, 1
    %p74 = por %p72, %p73
    %p75 = scmp.ne.s32.totalorder %s66, %s67
    %p76 = scmp.eq.s32.totalorder %s14, 0
    %p77 = por %p75, %p76
    %p78 = scmp.ne.s32.totalorder %s66, %s67
    %p79 = scmp.eq.s32.totalorder %s15, 1
    %p80 = por %p78, %p79
    %p82 = scmp.ne.s32.totalorder %s67, %s81
    %p83 = scmp.eq.s32.totalorder %s15, 0
    %p84 = por %p82, %p83
    %s85 = ssub.s32 %s9, %s16
    %p86 = scmp.eq.s32.totalorder %s85, 0
    %s88 = sadd.s32 %s87, 1
    %s89 = scalar_select %p86, %s87, %s88
    %p92 = pneg %p86
    %p93 = scmp.eq.s32.totalorder %s9, 1
    %p94 = por %p92, %p93
    %p95 = scmp.ne.s32.totalorder %s87, %s90
    %p96 = scmp.eq.s32.totalorder %s9, 0
    %p97 = por %p95, %p96
    %p98 = scmp.ne.s32.totalorder %s87, %s90
    %p99 = scmp.eq.s32.totalorder %s14, 1
    %p100 = por %p98, %p99
    %p101 = scmp.ne.s32.totalorder %s90, %s91
    %p102 = scmp.eq.s32.totalorder %s14, 0
    %p103 = por %p101, %p102
    %p104 = scmp.ne.s32.totalorder %s90, %s91
    %p105 = scmp.eq.s32.totalorder %s15, 1
    %p106 = por %p104, %p105
    %p108 = scmp.ne.s32.totalorder %s91, %s107
    %p109 = scmp.eq.s32.totalorder %s15, 0
    %p110 = por %p108, %p109
    %p111 = scmp.le.s32.totalorder 1, %s9
    %p112 = scmp.lt.s32.totalorder %s9, 3
    %p113 = pnand %p111, %p112
    %p114 = pneg %p113
    // Predicated region
    $region9: #{resnet_forward.29} parent=5 // pred_check
      _
    $region10: #{resnet_forward.29} parent=5 // pred_check_branch
      %116 = sbr.rel (%p113) target = $region12
    $region11: #{resnet_forward.29} parent=5 // pred_region
      %s117 = ssub.s32 %s9, 1
      // Predicated region
      $region13: #{resnet_forward.29} parent=11 // pred_check
        %p118 = pneg %p56
      $region14: #{resnet_forward.29} parent=11 // pred_check_branch
        %120 = sbr.rel (%p118) target = $region16
      $region15: #{resnet_forward.29} parent=11 // pred_region
        _
      $region16: #{resnet_forward.29} parent=11 // pred_fallthru
        _
      // Predicated region
      $region17: #{resnet_forward.29} parent=11 // pred_check
        %p121 = pneg %p77
      $region18: #{resnet_forward.29} parent=11 // pred_check_branch
        %123 = sbr.rel (%p121) target = $region20
      $region19: #{resnet_forward.29} parent=11 // pred_region
        _
      $region20: #{resnet_forward.29} parent=11 // pred_fallthru
        _
    $region12: #{resnet_forward.29} parent=5 // pred_fallthru
      _
    %p124 = scmp.lt.s32.totalorder %s9, 2
    // Predicated region
    $region21: #{resnet_forward.29} parent=5 // pred_check
      %p125 = pneg %p124
    $region22: #{resnet_forward.29} parent=5 // pred_check_branch
      %127 = sbr.rel (%p125) target = $region24
    $region23: #{resnet_forward.29} parent=5 // pred_region
      // Predicated region
      $region25: #{resnet_forward.29} parent=23 // pred_check
        %p128 = pneg %p29
      $region26: #{resnet_forward.29} parent=23 // pred_check_branch
        %130 = sbr.rel (%p128) target = $region28
      $region27: #{resnet_forward.29} parent=23 // pred_region
        %s131 = smul.u32 32, %s9
        %p132 = scmp.lt.s32.totalorder %s131, 63
        %s133 = scalar_select %p132, %s131, 63
        %s134 = smul.addr %s133, 8
        %s135 = scalar_lea.vmem %s0, %s134
        %s136 = smul.u32 32, %s9
      $region28: #{resnet_forward.29} parent=23 // pred_fallthru
        _
    $region24: #{resnet_forward.29} parent=5 // pred_fallthru
      _
    %p137 = scmp.le.s32.totalorder 1, %s9
    %p138 = scmp.lt.s32.totalorder %s9, 3
    %p139 = pnand %p137, %p138
    %p140 = pneg %p139
    // Predicated region
    $region29: #{resnet_forward.29} parent=5 // pred_check
      _
    $region30: #{resnet_forward.29} parent=5 // pred_check_branch
      %142 = sbr.rel (%p139) target = $region32
    $region31: #{resnet_forward.29} parent=5 // pred_region
      %s143 = ssub.s32 %s9, 1
      %s144 = smul.u32 32, %s14
      %p145 = scmp.lt.s32.totalorder %s144, 63
      %s146 = scalar_select %p145, %s144, 63
      %s147 = smul.addr %s146, 8
      %s148 = scalar_lea.vmem %s0, %s147
      %p149 = pneg %p35
      %p150 = pneg %p32
      %p151 = pneg %p56
      %p152 = pneg %p53
      %p153 = pneg %p77
      %p154 = pneg %p74
      %p155 = pneg %p103
      %p156 = pneg %p100
      %s157 = smul.u32 32, %s14
      %p158 = scmp.lt.s32.totalorder %s157, 63
      %s159 = scalar_select %p158, %s157, 63
      %s160 = smul.addr %s159, 8
      %s161 = scalar_lea.vmem %s3, %s160
      %s162 = smul.u32 32, %s14
      %p163 = scmp.lt.s32.totalorder %s162, 63
      %s164 = scalar_select %p163, %s162, 63
      %s165 = smul.addr %s164, 8
      %s166 = scalar_lea.vmem %s0, %s165
      %s167 = smul.u32 32, %s14
      %s168 = smul.u32 32, %s14
      %p169 = scmp.lt.s32.totalorder %s168, 63
      %s170 = scalar_select %p169, %s168, 63
      %s171 = smul.addr %s170, 8
      %s172 = scalar_lea.vmem %s3, %s171
      %s173 = smul.u32 32, %s14
      %v174 = vld [vmem:[%s166] sm:$0xff]
      %v175 = vld [vmem:[%s166 + $0x8] sm:$0xff]
      %v176 = vld [vmem:[%s166 + $0x10] sm:$0xff]
      %v177 = vld [vmem:[%s166 + $0x18] sm:$0xff]
      %v178 = vld [vmem:[%s166 + $0x20] sm:$0xff]
      %v179 = vld [vmem:[%s166 + $0x28] sm:$0xff]
      %v180 = vld [vmem:[%s166 + $0x30] sm:$0xff]
      %v181 = vld [vmem:[%s166 + $0x38] sm:$0xff]
      %v182 = vld [vmem:[%s166 + $0x40] sm:$0xff]
      %v183 = vld [vmem:[%s166 + $0x48] sm:$0xff]
      %v184 = vld [vmem:[%s166 + $0x50] sm:$0xff]
      %v185 = vld [vmem:[%s166 + $0x58] sm:$0xff]
      %v186 = vld [vmem:[%s166 + $0x60] sm:$0xff]
      %v187 = vld [vmem:[%s166 + $0x68] sm:$0xff]
      %v188 = vld [vmem:[%s166 + $0x70] sm:$0xff]
      %v189 = vld [vmem:[%s166 + $0x78] sm:$0xff]
      %v190 = vld [vmem:[%s166 + $0x80] sm:$0xff]
      %v191 = vld [vmem:[%s166 + $0x88] sm:$0xff]
      %v192 = vld [vmem:[%s166 + $0x90] sm:$0xff]
      %v193 = vld [vmem:[%s166 + $0x98] sm:$0xff]
      %v194 = vld [vmem:[%s166 + $0xa0] sm:$0xff]
      %v195 = vld [vmem:[%s166 + $0xa8] sm:$0xff]
      %v196 = vld [vmem:[%s166 + $0xb0] sm:$0xff]
      %v197 = vld [vmem:[%s166 + $0xb8] sm:$0xff]
      %v198 = vld [vmem:[%s166 + $0xc0] sm:$0xff]
      %v199 = vld [vmem:[%s166 + $0xc8] sm:$0xff]
      %v200 = vld [vmem:[%s166 + $0xd0] sm:$0xff]
      %v201 = vld [vmem:[%s166 + $0xd8] sm:$0xff]
      %v202 = vld [vmem:[%s166 + $0xe0] sm:$0xff]
      %v203 = vld [vmem:[%s166 + $0xe8] sm:$0xff]
      %v204 = vld [vmem:[%s166 + $0xf0] sm:$0xff]
      %v205 = vld [vmem:[%s166 + $0xf8] sm:$0xff]
      %v206 = vld [vmem:[%s1] sm:$0x1]
      %v208 = vlaneseq
      %v209 = vshrl.u32 %v208, 7
      %v210 = vsub.s32 0, %v209
      %v211 = vrot.slane %v206, %v210
      %v213 = vmul.f32 %v174, %v211
      %v214 = vmul.f32 %v175, %v211
      %v215 = vmul.f32 %v176, %v211
      %v216 = vmul.f32 %v177, %v211
      %v217 = vmul.f32 %v178, %v211
      %v218 = vmul.f32 %v179, %v211
      %v219 = vmul.f32 %v180, %v211
      %v220 = vmul.f32 %v181, %v211
      %v221 = vmul.f32 %v182, %v211
      %v222 = vmul.f32 %v183, %v211
      %v223 = vmul.f32 %v184, %v211
      %v224 = vmul.f32 %v185, %v211
      %v225 = vmul.f32 %v186, %v211
      %v226 = vmul.f32 %v187, %v211
      %v227 = vmul.f32 %v188, %v211
      %v228 = vmul.f32 %v189, %v211
      %v229 = vmul.f32 %v190, %v211
      %v230 = vmul.f32 %v191, %v211
      %v231 = vmul.f32 %v192, %v211
      %v232 = vmul.f32 %v193, %v211
      %v233 = vmul.f32 %v194, %v211
      %v234 = vmul.f32 %v195, %v211
      %v235 = vmul.f32 %v196, %v211
      %v236 = vmul.f32 %v197, %v211
      %v237 = vmul.f32 %v198, %v211
      %v238 = vmul.f32 %v199, %v211
      %v239 = vmul.f32 %v200, %v211
      %v240 = vmul.f32 %v201, %v211
      %v241 = vmul.f32 %v202, %v211
      %v242 = vmul.f32 %v203, %v211
      %v243 = vmul.f32 %v204, %v211
      %v244 = vmul.f32 %v205, %v211
      %v245 = vld [vmem:[%s2] sm:$0x1]
      %v247 = vlaneseq
      %v248 = vshrl.u32 %v247, 7
      %v249 = vsub.s32 0, %v248
      %v250 = vrot.slane %v245, %v249
      %v252 = vadd.f32 %v213, %v250
      %v253 = vadd.f32 %v214, %v250
      %v254 = vadd.f32 %v215, %v250
      %v255 = vadd.f32 %v216, %v250
      %v256 = vadd.f32 %v217, %v250
      %v257 = vadd.f32 %v218, %v250
      %v258 = vadd.f32 %v219, %v250
      %v259 = vadd.f32 %v220, %v250
      %v260 = vadd.f32 %v221, %v250
      %v261 = vadd.f32 %v222, %v250
      %v262 = vadd.f32 %v223, %v250
      %v263 = vadd.f32 %v224, %v250
      %v264 = vadd.f32 %v225, %v250
      %v265 = vadd.f32 %v226, %v250
      %v266 = vadd.f32 %v227, %v250
      %v267 = vadd.f32 %v228, %v250
      %v268 = vadd.f32 %v229, %v250
      %v269 = vadd.f32 %v230, %v250
      %v270 = vadd.f32 %v231, %v250
      %v271 = vadd.f32 %v232, %v250
      %v272 = vadd.f32 %v233, %v250
      %v273 = vadd.f32 %v234, %v250
      %v274 = vadd.f32 %v235, %v250
      %v275 = vadd.f32 %v236, %v250
      %v276 = vadd.f32 %v237, %v250
      %v277 = vadd.f32 %v238, %v250
      %v278 = vadd.f32 %v239, %v250
      %v279 = vadd.f32 %v240, %v250
      %v280 = vadd.f32 %v241, %v250
      %v281 = vadd.f32 %v242, %v250
      %v282 = vadd.f32 %v243, %v250
      %v283 = vadd.f32 %v244, %v250
      %v284 = vmax.f32 %v252, 0.0
      %v285 = vmax.f32 %v253, 0.0
      %v286 = vmax.f32 %v254, 0.0
      %v287 = vmax.f32 %v255, 0.0
      %v288 = vmax.f32 %v256, 0.0
      %v289 = vmax.f32 %v257, 0.0
      %v290 = vmax.f32 %v258, 0.0
      %v291 = vmax.f32 %v259, 0.0
      %v292 = vmax.f32 %v260, 0.0
      %v293 = vmax.f32 %v261, 0.0
      %v294 = vmax.f32 %v262, 0.0
      %v295 = vmax.f32 %v263, 0.0
      %v296 = vmax.f32 %v264, 0.0
      %v297 = vmax.f32 %v265, 0.0
      %v298 = vmax.f32 %v266, 0.0
      %v299 = vmax.f32 %v267, 0.0
      %v300 = vmax.f32 %v268, 0.0
      %v301 = vmax.f32 %v269, 0.0
      %v302 = vmax.f32 %v270, 0.0
      %v303 = vmax.f32 %v271, 0.0
      %v304 = vmax.f32 %v272, 0.0
      %v305 = vmax.f32 %v273, 0.0
      %v306 = vmax.f32 %v274, 0.0
      %v307 = vmax.f32 %v275, 0.0
      %v308 = vmax.f32 %v276, 0.0
      %v309 = vmax.f32 %v277, 0.0
      %v310 = vmax.f32 %v278, 0.0
      %v311 = vmax.f32 %v279, 0.0
      %v312 = vmax.f32 %v280, 0.0
      %v313 = vmax.f32 %v281, 0.0
      %v314 = vmax.f32 %v282, 0.0
      %v315 = vmax.f32 %v283, 0.0
      %v316 = vmin.f32 %v284, 6.0
      %v317 = vmin.f32 %v285, 6.0
      %v318 = vmin.f32 %v286, 6.0
      %v319 = vmin.f32 %v287, 6.0
      %v320 = vmin.f32 %v288, 6.0
      %v321 = vmin.f32 %v289, 6.0
      %v322 = vmin.f32 %v290, 6.0
      %v323 = vmin.f32 %v291, 6.0
      %v324 = vmin.f32 %v292, 6.0
      %v325 = vmin.f32 %v293, 6.0
      %v326 = vmin.f32 %v294, 6.0
      %v327 = vmin.f32 %v295, 6.0
      %v328 = vmin.f32 %v296, 6.0
      %v329 = vmin.f32 %v297, 6.0
      %v330 = vmin.f32 %v298, 6.0
      %v331 = vmin.f32 %v299, 6.0
      %v332 = vmin.f32 %v300, 6.0
      %v333 = vmin.f32 %v301, 6.0
      %v334 = vmin.f32 %v302, 6.0
      %v335 = vmin.f32 %v303, 6.0
      %v336 = vmin.f32 %v304, 6.0
      %v337 = vmin.f32 %v305, 6.0
      %v338 = vmin.f32 %v306, 6.0
      %v339 = vmin.f32 %v307, 6.0
      %v340 = vmin.f32 %v308, 6.0
      %v341 = vmin.f32 %v309, 6.0
      %v342 = vmin.f32 %v310, 6.0
      %v343 = vmin.f32 %v311, 6.0
      %v344 = vmin.f32 %v312, 6.0
      %v345 = vmin.f32 %v313, 6.0
      %v346 = vmin.f32 %v314, 6.0
      %v347 = vmin.f32 %v315, 6.0
      %348 = vst [vmem:[%s172] sm:$0xff] %v316
      %349 = vst [vmem:[%s172 + $0x8] sm:$0xff] %v317
      %350 = vst [vmem:[%s172 + $0x10] sm:$0xff] %v318
      %351 = vst [vmem:[%s172 + $0x18] sm:$0xff] %v319
      %352 = vst [vmem:[%s172 + $0x20] sm:$0xff] %v320
      %353 = vst [vmem:[%s172 + $0x28] sm:$0xff] %v321
      %354 = vst [vmem:[%s172 + $0x30] sm:$0xff] %v322
      %355 = vst [vmem:[%s172 + $0x38] sm:$0xff] %v323
      %356 = vst [vmem:[%s172 + $0x40] sm:$0xff] %v324
      %357 = vst [vmem:[%s172 + $0x48] sm:$0xff] %v325
      %358 = vst [vmem:[%s172 + $0x50] sm:$0xff] %v326
      %359 = vst [vmem:[%s172 + $0x58] sm:$0xff] %v327
      %360 = vst [vmem:[%s172 + $0x60] sm:$0xff] %v328
      %361 = vst [vmem:[%s172 + $0x68] sm:$0xff] %v329
      %362 = vst [vmem:[%s172 + $0x70] sm:$0xff] %v330
      %363 = vst [vmem:[%s172 + $0x78] sm:$0xff] %v331
      %364 = vst [vmem:[%s172 + $0x80] sm:$0xff] %v332
      %365 = vst [vmem:[%s172 + $0x88] sm:$0xff] %v333
      %366 = vst [vmem:[%s172 + $0x90] sm:$0xff] %v334
      %367 = vst [vmem:[%s172 + $0x98] sm:$0xff] %v335
      %368 = vst [vmem:[%s172 + $0xa0] sm:$0xff] %v336
      %369 = vst [vmem:[%s172 + $0xa8] sm:$0xff] %v337
      %370 = vst [vmem:[%s172 + $0xb0] sm:$0xff] %v338
      %371 = vst [vmem:[%s172 + $0xb8] sm:$0xff] %v339
      %372 = vst [vmem:[%s172 + $0xc0] sm:$0xff] %v340
      %373 = vst [vmem:[%s172 + $0xc8] sm:$0xff] %v341
      %374 = vst [vmem:[%s172 + $0xd0] sm:$0xff] %v342
      %375 = vst [vmem:[%s172 + $0xd8] sm:$0xff] %v343
      %376 = vst [vmem:[%s172 + $0xe0] sm:$0xff] %v344
      %377 = vst [vmem:[%s172 + $0xe8] sm:$0xff] %v345
      %378 = vst [vmem:[%s172 + $0xf0] sm:$0xff] %v346
      %379 = vst [vmem:[%s172 + $0xf8] sm:$0xff] %v347
      %s380 = smul.u32 32, %s14
      %p381 = scmp.lt.s32.totalorder %s380, 63
      %s382 = scalar_select %p381, %s380, 63
      %s383 = smul.addr %s382, 8
      %s384 = scalar_lea.vmem %s3, %s383
      // Predicated region
      $region33: #{resnet_forward.29} parent=31 // pred_check
        %p385 = pneg %p100
      $region34: #{resnet_forward.29} parent=31 // pred_check_branch
        %387 = sbr.rel (%p385) target = $region36
      $region35: #{resnet_forward.29} parent=31 // pred_region
        %s388 = smul.u32 32, %s14
      $region36: #{resnet_forward.29} parent=31 // pred_fallthru
        _
    $region32: #{resnet_forward.29} parent=5 // pred_fallthru
      _
    %p389 = scmp.le.s32.totalorder 2, %s9
    // Predicated region
    $region37: #{resnet_forward.29} parent=5 // pred_check
      %p390 = pneg %p389
    $region38: #{resnet_forward.29} parent=5 // pred_check_branch
      %392 = sbr.rel (%p390) target = $region40
    $region39: #{resnet_forward.29} parent=5 // pred_region
      %s393 = ssub.s32 %s9, 2
      // Predicated region
      $region41: #{resnet_forward.29} parent=39 // pred_check
        %p394 = pneg %p106
      $region42: #{resnet_forward.29} parent=39 // pred_check_branch
        %396 = sbr.rel (%p394) target = $region44
      $region43: #{resnet_forward.29} parent=39 // pred_region
        %s397 = smul.u32 32, %s15
        %p398 = scmp.lt.s32.totalorder %s397, 63
        %s399 = scalar_select %p398, %s397, 63
        %s400 = smul.addr %s399, 8
        %s401 = scalar_lea.vmem %s3, %s400
      $region44: #{resnet_forward.29} parent=39 // pred_fallthru
        _
    $region40: #{resnet_forward.29} parent=5 // pred_fallthru
      _
  $region6: #{resnet_forward.29} parent=0 // loop_footer
    %s13 = sadd.s32 1, %s9
  $region7: #{resnet_forward.29} parent=0 // loop_footer_branch
    %8 = sbr.rel target = $region3
  $region8: #{resnet_forward.29} parent=0 // loop_exit
    _

// kernel: resnet_forward.28
$region0: #{resnet_forward.28}
  #allocation0 [shape = 'u32[]', space=smem, size = 0x4, offset = 0x4, fixed_abs, tag = 'smem constant byte address 0x4 - core index']
  #allocation1 [shape = 'u32[144,128]{1,0:T(1,128)}', space=vmem, size = 0x12000, scoped, tag = 'internal scratch']
  #allocation2 [shape = 'f32[256,128]{1,0:T(8,128)}', space=vmem, size = 0x20000, scoped, tag = 'scratch operand']
  %s0 = inlined_call_operand.vmem [shape: bf16[512,128], index: 0, kind: input, shape index: {}]
  %s1 = inlined_call_operand.vmem [shape: bf16[128,128], index: 1, kind: input, shape index: {}]
  %s2 = inlined_call_operand.vmem [shape: f32[1,128], index: 2, kind: input, shape index: {}]
  %s3 = inlined_call_operand.vmem [shape: f32[512,128], index: 3, kind: output, shape index: {0}]
  %s4 = inlined_call_operand.vmem [shape: f32[16,128], index: 4, kind: output, shape index: {1}]
  %5 = xla_tuple %s3, %s4
  %s6 = sld [smem:[#allocation0]]
  $region61: #{resnet_forward.28} parent=0
    _
  %s8 = ssub.s32 1, %s6
  %s9 = scalar_select 0, %s8, %s6
  loop: start=0, step=1, limit=4
  $region2: #{resnet_forward.28} parent=0 // loop_pre_header
    _
  $region3: #{resnet_forward.28} parent=0 // loop_header
    %s11 = sphi 0, %s15
    %p12 = scmp.ge.s32.totalorder %s11, 4
    %s18 = sphi 0, %s37
    %s19 = sphi 0, %s33
    %s20 = sphi 0, %s29
    %s21 = sphi 0, %s18
    %s22 = sphi 0, %s19
    %s23 = sphi 0, %s20
    %s24 = sphi 0, %s21
    %s25 = sphi 0, %s22
    %s26 = sphi 0, %s23
    %s42 = sphi 0, %s44
    %s45 = sphi 0, %s42
    %s46 = sphi 0, %s45
    %s62 = sphi 0, %s46
    %s70 = sphi 0, %s72
    %s73 = sphi 0, %s70
    %s74 = sphi 0, %s73
    %s90 = sphi 0, %s74
    %s96 = sphi 0, %s98
    %s99 = sphi 0, %s96
    %s100 = sphi 0, %s99
    %s116 = sphi 0, %s100
    %s124 = sphi 0, %s126
    %s127 = sphi 0, %s124
    %s128 = sphi 0, %s127
    %s144 = sphi 0, %s128
    %s152 = sphi 0, %s154
    %s155 = sphi 0, %s152
    %s156 = sphi 0, %s155
    %s172 = sphi 0, %s156
  $region4: #{resnet_forward.28} parent=0 // loop_header_branch
    %14 = sbr.rel (%p12) target = $region8
  $region5: #{resnet_forward.28} parent=0 // loop_body
    %s16 = ssub.s32 %s11, 1
    %s17 = ssub.s32 %s11, 2
    %s27 = sadd.s32 1, %s20
    %p28 = scmp.ge.s32.totalorder %s27, 1
    %s29 = scalar_select %p28, 0, %s27
    %s30 = sadd.s32 1, %s19
    %s31 = scalar_select %p28, %s30, %s19
    %p32 = scmp.ge.s32.totalorder %s31, 1
    %s33 = scalar_select %p32, 0, %s31
    %s34 = sadd.s32 1, %s18
    %s35 = scalar_select %p32, %s34, %s18
    %p36 = scmp.ge.s32.totalorder %s35, 2
    %s37 = scalar_select %p36, 0, %s35
    %s38 = ssub.s32 %s18, %s37
    %s39 = ssub.s32 %s20, %s29
    %s40 = sor.u32 %s38, %s39
    %p41 = scmp.eq.s32.totalorder %s40, 0
    %s43 = sadd.s32 %s42, 1
    %s44 = scalar_select %p41, %s42, %s43
    %p47 = pneg %p41
    %p48 = scmp.eq.s32.totalorder %s11, 1
    %p49 = por %p47, %p48
    %p50 = scmp.ne.s32.totalorder %s42, %s45
    %p51 = scmp.eq.s32.totalorder %s11, 0
    %p52 = por %p50, %p51
    %p53 = scmp.ne.s32.totalorder %s42, %s45
    %p54 = scmp.eq.s32.totalorder %s16, 1
    %p55 = por %p53, %p54
    %p56 = scmp.ne.s32.totalorder %s45, %s46
    %p57 = scmp.eq.s32.totalorder %s16, 0
    %p58 = por %p56, %p57
    %p59 = scmp.ne.s32.totalorder %s45, %s46
    %p60 = scmp.eq.s32.totalorder %s17, 1
    %p61 = por %p59, %p60
    %p63 = scmp.ne.s32.totalorder %s46, %s62
    %p64 = scmp.eq.s32.totalorder %s17, 0
    %p65 = por %p63, %p64
    %s66 = ssub.s32 %s20, %s29
    %s67 = ssub.s32 %s19, %s33
    %s68 = sor.u32 %s66, %s67
    %p69 = scmp.eq.s32.totalorder %s68, 0
    %s71 = sadd.s32 %s70, 1
    %s72 = scalar_select %p69, %s70, %s71
    %p75 = pneg %p69
    %p76 = scmp.eq.s32.totalorder %s11, 1
    %p77 = por %p75, %p76
    %p78 = scmp.ne.s32.totalorder %s70, %s73
    %p79 = scmp.eq.s32.totalorder %s11, 0
    %p80 = por %p78, %p79
    %p81 = scmp.ne.s32.totalorder %s70, %s73
    %p82 = scmp.eq.s32.totalorder %s16, 1
    %p83 = por %p81, %p82
    %p84 = scmp.ne.s32.totalorder %s73, %s74
    %p85 = scmp.eq.s32.totalorder %s16, 0
    %p86 = por %p84, %p85
    %p87 = scmp.ne.s32.totalorder %s73, %s74
    %p88 = scmp.eq.s32.totalorder %s17, 1
    %p89 = por %p87, %p88
    %p91 = scmp.ne.s32.totalorder %s74, %s90
    %p92 = scmp.eq.s32.totalorder %s17, 0
    %p93 = por %p91, %p92
    %s94 = ssub.s32 %s19, %s33
    %p95 = scmp.eq.s32.totalorder %s94, 0
    %s97 = sadd.s32 %s96, 1
    %s98 = scalar_select %p95, %s96, %s97
    %p101 = pneg %p95
    %p102 = scmp.eq.s32.totalorder %s11, 1
    %p103 = por %p101, %p102
    %p104 = scmp.ne.s32.totalorder %s96, %s99
    %p105 = scmp.eq.s32.totalorder %s11, 0
    %p106 = por %p104, %p105
    %p107 = scmp.ne.s32.totalorder %s96, %s99
    %p108 = scmp.eq.s32.totalorder %s16, 1
    %p109 = por %p107, %p108
    %p110 = scmp.ne.s32.totalorder %s99, %s100
    %p111 = scmp.eq.s32.totalorder %s16, 0
    %p112 = por %p110, %p111
    %p113 = scmp.ne.s32.totalorder %s99, %s100
    %p114 = scmp.eq.s32.totalorder %s17, 1
    %p115 = por %p113, %p114
    %p117 = scmp.ne.s32.totalorder %s100, %s116
    %p118 = scmp.eq.s32.totalorder %s17, 0
    %p119 = por %p117, %p118
    %s120 = ssub.s32 %s18, %s37
    %s121 = ssub.s32 %s19, %s33
    %s122 = sor.u32 %s120, %s121
    %p123 = scmp.eq.s32.totalorder %s122, 0
    %s125 = sadd.s32 %s124, 1
    %s126 = scalar_select %p123, %s124, %s125
    %p129 = pneg %p123
    %p130 = scmp.eq.s32.totalorder %s11, 1
    %p131 = por %p129, %p130
    %p132 = scmp.ne.s32.totalorder %s124, %s127
    %p133 = scmp.eq.s32.totalorder %s11, 0
    %p134 = por %p132, %p133
    %p135 = scmp.ne.s32.totalorder %s124, %s127
    %p136 = scmp.eq.s32.totalorder %s16, 1
    %p137 = por %p135, %p136
    %p138 = scmp.ne.s32.totalorder %s127, %s128
    %p139 = scmp.eq.s32.totalorder %s16, 0
    %p140 = por %p138, %p139
    %p141 = scmp.ne.s32.totalorder %s127, %s128
    %p142 = scmp.eq.s32.totalorder %s17, 1
    %p143 = por %p141, %p142
    %p145 = scmp.ne.s32.totalorder %s128, %s144
    %p146 = scmp.eq.s32.totalorder %s17, 0
    %p147 = por %p145, %p146
    %s148 = ssub.s32 %s18, %s37
    %s149 = ssub.s32 %s19, %s33
    %s150 = sor.u32 %s148, %s149
    %p151 = scmp.eq.s32.totalorder %s150, 0
    %s153 = sadd.s32 %s152, 1
    %s154 = scalar_select %p151, %s152, %s153
    %p157 = pneg %p151
    %p158 = scmp.eq.s32.totalorder %s11, 1
    %p159 = por %p157, %p158
    %p160 = scmp.ne.s32.totalorder %s152, %s155
    %p161 = scmp.eq.s32.totalorder %s11, 0
    %p162 = por %p160, %p161
    %p163 = scmp.ne.s32.totalorder %s152, %s155
    %p164 = scmp.eq.s32.totalorder %s16, 1
    %p165 = por %p163, %p164
    %p166 = scmp.ne.s32.totalorder %s155, %s156
    %p167 = scmp.eq.s32.totalorder %s16, 0
    %p168 = por %p166, %p167
    %p169 = scmp.ne.s32.totalorder %s155, %s156
    %p170 = scmp.eq.s32.totalorder %s17, 1
    %p171 = por %p169, %p170
    %p173 = scmp.ne.s32.totalorder %s156, %s172
    %p174 = scmp.eq.s32.totalorder %s17, 0
    %p175 = por %p173, %p174
    %p176 = scmp.le.s32.totalorder 1, %s11
    %p177 = scmp.lt.s32.totalorder %s11, 3
    %p178 = pnand %p176, %p177
    %p179 = pneg %p178
    // Predicated region
    $region9: #{resnet_forward.28} parent=5 // pred_check
      _
    $region10: #{resnet_forward.28} parent=5 // pred_check_branch
      %181 = sbr.rel (%p178) target = $region12
    $region11: #{resnet_forward.28} parent=5 // pred_region
      %s182 = ssub.s32 %s11, 1
      // Predicated region
      $region13: #{resnet_forward.28} parent=11 // pred_check
        %p183 = pneg %p86
      $region14: #{resnet_forward.28} parent=11 // pred_check_branch
        %185 = sbr.rel (%p183) target = $region16
      $region15: #{resnet_forward.28} parent=11 // pred_region
        %s186 = smul.u32 16, %s23
        %p187 = scmp.lt.s32.totalorder %s186, 15
        %s188 = scalar_select %p187, %s186, 15
        %p189 = scmp.lt.s32.totalorder %s22, 0
        %s190 = scalar_select %p189, %s22, 0
        %s191 = sadd.s32 %s190, %s188
        %s192 = smul.addr %s191, 4
        %s193 = scalar_lea.vmem %s1, %s192
        %s194 = smul.u32 16, %s23
      $region16: #{resnet_forward.28} parent=11 // pred_fallthru
        _
      // Predicated region
      $region17: #{resnet_forward.28} parent=11 // pred_check
        %p195 = pneg %p112
      $region18: #{resnet_forward.28} parent=11 // pred_check_branch
        %197 = sbr.rel (%p195) target = $region20
      $region19: #{resnet_forward.28} parent=11 // pred_region
        %p198 = scmp.lt.s32.totalorder %s22, 0
        %s199 = scalar_select %p198, %s22, 0
        %s200 = scalar_lea.vmem %s2, %s199
      $region20: #{resnet_forward.28} parent=11 // pred_fallthru
        _
    $region12: #{resnet_forward.28} parent=5 // pred_fallthru
      _
    %p201 = scmp.lt.s32.totalorder %s11, 2
    // Predicated region
    $region21: #{resnet_forward.28} parent=5 // pred_check
      %p202 = pneg %p201
    $region22: #{resnet_forward.28} parent=5 // pred_check_branch
      %204 = sbr.rel (%p202) target = $region24
    $region23: #{resnet_forward.28} parent=5 // pred_region
      // Predicated region
      $region25: #{resnet_forward.28} parent=23 // pred_check
        %p205 = pneg %p52
      $region26: #{resnet_forward.28} parent=23 // pred_check_branch
        %207 = sbr.rel (%p205) target = $region28
      $region27: #{resnet_forward.28} parent=23 // pred_region
        %s208 = smul.u32 32, %s18
        %p209 = scmp.lt.s32.totalorder %s208, 63
        %s210 = scalar_select %p209, %s208, 63
        %p211 = scmp.lt.s32.totalorder %s20, 0
        %s212 = scalar_select %p211, %s20, 0
        %s213 = sadd.s32 %s212, %s210
        %s214 = smul.addr %s213, 4
        %s215 = scalar_lea.vmem %s0, %s214
        %s216 = smul.u32 32, %s18
      $region28: #{resnet_forward.28} parent=23 // pred_fallthru
        _
    $region24: #{resnet_forward.28} parent=5 // pred_fallthru
      _
    %p217 = scmp.le.s32.totalorder 1, %s11
    %p218 = scmp.lt.s32.totalorder %s11, 3
    %p219 = pnand %p217, %p218
    %p220 = pneg %p219
    // Predicated region
    $region29: #{resnet_forward.28} parent=5 // pred_check
      _
    $region30: #{resnet_forward.28} parent=5 // pred_check_branch
      %222 = sbr.rel (%p219) target = $region32
    $region31: #{resnet_forward.28} parent=5 // pred_region
      %s223 = ssub.s32 %s11, 1
      %s224 = smul.u32 32, %s21
      %p225 = scmp.lt.s32.totalorder %s224, 63
      %s226 = scalar_select %p225, %s224, 63
      %p227 = scmp.lt.s32.totalorder %s23, 0
      %s228 = scalar_select %p227, %s23, 0
      %s229 = sadd.s32 %s228, %s226
      %s230 = smul.addr %s229, 4
      %s231 = scalar_lea.vmem %s0, %s230
      %p232 = pneg %p58
      %p233 = pneg %p55
      %s234 = smul.u32 16, %s23
      %p235 = scmp.lt.s32.totalorder %s234, 15
      %s236 = scalar_select %p235, %s234, 15
      %p237 = scmp.lt.s32.totalorder %s22, 0
      %s238 = scalar_select %p237, %s22, 0
      %s239 = sadd.s32 %s238, %s236
      %s240 = smul.addr %s239, 4
      %s241 = scalar_lea.vmem %s1, %s240
      %p242 = pneg %p86
      %p243 = pneg %p83
      %p244 = scmp.lt.s32.totalorder %s22, 0
      %s245 = scalar_select %p244, %s22, 0
      %s246 = scalar_lea.vmem %s2, %s245
      %p247 = pneg %p112
      %p248 = pneg %p109
      %p249 = pneg %p140
      %p250 = pneg %p137
      %s251 = smul.u32 32, %s21
      %p252 = scmp.lt.s32.totalorder %s251, 63
      %s253 = scalar_select %p252, %s251, 63
      %p254 = scmp.lt.s32.totalorder %s22, 0
      %s255 = scalar_select %p254, %s22, 0
      %s256 = sadd.s32 %s255, %s253
      %s257 = smul.addr %s256, 8
      %s258 = scalar_lea.vmem %s3, %s257
      %p259 = pneg %p168
      %p260 = pneg %p165
      %p261 = scmp.lt.s32.totalorder %s21, 1
      %s262 = scalar_select %p261, %s21, 1
      %p263 = scmp.lt.s32.totalorder %s22, 0
      %s264 = scalar_select %p263, %s22, 0
      %s265 = sadd.s32 %s264, %s262
      %s266 = smul.addr %s265, 8
      %s267 = scalar_lea.vmem %s4, %s266
      %s268 = smul.u32 32, %s21
      %p269 = scmp.lt.s32.totalorder %s268, 63
      %s270 = scalar_select %p269, %s268, 63
      %p271 = scmp.lt.s32.totalorder %s23, 0
      %s272 = scalar_select %p271, %s23, 0
      %s273 = sadd.s32 %s272, %s270
      %s274 = smul.addr %s273, 4
      %s275 = scalar_lea.vmem %s0, %s274
      %s276 = smul.u32 32, %s21
      %s277 = smul.u32 16, %s23
      %p278 = scmp.lt.s32.totalorder %s277, 15
      %s279 = scalar_select %p278, %s277, 15
      %p280 = scmp.lt.s32.totalorder %s22, 0
      %s281 = scalar_select %p280, %s22, 0
      %s282 = sadd.s32 %s281, %s279
      %s283 = smul.addr %s282, 4
      %s284 = scalar_lea.vmem %s1, %s283
      %s285 = smul.u32 16, %s23
      %p286 = scmp.lt.s32.totalorder %s22, 0
      %s287 = scalar_select %p286, %s22, 0
      %s288 = scalar_lea.vmem %s2, %s287
      %s289 = smul.u32 32, %s21
      %p290 = scmp.lt.s32.totalorder %s289, 63
      %s291 = scalar_select %p290, %s289, 63
      %p292 = scmp.lt.s32.totalorder %s22, 0
      %s293 = scalar_select %p292, %s22, 0
      %s294 = sadd.s32 %s293, %s291
      %s295 = smul.addr %s294, 8
      %s296 = scalar_lea.vmem %s3, %s295
      %s297 = smul.u32 32, %s21
      %p298 = scmp.lt.s32.totalorder %s21, 1
      %s299 = scalar_select %p298, %s21, 1
      %p300 = scmp.lt.s32.totalorder %s22, 0
      %s301 = scalar_select %p300, %s22, 0
      %s302 = sadd.s32 %s301, %s299
      %s303 = smul.addr %s302, 8
      %s304 = scalar_lea.vmem %s4, %s303
      %p306 = scmp.eq.s32.totalorder %s23, 0
      // Predicated region
      $region33: #{resnet_forward.28} parent=31 // pred_check
        %p307 = pneg %p306
      $region34: #{resnet_forward.28} parent=31 // pred_check_branch
        %309 = sbr.rel (%p307) target = $region36
      $region35: #{resnet_forward.28} parent=31 // pred_region
        %310 = vst [vmem:[#allocation2] sm:$0xff] 0.0
        %311 = vst [vmem:[#allocation2 + $0x8] sm:$0xff] 0.0
        %312 = vst [vmem:[#allocation2 + $0x10] sm:$0xff] 0.0
        %313 = vst [vmem:[#allocation2 + $0x18] sm:$0xff] 0.0
        %314 = vst [vmem:[#allocation2 + $0x20] sm:$0xff] 0.0
        %315 = vst [vmem:[#allocation2 + $0x28] sm:$0xff] 0.0
        %316 = vst [vmem:[#allocation2 + $0x30] sm:$0xff] 0.0
        %317 = vst [vmem:[#allocation2 + $0x38] sm:$0xff] 0.0
        %318 = vst [vmem:[#allocation2 + $0x40] sm:$0xff] 0.0
        %319 = vst [vmem:[#allocation2 + $0x48] sm:$0xff] 0.0
        %320 = vst [vmem:[#allocation2 + $0x50] sm:$0xff] 0.0
        %321 = vst [vmem:[#allocation2 + $0x58] sm:$0xff] 0.0
        %322 = vst [vmem:[#allocation2 + $0x60] sm:$0xff] 0.0
        %323 = vst [vmem:[#allocation2 + $0x68] sm:$0xff] 0.0
        %324 = vst [vmem:[#allocation2 + $0x70] sm:$0xff] 0.0
        %325 = vst [vmem:[#allocation2 + $0x78] sm:$0xff] 0.0
        %326 = vst [vmem:[#allocation2 + $0x80] sm:$0xff] 0.0
        %327 = vst [vmem:[#allocation2 + $0x88] sm:$0xff] 0.0
        %328 = vst [vmem:[#allocation2 + $0x90] sm:$0xff] 0.0
        %329 = vst [vmem:[#allocation2 + $0x98] sm:$0xff] 0.0
        %330 = vst [vmem:[#allocation2 + $0xa0] sm:$0xff] 0.0
        %331 = vst [vmem:[#allocation2 + $0xa8] sm:$0xff] 0.0
        %332 = vst [vmem:[#allocation2 + $0xb0] sm:$0xff] 0.0
        %333 = vst [vmem:[#allocation2 + $0xb8] sm:$0xff] 0.0
        %334 = vst [vmem:[#allocation2 + $0xc0] sm:$0xff] 0.0
        %335 = vst [vmem:[#allocation2 + $0xc8] sm:$0xff] 0.0
        %336 = vst [vmem:[#allocation2 + $0xd0] sm:$0xff] 0.0
        %337 = vst [vmem:[#allocation2 + $0xd8] sm:$0xff] 0.0
        %338 = vst [vmem:[#allocation2 + $0xe0] sm:$0xff] 0.0
        %339 = vst [vmem:[#allocation2 + $0xe8] sm:$0xff] 0.0
        %340 = vst [vmem:[#allocation2 + $0xf0] sm:$0xff] 0.0
        %341 = vst [vmem:[#allocation2 + $0xf8] sm:$0xff] 0.0
      $region36: #{resnet_forward.28} parent=31 // pred_fallthru
        _
      %v342 = vld [vmem:[#allocation2] sm:$0xff]
      %v343 = vld [vmem:[#allocation2 + $0x8] sm:$0xff]
      %v344 = vld [vmem:[#allocation2 + $0x10] sm:$0xff]
      %v345 = vld [vmem:[#allocation2 + $0x18] sm:$0xff]
      %v346 = vld [vmem:[#allocation2 + $0x20] sm:$0xff]
      %v347 = vld [vmem:[#allocation2 + $0x28] sm:$0xff]
      %v348 = vld [vmem:[#allocation2 + $0x30] sm:$0xff]
      %v349 = vld [vmem:[#allocation2 + $0x38] sm:$0xff]
      %v350 = vld [vmem:[#allocation2 + $0x40] sm:$0xff]
      %v351 = vld [vmem:[#allocation2 + $0x48] sm:$0xff]
      %v352 = vld [vmem:[#allocation2 + $0x50] sm:$0xff]
      %v353 = vld [vmem:[#allocation2 + $0x58] sm:$0xff]
      %v354 = vld [vmem:[#allocation2 + $0x60] sm:$0xff]
      %v355 = vld [vmem:[#allocation2 + $0x68] sm:$0xff]
      %v356 = vld [vmem:[#allocation2 + $0x70] sm:$0xff]
      %v357 = vld [vmem:[#allocation2 + $0x78] sm:$0xff]
      %v358 = vld [vmem:[#allocation2 + $0x80] sm:$0xff]
      %v359 = vld [vmem:[#allocation2 + $0x88] sm:$0xff]
      %v360 = vld [vmem:[#allocation2 + $0x90] sm:$0xff]
      %v361 = vld [vmem:[#allocation2 + $0x98] sm:$0xff]
      %v362 = vld [vmem:[#allocation2 + $0xa0] sm:$0xff]
      %v363 = vld [vmem:[#allocation2 + $0xa8] sm:$0xff]
      %v364 = vld [vmem:[#allocation2 + $0xb0] sm:$0xff]
      %v365 = vld [vmem:[#allocation2 + $0xb8] sm:$0xff]
      %v366 = vld [vmem:[#allocation2 + $0xc0] sm:$0xff]
      %v367 = vld [vmem:[#allocation2 + $0xc8] sm:$0xff]
      %v368 = vld [vmem:[#allocation2 + $0xd0] sm:$0xff]
      %v369 = vld [vmem:[#allocation2 + $0xd8] sm:$0xff]
      %v370 = vld [vmem:[#allocation2 + $0xe0] sm:$0xff]
      %v371 = vld [vmem:[#allocation2 + $0xe8] sm:$0xff]
      %v372 = vld [vmem:[#allocation2 + $0xf0] sm:$0xff]
      %v373 = vld [vmem:[#allocation2 + $0xf8] sm:$0xff]
      %v374 = vld [vmem:[%s275] sm:$0xf]
      %v375 = vld [vmem:[%s275 + $0x4] sm:$0xf]
      %v376 = vld [vmem:[%s275 + $0x8] sm:$0xf]
      %v377 = vld [vmem:[%s275 + $0xc] sm:$0xf]
      %v378 = vld [vmem:[%s275 + $0x10] sm:$0xf]
      %v379 = vld [vmem:[%s275 + $0x14] sm:$0xf]
      %v380 = vld [vmem:[%s275 + $0x18] sm:$0xf]
      %v381 = vld [vmem:[%s275 + $0x1c] sm:$0xf]
      %v382 = vld [vmem:[%s275 + $0x20] sm:$0xf]
      %v383 = vld [vmem:[%s275 + $0x24] sm:$0xf]
      %v384 = vld [vmem:[%s275 + $0x28] sm:$0xf]
      %v385 = vld [vmem:[%s275 + $0x2c] sm:$0xf]
      %v386 = vld [vmem:[%s275 + $0x30] sm:$0xf]
      %v387 = vld [vmem:[%s275 + $0x34] sm:$0xf]
      %v388 = vld [vmem:[%s275 + $0x38] sm:$0xf]
      %v389 = vld [vmem:[%s275 + $0x3c] sm:$0xf]
      %v390 = vld [vmem:[%s275 + $0x40] sm:$0xf]
      %v391 = vld [vmem:[%s275 + $0x44] sm:$0xf]
      %v392 = vld [vmem:[%s275 + $0x48] sm:$0xf]
      %v393 = vld [vmem:[%s275 + $0x4c] sm:$0xf]
      %v394 = vld [vmem:[%s275 + $0x50] sm:$0xf]
      %v395 = vld [vmem:[%s275 + $0x54] sm:$0xf]
      %v396 = vld [vmem:[%s275 + $0x58] sm:$0xf]
      %v397 = vld [vmem:[%s275 + $0x5c] sm:$0xf]
      %v398 = vld [vmem:[%s275 + $0x60] sm:$0xf]
      %v399 = vld [vmem:[%s275 + $0x64] sm:$0xf]
      %v400 = vld [vmem:[%s275 + $0x68] sm:$0xf]
      %v401 = vld [vmem:[%s275 + $0x6c] sm:$0xf]
      %v402 = vld [vmem:[%s275 + $0x70] sm:$0xf]
      %v403 = vld [vmem:[%s275 + $0x74] sm:$0xf]
      %v404 = vld [vmem:[%s275 + $0x78] sm:$0xf]
      %v405 = vld [vmem:[%s275 + $0x7c] sm:$0xf]
      %v406 = vld [vmem:[%s284] sm:$0xf]
      %v407 = vld [vmem:[%s284 + $0x4] sm:$0xf]
      %v408 = vld [vmem:[%s284 + $0x8] sm:$0xf]
      %v409 = vld [vmem:[%s284 + $0xc] sm:$0xf]
      %v410 = vld [vmem:[%s284 + $0x10] sm:$0xf]
      %v411 = vld [vmem:[%s284 + $0x14] sm:$0xf]
      %v412 = vld [vmem:[%s284 + $0x18] sm:$0xf]
      %v413 = vld [vmem:[%s284 + $0x1c] sm:$0xf]
      %v414 = vld [vmem:[%s284 + $0x20] sm:$0xf]
      %v415 = vld [vmem:[%s284 + $0x24] sm:$0xf]
      %v416 = vld [vmem:[%s284 + $0x28] sm:$0xf]
      %v417 = vld [vmem:[%s284 + $0x2c] sm:$0xf]
      %v418 = vld [vmem:[%s284 + $0x30] sm:$0xf]
      %v419 = vld [vmem:[%s284 + $0x34] sm:$0xf]
      %v420 = vld [vmem:[%s284 + $0x38] sm:$0xf]
      %v421 = vld [vmem:[%s284 + $0x3c] sm:$0xf]
      %v454 = vunpack.c.l.b16 %v374
      %v455 = vunpack.c.l.b16 %v375
      %v456 = vunpack.c.l.b16 %v376
      %v457 = vunpack.c.l.b16 %v377
      %v458 = vunpack.c.l.b16 %v378
      %v459 = vunpack.c.l.b16 %v379
      %v460 = vunpack.c.l.b16 %v380
      %v461 = vunpack.c.l.b16 %v381
      %v462 = vunpack.c.l.b16 %v382
      %v463 = vunpack.c.l.b16 %v383
      %v464 = vunpack.c.l.b16 %v384
      %v465 = vunpack.c.l.b16 %v385
      %v466 = vunpack.c.l.b16 %v386
      %v467 = vunpack.c.l.b16 %v387
      %v468 = vunpack.c.l.b16 %v388
      %v469 = vunpack.c.l.b16 %v389
      %v470 = vunpack.c.l.b16 %v390
      %v471 = vunpack.c.l.b16 %v391
      %v472 = vunpack.c.l.b16 %v392
      %v473 = vunpack.c.l.b16 %v393
      %v474 = vunpack.c.l.b16 %v394
      %v475 = vunpack.c.l.b16 %v395
      %v476 = vunpack.c.l.b16 %v396
      %v477 = vunpack.c.l.b16 %v397
      %v478 = vunpack.c.l.b16 %v398
      %v479 = vunpack.c.l.b16 %v399
      %v480 = vunpack.c.l.b16 %v400
      %v481 = vunpack.c.l.b16 %v401
      %v482 = vunpack.c.l.b16 %v402
      %v483 = vunpack.c.l.b16 %v403
      %v484 = vunpack.c.l.b16 %v404
      %v485 = vunpack.c.l.b16 %v405
      %v486 = vpack.c.b16 %v455, %v454
      %v487 = vpack.c.b16 %v457, %v456
      %v488 = vpack.c.b16 %v459, %v458
      %v489 = vpack.c.b16 %v461, %v460
      %v490 = vpack.c.b16 %v463, %v462
      %v491 = vpack.c.b16 %v465, %v464
      %v492 = vpack.c.b16 %v467, %v466
      %v493 = vpack.c.b16 %v469, %v468
      %v494 = vpack.c.b16 %v471, %v470
      %v495 = vpack.c.b16 %v473, %v472
      %v496 = vpack.c.b16 %v475, %v474
      %v497 = vpack.c.b16 %v477, %v476
      %v498 = vpack.c.b16 %v479, %v478
      %v499 = vpack.c.b16 %v481, %v480
      %v500 = vpack.c.b16 %v483, %v482
      %v501 = vpack.c.b16 %v485, %v484
      %v534 = vunpack.c.l.b16 %v406
      %v535 = vunpack.c.l.b16 %v407
      %v536 = vunpack.c.l.b16 %v408
      %v537 = vunpack.c.l.b16 %v409
      %v538 = vunpack.c.l.b16 %v410
      %v539 = vunpack.c.l.b16 %v411
      %v540 = vunpack.c.l.b16 %v412
      %v541 = vunpack.c.l.b16 %v413
      %v542 = vunpack.c.l.b16 %v414
      %v543 = vunpack.c.l.b16 %v415
      %v544 = vunpack.c.l.b16 %v416
      %v545 = vunpack.c.l.b16 %v417
      %v546 = vunpack.c.l.b16 %v418
      %v547 = vunpack.c.l.b16 %v419
      %v548 = vunpack.c.l.b16 %v420
      %v549 = vunpack.c.l.b16 %v421
      %v550 = vpack.c.b16 %v535, %v534
      %v551 = vpack.c.b16 %v537, %v536
      %v552 = vpack.c.b16 %v539, %v538
      %v553 = vpack.c.b16 %v541, %v540
      %v554 = vpack.c.b16 %v543, %v542
      %v555 = vpack.c.b16 %v545, %v544
      %v556 = vpack.c.b16 %v547, %v546
      %v557 = vpack.c.b16 %v549, %v548
      %566 = vmatprep.subr.bf16.mxu0 0
      %567 = vmatpush1.bf16.msra.mxu0 %v557
      %568 = vmatprep.subr.bf16.mxu0 0
      %569 = vmatpush1.bf16.msra.mxu0 %v556
      %570 = vmatprep.subr.bf16.mxu0 0
      %571 = vmatpush1.bf16.msra.mxu0 %v555
      %572 = vmatprep.subr.bf16.mxu0 0
      %573 = vmatpush1.bf16.msra.mxu0 %v554
      %574 = vmatprep.subr.bf16.mxu0 0
      %575 = vmatpush1.bf16.msra.mxu0 %v553
      %576 = vmatprep.subr.bf16.mxu0 0
      %577 = vmatpush1.bf16.msra.mxu0 %v552
      %578 = vmatprep.subr.bf16.mxu0 0
      %579 = vmatpush1.bf16.msra.mxu0 %v551
      %580 = vmatprep.subr.bf16.mxu0 0
      %581 = vmatpush1.bf16.msra.mxu0 %v550
      %582 = vmatprep.subr.bf16.mxu0 0
      %583 = vmatpush2.bf16.msra.mxu0 0
      %584 = vmatprep.subr.bf16.mxu0 0
      %585 = vmatpush2.bf16.msra.mxu0 0
      %586 = vmatprep.subr.bf16.mxu0 0
      %587 = vmatpush2.bf16.msra.mxu0 0
      %588 = vmatprep.subr.bf16.mxu0 0
      %589 = vmatpush2.bf16.msra.mxu0 0
      %590 = vmatprep.subr.bf16.mxu0 0
      %591 = vmatpush2.bf16.msra.mxu0 0
      %592 = vmatprep.subr.bf16.mxu0 0
      %593 = vmatpush2.bf16.msra.mxu0 0
      %594 = vmatprep.subr.bf16.mxu0 0
      %595 = vmatpush2.bf16.msra.mxu0 0
      %596 = vmatprep.subr.bf16.mxu0 0
      %597 = vmatpush2.bf16.msra.mxu0 0
      %598 = vmatprep.mubr.bf16.mxu0 0
      %599 = vmatmul.mubr.bf16.gmra.mxu0 %v486
      %v600 = vpop.f32.mrf.mxu0
      %v601 = vadd.f32 0.0, %v600
      %v602 = vpop.f32.mrf.mxu0
      %v603 = vpop.f32.mrf.mxu0
      %v604 = vadd.f32 0.0, %v603
      %v605 = vpop.f32.mrf.mxu0
      %606 = vmatprep.mubr.bf16.mxu0 0
      %607 = vmatmul.mubr.bf16.gmra.mxu0 %v487
      %v608 = vpop.f32.mrf.mxu0
      %v609 = vadd.f32 0.0, %v608
      %v610 = vpop.f32.mrf.mxu0
      %v611 = vpop.f32.mrf.mxu0
      %v612 = vadd.f32 0.0, %v611
      %v613 = vpop.f32.mrf.mxu0
      %614 = vmatprep.mubr.bf16.mxu0 0
      %615 = vmatmul.mubr.bf16.gmra.mxu0 %v488
      %v616 = vpop.f32.mrf.mxu0
      %v617 = vadd.f32 0.0, %v616
      %v618 = vpop.f32.mrf.mxu0
      %v619 = vpop.f32.mrf.mxu0
      %v620 = vadd.f32 0.0, %v619
      %v621 = vpop.f32.mrf.mxu0
      %622 = vmatprep.mubr.bf16.mxu0 0
      %623 = vmatmul.mubr.bf16.gmra.mxu0 %v489
      %v624 = vpop.f32.mrf.mxu0
      %v625 = vadd.f32 0.0, %v624
      %v626 = vpop.f32.mrf.mxu0
      %v627 = vpop.f32.mrf.mxu0
      %v628 = vadd.f32 0.0, %v627
      %v629 = vpop.f32.mrf.mxu0
      %630 = vmatprep.mubr.bf16.mxu0 0
      %631 = vmatmul.mubr.bf16.gmra.mxu0 %v490
      %v632 = vpop.f32.mrf.mxu0
      %v633 = vadd.f32 0.0, %v632
      %v634 = vpop.f32.mrf.mxu0
      %v635 = vpop.f32.mrf.mxu0
      %v636 = vadd.f32 0.0, %v635
      %v637 = vpop.f32.mrf.mxu0
      %638 = vmatprep.mubr.bf16.mxu0 0
      %639 = vmatmul.mubr.bf16.gmra.mxu0 %v491
      %v640 = vpop.f32.mrf.mxu0
      %v641 = vadd.f32 0.0, %v640
      %v642 = vpop.f32.mrf.mxu0
      %v643 = vpop.f32.mrf.mxu0
      %v644 = vadd.f32 0.0, %v643
      %v645 = vpop.f32.mrf.mxu0
      %646 = vmatprep.mubr.bf16.mxu0 0
      %647 = vmatmul.mubr.bf16.gmra.mxu0 %v492
      %v648 = vpop.f32.mrf.mxu0
      %v649 = vadd.f32 0.0, %v648
      %v650 = vpop.f32.mrf.mxu0
      %v651 = vpop.f32.mrf.mxu0
      %v652 = vadd.f32 0.0, %v651
      %v653 = vpop.f32.mrf.mxu0
      %654 = vmatprep.mubr.bf16.mxu0 0
      %655 = vmatmul.mubr.bf16.gmra.mxu0 %v493
      %v656 = vpop.f32.mrf.mxu0
      %v657 = vadd.f32 0.0, %v656
      %v658 = vpop.f32.mrf.mxu0
      %v659 = vpop.f32.mrf.mxu0
      %v660 = vadd.f32 0.0, %v659
      %v661 = vpop.f32.mrf.mxu0
      %662 = vmatprep.mubr.bf16.mxu0 0
      %663 = vmatmul.mubr.bf16.gmra.mxu0 %v494
      %v664 = vpop.f32.mrf.mxu0
      %v665 = vadd.f32 0.0, %v664
      %v666 = vpop.f32.mrf.mxu0
      %v667 = vpop.f32.mrf.mxu0
      %v668 = vadd.f32 0.0, %v667
      %v669 = vpop.f32.mrf.mxu0
      %670 = vmatprep.mubr.bf16.mxu0 0
      %671 = vmatmul.mubr.bf16.gmra.mxu0 %v495
      %v672 = vpop.f32.mrf.mxu0
      %v673 = vadd.f32 0.0, %v672
      %v674 = vpop.f32.mrf.mxu0
      %v675 = vpop.f32.mrf.mxu0
      %v676 = vadd.f32 0.0, %v675
      %v677 = vpop.f32.mrf.mxu0
      %678 = vmatprep.mubr.bf16.mxu0 0
      %679 = vmatmul.mubr.bf16.gmra.mxu0 %v496
      %v680 = vpop.f32.mrf.mxu0
      %v681 = vadd.f32 0.0, %v680
      %v682 = vpop.f32.mrf.mxu0
      %v683 = vpop.f32.mrf.mxu0
      %v684 = vadd.f32 0.0, %v683
      %v685 = vpop.f32.mrf.mxu0
      %686 = vmatprep.mubr.bf16.mxu0 0
      %687 = vmatmul.mubr.bf16.gmra.mxu0 %v497
      %v688 = vpop.f32.mrf.mxu0
      %v689 = vadd.f32 0.0, %v688
      %v690 = vpop.f32.mrf.mxu0
      %v691 = vpop.f32.mrf.mxu0
      %v692 = vadd.f32 0.0, %v691
      %v693 = vpop.f32.mrf.mxu0
      %694 = vmatprep.mubr.bf16.mxu0 0
      %695 = vmatmul.mubr.bf16.gmra.mxu0 %v498
      %v696 = vpop.f32.mrf.mxu0
      %v697 = vadd.f32 0.0, %v696
      %v698 = vpop.f32.mrf.mxu0
      %v699 = vpop.f32.mrf.mxu0
      %v700 = vadd.f32 0.0, %v699
      %v701 = vpop.f32.mrf.mxu0
      %702 = vmatprep.mubr.bf16.mxu0 0
      %703 = vmatmul.mubr.bf16.gmra.mxu0 %v499
      %v704 = vpop.f32.mrf.mxu0
      %v705 = vadd.f32 0.0, %v704
      %v706 = vpop.f32.mrf.mxu0
      %v707 = vpop.f32.mrf.mxu0
      %v708 = vadd.f32 0.0, %v707
      %v709 = vpop.f32.mrf.mxu0
      %710 = vmatprep.mubr.bf16.mxu0 0
      %711 = vmatmul.mubr.bf16.gmra.mxu0 %v500
      %v712 = vpop.f32.mrf.mxu0
      %v713 = vadd.f32 0.0, %v712
      %v714 = vpop.f32.mrf.mxu0
      %v715 = vpop.f32.mrf.mxu0
      %v716 = vadd.f32 0.0, %v715
      %v717 = vpop.f32.mrf.mxu0
      %718 = vmatprep.mubr.bf16.mxu0 0
      %719 = vmatmul.mubr.bf16.gmra.mxu0 %v501
      %v720 = vpop.f32.mrf.mxu0
      %v721 = vadd.f32 0.0, %v720
      %v722 = vpop.f32.mrf.mxu0
      %v723 = vpop.f32.mrf.mxu0
      %v724 = vadd.f32 0.0, %v723
      %v725 = vpop.f32.mrf.mxu0
      %726 = vdwg.mxu0
      %v727 = vadd.f32 %v342, %v601
      %v728 = vadd.f32 %v343, %v604
      %v729 = vadd.f32 %v344, %v609
      %v730 = vadd.f32 %v345, %v612
      %v731 = vadd.f32 %v346, %v617
      %v732 = vadd.f32 %v347, %v620
      %v733 = vadd.f32 %v348, %v625
      %v734 = vadd.f32 %v349, %v628
      %v735 = vadd.f32 %v350, %v633
      %v736 = vadd.f32 %v351, %v636
      %v737 = vadd.f32 %v352, %v641
      %v738 = vadd.f32 %v353, %v644
      %v739 = vadd.f32 %v354, %v649
      %v740 = vadd.f32 %v355, %v652
      %v741 = vadd.f32 %v356, %v657
      %v742 = vadd.f32 %v357, %v660
      %v743 = vadd.f32 %v358, %v665
      %v744 = vadd.f32 %v359, %v668
      %v745 = vadd.f32 %v360, %v673
      %v746 = vadd.f32 %v361, %v676
      %v747 = vadd.f32 %v362, %v681
      %v748 = vadd.f32 %v363, %v684
      %v749 = vadd.f32 %v364, %v689
      %v750 = vadd.f32 %v365, %v692
      %v751 = vadd.f32 %v366, %v697
      %v752 = vadd.f32 %v367, %v700
      %v753 = vadd.f32 %v368, %v705
      %v754 = vadd.f32 %v369, %v708
      %v755 = vadd.f32 %v370, %v713
      %v756 = vadd.f32 %v371, %v716
      %v757 = vadd.f32 %v372, %v721
      %v758 = vadd.f32 %v373, %v724
      %759 = vst [vmem:[#allocation2] sm:$0xff] %v727
      %760 = vst [vmem:[#allocation2 + $0x8] sm:$0xff] %v728
      %761 = vst [vmem:[#allocation2 + $0x10] sm:$0xff] %v729
      %762 = vst [vmem:[#allocation2 + $0x18] sm:$0xff] %v730
      %763 = vst [vmem:[#allocation2 + $0x20] sm:$0xff] %v731
      %764 = vst [vmem:[#allocation2 + $0x28] sm:$0xff] %v732
      %765 = vst [vmem:[#allocation2 + $0x30] sm:$0xff] %v733
      %766 = vst [vmem:[#allocation2 + $0x38] sm:$0xff] %v734
      %767 = vst [vmem:[#allocation2 + $0x40] sm:$0xff] %v735
      %768 = vst [vmem:[#allocation2 + $0x48] sm:$0xff] %v736
      %769 = vst [vmem:[#allocation2 + $0x50] sm:$0xff] %v737
      %770 = vst [vmem:[#allocation2 + $0x58] sm:$0xff] %v738
      %771 = vst [vmem:[#allocation2 + $0x60] sm:$0xff] %v739
      %772 = vst [vmem:[#allocation2 + $0x68] sm:$0xff] %v740
      %773 = vst [vmem:[#allocation2 + $0x70] sm:$0xff] %v741
      %774 = vst [vmem:[#allocation2 + $0x78] sm:$0xff] %v742
      %775 = vst [vmem:[#allocation2 + $0x80] sm:$0xff] %v743
      %776 = vst [vmem:[#allocation2 + $0x88] sm:$0xff] %v744
      %777 = vst [vmem:[#allocation2 + $0x90] sm:$0xff] %v745
      %778 = vst [vmem:[#allocation2 + $0x98] sm:$0xff] %v746
      %779 = vst [vmem:[#allocation2 + $0xa0] sm:$0xff] %v747
      %780 = vst [vmem:[#allocation2 + $0xa8] sm:$0xff] %v748
      %781 = vst [vmem:[#allocation2 + $0xb0] sm:$0xff] %v749
      %782 = vst [vmem:[#allocation2 + $0xb8] sm:$0xff] %v750
      %783 = vst [vmem:[#allocation2 + $0xc0] sm:$0xff] %v751
      %784 = vst [vmem:[#allocation2 + $0xc8] sm:$0xff] %v752
      %785 = vst [vmem:[#allocation2 + $0xd0] sm:$0xff] %v753
      %786 = vst [vmem:[#allocation2 + $0xd8] sm:$0xff] %v754
      %787 = vst [vmem:[#allocation2 + $0xe0] sm:$0xff] %v755
      %788 = vst [vmem:[#allocation2 + $0xe8] sm:$0xff] %v756
      %789 = vst [vmem:[#allocation2 + $0xf0] sm:$0xff] %v757
      %790 = vst [vmem:[#allocation2 + $0xf8] sm:$0xff] %v758
      // Predicated region
      $region37: #{resnet_forward.28} parent=31 // pred_check
        %p791 = pneg %p306
      $region38: #{resnet_forward.28} parent=31 // pred_check_branch
        %793 = sbr.rel (%p791) target = $region40
      $region39: #{resnet_forward.28} parent=31 // pred_region
        %v794 = vld [vmem:[#allocation2] sm:$0xff]
        %v795 = vld [vmem:[#allocation2 + $0x8] sm:$0xff]
        %v796 = vld [vmem:[#allocation2 + $0x10] sm:$0xff]
        %v797 = vld [vmem:[#allocation2 + $0x18] sm:$0xff]
        %v798 = vld [vmem:[#allocation2 + $0x20] sm:$0xff]
        %v799 = vld [vmem:[#allocation2 + $0x28] sm:$0xff]
        %v800 = vld [vmem:[#allocation2 + $0x30] sm:$0xff]
        %v801 = vld [vmem:[#allocation2 + $0x38] sm:$0xff]
        %v802 = vld [vmem:[#allocation2 + $0x40] sm:$0xff]
        %v803 = vld [vmem:[#allocation2 + $0x48] sm:$0xff]
        %v804 = vld [vmem:[#allocation2 + $0x50] sm:$0xff]
        %v805 = vld [vmem:[#allocation2 + $0x58] sm:$0xff]
        %v806 = vld [vmem:[#allocation2 + $0x60] sm:$0xff]
        %v807 = vld [vmem:[#allocation2 + $0x68] sm:$0xff]
        %v808 = vld [vmem:[#allocation2 + $0x70] sm:$0xff]
        %v809 = vld [vmem:[#allocation2 + $0x78] sm:$0xff]
        %v810 = vld [vmem:[#allocation2 + $0x80] sm:$0xff]
        %v811 = vld [vmem:[#allocation2 + $0x88] sm:$0xff]
        %v812 = vld [vmem:[#allocation2 + $0x90] sm:$0xff]
        %v813 = vld [vmem:[#allocation2 + $0x98] sm:$0xff]
        %v814 = vld [vmem:[#allocation2 + $0xa0] sm:$0xff]
        %v815 = vld [vmem:[#allocation2 + $0xa8] sm:$0xff]
        %v816 = vld [vmem:[#allocation2 + $0xb0] sm:$0xff]
        %v817 = vld [vmem:[#allocation2 + $0xb8] sm:$0xff]
        %v818 = vld [vmem:[#allocation2 + $0xc0] sm:$0xff]
        %v819 = vld [vmem:[#allocation2 + $0xc8] sm:$0xff]
        %v820 = vld [vmem:[#allocation2 + $0xd0] sm:$0xff]
        %v821 = vld [vmem:[#allocation2 + $0xd8] sm:$0xff]
        %v822 = vld [vmem:[#allocation2 + $0xe0] sm:$0xff]
        %v823 = vld [vmem:[#allocation2 + $0xe8] sm:$0xff]
        %v824 = vld [vmem:[#allocation2 + $0xf0] sm:$0xff]
        %v825 = vld [vmem:[#allocation2 + $0xf8] sm:$0xff]
        %v826 = vld [vmem:[%s288] sm:$0x1]
        %v828 = vlaneseq
        %v829 = vshrl.u32 %v828, 7
        %v830 = vsub.s32 0, %v829
        %v831 = vrot.slane %v826, %v830
        %v833 = vmul.f32 %v794, %v831
        %v834 = vmul.f32 %v795, %v831
        %v835 = vmul.f32 %v796, %v831
        %v836 = vmul.f32 %v797, %v831
        %v837 = vmul.f32 %v798, %v831
        %v838 = vmul.f32 %v799, %v831
        %v839 = vmul.f32 %v800, %v831
        %v840 = vmul.f32 %v801, %v831
        %v841 = vmul.f32 %v802, %v831
        %v842 = vmul.f32 %v803, %v831
        %v843 = vmul.f32 %v804, %v831
        %v844 = vmul.f32 %v805, %v831
        %v845 = vmul.f32 %v806, %v831
        %v846 = vmul.f32 %v807, %v831
        %v847 = vmul.f32 %v808, %v831
        %v848 = vmul.f32 %v809, %v831
        %v849 = vmul.f32 %v810, %v831
        %v850 = vmul.f32 %v811, %v831
        %v851 = vmul.f32 %v812, %v831
        %v852 = vmul.f32 %v813, %v831
        %v853 = vmul.f32 %v814, %v831
        %v854 = vmul.f32 %v815, %v831
        %v855 = vmul.f32 %v816, %v831
        %v856 = vmul.f32 %v817, %v831
        %v857 = vmul.f32 %v818, %v831
        %v858 = vmul.f32 %v819, %v831
        %v859 = vmul.f32 %v820, %v831
        %v860 = vmul.f32 %v821, %v831
        %v861 = vmul.f32 %v822, %v831
        %v862 = vmul.f32 %v823, %v831
        %v863 = vmul.f32 %v824, %v831
        %v864 = vmul.f32 %v825, %v831
        %865 = vst [vmem:[%s296] sm:$0xff] %v833
        %866 = vst [vmem:[%s296 + $0x8] sm:$0xff] %v834
        %867 = vst [vmem:[%s296 + $0x10] sm:$0xff] %v835
        %868 = vst [vmem:[%s296 + $0x18] sm:$0xff] %v836
        %869 = vst [vmem:[%s296 + $0x20] sm:$0xff] %v837
        %870 = vst [vmem:[%s296 + $0x28] sm:$0xff] %v838
        %871 = vst [vmem:[%s296 + $0x30] sm:$0xff] %v839
        %872 = vst [vmem:[%s296 + $0x38] sm:$0xff] %v840
        %873 = vst [vmem:[%s296 + $0x40] sm:$0xff] %v841
        %874 = vst [vmem:[%s296 + $0x48] sm:$0xff] %v842
        %875 = vst [vmem:[%s296 + $0x50] sm:$0xff] %v843
        %876 = vst [vmem:[%s296 + $0x58] sm:$0xff] %v844
        %877 = vst [vmem:[%s296 + $0x60] sm:$0xff] %v845
        %878 = vst [vmem:[%s296 + $0x68] sm:$0xff] %v846
        %879 = vst [vmem:[%s296 + $0x70] sm:$0xff] %v847
        %880 = vst [vmem:[%s296 + $0x78] sm:$0xff] %v848
        %881 = vst [vmem:[%s296 + $0x80] sm:$0xff] %v849
        %882 = vst [vmem:[%s296 + $0x88] sm:$0xff] %v850
        %883 = vst [vmem:[%s296 + $0x90] sm:$0xff] %v851
        %884 = vst [vmem:[%s296 + $0x98] sm:$0xff] %v852
        %885 = vst [vmem:[%s296 + $0xa0] sm:$0xff] %v853
        %886 = vst [vmem:[%s296 + $0xa8] sm:$0xff] %v854
        %887 = vst [vmem:[%s296 + $0xb0] sm:$0xff] %v855
        %888 = vst [vmem:[%s296 + $0xb8] sm:$0xff] %v856
        %889 = vst [vmem:[%s296 + $0xc0] sm:$0xff] %v857
        %890 = vst [vmem:[%s296 + $0xc8] sm:$0xff] %v858
        %891 = vst [vmem:[%s296 + $0xd0] sm:$0xff] %v859
        %892 = vst [vmem:[%s296 + $0xd8] sm:$0xff] %v860
        %893 = vst [vmem:[%s296 + $0xe0] sm:$0xff] %v861
        %894 = vst [vmem:[%s296 + $0xe8] sm:$0xff] %v862
        %895 = vst [vmem:[%s296 + $0xf0] sm:$0xff] %v863
        %896 = vst [vmem:[%s296 + $0xf8] sm:$0xff] %v864
        %v897 = vadd.f32 %v833, %v834
        %v898 = vadd.f32 %v897, %v835
        %v899 = vadd.f32 %v898, %v836
        %v900 = vadd.f32 %v899, %v837
        %v901 = vadd.f32 %v900, %v838
        %v902 = vadd.f32 %v901, %v839
        %v903 = vadd.f32 %v902, %v840
        %v904 = vadd.f32 %v903, %v841
        %v905 = vadd.f32 %v904, %v842
        %v906 = vadd.f32 %v905, %v843
        %v907 = vadd.f32 %v906, %v844
        %v908 = vadd.f32 %v907, %v845
        %v909 = vadd.f32 %v908, %v846
        %v910 = vadd.f32 %v909, %v847
        %v911 = vadd.f32 %v910, %v848
        %v912 = vadd.f32 %v911, %v849
        %v913 = vadd.f32 %v912, %v850
        %v914 = vadd.f32 %v913, %v851
        %v915 = vadd.f32 %v914, %v852
        %v916 = vadd.f32 %v915, %v853
        %v917 = vadd.f32 %v916, %v854
        %v918 = vadd.f32 %v917, %v855
        %v919 = vadd.f32 %v918, %v856
        %v920 = vadd.f32 %v919, %v857
        %v921 = vadd.f32 %v920, %v858
        %v922 = vadd.f32 %v921, %v859
        %v923 = vadd.f32 %v922, %v860
        %v924 = vadd.f32 %v923, %v861
        %v925 = vadd.f32 %v924, %v862
        %v926 = vadd.f32 %v925, %v863
        %v927 = vadd.f32 %v926, %v864
        %v928 = vrot.slane %v927, 4
        %v929 = vadd.f32 %v927, %v928
        %v930 = vrot.slane %v929, 2
        %v931 = vadd.f32 %v929, %v930
        %v932 = vrot.slane %v931, 1
        %v933 = vadd.f32 %v931, %v932
        %v934 = vmul.f32 %v833, %v833
        %v935 = vmul.f32 %v834, %v834
        %v936 = vmul.f32 %v835, %v835
        %v937 = vmul.f32 %v836, %v836
        %v938 = vmul.f32 %v837, %v837
        %v939 = vmul.f32 %v838, %v838
        %v940 = vmul.f32 %v839, %v839
        %v941 = vmul.f32 %v840, %v840
        %v942 = vmul.f32 %v841, %v841
        %v943 = vmul.f32 %v842, %v842
        %v944 = vmul.f32 %v843, %v843
        %v945 = vmul.f32 %v844, %v844
        %v946 = vmul.f32 %v845, %v845
        %v947 = vmul.f32 %v846, %v846
        %v948 = vmul.f32 %v847, %v847
        %v949 = vmul.f32 %v848, %v848
        %v950 = vmul.f32 %v849, %v849
        %v951 = vmul.f32 %v850, %v850
        %v952 = vmul.f32 %v851, %v851
        %v953 = vmul.f32 %v852, %v852
        %v954 = vmul.f32 %v853, %v853
        %v955 = vmul.f32 %v854, %v854
        %v956 = vmul.f32 %v855, %v855
        %v957 = vmul.f32 %v856, %v856
        %v958 = vmul.f32 %v857, %v857
        %v959 = vmul.f32 %v858, %v858
        %v960 = vmul.f32 %v859, %v859
        %v961 = vmul.f32 %v860, %v860
        %v962 = vmul.f32 %v861, %v861
        %v963 = vmul.f32 %v862, %v862
        %v964 = vmul.f32 %v863, %v863
        %v965 = vmul.f32 %v864, %v864
        %v966 = vadd.f32 %v934, %v935
        %v967 = vadd.f32 %v966, %v936
        %v968 = vadd.f32 %v967, %v937
        %v969 = vadd.f32 %v968, %v938
        %v970 = vadd.f32 %v969, %v939
        %v971 = vadd.f32 %v970, %v940
        %v972 = vadd.f32 %v971, %v941
        %v973 = vadd.f32 %v972, %v942
        %v974 = vadd.f32 %v973, %v943
        %v975 = vadd.f32 %v974, %v944
        %v976 = vadd.f32 %v975, %v945
        %v977 = vadd.f32 %v976, %v946
        %v978 = vadd.f32 %v977, %v947
        %v979 = vadd.f32 %v978, %v948
        %v980 = vadd.f32 %v979, %v949
        %v981 = vadd.f32 %v980, %v950
        %v982 = vadd.f32 %v981, %v951
        %v983 = vadd.f32 %v982, %v952
        %v984 = vadd.f32 %v983, %v953
        %v985 = vadd.f32 %v984, %v954
        %v986 = vadd.f32 %v985, %v955
        %v987 = vadd.f32 %v986, %v956
        %v988 = vadd.f32 %v987, %v957
        %v989 = vadd.f32 %v988, %v958
        %v990 = vadd.f32 %v989, %v959
        %v991 = vadd.f32 %v990, %v960
        %v992 = vadd.f32 %v991, %v961
        %v993 = vadd.f32 %v992, %v962
        %v994 = vadd.f32 %v993, %v963
        %v995 = vadd.f32 %v994, %v964
        %v996 = vadd.f32 %v995, %v965
        %v997 = vrot.slane %v996, 4
        %v998 = vadd.f32 %v996, %v997
        %v999 = vrot.slane %v998, 2
        %v1000 = vadd.f32 %v998, %v999
        %v1001 = vrot.slane %v1000, 1
        %v1002 = vadd.f32 %v1000, %v1001
        %vm1003 = vcmask 1040384
        %v1004 = vsel %vm1003, %v933, %v1002
        %vm1005 = vcmask 1041408
        %v1006 = vsel %vm1005, %v1004, 0.0
        %1007 = vst [vmem:[%s304] sm:$0xff] %v1006
      $region40: #{resnet_forward.28} parent=31 // pred_fallthru
        _
      %s1008 = smul.u32 32, %s21
      %p1009 = scmp.lt.s32.totalorder %s1008, 63
      %s1010 = scalar_select %p1009, %s1008, 63
      %p1011 = scmp.lt.s32.totalorder %s22, 0
      %s1012 = scalar_select %p1011, %s22, 0
      %s1013 = sadd.s32 %s1012, %s1010
      %s1014 = smul.addr %s1013, 8
      %s1015 = scalar_lea.vmem %s3, %s1014
      %p1016 = scmp.lt.s32.totalorder %s21, 1
      %s1017 = scalar_select %p1016, %s21, 1
      %p1018 = scmp.lt.s32.totalorder %s22, 0
      %s1019 = scalar_select %p1018, %s22, 0
      %s1020 = sadd.s32 %s1019, %s1017
      %s1021 = smul.addr %s1020, 8
      %s1022 = scalar_lea.vmem %s4, %s1021
      // Predicated region
      $region41: #{resnet_forward.28} parent=31 // pred_check
        %p1023 = pneg %p137
      $region42: #{resnet_forward.28} parent=31 // pred_check_branch
        %1025 = sbr.rel (%p1023) target = $region44
      $region43: #{resnet_forward.28} parent=31 // pred_region
        %s1026 = smul.u32 32, %s21
      $region44: #{resnet_forward.28} parent=31 // pred_fallthru
        _
      // Predicated region
      $region45: #{resnet_forward.28} parent=31 // pred_check
        %p1027 = pneg %p165
      $region46: #{resnet_forward.28} parent=31 // pred_check_branch
        %1029 = sbr.rel (%p1027) target = $region48
      $region47: #{resnet_forward.28} parent=31 // pred_region
        _
      $region48: #{resnet_forward.28} parent=31 // pred_fallthru
        _
    $region32: #{resnet_forward.28} parent=5 // pred_fallthru
      _
    %p1030 = scmp.le.s32.totalorder 2, %s11
    // Predicated region
    $region49: #{resnet_forward.28} parent=5 // pred_check
      %p1031 = pneg %p1030
    $region50: #{resnet_forward.28} parent=5 // pred_check_branch
      %1033 = sbr.rel (%p1031) target = $region52
    $region51: #{resnet_forward.28} parent=5 // pred_region
      %s1034 = ssub.s32 %s11, 2
      // Predicated region
      $region53: #{resnet_forward.28} parent=51 // pred_check
        %p1035 = pneg %p143
      $region54: #{resnet_forward.28} parent=51 // pred_check_branch
        %1037 = sbr.rel (%p1035) target = $region56
      $region55: #{resnet_forward.28} parent=51 // pred_region
        %s1038 = smul.u32 32, %s24
        %p1039 = scmp.lt.s32.totalorder %s1038, 63
        %s1040 = scalar_select %p1039, %s1038, 63
        %p1041 = scmp.lt.s32.totalorder %s25, 0
        %s1042 = scalar_select %p1041, %s25, 0
        %s1043 = sadd.s32 %s1042, %s1040
        %s1044 = smul.addr %s1043, 8
        %s1045 = scalar_lea.vmem %s3, %s1044
      $region56: #{resnet_forward.28} parent=51 // pred_fallthru
        _
      // Predicated region
      $region57: #{resnet_forward.28} parent=51 // pred_check
        %p1046 = pneg %p171
      $region58: #{resnet_forward.28} parent=51 // pred_check_branch
        %1048 = sbr.rel (%p1046) target = $region60
      $region59: #{resnet_forward.28} parent=51 // pred_region
        %p1049 = scmp.lt.s32.totalorder %s24, 1
        %s1050 = scalar_select %p1049, %s24, 1
        %p1051 = scmp.lt.s32.totalorder %s25, 0
        %s1052 = scalar_select %p1051, %s25, 0
        %s1053 = sadd.s32 %s1052, %s1050
        %s1054 = smul.addr %s1053, 8
        %s1055 = scalar_lea.vmem %s4, %s1054
      $region60: #{resnet_forward.28} parent=51 // pred_fallthru
        _
    $region52: #{resnet_forward.28} parent=5 // pred_fallthru
      _
  $region6: #{resnet_forward.28} parent=0 // loop_footer
    %s15 = sadd.s32 1, %s11
  $region7: #{resnet_forward.28} parent=0 // loop_footer_branch
    %10 = sbr.rel target = $region3
  $region8: #{resnet_forward.28} parent=0 // loop_exit
    _

// kernel: resnet_forward.32
$region0: #{resnet_forward.32}
  #allocation0 [shape = 'u32[]', space=smem, size = 0x4, offset = 0x4, fixed_abs, tag = 'smem constant byte address 0x4 - core index']
  #allocation1 [shape = 'u32[144,128]{1,0:T(1,128)}', space=vmem, size = 0x12000, scoped, tag = 'internal scratch']
  %s0 = inlined_call_operand.vmem [shape: f32[512,128], index: 0, kind: input, shape index: {}]
  %s1 = inlined_call_operand.vmem [shape: f32[1,128], index: 1, kind: input, shape index: {}]
  %s2 = inlined_call_operand.vmem [shape: f32[1,128], index: 2, kind: input, shape index: {}]
  %s3 = inlined_call_operand.vmem [shape: f32[512,128], index: 3, kind: input, shape index: {}]
  %s4 = inlined_call_operand.vmem [shape: f32[1,128], index: 4, kind: input, shape index: {}]
  %s5 = inlined_call_operand.vmem [shape: f32[1,128], index: 5, kind: input, shape index: {}]
  %s6 = inlined_call_operand.vmem [shape: f32[512,128], index: 6, kind: output, shape index: {0}]
  %s7 = inlined_call_operand.vmem [shape: f32[16,128], index: 7, kind: output, shape index: {1}]
  %8 = xla_tuple %s6, %s7
  %s9 = sld [smem:[#allocation0]]
  $region65: #{resnet_forward.32} parent=0
    _
  %s11 = ssub.s32 1, %s9
  %s12 = scalar_select 0, %s11, %s9
  loop: start=0, step=1, limit=4
  $region2: #{resnet_forward.32} parent=0 // loop_pre_header
    _
  $region3: #{resnet_forward.32} parent=0 // loop_header
    %s14 = sphi 0, %s18
    %p15 = scmp.ge.s32.totalorder %s14, 4
    %s24 = sphi 0, %s26
    %s27 = sphi 0, %s24
    %s28 = sphi 0, %s27
    %s44 = sphi 0, %s28
    %s48 = sphi 0, %s48
    %s50 = sphi 0, %s48
    %s51 = sphi 0, %s50
    %s65 = sphi 0, %s51
    %s69 = sphi 0, %s69
    %s71 = sphi 0, %s69
    %s72 = sphi 0, %s71
    %s86 = sphi 0, %s72
    %s92 = sphi 0, %s94
    %s95 = sphi 0, %s92
    %s96 = sphi 0, %s95
    %s112 = sphi 0, %s96
    %s116 = sphi 0, %s116
    %s118 = sphi 0, %s116
    %s119 = sphi 0, %s118
    %s133 = sphi 0, %s119
    %s137 = sphi 0, %s137
    %s139 = sphi 0, %s137
    %s140 = sphi 0, %s139
    %s154 = sphi 0, %s140
    %s160 = sphi 0, %s162
    %s163 = sphi 0, %s160
    %s164 = sphi 0, %s163
    %s180 = sphi 0, %s164
    %s186 = sphi 0, %s188
    %s189 = sphi 0, %s186
    %s190 = sphi 0, %s189
    %s206 = sphi 0, %s190
  $region4: #{resnet_forward.32} parent=0 // loop_header_branch
    %17 = sbr.rel (%p15) target = $region8
  $region5: #{resnet_forward.32} parent=0 // loop_body
    %s19 = ssub.s32 %s14, 1
    %s20 = ssub.s32 %s14, 2
    %s21 = sadd.s32 %s14, 1
    %s22 = ssub.s32 %s14, %s21
    %p23 = scmp.eq.s32.totalorder %s22, 0
    %s25 = sadd.s32 %s24, 1
    %s26 = scalar_select %p23, %s24, %s25
    %p29 = pneg %p23
    %p30 = scmp.eq.s32.totalorder %s14, 1
    %p31 = por %p29, %p30
    %p32 = scmp.ne.s32.totalorder %s24, %s27
    %p33 = scmp.eq.s32.totalorder %s14, 0
    %p34 = por %p32, %p33
    %p35 = scmp.ne.s32.totalorder %s24, %s27
    %p36 = scmp.eq.s32.totalorder %s19, 1
    %p37 = por %p35, %p36
    %p38 = scmp.ne.s32.totalorder %s27, %s28
    %p39 = scmp.eq.s32.totalorder %s19, 0
    %p40 = por %p38, %p39
    %p41 = scmp.ne.s32.totalorder %s27, %s28
    %p42 = scmp.eq.s32.totalorder %s20, 1
    %p43 = por %p41, %p42
    %p45 = scmp.ne.s32.totalorder %s28, %s44
    %p46 = scmp.eq.s32.totalorder %s20, 0
    %p47 = por %p45, %p46
    %s49 = sadd.s32 %s48, 1
    %p52 = scmp.eq.s32.totalorder %s14, 1
    %p53 = scmp.ne.s32.totalorder %s48, %s50
    %p54 = scmp.eq.s32.totalorder %s14, 0
    %p55 = por %p53, %p54
    %p56 = scmp.ne.s32.totalorder %s48, %s50
    %p57 = scmp.eq.s32.totalorder %s19, 1
    %p58 = por %p56, %p57
    %p59 = scmp.ne.s32.totalorder %s50, %s51
    %p60 = scmp.eq.s32.totalorder %s19, 0
    %p61 = por %p59, %p60
    %p62 = scmp.ne.s32.totalorder %s50, %s51
    %p63 = scmp.eq.s32.totalorder %s20, 1
    %p64 = por %p62, %p63
    %p66 = scmp.ne.s32.totalorder %s51, %s65
    %p67 = scmp.eq.s32.totalorder %s20, 0
    %p68 = por %p66, %p67
    %s70 = sadd.s32 %s69, 1
    %p73 = scmp.eq.s32.totalorder %s14, 1
    %p74 = scmp.ne.s32.totalorder %s69, %s71
    %p75 = scmp.eq.s32.totalorder %s14, 0
    %p76 = por %p74, %p75
    %p77 = scmp.ne.s32.totalorder %s69, %s71
    %p78 = scmp.eq.s32.totalorder %s19, 1
    %p79 = por %p77, %p78
    %p80 = scmp.ne.s32.totalorder %s71, %s72
    %p81 = scmp.eq.s32.totalorder %s19, 0
    %p82 = por %p80, %p81
    %p83 = scmp.ne.s32.totalorder %s71, %s72
    %p84 = scmp.eq.s32.totalorder %s20, 1
    %p85 = por %p83, %p84
    %p87 = scmp.ne.s32.totalorder %s72, %s86
    %p88 = scmp.eq.s32.totalorder %s20, 0
    %p89 = por %p87, %p88
    %s90 = ssub.s32 %s14, %s21
    %p91 = scmp.eq.s32.totalorder %s90, 0
    %s93 = sadd.s32 %s92, 1
    %s94 = scalar_select %p91, %s92, %s93
    %p97 = pneg %p91
    %p98 = scmp.eq.s32.totalorder %s14, 1
    %p99 = por %p97, %p98
    %p100 = scmp.ne.s32.totalorder %s92, %s95
    %p101 = scmp.eq.s32.totalorder %s14, 0
    %p102 = por %p100, %p101
    %p103 = scmp.ne.s32.totalorder %s92, %s95
    %p104 = scmp.eq.s32.totalorder %s19, 1
    %p105 = por %p103, %p104
    %p106 = scmp.ne.s32.totalorder %s95, %s96
    %p107 = scmp.eq.s32.totalorder %s19, 0
    %p108 = por %p106, %p107
    %p109 = scmp.ne.s32.totalorder %s95, %s96
    %p110 = scmp.eq.s32.totalorder %s20, 1
    %p111 = por %p109, %p110
    %p113 = scmp.ne.s32.totalorder %s96, %s112
    %p114 = scmp.eq.s32.totalorder %s20, 0
    %p115 = por %p113, %p114
    %s117 = sadd.s32 %s116, 1
    %p120 = scmp.eq.s32.totalorder %s14, 1
    %p121 = scmp.ne.s32.totalorder %s116, %s118
    %p122 = scmp.eq.s32.totalorder %s14, 0
    %p123 = por %p121, %p122
    %p124 = scmp.ne.s32.totalorder %s116, %s118
    %p125 = scmp.eq.s32.totalorder %s19, 1
    %p126 = por %p124, %p125
    %p127 = scmp.ne.s32.totalorder %s118, %s119
    %p128 = scmp.eq.s32.totalorder %s19, 0
    %p129 = por %p127, %p128
    %p130 = scmp.ne.s32.totalorder %s118, %s119
    %p131 = scmp.eq.s32.totalorder %s20, 1
    %p132 = por %p130, %p131
    %p134 = scmp.ne.s32.totalorder %s119, %s133
    %p135 = scmp.eq.s32.totalorder %s20, 0
    %p136 = por %p134, %p135
    %s138 = sadd.s32 %s137, 1
    %p141 = scmp.eq.s32.totalorder %s14, 1
    %p142 = scmp.ne.s32.totalorder %s137, %s139
    %p143 = scmp.eq.s32.totalorder %s14, 0
    %p144 = por %p142, %p143
    %p145 = scmp.ne.s32.totalorder %s137, %s139
    %p146 = scmp.eq.s32.totalorder %s19, 1
    %p147 = por %p145, %p146
    %p148 = scmp.ne.s32.totalorder %s139, %s140
    %p149 = scmp.eq.s32.totalorder %s19, 0
    %p150 = por %p148, %p149
    %p151 = scmp.ne.s32.totalorder %s139, %s140
    %p152 = scmp.eq.s32.totalorder %s20, 1
    %p153 = por %p151, %p152
    %p155 = scmp.ne.s32.totalorder %s140, %s154
    %p156 = scmp.eq.s32.totalorder %s20, 0
    %p157 = por %p155, %p156
    %s158 = ssub.s32 %s14, %s21
    %p159 = scmp.eq.s32.totalorder %s158, 0
    %s161 = sadd.s32 %s160, 1
    %s162 = scalar_select %p159, %s160, %s161
    %p165 = pneg %p159
    %p166 = scmp.eq.s32.totalorder %s14, 1
    %p167 = por %p165, %p166
    %p168 = scmp.ne.s32.totalorder %s160, %s163
    %p169 = scmp.eq.s32.totalorder %s14, 0
    %p170 = por %p168, %p169
    %p171 = scmp.ne.s32.totalorder %s160, %s163
    %p172 = scmp.eq.s32.totalorder %s19, 1
    %p173 = por %p171, %p172
    %p174 = scmp.ne.s32.totalorder %s163, %s164
    %p175 = scmp.eq.s32.totalorder %s19, 0
    %p176 = por %p174, %p175
    %p177 = scmp.ne.s32.totalorder %s163, %s164
    %p178 = scmp.eq.s32.totalorder %s20, 1
    %p179 = por %p177, %p178
    %p181 = scmp.ne.s32.totalorder %s164, %s180
    %p182 = scmp.eq.s32.totalorder %s20, 0
    %p183 = por %p181, %p182
    %s184 = ssub.s32 %s14, %s21
    %p185 = scmp.eq.s32.totalorder %s184, 0
    %s187 = sadd.s32 %s186, 1
    %s188 = scalar_select %p185, %s186, %s187
    %p191 = pneg %p185
    %p192 = scmp.eq.s32.totalorder %s14, 1
    %p193 = por %p191, %p192
    %p194 = scmp.ne.s32.totalorder %s186, %s189
    %p195 = scmp.eq.s32.totalorder %s14, 0
    %p196 = por %p194, %p195
    %p197 = scmp.ne.s32.totalorder %s186, %s189
    %p198 = scmp.eq.s32.totalorder %s19, 1
    %p199 = por %p197, %p198
    %p200 = scmp.ne.s32.totalorder %s189, %s190
    %p201 = scmp.eq.s32.totalorder %s19, 0
    %p202 = por %p200, %p201
    %p203 = scmp.ne.s32.totalorder %s189, %s190
    %p204 = scmp.eq.s32.totalorder %s20, 1
    %p205 = por %p203, %p204
    %p207 = scmp.ne.s32.totalorder %s190, %s206
    %p208 = scmp.eq.s32.totalorder %s20, 0
    %p209 = por %p207, %p208
    %p210 = scmp.le.s32.totalorder 1, %s14
    %p211 = scmp.lt.s32.totalorder %s14, 3
    %p212 = pnand %p210, %p211
    %p213 = pneg %p212
    // Predicated region
    $region9: #{resnet_forward.32} parent=5 // pred_check
      _
    $region10: #{resnet_forward.32} parent=5 // pred_check_branch
      %215 = sbr.rel (%p212) target = $region12
    $region11: #{resnet_forward.32} parent=5 // pred_region
      %s216 = ssub.s32 %s14, 1
      // Predicated region
      $region13: #{resnet_forward.32} parent=11 // pred_check
        %p217 = pneg %p61
      $region14: #{resnet_forward.32} parent=11 // pred_check_branch
        %219 = sbr.rel (%p217) target = $region16
      $region15: #{resnet_forward.32} parent=11 // pred_region
        _
      $region16: #{resnet_forward.32} parent=11 // pred_fallthru
        _
      // Predicated region
      $region17: #{resnet_forward.32} parent=11 // pred_check
        %p220 = pneg %p82
      $region18: #{resnet_forward.32} parent=11 // pred_check_branch
        %222 = sbr.rel (%p220) target = $region20
      $region19: #{resnet_forward.32} parent=11 // pred_region
        _
      $region20: #{resnet_forward.32} parent=11 // pred_fallthru
        _
      // Predicated region
      $region21: #{resnet_forward.32} parent=11 // pred_check
        %p223 = pneg %p129
      $region22: #{resnet_forward.32} parent=11 // pred_check_branch
        %225 = sbr.rel (%p223) target = $region24
      $region23: #{resnet_forward.32} parent=11 // pred_region
        _
      $region24: #{resnet_forward.32} parent=11 // pred_fallthru
        _
      // Predicated region
      $region25: #{resnet_forward.32} parent=11 // pred_check
        %p226 = pneg %p150
      $region26: #{resnet_forward.32} parent=11 // pred_check_branch
        %228 = sbr.rel (%p226) target = $region28
      $region27: #{resnet_forward.32} parent=11 // pred_region
        _
      $region28: #{resnet_forward.32} parent=11 // pred_fallthru
        _
    $region12: #{resnet_forward.32} parent=5 // pred_fallthru
      _
    %p229 = scmp.lt.s32.totalorder %s14, 2
    // Predicated region
    $region29: #{resnet_forward.32} parent=5 // pred_check
      %p230 = pneg %p229
    $region30: #{resnet_forward.32} parent=5 // pred_check_branch
      %232 = sbr.rel (%p230) target = $region32
    $region31: #{resnet_forward.32} parent=5 // pred_region
      // Predicated region
      $region33: #{resnet_forward.32} parent=31 // pred_check
        %p233 = pneg %p34
      $region34: #{resnet_forward.32} parent=31 // pred_check_branch
        %235 = sbr.rel (%p233) target = $region36
      $region35: #{resnet_forward.32} parent=31 // pred_region
        %s236 = smul.u32 32, %s14
        %p237 = scmp.lt.s32.totalorder %s236, 63
        %s238 = scalar_select %p237, %s236, 63
        %s239 = smul.addr %s238, 8
        %s240 = scalar_lea.vmem %s0, %s239
        %s241 = smul.u32 32, %s14
      $region36: #{resnet_forward.32} parent=31 // pred_fallthru
        _
      // Predicated region
      $region37: #{resnet_forward.32} parent=31 // pred_check
        %p242 = pneg %p102
      $region38: #{resnet_forward.32} parent=31 // pred_check_branch
        %244 = sbr.rel (%p242) target = $region40
      $region39: #{resnet_forward.32} parent=31 // pred_region
        %s245 = smul.u32 32, %s14
        %p246 = scmp.lt.s32.totalorder %s245, 63
        %s247 = scalar_select %p246, %s245, 63
        %s248 = smul.addr %s247, 8
        %s249 = scalar_lea.vmem %s3, %s248
        %s250 = smul.u32 32, %s14
      $region40: #{resnet_forward.32} parent=31 // pred_fallthru
        _
    $region32: #{resnet_forward.32} parent=5 // pred_fallthru
      _
    %p251 = scmp.le.s32.totalorder 1, %s14
    %p252 = scmp.lt.s32.totalorder %s14, 3
    %p253 = pnand %p251, %p252
    %p254 = pneg %p253
    // Predicated region
    $region41: #{resnet_forward.32} parent=5 // pred_check
      _
    $region42: #{resnet_forward.32} parent=5 // pred_check_branch
      %256 = sbr.rel (%p253) target = $region44
    $region43: #{resnet_forward.32} parent=5 // pred_region
      %s257 = ssub.s32 %s14, 1
      %s258 = smul.u32 32, %s19
      %p259 = scmp.lt.s32.totalorder %s258, 63
      %s260 = scalar_select %p259, %s258, 63
      %s261 = smul.addr %s260, 8
      %s262 = scalar_lea.vmem %s0, %s261
      %p263 = pneg %p40
      %p264 = pneg %p37
      %p265 = pneg %p61
      %p266 = pneg %p58
      %p267 = pneg %p82
      %p268 = pneg %p79
      %s269 = smul.u32 32, %s19
      %p270 = scmp.lt.s32.totalorder %s269, 63
      %s271 = scalar_select %p270, %s269, 63
      %s272 = smul.addr %s271, 8
      %s273 = scalar_lea.vmem %s3, %s272
      %p274 = pneg %p108
      %p275 = pneg %p105
      %p276 = pneg %p129
      %p277 = pneg %p126
      %p278 = pneg %p150
      %p279 = pneg %p147
      %p280 = pneg %p176
      %p281 = pneg %p173
      %s282 = smul.u32 32, %s19
      %p283 = scmp.lt.s32.totalorder %s282, 63
      %s284 = scalar_select %p283, %s282, 63
      %s285 = smul.addr %s284, 8
      %s286 = scalar_lea.vmem %s6, %s285
      %p287 = pneg %p202
      %p288 = pneg %p199
      %p289 = scmp.lt.s32.totalorder %s19, 1
      %s290 = scalar_select %p289, %s19, 1
      %s291 = smul.addr %s290, 8
      %s292 = scalar_lea.vmem %s7, %s291
      %s293 = smul.u32 32, %s19
      %p294 = scmp.lt.s32.totalorder %s293, 63
      %s295 = scalar_select %p294, %s293, 63
      %s296 = smul.addr %s295, 8
      %s297 = scalar_lea.vmem %s0, %s296
      %s298 = smul.u32 32, %s19
      %s299 = smul.u32 32, %s19
      %p300 = scmp.lt.s32.totalorder %s299, 63
      %s301 = scalar_select %p300, %s299, 63
      %s302 = smul.addr %s301, 8
      %s303 = scalar_lea.vmem %s3, %s302
      %s304 = smul.u32 32, %s19
      %s305 = smul.u32 32, %s19
      %p306 = scmp.lt.s32.totalorder %s305, 63
      %s307 = scalar_select %p306, %s305, 63
      %s308 = smul.addr %s307, 8
      %s309 = scalar_lea.vmem %s6, %s308
      %s310 = smul.u32 32, %s19
      %p311 = scmp.lt.s32.totalorder %s19, 1
      %s312 = scalar_select %p311, %s19, 1
      %s313 = smul.addr %s312, 8
      %s314 = scalar_lea.vmem %s7, %s313
      %v315 = vld [vmem:[%s297] sm:$0xff]
      %v316 = vld [vmem:[%s297 + $0x8] sm:$0xff]
      %v317 = vld [vmem:[%s297 + $0x10] sm:$0xff]
      %v318 = vld [vmem:[%s297 + $0x18] sm:$0xff]
      %v319 = vld [vmem:[%s297 + $0x20] sm:$0xff]
      %v320 = vld [vmem:[%s297 + $0x28] sm:$0xff]
      %v321 = vld [vmem:[%s297 + $0x30] sm:$0xff]
      %v322 = vld [vmem:[%s297 + $0x38] sm:$0xff]
      %v323 = vld [vmem:[%s297 + $0x40] sm:$0xff]
      %v324 = vld [vmem:[%s297 + $0x48] sm:$0xff]
      %v325 = vld [vmem:[%s297 + $0x50] sm:$0xff]
      %v326 = vld [vmem:[%s297 + $0x58] sm:$0xff]
      %v327 = vld [vmem:[%s297 + $0x60] sm:$0xff]
      %v328 = vld [vmem:[%s297 + $0x68] sm:$0xff]
      %v329 = vld [vmem:[%s297 + $0x70] sm:$0xff]
      %v330 = vld [vmem:[%s297 + $0x78] sm:$0xff]
      %v331 = vld [vmem:[%s297 + $0x80] sm:$0xff]
      %v332 = vld [vmem:[%s297 + $0x88] sm:$0xff]
      %v333 = vld [vmem:[%s297 + $0x90] sm:$0xff]
      %v334 = vld [vmem:[%s297 + $0x98] sm:$0xff]
      %v335 = vld [vmem:[%s297 + $0xa0] sm:$0xff]
      %v336 = vld [vmem:[%s297 + $0xa8] sm:$0xff]
      %v337 = vld [vmem:[%s297 + $0xb0] sm:$0xff]
      %v338 = vld [vmem:[%s297 + $0xb8] sm:$0xff]
      %v339 = vld [vmem:[%s297 + $0xc0] sm:$0xff]
      %v340 = vld [vmem:[%s297 + $0xc8] sm:$0xff]
      %v341 = vld [vmem:[%s297 + $0xd0] sm:$0xff]
      %v342 = vld [vmem:[%s297 + $0xd8] sm:$0xff]
      %v343 = vld [vmem:[%s297 + $0xe0] sm:$0xff]
      %v344 = vld [vmem:[%s297 + $0xe8] sm:$0xff]
      %v345 = vld [vmem:[%s297 + $0xf0] sm:$0xff]
      %v346 = vld [vmem:[%s297 + $0xf8] sm:$0xff]
      %v347 = vld [vmem:[%s1] sm:$0x1]
      %v349 = vlaneseq
      %v350 = vshrl.u32 %v349, 7
      %v351 = vsub.s32 0, %v350
      %v352 = vrot.slane %v347, %v351
      %v354 = vmul.f32 %v315, %v352
      %v355 = vmul.f32 %v316, %v352
      %v356 = vmul.f32 %v317, %v352
      %v357 = vmul.f32 %v318, %v352
      %v358 = vmul.f32 %v319, %v352
      %v359 = vmul.f32 %v320, %v352
      %v360 = vmul.f32 %v321, %v352
      %v361 = vmul.f32 %v322, %v352
      %v362 = vmul.f32 %v323, %v352
      %v363 = vmul.f32 %v324, %v352
      %v364 = vmul.f32 %v325, %v352
      %v365 = vmul.f32 %v326, %v352
      %v366 = vmul.f32 %v327, %v352
      %v367 = vmul.f32 %v328, %v352
      %v368 = vmul.f32 %v329, %v352
      %v369 = vmul.f32 %v330, %v352
      %v370 = vmul.f32 %v331, %v352
      %v371 = vmul.f32 %v332, %v352
      %v372 = vmul.f32 %v333, %v352
      %v373 = vmul.f32 %v334, %v352
      %v374 = vmul.f32 %v335, %v352
      %v375 = vmul.f32 %v336, %v352
      %v376 = vmul.f32 %v337, %v352
      %v377 = vmul.f32 %v338, %v352
      %v378 = vmul.f32 %v339, %v352
      %v379 = vmul.f32 %v340, %v352
      %v380 = vmul.f32 %v341, %v352
      %v381 = vmul.f32 %v342, %v352
      %v382 = vmul.f32 %v343, %v352
      %v383 = vmul.f32 %v344, %v352
      %v384 = vmul.f32 %v345, %v352
      %v385 = vmul.f32 %v346, %v352
      %v386 = vld [vmem:[%s2] sm:$0x1]
      %v388 = vlaneseq
      %v389 = vshrl.u32 %v388, 7
      %v390 = vsub.s32 0, %v389
      %v391 = vrot.slane %v386, %v390
      %v393 = vadd.f32 %v354, %v391
      %v394 = vadd.f32 %v355, %v391
      %v395 = vadd.f32 %v356, %v391
      %v396 = vadd.f32 %v357, %v391
      %v397 = vadd.f32 %v358, %v391
      %v398 = vadd.f32 %v359, %v391
      %v399 = vadd.f32 %v360, %v391
      %v400 = vadd.f32 %v361, %v391
      %v401 = vadd.f32 %v362, %v391
      %v402 = vadd.f32 %v363, %v391
      %v403 = vadd.f32 %v364, %v391
      %v404 = vadd.f32 %v365, %v391
      %v405 = vadd.f32 %v366, %v391
      %v406 = vadd.f32 %v367, %v391
      %v407 = vadd.f32 %v368, %v391
      %v408 = vadd.f32 %v369, %v391
      %v409 = vadd.f32 %v370, %v391
      %v410 = vadd.f32 %v371, %v391
      %v411 = vadd.f32 %v372, %v391
      %v412 = vadd.f32 %v373, %v391
      %v413 = vadd.f32 %v374, %v391
      %v414 = vadd.f32 %v375, %v391
      %v415 = vadd.f32 %v376, %v391
      %v416 = vadd.f32 %v377, %v391
      %v417 = vadd.f32 %v378, %v391
      %v418 = vadd.f32 %v379, %v391
      %v419 = vadd.f32 %v380, %v391
      %v420 = vadd.f32 %v381, %v391
      %v421 = vadd.f32 %v382, %v391
      %v422 = vadd.f32 %v383, %v391
      %v423 = vadd.f32 %v384, %v391
      %v424 = vadd.f32 %v385, %v391
      %v425 = vld [vmem:[%s303] sm:$0xff]
      %v426 = vld [vmem:[%s303 + $0x8] sm:$0xff]
      %v427 = vld [vmem:[%s303 + $0x10] sm:$0xff]
      %v428 = vld [vmem:[%s303 + $0x18] sm:$0xff]
      %v429 = vld [vmem:[%s303 + $0x20] sm:$0xff]
      %v430 = vld [vmem:[%s303 + $0x28] sm:$0xff]
      %v431 = vld [vmem:[%s303 + $0x30] sm:$0xff]
      %v432 = vld [vmem:[%s303 + $0x38] sm:$0xff]
      %v433 = vld [vmem:[%s303 + $0x40] sm:$0xff]
      %v434 = vld [vmem:[%s303 + $0x48] sm:$0xff]
      %v435 = vld [vmem:[%s303 + $0x50] sm:$0xff]
      %v436 = vld [vmem:[%s303 + $0x58] sm:$0xff]
      %v437 = vld [vmem:[%s303 + $0x60] sm:$0xff]
      %v438 = vld [vmem:[%s303 + $0x68] sm:$0xff]
      %v439 = vld [vmem:[%s303 + $0x70] sm:$0xff]
      %v440 = vld [vmem:[%s303 + $0x78] sm:$0xff]
      %v441 = vld [vmem:[%s303 + $0x80] sm:$0xff]
      %v442 = vld [vmem:[%s303 + $0x88] sm:$0xff]
      %v443 = vld [vmem:[%s303 + $0x90] sm:$0xff]
      %v444 = vld [vmem:[%s303 + $0x98] sm:$0xff]
      %v445 = vld [vmem:[%s303 + $0xa0] sm:$0xff]
      %v446 = vld [vmem:[%s303 + $0xa8] sm:$0xff]
      %v447 = vld [vmem:[%s303 + $0xb0] sm:$0xff]
      %v448 = vld [vmem:[%s303 + $0xb8] sm:$0xff]
      %v449 = vld [vmem:[%s303 + $0xc0] sm:$0xff]
      %v450 = vld [vmem:[%s303 + $0xc8] sm:$0xff]
      %v451 = vld [vmem:[%s303 + $0xd0] sm:$0xff]
      %v452 = vld [vmem:[%s303 + $0xd8] sm:$0xff]
      %v453 = vld [vmem:[%s303 + $0xe0] sm:$0xff]
      %v454 = vld [vmem:[%s303 + $0xe8] sm:$0xff]
      %v455 = vld [vmem:[%s303 + $0xf0] sm:$0xff]
      %v456 = vld [vmem:[%s303 + $0xf8] sm:$0xff]
      %v457 = vld [vmem:[%s4] sm:$0x1]
      %v459 = vlaneseq
      %v460 = vshrl.u32 %v459, 7
      %v461 = vsub.s32 0, %v460
      %v462 = vrot.slane %v457, %v461
      %v464 = vmul.f32 %v425, %v462
      %v465 = vmul.f32 %v426, %v462
      %v466 = vmul.f32 %v427, %v462
      %v467 = vmul.f32 %v428, %v462
      %v468 = vmul.f32 %v429, %v462
      %v469 = vmul.f32 %v430, %v462
      %v470 = vmul.f32 %v431, %v462
      %v471 = vmul.f32 %v432, %v462
      %v472 = vmul.f32 %v433, %v462
      %v473 = vmul.f32 %v434, %v462
      %v474 = vmul.f32 %v435, %v462
      %v475 = vmul.f32 %v436, %v462
      %v476 = vmul.f32 %v437, %v462
      %v477 = vmul.f32 %v438, %v462
      %v478 = vmul.f32 %v439, %v462
      %v479 = vmul.f32 %v440, %v462
      %v480 = vmul.f32 %v441, %v462
      %v481 = vmul.f32 %v442, %v462
      %v482 = vmul.f32 %v443, %v462
      %v483 = vmul.f32 %v444, %v462
      %v484 = vmul.f32 %v445, %v462
      %v485 = vmul.f32 %v446, %v462
      %v486 = vmul.f32 %v447, %v462
      %v487 = vmul.f32 %v448, %v462
      %v488 = vmul.f32 %v449, %v462
      %v489 = vmul.f32 %v450, %v462
      %v490 = vmul.f32 %v451, %v462
      %v491 = vmul.f32 %v452, %v462
      %v492 = vmul.f32 %v453, %v462
      %v493 = vmul.f32 %v454, %v462
      %v494 = vmul.f32 %v455, %v462
      %v495 = vmul.f32 %v456, %v462
      %v496 = vadd.f32 %v393, %v464
      %v497 = vadd.f32 %v394, %v465
      %v498 = vadd.f32 %v395, %v466
      %v499 = vadd.f32 %v396, %v467
      %v500 = vadd.f32 %v397, %v468
      %v501 = vadd.f32 %v398, %v469
      %v502 = vadd.f32 %v399, %v470
      %v503 = vadd.f32 %v400, %v471
      %v504 = vadd.f32 %v401, %v472
      %v505 = vadd.f32 %v402, %v473
      %v506 = vadd.f32 %v403, %v474
      %v507 = vadd.f32 %v404, %v475
      %v508 = vadd.f32 %v405, %v476
      %v509 = vadd.f32 %v406, %v477
      %v510 = vadd.f32 %v407, %v478
      %v511 = vadd.f32 %v408, %v479
      %v512 = vadd.f32 %v409, %v480
      %v513 = vadd.f32 %v410, %v481
      %v514 = vadd.f32 %v411, %v482
      %v515 = vadd.f32 %v412, %v483
      %v516 = vadd.f32 %v413, %v484
      %v517 = vadd.f32 %v414, %v485
      %v518 = vadd.f32 %v415, %v486
      %v519 = vadd.f32 %v416, %v487
      %v520 = vadd.f32 %v417, %v488
      %v521 = vadd.f32 %v418, %v489
      %v522 = vadd.f32 %v419, %v490
      %v523 = vadd.f32 %v420, %v491
      %v524 = vadd.f32 %v421, %v492
      %v525 = vadd.f32 %v422, %v493
      %v526 = vadd.f32 %v423, %v494
      %v527 = vadd.f32 %v424, %v495
      %v528 = vld [vmem:[%s5] sm:$0x1]
      %v530 = vlaneseq
      %v531 = vshrl.u32 %v530, 7
      %v532 = vsub.s32 0, %v531
      %v533 = vrot.slane %v528, %v532
      %v535 = vadd.f32 %v496, %v533
      %v536 = vadd.f32 %v497, %v533
      %v537 = vadd.f32 %v498, %v533
      %v538 = vadd.f32 %v499, %v533
      %v539 = vadd.f32 %v500, %v533
      %v540 = vadd.f32 %v501, %v533
      %v541 = vadd.f32 %v502, %v533
      %v542 = vadd.f32 %v503, %v533
      %v543 = vadd.f32 %v504, %v533
      %v544 = vadd.f32 %v505, %v533
      %v545 = vadd.f32 %v506, %v533
      %v546 = vadd.f32 %v507, %v533
      %v547 = vadd.f32 %v508, %v533
      %v548 = vadd.f32 %v509, %v533
      %v549 = vadd.f32 %v510, %v533
      %v550 = vadd.f32 %v511, %v533
      %v551 = vadd.f32 %v512, %v533
      %v552 = vadd.f32 %v513, %v533
      %v553 = vadd.f32 %v514, %v533
      %v554 = vadd.f32 %v515, %v533
      %v555 = vadd.f32 %v516, %v533
      %v556 = vadd.f32 %v517, %v533
      %v557 = vadd.f32 %v518, %v533
      %v558 = vadd.f32 %v519, %v533
      %v559 = vadd.f32 %v520, %v533
      %v560 = vadd.f32 %v521, %v533
      %v561 = vadd.f32 %v522, %v533
      %v562 = vadd.f32 %v523, %v533
      %v563 = vadd.f32 %v524, %v533
      %v564 = vadd.f32 %v525, %v533
      %v565 = vadd.f32 %v526, %v533
      %v566 = vadd.f32 %v527, %v533
      %v567 = vmax.f32 %v535, 0.0
      %v568 = vmax.f32 %v536, 0.0
      %v569 = vmax.f32 %v537, 0.0
      %v570 = vmax.f32 %v538, 0.0
      %v571 = vmax.f32 %v539, 0.0
      %v572 = vmax.f32 %v540, 0.0
      %v573 = vmax.f32 %v541, 0.0
      %v574 = vmax.f32 %v542, 0.0
      %v575 = vmax.f32 %v543, 0.0
      %v576 = vmax.f32 %v544, 0.0
      %v577 = vmax.f32 %v545, 0.0
      %v578 = vmax.f32 %v546, 0.0
      %v579 = vmax.f32 %v547, 0.0
      %v580 = vmax.f32 %v548, 0.0
      %v581 = vmax.f32 %v549, 0.0
      %v582 = vmax.f32 %v550, 0.0
      %v583 = vmax.f32 %v551, 0.0
      %v584 = vmax.f32 %v552, 0.0
      %v585 = vmax.f32 %v553, 0.0
      %v586 = vmax.f32 %v554, 0.0
      %v587 = vmax.f32 %v555, 0.0
      %v588 = vmax.f32 %v556, 0.0
      %v589 = vmax.f32 %v557, 0.0
      %v590 = vmax.f32 %v558, 0.0
      %v591 = vmax.f32 %v559, 0.0
      %v592 = vmax.f32 %v560, 0.0
      %v593 = vmax.f32 %v561, 0.0
      %v594 = vmax.f32 %v562, 0.0
      %v595 = vmax.f32 %v563, 0.0
      %v596 = vmax.f32 %v564, 0.0
      %v597 = vmax.f32 %v565, 0.0
      %v598 = vmax.f32 %v566, 0.0
      %v599 = vmin.f32 %v567, 6.0
      %v600 = vmin.f32 %v568, 6.0
      %v601 = vmin.f32 %v569, 6.0
      %v602 = vmin.f32 %v570, 6.0
      %v603 = vmin.f32 %v571, 6.0
      %v604 = vmin.f32 %v572, 6.0
      %v605 = vmin.f32 %v573, 6.0
      %v606 = vmin.f32 %v574, 6.0
      %v607 = vmin.f32 %v575, 6.0
      %v608 = vmin.f32 %v576, 6.0
      %v609 = vmin.f32 %v577, 6.0
      %v610 = vmin.f32 %v578, 6.0
      %v611 = vmin.f32 %v579, 6.0
      %v612 = vmin.f32 %v580, 6.0
      %v613 = vmin.f32 %v581, 6.0
      %v614 = vmin.f32 %v582, 6.0
      %v615 = vmin.f32 %v583, 6.0
      %v616 = vmin.f32 %v584, 6.0
      %v617 = vmin.f32 %v585, 6.0
      %v618 = vmin.f32 %v586, 6.0
      %v619 = vmin.f32 %v587, 6.0
      %v620 = vmin.f32 %v588, 6.0
      %v621 = vmin.f32 %v589, 6.0
      %v622 = vmin.f32 %v590, 6.0
      %v623 = vmin.f32 %v591, 6.0
      %v624 = vmin.f32 %v592, 6.0
      %v625 = vmin.f32 %v593, 6.0
      %v626 = vmin.f32 %v594, 6.0
      %v627 = vmin.f32 %v595, 6.0
      %v628 = vmin.f32 %v596, 6.0
      %v629 = vmin.f32 %v597, 6.0
      %v630 = vmin.f32 %v598, 6.0
      %631 = vst [vmem:[%s309] sm:$0xff] %v599
      %632 = vst [vmem:[%s309 + $0x8] sm:$0xff] %v600
      %633 = vst [vmem:[%s309 + $0x10] sm:$0xff] %v601
      %634 = vst [vmem:[%s309 + $0x18] sm:$0xff] %v602
      %635 = vst [vmem:[%s309 + $0x20] sm:$0xff] %v603
      %636 = vst [vmem:[%s309 + $0x28] sm:$0xff] %v604
      %637 = vst [vmem:[%s309 + $0x30] sm:$0xff] %v605
      %638 = vst [vmem:[%s309 + $0x38] sm:$0xff] %v606
      %639 = vst [vmem:[%s309 + $0x40] sm:$0xff] %v607
      %640 = vst [vmem:[%s309 + $0x48] sm:$0xff] %v608
      %641 = vst [vmem:[%s309 + $0x50] sm:$0xff] %v609
      %642 = vst [vmem:[%s309 + $0x58] sm:$0xff] %v610
      %643 = vst [vmem:[%s309 + $0x60] sm:$0xff] %v611
      %644 = vst [vmem:[%s309 + $0x68] sm:$0xff] %v612
      %645 = vst [vmem:[%s309 + $0x70] sm:$0xff] %v613
      %646 = vst [vmem:[%s309 + $0x78] sm:$0xff] %v614
      %647 = vst [vmem:[%s309 + $0x80] sm:$0xff] %v615
      %648 = vst [vmem:[%s309 + $0x88] sm:$0xff] %v616
      %649 = vst [vmem:[%s309 + $0x90] sm:$0xff] %v617
      %650 = vst [vmem:[%s309 + $0x98] sm:$0xff] %v618
      %651 = vst [vmem:[%s309 + $0xa0] sm:$0xff] %v619
      %652 = vst [vmem:[%s309 + $0xa8] sm:$0xff] %v620
      %653 = vst [vmem:[%s309 + $0xb0] sm:$0xff] %v621
      %654 = vst [vmem:[%s309 + $0xb8] sm:$0xff] %v622
      %655 = vst [vmem:[%s309 + $0xc0] sm:$0xff] %v623
      %656 = vst [vmem:[%s309 + $0xc8] sm:$0xff] %v624
      %657 = vst [vmem:[%s309 + $0xd0] sm:$0xff] %v625
      %658 = vst [vmem:[%s309 + $0xd8] sm:$0xff] %v626
      %659 = vst [vmem:[%s309 + $0xe0] sm:$0xff] %v627
      %660 = vst [vmem:[%s309 + $0xe8] sm:$0xff] %v628
      %661 = vst [vmem:[%s309 + $0xf0] sm:$0xff] %v629
      %662 = vst [vmem:[%s309 + $0xf8] sm:$0xff] %v630
      %v663 = vlaneseq
      %v664 = vshrl.u32 %v663, 7
      %v665 = vadd.s32 %v664, 8
      %v666 = vadd.s32 %v664, 16
      %v667 = vadd.s32 %v664, 24
      %v668 = vadd.s32 %v664, 32
      %v669 = vadd.s32 %v664, 40
      %v670 = vadd.s32 %v664, 48
      %v671 = vadd.s32 %v664, 56
      %v672 = vadd.s32 %v664, 64
      %v673 = vadd.s32 %v664, 72
      %v674 = vadd.s32 %v664, 80
      %v675 = vadd.s32 %v664, 88
      %v676 = vadd.s32 %v664, 96
      %v677 = vadd.s32 %v664, 104
      %v678 = vadd.s32 %v664, 112
      %v679 = vadd.s32 %v664, 120
      %v680 = vadd.s32 %v664, 128
      %v681 = vadd.s32 %v664, 136
      %v682 = vadd.s32 %v664, 144
      %v683 = vadd.s32 %v664, 152
      %v684 = vadd.s32 %v664, 160
      %v685 = vadd.s32 %v664, 168
      %v686 = vadd.s32 %v664, 176
      %v687 = vadd.s32 %v664, 184
      %v688 = vadd.s32 %v664, 192
      %v689 = vadd.s32 %v664, 200
      %v690 = vadd.s32 %v664, 208
      %v691 = vadd.s32 %v664, 216
      %v692 = vadd.s32 %v664, 224
      %v693 = vadd.s32 %v664, 232
      %v694 = vadd.s32 %v664, 240
      %v695 = vadd.s32 %v664, 248
      %s696 = smul.u32 %s19, 256
      %v697 = vstv %s696
      %v698 = vadd.s32 %v664, %v697
      %v699 = vadd.s32 %v665, %v697
      %v700 = vadd.s32 %v666, %v697
      %v701 = vadd.s32 %v667, %v697
      %v702 = vadd.s32 %v668, %v697
      %v703 = vadd.s32 %v669, %v697
      %v704 = vadd.s32 %v670, %v697
      %v705 = vadd.s32 %v671, %v697
      %v706 = vadd.s32 %v672, %v697
      %v707 = vadd.s32 %v673, %v697
      %v708 = vadd.s32 %v674, %v697
      %v709 = vadd.s32 %v675, %v697
      %v710 = vadd.s32 %v676, %v697
      %v711 = vadd.s32 %v677, %v697
      %v712 = vadd.s32 %v678, %v697
      %v713 = vadd.s32 %v679, %v697
      %v714 = vadd.s32 %v680, %v697
      %v715 = vadd.s32 %v681, %v697
      %v716 = vadd.s32 %v682, %v697
      %v717 = vadd.s32 %v683, %v697
      %v718 = vadd.s32 %v684, %v697
      %v719 = vadd.s32 %v685, %v697
      %v720 = vadd.s32 %v686, %v697
      %v721 = vadd.s32 %v687, %v697
      %v722 = vadd.s32 %v688, %v697
      %v723 = vadd.s32 %v689, %v697
      %v724 = vadd.s32 %v690, %v697
      %v725 = vadd.s32 %v691, %v697
      %v726 = vadd.s32 %v692, %v697
      %v727 = vadd.s32 %v693, %v697
      %v728 = vadd.s32 %v694, %v697
      %v729 = vadd.s32 %v695, %v697
      %vm730 = vcmp.lt.s32.totalorder %v698, 450
      %vm731 = vcmp.lt.s32.totalorder %v699, 450
      %vm732 = vcmp.lt.s32.totalorder %v700, 450
      %vm733 = vcmp.lt.s32.totalorder %v701, 450
      %vm734 = vcmp.lt.s32.totalorder %v702, 450
      %vm735 = vcmp.lt.s32.totalorder %v703, 450
      %vm736 = vcmp.lt.s32.totalorder %v704, 450
      %vm737 = vcmp.lt.s32.totalorder %v705, 450
      %vm738 = vcmp.lt.s32.totalorder %v706, 450
      %vm739 = vcmp.lt.s32.totalorder %v707, 450
      %vm740 = vcmp.lt.s32.totalorder %v708, 450
      %vm741 = vcmp.lt.s32.totalorder %v709, 450
      %vm742 = vcmp.lt.s32.totalorder %v710, 450
      %vm743 = vcmp.lt.s32.totalorder %v711, 450
      %vm744 = vcmp.lt.s32.totalorder %v712, 450
      %vm745 = vcmp.lt.s32.totalorder %v713, 450
      %vm746 = vcmp.lt.s32.totalorder %v714, 450
      %vm747 = vcmp.lt.s32.totalorder %v715, 450
      %vm748 = vcmp.lt.s32.totalorder %v716, 450
      %vm749 = vcmp.lt.s32.totalorder %v717, 450
      %vm750 = vcmp.lt.s32.totalorder %v718, 450
      %vm751 = vcmp.lt.s32.totalorder %v719, 450
      %vm752 = vcmp.lt.s32.totalorder %v720, 450
      %vm753 = vcmp.lt.s32.totalorder %v721, 450
      %vm754 = vcmp.lt.s32.totalorder %v722, 450
      %vm755 = vcmp.lt.s32.totalorder %v723, 450
      %vm756 = vcmp.lt.s32.totalorder %v724, 450
      %vm757 = vcmp.lt.s32.totalorder %v725, 450
      %vm758 = vcmp.lt.s32.totalorder %v726, 450
      %vm759 = vcmp.lt.s32.totalorder %v727, 450
      %vm760 = vcmp.lt.s32.totalorder %v728, 450
      %vm761 = vcmp.lt.s32.totalorder %v729, 450
      %v762 = vsel %vm730, %v599, 0.0
      %v763 = vsel %vm731, %v600, 0.0
      %v764 = vsel %vm732, %v601, 0.0
      %v765 = vsel %vm733, %v602, 0.0
      %v766 = vsel %vm734, %v603, 0.0
      %v767 = vsel %vm735, %v604, 0.0
      %v768 = vsel %vm736, %v605, 0.0
      %v769 = vsel %vm737, %v606, 0.0
      %v770 = vsel %vm738, %v607, 0.0
      %v771 = vsel %vm739, %v608, 0.0
      %v772 = vsel %vm740, %v609, 0.0
      %v773 = vsel %vm741, %v610, 0.0
      %v774 = vsel %vm742, %v611, 0.0
      %v775 = vsel %vm743, %v612, 0.0
      %v776 = vsel %vm744, %v613, 0.0
      %v777 = vsel %vm745, %v614, 0.0
      %v778 = vsel %vm746, %v615, 0.0
      %v779 = vsel %vm747, %v616, 0.0
      %v780 = vsel %vm748, %v617, 0.0
      %v781 = vsel %vm749, %v618, 0.0
      %v782 = vsel %vm750, %v619, 0.0
      %v783 = vsel %vm751, %v620, 0.0
      %v784 = vsel %vm752, %v621, 0.0
      %v785 = vsel %vm753, %v622, 0.0
      %v786 = vsel %vm754, %v623, 0.0
      %v787 = vsel %vm755, %v624, 0.0
      %v788 = vsel %vm756, %v625, 0.0
      %v789 = vsel %vm757, %v626, 0.0
      %v790 = vsel %vm758, %v627, 0.0
      %v791 = vsel %vm759, %v628, 0.0
      %v792 = vsel %vm760, %v629, 0.0
      %v793 = vsel %vm761, %v630, 0.0
      %v794 = vadd.f32 %v762, %v763
      %v795 = vadd.f32 %v794, %v764
      %v796 = vadd.f32 %v795, %v765
      %v797 = vadd.f32 %v796, %v766
      %v798 = vadd.f32 %v797, %v767
      %v799 = vadd.f32 %v798, %v768
      %v800 = vadd.f32 %v799, %v769
      %v801 = vadd.f32 %v800, %v770
      %v802 = vadd.f32 %v801, %v771
      %v803 = vadd.f32 %v802, %v772
      %v804 = vadd.f32 %v803, %v773
      %v805 = vadd.f32 %v804, %v774
      %v806 = vadd.f32 %v805, %v775
      %v807 = vadd.f32 %v806, %v776
      %v808 = vadd.f32 %v807, %v777
      %v809 = vadd.f32 %v808, %v778
      %v810 = vadd.f32 %v809, %v779
      %v811 = vadd.f32 %v810, %v780
      %v812 = vadd.f32 %v811, %v781
      %v813 = vadd.f32 %v812, %v782
      %v814 = vadd.f32 %v813, %v783
      %v815 = vadd.f32 %v814, %v784
      %v816 = vadd.f32 %v815, %v785
      %v817 = vadd.f32 %v816, %v786
      %v818 = vadd.f32 %v817, %v787
      %v819 = vadd.f32 %v818, %v788
      %v820 = vadd.f32 %v819, %v789
      %v821 = vadd.f32 %v820, %v790
      %v822 = vadd.f32 %v821, %v791
      %v823 = vadd.f32 %v822, %v792
      %v824 = vadd.f32 %v823, %v793
      %v825 = vrot.slane %v824, 4
      %v826 = vadd.f32 %v824, %v825
      %v827 = vrot.slane %v826, 2
      %v828 = vadd.f32 %v826, %v827
      %v829 = vrot.slane %v828, 1
      %v830 = vadd.f32 %v828, %v829
      %v831 = vmul.f32 %v762, %v762
      %v832 = vmul.f32 %v763, %v763
      %v833 = vmul.f32 %v764, %v764
      %v834 = vmul.f32 %v765, %v765
      %v835 = vmul.f32 %v766, %v766
      %v836 = vmul.f32 %v767, %v767
      %v837 = vmul.f32 %v768, %v768
      %v838 = vmul.f32 %v769, %v769
      %v839 = vmul.f32 %v770, %v770
      %v840 = vmul.f32 %v771, %v771
      %v841 = vmul.f32 %v772, %v772
      %v842 = vmul.f32 %v773, %v773
      %v843 = vmul.f32 %v774, %v774
      %v844 = vmul.f32 %v775, %v775
      %v845 = vmul.f32 %v776, %v776
      %v846 = vmul.f32 %v777, %v777
      %v847 = vmul.f32 %v778, %v778
      %v848 = vmul.f32 %v779, %v779
      %v849 = vmul.f32 %v780, %v780
      %v850 = vmul.f32 %v781, %v781
      %v851 = vmul.f32 %v782, %v782
      %v852 = vmul.f32 %v783, %v783
      %v853 = vmul.f32 %v784, %v784
      %v854 = vmul.f32 %v785, %v785
      %v855 = vmul.f32 %v786, %v786
      %v856 = vmul.f32 %v787, %v787
      %v857 = vmul.f32 %v788, %v788
      %v858 = vmul.f32 %v789, %v789
      %v859 = vmul.f32 %v790, %v790
      %v860 = vmul.f32 %v791, %v791
      %v861 = vmul.f32 %v792, %v792
      %v862 = vmul.f32 %v793, %v793
      %v863 = vadd.f32 %v831, %v832
      %v864 = vadd.f32 %v863, %v833
      %v865 = vadd.f32 %v864, %v834
      %v866 = vadd.f32 %v865, %v835
      %v867 = vadd.f32 %v866, %v836
      %v868 = vadd.f32 %v867, %v837
      %v869 = vadd.f32 %v868, %v838
      %v870 = vadd.f32 %v869, %v839
      %v871 = vadd.f32 %v870, %v840
      %v872 = vadd.f32 %v871, %v841
      %v873 = vadd.f32 %v872, %v842
      %v874 = vadd.f32 %v873, %v843
      %v875 = vadd.f32 %v874, %v844
      %v876 = vadd.f32 %v875, %v845
      %v877 = vadd.f32 %v876, %v846
      %v878 = vadd.f32 %v877, %v847
      %v879 = vadd.f32 %v878, %v848
      %v880 = vadd.f32 %v879, %v849
      %v881 = vadd.f32 %v880, %v850
      %v882 = vadd.f32 %v881, %v851
      %v883 = vadd.f32 %v882, %v852
      %v884 = vadd.f32 %v883, %v853
      %v885 = vadd.f32 %v884, %v854
      %v886 = vadd.f32 %v885, %v855
      %v887 = vadd.f32 %v886, %v856
      %v888 = vadd.f32 %v887, %v857
      %v889 = vadd.f32 %v888, %v858
      %v890 = vadd.f32 %v889, %v859
      %v891 = vadd.f32 %v890, %v860
      %v892 = vadd.f32 %v891, %v861
      %v893 = vadd.f32 %v892, %v862
      %v894 = vrot.slane %v893, 4
      %v895 = vadd.f32 %v893, %v894
      %v896 = vrot.slane %v895, 2
      %v897 = vadd.f32 %v895, %v896
      %v898 = vrot.slane %v897, 1
      %v899 = vadd.f32 %v897, %v898
      %vm900 = vcmask 1040384
      %v901 = vsel %vm900, %v830, %v899
      %vm902 = vcmask 1041408
      %v903 = vsel %vm902, %v901, 0.0
      %904 = vst [vmem:[%s314] sm:$0xff] %v903
      %s905 = smul.u32 32, %s19
      %p906 = scmp.lt.s32.totalorder %s905, 63
      %s907 = scalar_select %p906, %s905, 63
      %s908 = smul.addr %s907, 8
      %s909 = scalar_lea.vmem %s6, %s908
      %p910 = scmp.lt.s32.totalorder %s19, 1
      %s911 = scalar_select %p910, %s19, 1
      %s912 = smul.addr %s911, 8
      %s913 = scalar_lea.vmem %s7, %s912
      // Predicated region
      $region45: #{resnet_forward.32} parent=43 // pred_check
        %p914 = pneg %p173
      $region46: #{resnet_forward.32} parent=43 // pred_check_branch
        %916 = sbr.rel (%p914) target = $region48
      $region47: #{resnet_forward.32} parent=43 // pred_region
        %s917 = smul.u32 32, %s19
      $region48: #{resnet_forward.32} parent=43 // pred_fallthru
        _
      // Predicated region
      $region49: #{resnet_forward.32} parent=43 // pred_check
        %p918 = pneg %p199
      $region50: #{resnet_forward.32} parent=43 // pred_check_branch
        %920 = sbr.rel (%p918) target = $region52
      $region51: #{resnet_forward.32} parent=43 // pred_region
        _
      $region52: #{resnet_forward.32} parent=43 // pred_fallthru
        _
    $region44: #{resnet_forward.32} parent=5 // pred_fallthru
      _
    %p921 = scmp.le.s32.totalorder 2, %s14
    // Predicated region
    $region53: #{resnet_forward.32} parent=5 // pred_check
      %p922 = pneg %p921
    $region54: #{resnet_forward.32} parent=5 // pred_check_branch
      %924 = sbr.rel (%p922) target = $region56
    $region55: #{resnet_forward.32} parent=5 // pred_region
      %s925 = ssub.s32 %s14, 2
      // Predicated region
      $region57: #{resnet_forward.32} parent=55 // pred_check
        %p926 = pneg %p179
      $region58: #{resnet_forward.32} parent=55 // pred_check_branch
        %928 = sbr.rel (%p926) target = $region60
      $region59: #{resnet_forward.32} parent=55 // pred_region
        %s929 = smul.u32 32, %s20
        %p930 = scmp.lt.s32.totalorder %s929, 63
        %s931 = scalar_select %p930, %s929, 63
        %s932 = smul.addr %s931, 8
        %s933 = scalar_lea.vmem %s6, %s932
      $region60: #{resnet_forward.32} parent=55 // pred_fallthru
        _
      // Predicated region
      $region61: #{resnet_forward.32} parent=55 // pred_check
        %p934 = pneg %p205
      $region62: #{resnet_forward.32} parent=55 // pred_check_branch
        %936 = sbr.rel (%p934) target = $region64
      $region63: #{resnet_forward.32} parent=55 // pred_region
        %p937 = scmp.lt.s32.totalorder %s20, 1
        %s938 = scalar_select %p937, %s20, 1
        %s939 = smul.addr %s938, 8
        %s940 = scalar_lea.vmem %s7, %s939
      $region64: #{resnet_forward.32} parent=55 // pred_fallthru
        _
    $region56: #{resnet_forward.32} parent=5 // pred_fallthru
      _
  $region6: #{resnet_forward.32} parent=0 // loop_footer
    %s18 = sadd.s32 1, %s14
  $region7: #{resnet_forward.32} parent=0 // loop_footer_branch
    %13 = sbr.rel target = $region3
  $region8: #{resnet_forward.32} parent=0 // loop_exit
    _

// kernel: resnet_forward.33
$region0: #{resnet_forward.33}
  #allocation0 [shape = 'u32[]', space=smem, size = 0x4, offset = 0x4, fixed_abs, tag = 'smem constant byte address 0x4 - core index']
  #allocation1 [shape = 'u32[144,128]{1,0:T(1,128)}', space=vmem, size = 0x12000, scoped, tag = 'internal scratch']
  %s0 = inlined_call_operand.vmem [shape: f32[512,128], index: 0, kind: input, shape index: {}]
  %s1 = inlined_call_operand.vmem [shape: f32[1,128], index: 1, kind: input, shape index: {}]
  %s2 = inlined_call_operand.vmem [shape: f32[1,128], index: 2, kind: input, shape index: {}]
  %s3 = inlined_call_operand.vmem [shape: f32[512,128], index: 3, kind: output, shape index: {}]
  %s4 = sld [smem:[#allocation0]]
  $region45: #{resnet_forward.33} parent=0
    _
  %s6 = ssub.s32 1, %s4
  %s7 = scalar_select 0, %s6, %s4
  loop: start=0, step=1, limit=4
  $region2: #{resnet_forward.33} parent=0 // loop_pre_header
    _
  $region3: #{resnet_forward.33} parent=0 // loop_header
    %s9 = sphi 0, %s13
    %p10 = scmp.ge.s32.totalorder %s9, 4
    %s19 = sphi 0, %s21
    %s22 = sphi 0, %s19
    %s23 = sphi 0, %s22
    %s39 = sphi 0, %s23
    %s43 = sphi 0, %s43
    %s45 = sphi 0, %s43
    %s46 = sphi 0, %s45
    %s60 = sphi 0, %s46
    %s64 = sphi 0, %s64
    %s66 = sphi 0, %s64
    %s67 = sphi 0, %s66
    %s81 = sphi 0, %s67
    %s87 = sphi 0, %s89
    %s90 = sphi 0, %s87
    %s91 = sphi 0, %s90
    %s107 = sphi 0, %s91
  $region4: #{resnet_forward.33} parent=0 // loop_header_branch
    %12 = sbr.rel (%p10) target = $region8
  $region5: #{resnet_forward.33} parent=0 // loop_body
    %s14 = ssub.s32 %s9, 1
    %s15 = ssub.s32 %s9, 2
    %s16 = sadd.s32 %s9, 1
    %s17 = ssub.s32 %s9, %s16
    %p18 = scmp.eq.s32.totalorder %s17, 0
    %s20 = sadd.s32 %s19, 1
    %s21 = scalar_select %p18, %s19, %s20
    %p24 = pneg %p18
    %p25 = scmp.eq.s32.totalorder %s9, 1
    %p26 = por %p24, %p25
    %p27 = scmp.ne.s32.totalorder %s19, %s22
    %p28 = scmp.eq.s32.totalorder %s9, 0
    %p29 = por %p27, %p28
    %p30 = scmp.ne.s32.totalorder %s19, %s22
    %p31 = scmp.eq.s32.totalorder %s14, 1
    %p32 = por %p30, %p31
    %p33 = scmp.ne.s32.totalorder %s22, %s23
    %p34 = scmp.eq.s32.totalorder %s14, 0
    %p35 = por %p33, %p34
    %p36 = scmp.ne.s32.totalorder %s22, %s23
    %p37 = scmp.eq.s32.totalorder %s15, 1
    %p38 = por %p36, %p37
    %p40 = scmp.ne.s32.totalorder %s23, %s39
    %p41 = scmp.eq.s32.totalorder %s15, 0
    %p42 = por %p40, %p41
    %s44 = sadd.s32 %s43, 1
    %p47 = scmp.eq.s32.totalorder %s9, 1
    %p48 = scmp.ne.s32.totalorder %s43, %s45
    %p49 = scmp.eq.s32.totalorder %s9, 0
    %p50 = por %p48, %p49
    %p51 = scmp.ne.s32.totalorder %s43, %s45
    %p52 = scmp.eq.s32.totalorder %s14, 1
    %p53 = por %p51, %p52
    %p54 = scmp.ne.s32.totalorder %s45, %s46
    %p55 = scmp.eq.s32.totalorder %s14, 0
    %p56 = por %p54, %p55
    %p57 = scmp.ne.s32.totalorder %s45, %s46
    %p58 = scmp.eq.s32.totalorder %s15, 1
    %p59 = por %p57, %p58
    %p61 = scmp.ne.s32.totalorder %s46, %s60
    %p62 = scmp.eq.s32.totalorder %s15, 0
    %p63 = por %p61, %p62
    %s65 = sadd.s32 %s64, 1
    %p68 = scmp.eq.s32.totalorder %s9, 1
    %p69 = scmp.ne.s32.totalorder %s64, %s66
    %p70 = scmp.eq.s32.totalorder %s9, 0
    %p71 = por %p69, %p70
    %p72 = scmp.ne.s32.totalorder %s64, %s66
    %p73 = scmp.eq.s32.totalorder %s14, 1
    %p74 = por %p72, %p73
    %p75 = scmp.ne.s32.totalorder %s66, %s67
    %p76 = scmp.eq.s32.totalorder %s14, 0
    %p77 = por %p75, %p76
    %p78 = scmp.ne.s32.totalorder %s66, %s67
    %p79 = scmp.eq.s32.totalorder %s15, 1
    %p80 = por %p78, %p79
    %p82 = scmp.ne.s32.totalorder %s67, %s81
    %p83 = scmp.eq.s32.totalorder %s15, 0
    %p84 = por %p82, %p83
    %s85 = ssub.s32 %s9, %s16
    %p86 = scmp.eq.s32.totalorder %s85, 0
    %s88 = sadd.s32 %s87, 1
    %s89 = scalar_select %p86, %s87, %s88
    %p92 = pneg %p86
    %p93 = scmp.eq.s32.totalorder %s9, 1
    %p94 = por %p92, %p93
    %p95 = scmp.ne.s32.totalorder %s87, %s90
    %p96 = scmp.eq.s32.totalorder %s9, 0
    %p97 = por %p95, %p96
    %p98 = scmp.ne.s32.totalorder %s87, %s90
    %p99 = scmp.eq.s32.totalorder %s14, 1
    %p100 = por %p98, %p99
    %p101 = scmp.ne.s32.totalorder %s90, %s91
    %p102 = scmp.eq.s32.totalorder %s14, 0
    %p103 = por %p101, %p102
    %p104 = scmp.ne.s32.totalorder %s90, %s91
    %p105 = scmp.eq.s32.totalorder %s15, 1
    %p106 = por %p104, %p105
    %p108 = scmp.ne.s32.totalorder %s91, %s107
    %p109 = scmp.eq.s32.totalorder %s15, 0
    %p110 = por %p108, %p109
    %p111 = scmp.le.s32.totalorder 1, %s9
    %p112 = scmp.lt.s32.totalorder %s9, 3
    %p113 = pnand %p111, %p112
    %p114 = pneg %p113
    // Predicated region
    $region9: #{resnet_forward.33} parent=5 // pred_check
      _
    $region10: #{resnet_forward.33} parent=5 // pred_check_branch
      %116 = sbr.rel (%p113) target = $region12
    $region11: #{resnet_forward.33} parent=5 // pred_region
      %s117 = ssub.s32 %s9, 1
      // Predicated region
      $region13: #{resnet_forward.33} parent=11 // pred_check
        %p118 = pneg %p56
      $region14: #{resnet_forward.33} parent=11 // pred_check_branch
        %120 = sbr.rel (%p118) target = $region16
      $region15: #{resnet_forward.33} parent=11 // pred_region
        _
      $region16: #{resnet_forward.33} parent=11 // pred_fallthru
        _
      // Predicated region
      $region17: #{resnet_forward.33} parent=11 // pred_check
        %p121 = pneg %p77
      $region18: #{resnet_forward.33} parent=11 // pred_check_branch
        %123 = sbr.rel (%p121) target = $region20
      $region19: #{resnet_forward.33} parent=11 // pred_region
        _
      $region20: #{resnet_forward.33} parent=11 // pred_fallthru
        _
    $region12: #{resnet_forward.33} parent=5 // pred_fallthru
      _
    %p124 = scmp.lt.s32.totalorder %s9, 2
    // Predicated region
    $region21: #{resnet_forward.33} parent=5 // pred_check
      %p125 = pneg %p124
    $region22: #{resnet_forward.33} parent=5 // pred_check_branch
      %127 = sbr.rel (%p125) target = $region24
    $region23: #{resnet_forward.33} parent=5 // pred_region
      // Predicated region
      $region25: #{resnet_forward.33} parent=23 // pred_check
        %p128 = pneg %p29
      $region26: #{resnet_forward.33} parent=23 // pred_check_branch
        %130 = sbr.rel (%p128) target = $region28
      $region27: #{resnet_forward.33} parent=23 // pred_region
        %s131 = smul.u32 32, %s9
        %p132 = scmp.lt.s32.totalorder %s131, 63
        %s133 = scalar_select %p132, %s131, 63
        %s134 = smul.addr %s133, 8
        %s135 = scalar_lea.vmem %s0, %s134
        %s136 = smul.u32 32, %s9
      $region28: #{resnet_forward.33} parent=23 // pred_fallthru
        _
    $region24: #{resnet_forward.33} parent=5 // pred_fallthru
      _
    %p137 = scmp.le.s32.totalorder 1, %s9
    %p138 = scmp.lt.s32.totalorder %s9, 3
    %p139 = pnand %p137, %p138
    %p140 = pneg %p139
    // Predicated region
    $region29: #{resnet_forward.33} parent=5 // pred_check
      _
    $region30: #{resnet_forward.33} parent=5 // pred_check_branch
      %142 = sbr.rel (%p139) target = $region32
    $region31: #{resnet_forward.33} parent=5 // pred_region
      %s143 = ssub.s32 %s9, 1
      %s144 = smul.u32 32, %s14
      %p145 = scmp.lt.s32.totalorder %s144, 63
      %s146 = scalar_select %p145, %s144, 63
      %s147 = smul.addr %s146, 8
      %s148 = scalar_lea.vmem %s0, %s147
      %p149 = pneg %p35
      %p150 = pneg %p32
      %p151 = pneg %p56
      %p152 = pneg %p53
      %p153 = pneg %p77
      %p154 = pneg %p74
      %p155 = pneg %p103
      %p156 = pneg %p100
      %s157 = smul.u32 32, %s14
      %p158 = scmp.lt.s32.totalorder %s157, 63
      %s159 = scalar_select %p158, %s157, 63
      %s160 = smul.addr %s159, 8
      %s161 = scalar_lea.vmem %s3, %s160
      %s162 = smul.u32 32, %s14
      %p163 = scmp.lt.s32.totalorder %s162, 63
      %s164 = scalar_select %p163, %s162, 63
      %s165 = smul.addr %s164, 8
      %s166 = scalar_lea.vmem %s0, %s165
      %s167 = smul.u32 32, %s14
      %s168 = smul.u32 32, %s14
      %p169 = scmp.lt.s32.totalorder %s168, 63
      %s170 = scalar_select %p169, %s168, 63
      %s171 = smul.addr %s170, 8
      %s172 = scalar_lea.vmem %s3, %s171
      %s173 = smul.u32 32, %s14
      %v174 = vld [vmem:[%s166] sm:$0xff]
      %v175 = vld [vmem:[%s166 + $0x8] sm:$0xff]
      %v176 = vld [vmem:[%s166 + $0x10] sm:$0xff]
      %v177 = vld [vmem:[%s166 + $0x18] sm:$0xff]
      %v178 = vld [vmem:[%s166 + $0x20] sm:$0xff]
      %v179 = vld [vmem:[%s166 + $0x28] sm:$0xff]
      %v180 = vld [vmem:[%s166 + $0x30] sm:$0xff]
      %v181 = vld [vmem:[%s166 + $0x38] sm:$0xff]
      %v182 = vld [vmem:[%s166 + $0x40] sm:$0xff]
      %v183 = vld [vmem:[%s166 + $0x48] sm:$0xff]
      %v184 = vld [vmem:[%s166 + $0x50] sm:$0xff]
      %v185 = vld [vmem:[%s166 + $0x58] sm:$0xff]
      %v186 = vld [vmem:[%s166 + $0x60] sm:$0xff]
      %v187 = vld [vmem:[%s166 + $0x68] sm:$0xff]
      %v188 = vld [vmem:[%s166 + $0x70] sm:$0xff]
      %v189 = vld [vmem:[%s166 + $0x78] sm:$0xff]
      %v190 = vld [vmem:[%s166 + $0x80] sm:$0xff]
      %v191 = vld [vmem:[%s166 + $0x88] sm:$0xff]
      %v192 = vld [vmem:[%s166 + $0x90] sm:$0xff]
      %v193 = vld [vmem:[%s166 + $0x98] sm:$0xff]
      %v194 = vld [vmem:[%s166 + $0xa0] sm:$0xff]
      %v195 = vld [vmem:[%s166 + $0xa8] sm:$0xff]
      %v196 = vld [vmem:[%s166 + $0xb0] sm:$0xff]
      %v197 = vld [vmem:[%s166 + $0xb8] sm:$0xff]
      %v198 = vld [vmem:[%s166 + $0xc0] sm:$0xff]
      %v199 = vld [vmem:[%s166 + $0xc8] sm:$0xff]
      %v200 = vld [vmem:[%s166 + $0xd0] sm:$0xff]
      %v201 = vld [vmem:[%s166 + $0xd8] sm:$0xff]
      %v202 = vld [vmem:[%s166 + $0xe0] sm:$0xff]
      %v203 = vld [vmem:[%s166 + $0xe8] sm:$0xff]
      %v204 = vld [vmem:[%s166 + $0xf0] sm:$0xff]
      %v205 = vld [vmem:[%s166 + $0xf8] sm:$0xff]
      %v206 = vld [vmem:[%s1] sm:$0x1]
      %v208 = vlaneseq
      %v209 = vshrl.u32 %v208, 7
      %v210 = vsub.s32 0, %v209
      %v211 = vrot.slane %v206, %v210
      %v213 = vmul.f32 %v174, %v211
      %v214 = vmul.f32 %v175, %v211
      %v215 = vmul.f32 %v176, %v211
      %v216 = vmul.f32 %v177, %v211
      %v217 = vmul.f32 %v178, %v211
      %v218 = vmul.f32 %v179, %v211
      %v219 = vmul.f32 %v180, %v211
      %v220 = vmul.f32 %v181, %v211
      %v221 = vmul.f32 %v182, %v211
      %v222 = vmul.f32 %v183, %v211
      %v223 = vmul.f32 %v184, %v211
      %v224 = vmul.f32 %v185, %v211
      %v225 = vmul.f32 %v186, %v211
      %v226 = vmul.f32 %v187, %v211
      %v227 = vmul.f32 %v188, %v211
      %v228 = vmul.f32 %v189, %v211
      %v229 = vmul.f32 %v190, %v211
      %v230 = vmul.f32 %v191, %v211
      %v231 = vmul.f32 %v192, %v211
      %v232 = vmul.f32 %v193, %v211
      %v233 = vmul.f32 %v194, %v211
      %v234 = vmul.f32 %v195, %v211
      %v235 = vmul.f32 %v196, %v211
      %v236 = vmul.f32 %v197, %v211
      %v237 = vmul.f32 %v198, %v211
      %v238 = vmul.f32 %v199, %v211
      %v239 = vmul.f32 %v200, %v211
      %v240 = vmul.f32 %v201, %v211
      %v241 = vmul.f32 %v202, %v211
      %v242 = vmul.f32 %v203, %v211
      %v243 = vmul.f32 %v204, %v211
      %v244 = vmul.f32 %v205, %v211
      %v245 = vld [vmem:[%s2] sm:$0x1]
      %v247 = vlaneseq
      %v248 = vshrl.u32 %v247, 7
      %v249 = vsub.s32 0, %v248
      %v250 = vrot.slane %v245, %v249
      %v252 = vadd.f32 %v213, %v250
      %v253 = vadd.f32 %v214, %v250
      %v254 = vadd.f32 %v215, %v250
      %v255 = vadd.f32 %v216, %v250
      %v256 = vadd.f32 %v217, %v250
      %v257 = vadd.f32 %v218, %v250
      %v258 = vadd.f32 %v219, %v250
      %v259 = vadd.f32 %v220, %v250
      %v260 = vadd.f32 %v221, %v250
      %v261 = vadd.f32 %v222, %v250
      %v262 = vadd.f32 %v223, %v250
      %v263 = vadd.f32 %v224, %v250
      %v264 = vadd.f32 %v225, %v250
      %v265 = vadd.f32 %v226, %v250
      %v266 = vadd.f32 %v227, %v250
      %v267 = vadd.f32 %v228, %v250
      %v268 = vadd.f32 %v229, %v250
      %v269 = vadd.f32 %v230, %v250
      %v270 = vadd.f32 %v231, %v250
      %v271 = vadd.f32 %v232, %v250
      %v272 = vadd.f32 %v233, %v250
      %v273 = vadd.f32 %v234, %v250
      %v274 = vadd.f32 %v235, %v250
      %v275 = vadd.f32 %v236, %v250
      %v276 = vadd.f32 %v237, %v250
      %v277 = vadd.f32 %v238, %v250
      %v278 = vadd.f32 %v239, %v250
      %v279 = vadd.f32 %v240, %v250
      %v280 = vadd.f32 %v241, %v250
      %v281 = vadd.f32 %v242, %v250
      %v282 = vadd.f32 %v243, %v250
      %v283 = vadd.f32 %v244, %v250
      %284 = vst [vmem:[%s172] sm:$0xff] %v252
      %285 = vst [vmem:[%s172 + $0x8] sm:$0xff] %v253
      %286 = vst [vmem:[%s172 + $0x10] sm:$0xff] %v254
      %287 = vst [vmem:[%s172 + $0x18] sm:$0xff] %v255
      %288 = vst [vmem:[%s172 + $0x20] sm:$0xff] %v256
      %289 = vst [vmem:[%s172 + $0x28] sm:$0xff] %v257
      %290 = vst [vmem:[%s172 + $0x30] sm:$0xff] %v258
      %291 = vst [vmem:[%s172 + $0x38] sm:$0xff] %v259
      %292 = vst [vmem:[%s172 + $0x40] sm:$0xff] %v260
      %293 = vst [vmem:[%s172 + $0x48] sm:$0xff] %v261
      %294 = vst [vmem:[%s172 + $0x50] sm:$0xff] %v262
      %295 = vst [vmem:[%s172 + $0x58] sm:$0xff] %v263
      %296 = vst [vmem:[%s172 + $0x60] sm:$0xff] %v264
      %297 = vst [vmem:[%s172 + $0x68] sm:$0xff] %v265
      %298 = vst [vmem:[%s172 + $0x70] sm:$0xff] %v266
      %299 = vst [vmem:[%s172 + $0x78] sm:$0xff] %v267
      %300 = vst [vmem:[%s172 + $0x80] sm:$0xff] %v268
      %301 = vst [vmem:[%s172 + $0x88] sm:$0xff] %v269
      %302 = vst [vmem:[%s172 + $0x90] sm:$0xff] %v270
      %303 = vst [vmem:[%s172 + $0x98] sm:$0xff] %v271
      %304 = vst [vmem:[%s172 + $0xa0] sm:$0xff] %v272
      %305 = vst [vmem:[%s172 + $0xa8] sm:$0xff] %v273
      %306 = vst [vmem:[%s172 + $0xb0] sm:$0xff] %v274
      %307 = vst [vmem:[%s172 + $0xb8] sm:$0xff] %v275
      %308 = vst [vmem:[%s172 + $0xc0] sm:$0xff] %v276
      %309 = vst [vmem:[%s172 + $0xc8] sm:$0xff] %v277
      %310 = vst [vmem:[%s172 + $0xd0] sm:$0xff] %v278
      %311 = vst [vmem:[%s172 + $0xd8] sm:$0xff] %v279
      %312 = vst [vmem:[%s172 + $0xe0] sm:$0xff] %v280
      %313 = vst [vmem:[%s172 + $0xe8] sm:$0xff] %v281
      %314 = vst [vmem:[%s172 + $0xf0] sm:$0xff] %v282
      %315 = vst [vmem:[%s172 + $0xf8] sm:$0xff] %v283
      %s316 = smul.u32 32, %s14
      %p317 = scmp.lt.s32.totalorder %s316, 63
      %s318 = scalar_select %p317, %s316, 63
      %s319 = smul.addr %s318, 8
      %s320 = scalar_lea.vmem %s3, %s319
      // Predicated region
      $region33: #{resnet_forward.33} parent=31 // pred_check
        %p321 = pneg %p100
      $region34: #{resnet_forward.33} parent=31 // pred_check_branch
        %323 = sbr.rel (%p321) target = $region36
      $region35: #{resnet_forward.33} parent=31 // pred_region
        %s324 = smul.u32 32, %s14
      $region36: #{resnet_forward.33} parent=31 // pred_fallthru
        _
    $region32: #{resnet_forward.33} parent=5 // pred_fallthru
      _
    %p325 = scmp.le.s32.totalorder 2, %s9
    // Predicated region
    $region37: #{resnet_forward.33} parent=5 // pred_check
      %p326 = pneg %p325
    $region38: #{resnet_forward.33} parent=5 // pred_check_branch
      %328 = sbr.rel (%p326) target = $region40
    $region39: #{resnet_forward.33} parent=5 // pred_region
      %s329 = ssub.s32 %s9, 2
      // Predicated region
      $region41: #{resnet_forward.33} parent=39 // pred_check
        %p330 = pneg %p106
      $region42: #{resnet_forward.33} parent=39 // pred_check_branch
        %332 = sbr.rel (%p330) target = $region44
      $region43: #{resnet_forward.33} parent=39 // pred_region
        %s333 = smul.u32 32, %s15
        %p334 = scmp.lt.s32.totalorder %s333, 63
        %s335 = scalar_select %p334, %s333, 63
        %s336 = smul.addr %s335, 8
        %s337 = scalar_lea.vmem %s3, %s336
      $region44: #{resnet_forward.33} parent=39 // pred_fallthru
        _
    $region40: #{resnet_forward.33} parent=5 // pred_fallthru
      _
  $region6: #{resnet_forward.33} parent=0 // loop_footer
    %s13 = sadd.s32 1, %s9
  $region7: #{resnet_forward.33} parent=0 // loop_footer_branch
    %8 = sbr.rel target = $region3
  $region8: #{resnet_forward.33} parent=0 // loop_exit
    _

// kernel: resnet_forward.38
$region0: #{resnet_forward.38}
  #allocation0 [shape = 'u32[]', space=smem, size = 0x4, offset = 0x4, fixed_abs, tag = 'smem constant byte address 0x4 - core index']
  #allocation1 [shape = 'u32[144,128]{1,0:T(1,128)}', space=vmem, size = 0x12000, scoped, tag = 'internal scratch']
  %s0 = inlined_call_operand.vmem [shape: f32[512,128], index: 0, kind: input, shape index: {}]
  %s1 = inlined_call_operand.vmem [shape: f32[1,128], index: 1, kind: input, shape index: {}]
  %s2 = inlined_call_operand.vmem [shape: f32[1,128], index: 2, kind: input, shape index: {}]
  %s3 = inlined_call_operand.vmem [shape: f32[512,128], index: 3, kind: input, shape index: {}]
  %s4 = inlined_call_operand.vmem [shape: f32[1,128], index: 4, kind: input, shape index: {}]
  %s5 = inlined_call_operand.vmem [shape: f32[1,128], index: 5, kind: input, shape index: {}]
  %s6 = inlined_call_operand.vmem [shape: f32[512,128], index: 6, kind: output, shape index: {}]
  %s7 = sld [smem:[#allocation0]]
  $region57: #{resnet_forward.38} parent=0
    _
  %s9 = ssub.s32 1, %s7
  %s10 = scalar_select 0, %s9, %s7
  loop: start=0, step=1, limit=4
  $region2: #{resnet_forward.38} parent=0 // loop_pre_header
    _
  $region3: #{resnet_forward.38} parent=0 // loop_header
    %s12 = sphi 0, %s16
    %p13 = scmp.ge.s32.totalorder %s12, 4
    %s22 = sphi 0, %s24
    %s25 = sphi 0, %s22
    %s26 = sphi 0, %s25
    %s42 = sphi 0, %s26
    %s46 = sphi 0, %s46
    %s48 = sphi 0, %s46
    %s49 = sphi 0, %s48
    %s63 = sphi 0, %s49
    %s67 = sphi 0, %s67
    %s69 = sphi 0, %s67
    %s70 = sphi 0, %s69
    %s84 = sphi 0, %s70
    %s90 = sphi 0, %s92
    %s93 = sphi 0, %s90
    %s94 = sphi 0, %s93
    %s110 = sphi 0, %s94
    %s114 = sphi 0, %s114
    %s116 = sphi 0, %s114
    %s117 = sphi 0, %s116
    %s131 = sphi 0, %s117
    %s135 = sphi 0, %s135
    %s137 = sphi 0, %s135
    %s138 = sphi 0, %s137
    %s152 = sphi 0, %s138
    %s158 = sphi 0, %s160
    %s161 = sphi 0, %s158
    %s162 = sphi 0, %s161
    %s178 = sphi 0, %s162
  $region4: #{resnet_forward.38} parent=0 // loop_header_branch
    %15 = sbr.rel (%p13) target = $region8
  $region5: #{resnet_forward.38} parent=0 // loop_body
    %s17 = ssub.s32 %s12, 1
    %s18 = ssub.s32 %s12, 2
    %s19 = sadd.s32 %s12, 1
    %s20 = ssub.s32 %s12, %s19
    %p21 = scmp.eq.s32.totalorder %s20, 0
    %s23 = sadd.s32 %s22, 1
    %s24 = scalar_select %p21, %s22, %s23
    %p27 = pneg %p21
    %p28 = scmp.eq.s32.totalorder %s12, 1
    %p29 = por %p27, %p28
    %p30 = scmp.ne.s32.totalorder %s22, %s25
    %p31 = scmp.eq.s32.totalorder %s12, 0
    %p32 = por %p30, %p31
    %p33 = scmp.ne.s32.totalorder %s22, %s25
    %p34 = scmp.eq.s32.totalorder %s17, 1
    %p35 = por %p33, %p34
    %p36 = scmp.ne.s32.totalorder %s25, %s26
    %p37 = scmp.eq.s32.totalorder %s17, 0
    %p38 = por %p36, %p37
    %p39 = scmp.ne.s32.totalorder %s25, %s26
    %p40 = scmp.eq.s32.totalorder %s18, 1
    %p41 = por %p39, %p40
    %p43 = scmp.ne.s32.totalorder %s26, %s42
    %p44 = scmp.eq.s32.totalorder %s18, 0
    %p45 = por %p43, %p44
    %s47 = sadd.s32 %s46, 1
    %p50 = scmp.eq.s32.totalorder %s12, 1
    %p51 = scmp.ne.s32.totalorder %s46, %s48
    %p52 = scmp.eq.s32.totalorder %s12, 0
    %p53 = por %p51, %p52
    %p54 = scmp.ne.s32.totalorder %s46, %s48
    %p55 = scmp.eq.s32.totalorder %s17, 1
    %p56 = por %p54, %p55
    %p57 = scmp.ne.s32.totalorder %s48, %s49
    %p58 = scmp.eq.s32.totalorder %s17, 0
    %p59 = por %p57, %p58
    %p60 = scmp.ne.s32.totalorder %s48, %s49
    %p61 = scmp.eq.s32.totalorder %s18, 1
    %p62 = por %p60, %p61
    %p64 = scmp.ne.s32.totalorder %s49, %s63
    %p65 = scmp.eq.s32.totalorder %s18, 0
    %p66 = por %p64, %p65
    %s68 = sadd.s32 %s67, 1
    %p71 = scmp.eq.s32.totalorder %s12, 1
    %p72 = scmp.ne.s32.totalorder %s67, %s69
    %p73 = scmp.eq.s32.totalorder %s12, 0
    %p74 = por %p72, %p73
    %p75 = scmp.ne.s32.totalorder %s67, %s69
    %p76 = scmp.eq.s32.totalorder %s17, 1
    %p77 = por %p75, %p76
    %p78 = scmp.ne.s32.totalorder %s69, %s70
    %p79 = scmp.eq.s32.totalorder %s17, 0
    %p80 = por %p78, %p79
    %p81 = scmp.ne.s32.totalorder %s69, %s70
    %p82 = scmp.eq.s32.totalorder %s18, 1
    %p83 = por %p81, %p82
    %p85 = scmp.ne.s32.totalorder %s70, %s84
    %p86 = scmp.eq.s32.totalorder %s18, 0
    %p87 = por %p85, %p86
    %s88 = ssub.s32 %s12, %s19
    %p89 = scmp.eq.s32.totalorder %s88, 0
    %s91 = sadd.s32 %s90, 1
    %s92 = scalar_select %p89, %s90, %s91
    %p95 = pneg %p89
    %p96 = scmp.eq.s32.totalorder %s12, 1
    %p97 = por %p95, %p96
    %p98 = scmp.ne.s32.totalorder %s90, %s93
    %p99 = scmp.eq.s32.totalorder %s12, 0
    %p100 = por %p98, %p99
    %p101 = scmp.ne.s32.totalorder %s90, %s93
    %p102 = scmp.eq.s32.totalorder %s17, 1
    %p103 = por %p101, %p102
    %p104 = scmp.ne.s32.totalorder %s93, %s94
    %p105 = scmp.eq.s32.totalorder %s17, 0
    %p106 = por %p104, %p105
    %p107 = scmp.ne.s32.totalorder %s93, %s94
    %p108 = scmp.eq.s32.totalorder %s18, 1
    %p109 = por %p107, %p108
    %p111 = scmp.ne.s32.totalorder %s94, %s110
    %p112 = scmp.eq.s32.totalorder %s18, 0
    %p113 = por %p111, %p112
    %s115 = sadd.s32 %s114, 1
    %p118 = scmp.eq.s32.totalorder %s12, 1
    %p119 = scmp.ne.s32.totalorder %s114, %s116
    %p120 = scmp.eq.s32.totalorder %s12, 0
    %p121 = por %p119, %p120
    %p122 = scmp.ne.s32.totalorder %s114, %s116
    %p123 = scmp.eq.s32.totalorder %s17, 1
    %p124 = por %p122, %p123
    %p125 = scmp.ne.s32.totalorder %s116, %s117
    %p126 = scmp.eq.s32.totalorder %s17, 0
    %p127 = por %p125, %p126
    %p128 = scmp.ne.s32.totalorder %s116, %s117
    %p129 = scmp.eq.s32.totalorder %s18, 1
    %p130 = por %p128, %p129
    %p132 = scmp.ne.s32.totalorder %s117, %s131
    %p133 = scmp.eq.s32.totalorder %s18, 0
    %p134 = por %p132, %p133
    %s136 = sadd.s32 %s135, 1
    %p139 = scmp.eq.s32.totalorder %s12, 1
    %p140 = scmp.ne.s32.totalorder %s135, %s137
    %p141 = scmp.eq.s32.totalorder %s12, 0
    %p142 = por %p140, %p141
    %p143 = scmp.ne.s32.totalorder %s135, %s137
    %p144 = scmp.eq.s32.totalorder %s17, 1
    %p145 = por %p143, %p144
    %p146 = scmp.ne.s32.totalorder %s137, %s138
    %p147 = scmp.eq.s32.totalorder %s17, 0
    %p148 = por %p146, %p147
    %p149 = scmp.ne.s32.totalorder %s137, %s138
    %p150 = scmp.eq.s32.totalorder %s18, 1
    %p151 = por %p149, %p150
    %p153 = scmp.ne.s32.totalorder %s138, %s152
    %p154 = scmp.eq.s32.totalorder %s18, 0
    %p155 = por %p153, %p154
    %s156 = ssub.s32 %s12, %s19
    %p157 = scmp.eq.s32.totalorder %s156, 0
    %s159 = sadd.s32 %s158, 1
    %s160 = scalar_select %p157, %s158, %s159
    %p163 = pneg %p157
    %p164 = scmp.eq.s32.totalorder %s12, 1
    %p165 = por %p163, %p164
    %p166 = scmp.ne.s32.totalorder %s158, %s161
    %p167 = scmp.eq.s32.totalorder %s12, 0
    %p168 = por %p166, %p167
    %p169 = scmp.ne.s32.totalorder %s158, %s161
    %p170 = scmp.eq.s32.totalorder %s17, 1
    %p171 = por %p169, %p170
    %p172 = scmp.ne.s32.totalorder %s161, %s162
    %p173 = scmp.eq.s32.totalorder %s17, 0
    %p174 = por %p172, %p173
    %p175 = scmp.ne.s32.totalorder %s161, %s162
    %p176 = scmp.eq.s32.totalorder %s18, 1
    %p177 = por %p175, %p176
    %p179 = scmp.ne.s32.totalorder %s162, %s178
    %p180 = scmp.eq.s32.totalorder %s18, 0
    %p181 = por %p179, %p180
    %p182 = scmp.le.s32.totalorder 1, %s12
    %p183 = scmp.lt.s32.totalorder %s12, 3
    %p184 = pnand %p182, %p183
    %p185 = pneg %p184
    // Predicated region
    $region9: #{resnet_forward.38} parent=5 // pred_check
      _
    $region10: #{resnet_forward.38} parent=5 // pred_check_branch
      %187 = sbr.rel (%p184) target = $region12
    $region11: #{resnet_forward.38} parent=5 // pred_region
      %s188 = ssub.s32 %s12, 1
      // Predicated region
      $region13: #{resnet_forward.38} parent=11 // pred_check
        %p189 = pneg %p59
      $region14: #{resnet_forward.38} parent=11 // pred_check_branch
        %191 = sbr.rel (%p189) target = $region16
      $region15: #{resnet_forward.38} parent=11 // pred_region
        _
      $region16: #{resnet_forward.38} parent=11 // pred_fallthru
        _
      // Predicated region
      $region17: #{resnet_forward.38} parent=11 // pred_check
        %p192 = pneg %p80
      $region18: #{resnet_forward.38} parent=11 // pred_check_branch
        %194 = sbr.rel (%p192) target = $region20
      $region19: #{resnet_forward.38} parent=11 // pred_region
        _
      $region20: #{resnet_forward.38} parent=11 // pred_fallthru
        _
      // Predicated region
      $region21: #{resnet_forward.38} parent=11 // pred_check
        %p195 = pneg %p127
      $region22: #{resnet_forward.38} parent=11 // pred_check_branch
        %197 = sbr.rel (%p195) target = $region24
      $region23: #{resnet_forward.38} parent=11 // pred_region
        _
      $region24: #{resnet_forward.38} parent=11 // pred_fallthru
        _
      // Predicated region
      $region25: #{resnet_forward.38} parent=11 // pred_check
        %p198 = pneg %p148
      $region26: #{resnet_forward.38} parent=11 // pred_check_branch
        %200 = sbr.rel (%p198) target = $region28
      $region27: #{resnet_forward.38} parent=11 // pred_region
        _
      $region28: #{resnet_forward.38} parent=11 // pred_fallthru
        _
    $region12: #{resnet_forward.38} parent=5 // pred_fallthru
      _
    %p201 = scmp.lt.s32.totalorder %s12, 2
    // Predicated region
    $region29: #{resnet_forward.38} parent=5 // pred_check
      %p202 = pneg %p201
    $region30: #{resnet_forward.38} parent=5 // pred_check_branch
      %204 = sbr.rel (%p202) target = $region32
    $region31: #{resnet_forward.38} parent=5 // pred_region
      // Predicated region
      $region33: #{resnet_forward.38} parent=31 // pred_check
        %p205 = pneg %p32
      $region34: #{resnet_forward.38} parent=31 // pred_check_branch
        %207 = sbr.rel (%p205) target = $region36
      $region35: #{resnet_forward.38} parent=31 // pred_region
        %s208 = smul.u32 32, %s12
        %p209 = scmp.lt.s32.totalorder %s208, 63
        %s210 = scalar_select %p209, %s208, 63
        %s211 = smul.addr %s210, 8
        %s212 = scalar_lea.vmem %s0, %s211
        %s213 = smul.u32 32, %s12
      $region36: #{resnet_forward.38} parent=31 // pred_fallthru
        _
      // Predicated region
      $region37: #{resnet_forward.38} parent=31 // pred_check
        %p214 = pneg %p100
      $region38: #{resnet_forward.38} parent=31 // pred_check_branch
        %216 = sbr.rel (%p214) target = $region40
      $region39: #{resnet_forward.38} parent=31 // pred_region
        %s217 = smul.u32 32, %s12
        %p218 = scmp.lt.s32.totalorder %s217, 63
        %s219 = scalar_select %p218, %s217, 63
        %s220 = smul.addr %s219, 8
        %s221 = scalar_lea.vmem %s3, %s220
        %s222 = smul.u32 32, %s12
      $region40: #{resnet_forward.38} parent=31 // pred_fallthru
        _
    $region32: #{resnet_forward.38} parent=5 // pred_fallthru
      _
    %p223 = scmp.le.s32.totalorder 1, %s12
    %p224 = scmp.lt.s32.totalorder %s12, 3
    %p225 = pnand %p223, %p224
    %p226 = pneg %p225
    // Predicated region
    $region41: #{resnet_forward.38} parent=5 // pred_check
      _
    $region42: #{resnet_forward.38} parent=5 // pred_check_branch
      %228 = sbr.rel (%p225) target = $region44
    $region43: #{resnet_forward.38} parent=5 // pred_region
      %s229 = ssub.s32 %s12, 1
      %s230 = smul.u32 32, %s17
      %p231 = scmp.lt.s32.totalorder %s230, 63
      %s232 = scalar_select %p231, %s230, 63
      %s233 = smul.addr %s232, 8
      %s234 = scalar_lea.vmem %s0, %s233
      %p235 = pneg %p38
      %p236 = pneg %p35
      %p237 = pneg %p59
      %p238 = pneg %p56
      %p239 = pneg %p80
      %p240 = pneg %p77
      %s241 = smul.u32 32, %s17
      %p242 = scmp.lt.s32.totalorder %s241, 63
      %s243 = scalar_select %p242, %s241, 63
      %s244 = smul.addr %s243, 8
      %s245 = scalar_lea.vmem %s3, %s244
      %p246 = pneg %p106
      %p247 = pneg %p103
      %p248 = pneg %p127
      %p249 = pneg %p124
      %p250 = pneg %p148
      %p251 = pneg %p145
      %p252 = pneg %p174
      %p253 = pneg %p171
      %s254 = smul.u32 32, %s17
      %p255 = scmp.lt.s32.totalorder %s254, 63
      %s256 = scalar_select %p255, %s254, 63
      %s257 = smul.addr %s256, 8
      %s258 = scalar_lea.vmem %s6, %s257
      %s259 = smul.u32 32, %s17
      %p260 = scmp.lt.s32.totalorder %s259, 63
      %s261 = scalar_select %p260, %s259, 63
      %s262 = smul.addr %s261, 8
      %s263 = scalar_lea.vmem %s0, %s262
      %s264 = smul.u32 32, %s17
      %s265 = smul.u32 32, %s17
      %p266 = scmp.lt.s32.totalorder %s265, 63
      %s267 = scalar_select %p266, %s265, 63
      %s268 = smul.addr %s267, 8
      %s269 = scalar_lea.vmem %s3, %s268
      %s270 = smul.u32 32, %s17
      %s271 = smul.u32 32, %s17
      %p272 = scmp.lt.s32.totalorder %s271, 63
      %s273 = scalar_select %p272, %s271, 63
      %s274 = smul.addr %s273, 8
      %s275 = scalar_lea.vmem %s6, %s274
      %s276 = smul.u32 32, %s17
      %v277 = vld [vmem:[%s263] sm:$0xff]
      %v278 = vld [vmem:[%s263 + $0x8] sm:$0xff]
      %v279 = vld [vmem:[%s263 + $0x10] sm:$0xff]
      %v280 = vld [vmem:[%s263 + $0x18] sm:$0xff]
      %v281 = vld [vmem:[%s263 + $0x20] sm:$0xff]
      %v282 = vld [vmem:[%s263 + $0x28] sm:$0xff]
      %v283 = vld [vmem:[%s263 + $0x30] sm:$0xff]
      %v284 = vld [vmem:[%s263 + $0x38] sm:$0xff]
      %v285 = vld [vmem:[%s263 + $0x40] sm:$0xff]
      %v286 = vld [vmem:[%s263 + $0x48] sm:$0xff]
      %v287 = vld [vmem:[%s263 + $0x50] sm:$0xff]
      %v288 = vld [vmem:[%s263 + $0x58] sm:$0xff]
      %v289 = vld [vmem:[%s263 + $0x60] sm:$0xff]
      %v290 = vld [vmem:[%s263 + $0x68] sm:$0xff]
      %v291 = vld [vmem:[%s263 + $0x70] sm:$0xff]
      %v292 = vld [vmem:[%s263 + $0x78] sm:$0xff]
      %v293 = vld [vmem:[%s263 + $0x80] sm:$0xff]
      %v294 = vld [vmem:[%s263 + $0x88] sm:$0xff]
      %v295 = vld [vmem:[%s263 + $0x90] sm:$0xff]
      %v296 = vld [vmem:[%s263 + $0x98] sm:$0xff]
      %v297 = vld [vmem:[%s263 + $0xa0] sm:$0xff]
      %v298 = vld [vmem:[%s263 + $0xa8] sm:$0xff]
      %v299 = vld [vmem:[%s263 + $0xb0] sm:$0xff]
      %v300 = vld [vmem:[%s263 + $0xb8] sm:$0xff]
      %v301 = vld [vmem:[%s263 + $0xc0] sm:$0xff]
      %v302 = vld [vmem:[%s263 + $0xc8] sm:$0xff]
      %v303 = vld [vmem:[%s263 + $0xd0] sm:$0xff]
      %v304 = vld [vmem:[%s263 + $0xd8] sm:$0xff]
      %v305 = vld [vmem:[%s263 + $0xe0] sm:$0xff]
      %v306 = vld [vmem:[%s263 + $0xe8] sm:$0xff]
      %v307 = vld [vmem:[%s263 + $0xf0] sm:$0xff]
      %v308 = vld [vmem:[%s263 + $0xf8] sm:$0xff]
      %v309 = vld [vmem:[%s1] sm:$0x1]
      %v311 = vlaneseq
      %v312 = vshrl.u32 %v311, 7
      %v313 = vsub.s32 0, %v312
      %v314 = vrot.slane %v309, %v313
      %v316 = vmul.f32 %v277, %v314
      %v317 = vmul.f32 %v278, %v314
      %v318 = vmul.f32 %v279, %v314
      %v319 = vmul.f32 %v280, %v314
      %v320 = vmul.f32 %v281, %v314
      %v321 = vmul.f32 %v282, %v314
      %v322 = vmul.f32 %v283, %v314
      %v323 = vmul.f32 %v284, %v314
      %v324 = vmul.f32 %v285, %v314
      %v325 = vmul.f32 %v286, %v314
      %v326 = vmul.f32 %v287, %v314
      %v327 = vmul.f32 %v288, %v314
      %v328 = vmul.f32 %v289, %v314
      %v329 = vmul.f32 %v290, %v314
      %v330 = vmul.f32 %v291, %v314
      %v331 = vmul.f32 %v292, %v314
      %v332 = vmul.f32 %v293, %v314
      %v333 = vmul.f32 %v294, %v314
      %v334 = vmul.f32 %v295, %v314
      %v335 = vmul.f32 %v296, %v314
      %v336 = vmul.f32 %v297, %v314
      %v337 = vmul.f32 %v298, %v314
      %v338 = vmul.f32 %v299, %v314
      %v339 = vmul.f32 %v300, %v314
      %v340 = vmul.f32 %v301, %v314
      %v341 = vmul.f32 %v302, %v314
      %v342 = vmul.f32 %v303, %v314
      %v343 = vmul.f32 %v304, %v314
      %v344 = vmul.f32 %v305, %v314
      %v345 = vmul.f32 %v306, %v314
      %v346 = vmul.f32 %v307, %v314
      %v347 = vmul.f32 %v308, %v314
      %v348 = vld [vmem:[%s2] sm:$0x1]
      %v350 = vlaneseq
      %v351 = vshrl.u32 %v350, 7
      %v352 = vsub.s32 0, %v351
      %v353 = vrot.slane %v348, %v352
      %v355 = vadd.f32 %v316, %v353
      %v356 = vadd.f32 %v317, %v353
      %v357 = vadd.f32 %v318, %v353
      %v358 = vadd.f32 %v319, %v353
      %v359 = vadd.f32 %v320, %v353
      %v360 = vadd.f32 %v321, %v353
      %v361 = vadd.f32 %v322, %v353
      %v362 = vadd.f32 %v323, %v353
      %v363 = vadd.f32 %v324, %v353
      %v364 = vadd.f32 %v325, %v353
      %v365 = vadd.f32 %v326, %v353
      %v366 = vadd.f32 %v327, %v353
      %v367 = vadd.f32 %v328, %v353
      %v368 = vadd.f32 %v329, %v353
      %v369 = vadd.f32 %v330, %v353
      %v370 = vadd.f32 %v331, %v353
      %v371 = vadd.f32 %v332, %v353
      %v372 = vadd.f32 %v333, %v353
      %v373 = vadd.f32 %v334, %v353
      %v374 = vadd.f32 %v335, %v353
      %v375 = vadd.f32 %v336, %v353
      %v376 = vadd.f32 %v337, %v353
      %v377 = vadd.f32 %v338, %v353
      %v378 = vadd.f32 %v339, %v353
      %v379 = vadd.f32 %v340, %v353
      %v380 = vadd.f32 %v341, %v353
      %v381 = vadd.f32 %v342, %v353
      %v382 = vadd.f32 %v343, %v353
      %v383 = vadd.f32 %v344, %v353
      %v384 = vadd.f32 %v345, %v353
      %v385 = vadd.f32 %v346, %v353
      %v386 = vadd.f32 %v347, %v353
      %v387 = vld [vmem:[%s269] sm:$0xff]
      %v388 = vld [vmem:[%s269 + $0x8] sm:$0xff]
      %v389 = vld [vmem:[%s269 + $0x10] sm:$0xff]
      %v390 = vld [vmem:[%s269 + $0x18] sm:$0xff]
      %v391 = vld [vmem:[%s269 + $0x20] sm:$0xff]
      %v392 = vld [vmem:[%s269 + $0x28] sm:$0xff]
      %v393 = vld [vmem:[%s269 + $0x30] sm:$0xff]
      %v394 = vld [vmem:[%s269 + $0x38] sm:$0xff]
      %v395 = vld [vmem:[%s269 + $0x40] sm:$0xff]
      %v396 = vld [vmem:[%s269 + $0x48] sm:$0xff]
      %v397 = vld [vmem:[%s269 + $0x50] sm:$0xff]
      %v398 = vld [vmem:[%s269 + $0x58] sm:$0xff]
      %v399 = vld [vmem:[%s269 + $0x60] sm:$0xff]
      %v400 = vld [vmem:[%s269 + $0x68] sm:$0xff]
      %v401 = vld [vmem:[%s269 + $0x70] sm:$0xff]
      %v402 = vld [vmem:[%s269 + $0x78] sm:$0xff]
      %v403 = vld [vmem:[%s269 + $0x80] sm:$0xff]
      %v404 = vld [vmem:[%s269 + $0x88] sm:$0xff]
      %v405 = vld [vmem:[%s269 + $0x90] sm:$0xff]
      %v406 = vld [vmem:[%s269 + $0x98] sm:$0xff]
      %v407 = vld [vmem:[%s269 + $0xa0] sm:$0xff]
      %v408 = vld [vmem:[%s269 + $0xa8] sm:$0xff]
      %v409 = vld [vmem:[%s269 + $0xb0] sm:$0xff]
      %v410 = vld [vmem:[%s269 + $0xb8] sm:$0xff]
      %v411 = vld [vmem:[%s269 + $0xc0] sm:$0xff]
      %v412 = vld [vmem:[%s269 + $0xc8] sm:$0xff]
      %v413 = vld [vmem:[%s269 + $0xd0] sm:$0xff]
      %v414 = vld [vmem:[%s269 + $0xd8] sm:$0xff]
      %v415 = vld [vmem:[%s269 + $0xe0] sm:$0xff]
      %v416 = vld [vmem:[%s269 + $0xe8] sm:$0xff]
      %v417 = vld [vmem:[%s269 + $0xf0] sm:$0xff]
      %v418 = vld [vmem:[%s269 + $0xf8] sm:$0xff]
      %v419 = vld [vmem:[%s4] sm:$0x1]
      %v421 = vlaneseq
      %v422 = vshrl.u32 %v421, 7
      %v423 = vsub.s32 0, %v422
      %v424 = vrot.slane %v419, %v423
      %v426 = vmul.f32 %v387, %v424
      %v427 = vmul.f32 %v388, %v424
      %v428 = vmul.f32 %v389, %v424
      %v429 = vmul.f32 %v390, %v424
      %v430 = vmul.f32 %v391, %v424
      %v431 = vmul.f32 %v392, %v424
      %v432 = vmul.f32 %v393, %v424
      %v433 = vmul.f32 %v394, %v424
      %v434 = vmul.f32 %v395, %v424
      %v435 = vmul.f32 %v396, %v424
      %v436 = vmul.f32 %v397, %v424
      %v437 = vmul.f32 %v398, %v424
      %v438 = vmul.f32 %v399, %v424
      %v439 = vmul.f32 %v400, %v424
      %v440 = vmul.f32 %v401, %v424
      %v441 = vmul.f32 %v402, %v424
      %v442 = vmul.f32 %v403, %v424
      %v443 = vmul.f32 %v404, %v424
      %v444 = vmul.f32 %v405, %v424
      %v445 = vmul.f32 %v406, %v424
      %v446 = vmul.f32 %v407, %v424
      %v447 = vmul.f32 %v408, %v424
      %v448 = vmul.f32 %v409, %v424
      %v449 = vmul.f32 %v410, %v424
      %v450 = vmul.f32 %v411, %v424
      %v451 = vmul.f32 %v412, %v424
      %v452 = vmul.f32 %v413, %v424
      %v453 = vmul.f32 %v414, %v424
      %v454 = vmul.f32 %v415, %v424
      %v455 = vmul.f32 %v416, %v424
      %v456 = vmul.f32 %v417, %v424
      %v457 = vmul.f32 %v418, %v424
      %v458 = vadd.f32 %v355, %v426
      %v459 = vadd.f32 %v356, %v427
      %v460 = vadd.f32 %v357, %v428
      %v461 = vadd.f32 %v358, %v429
      %v462 = vadd.f32 %v359, %v430
      %v463 = vadd.f32 %v360, %v431
      %v464 = vadd.f32 %v361, %v432
      %v465 = vadd.f32 %v362, %v433
      %v466 = vadd.f32 %v363, %v434
      %v467 = vadd.f32 %v364, %v435
      %v468 = vadd.f32 %v365, %v436
      %v469 = vadd.f32 %v366, %v437
      %v470 = vadd.f32 %v367, %v438
      %v471 = vadd.f32 %v368, %v439
      %v472 = vadd.f32 %v369, %v440
      %v473 = vadd.f32 %v370, %v441
      %v474 = vadd.f32 %v371, %v442
      %v475 = vadd.f32 %v372, %v443
      %v476 = vadd.f32 %v373, %v444
      %v477 = vadd.f32 %v374, %v445
      %v478 = vadd.f32 %v375, %v446
      %v479 = vadd.f32 %v376, %v447
      %v480 = vadd.f32 %v377, %v448
      %v481 = vadd.f32 %v378, %v449
      %v482 = vadd.f32 %v379, %v450
      %v483 = vadd.f32 %v380, %v451
      %v484 = vadd.f32 %v381, %v452
      %v485 = vadd.f32 %v382, %v453
      %v486 = vadd.f32 %v383, %v454
      %v487 = vadd.f32 %v384, %v455
      %v488 = vadd.f32 %v385, %v456
      %v489 = vadd.f32 %v386, %v457
      %v490 = vld [vmem:[%s5] sm:$0x1]
      %v492 = vlaneseq
      %v493 = vshrl.u32 %v492, 7
      %v494 = vsub.s32 0, %v493
      %v495 = vrot.slane %v490, %v494
      %v497 = vadd.f32 %v458, %v495
      %v498 = vadd.f32 %v459, %v495
      %v499 = vadd.f32 %v460, %v495
      %v500 = vadd.f32 %v461, %v495
      %v501 = vadd.f32 %v462, %v495
      %v502 = vadd.f32 %v463, %v495
      %v503 = vadd.f32 %v464, %v495
      %v504 = vadd.f32 %v465, %v495
      %v505 = vadd.f32 %v466, %v495
      %v506 = vadd.f32 %v467, %v495
      %v507 = vadd.f32 %v468, %v495
      %v508 = vadd.f32 %v469, %v495
      %v509 = vadd.f32 %v470, %v495
      %v510 = vadd.f32 %v471, %v495
      %v511 = vadd.f32 %v472, %v495
      %v512 = vadd.f32 %v473, %v495
      %v513 = vadd.f32 %v474, %v495
      %v514 = vadd.f32 %v475, %v495
      %v515 = vadd.f32 %v476, %v495
      %v516 = vadd.f32 %v477, %v495
      %v517 = vadd.f32 %v478, %v495
      %v518 = vadd.f32 %v479, %v495
      %v519 = vadd.f32 %v480, %v495
      %v520 = vadd.f32 %v481, %v495
      %v521 = vadd.f32 %v482, %v495
      %v522 = vadd.f32 %v483, %v495
      %v523 = vadd.f32 %v484, %v495
      %v524 = vadd.f32 %v485, %v495
      %v525 = vadd.f32 %v486, %v495
      %v526 = vadd.f32 %v487, %v495
      %v527 = vadd.f32 %v488, %v495
      %v528 = vadd.f32 %v489, %v495
      %v529 = vmax.f32 %v497, 0.0
      %v530 = vmax.f32 %v498, 0.0
      %v531 = vmax.f32 %v499, 0.0
      %v532 = vmax.f32 %v500, 0.0
      %v533 = vmax.f32 %v501, 0.0
      %v534 = vmax.f32 %v502, 0.0
      %v535 = vmax.f32 %v503, 0.0
      %v536 = vmax.f32 %v504, 0.0
      %v537 = vmax.f32 %v505, 0.0
      %v538 = vmax.f32 %v506, 0.0
      %v539 = vmax.f32 %v507, 0.0
      %v540 = vmax.f32 %v508, 0.0
      %v541 = vmax.f32 %v509, 0.0
      %v542 = vmax.f32 %v510, 0.0
      %v543 = vmax.f32 %v511, 0.0
      %v544 = vmax.f32 %v512, 0.0
      %v545 = vmax.f32 %v513, 0.0
      %v546 = vmax.f32 %v514, 0.0
      %v547 = vmax.f32 %v515, 0.0
      %v548 = vmax.f32 %v516, 0.0
      %v549 = vmax.f32 %v517, 0.0
      %v550 = vmax.f32 %v518, 0.0
      %v551 = vmax.f32 %v519, 0.0
      %v552 = vmax.f32 %v520, 0.0
      %v553 = vmax.f32 %v521, 0.0
      %v554 = vmax.f32 %v522, 0.0
      %v555 = vmax.f32 %v523, 0.0
      %v556 = vmax.f32 %v524, 0.0
      %v557 = vmax.f32 %v525, 0.0
      %v558 = vmax.f32 %v526, 0.0
      %v559 = vmax.f32 %v527, 0.0
      %v560 = vmax.f32 %v528, 0.0
      %v561 = vmin.f32 %v529, 6.0
      %v562 = vmin.f32 %v530, 6.0
      %v563 = vmin.f32 %v531, 6.0
      %v564 = vmin.f32 %v532, 6.0
      %v565 = vmin.f32 %v533, 6.0
      %v566 = vmin.f32 %v534, 6.0
      %v567 = vmin.f32 %v535, 6.0
      %v568 = vmin.f32 %v536, 6.0
      %v569 = vmin.f32 %v537, 6.0
      %v570 = vmin.f32 %v538, 6.0
      %v571 = vmin.f32 %v539, 6.0
      %v572 = vmin.f32 %v540, 6.0
      %v573 = vmin.f32 %v541, 6.0
      %v574 = vmin.f32 %v542, 6.0
      %v575 = vmin.f32 %v543, 6.0
      %v576 = vmin.f32 %v544, 6.0
      %v577 = vmin.f32 %v545, 6.0
      %v578 = vmin.f32 %v546, 6.0
      %v579 = vmin.f32 %v547, 6.0
      %v580 = vmin.f32 %v548, 6.0
      %v581 = vmin.f32 %v549, 6.0
      %v582 = vmin.f32 %v550, 6.0
      %v583 = vmin.f32 %v551, 6.0
      %v584 = vmin.f32 %v552, 6.0
      %v585 = vmin.f32 %v553, 6.0
      %v586 = vmin.f32 %v554, 6.0
      %v587 = vmin.f32 %v555, 6.0
      %v588 = vmin.f32 %v556, 6.0
      %v589 = vmin.f32 %v557, 6.0
      %v590 = vmin.f32 %v558, 6.0
      %v591 = vmin.f32 %v559, 6.0
      %v592 = vmin.f32 %v560, 6.0
      %593 = vst [vmem:[%s275] sm:$0xff] %v561
      %594 = vst [vmem:[%s275 + $0x8] sm:$0xff] %v562
      %595 = vst [vmem:[%s275 + $0x10] sm:$0xff] %v563
      %596 = vst [vmem:[%s275 + $0x18] sm:$0xff] %v564
      %597 = vst [vmem:[%s275 + $0x20] sm:$0xff] %v565
      %598 = vst [vmem:[%s275 + $0x28] sm:$0xff] %v566
      %599 = vst [vmem:[%s275 + $0x30] sm:$0xff] %v567
      %600 = vst [vmem:[%s275 + $0x38] sm:$0xff] %v568
      %601 = vst [vmem:[%s275 + $0x40] sm:$0xff] %v569
      %602 = vst [vmem:[%s275 + $0x48] sm:$0xff] %v570
      %603 = vst [vmem:[%s275 + $0x50] sm:$0xff] %v571
      %604 = vst [vmem:[%s275 + $0x58] sm:$0xff] %v572
      %605 = vst [vmem:[%s275 + $0x60] sm:$0xff] %v573
      %606 = vst [vmem:[%s275 + $0x68] sm:$0xff] %v574
      %607 = vst [vmem:[%s275 + $0x70] sm:$0xff] %v575
      %608 = vst [vmem:[%s275 + $0x78] sm:$0xff] %v576
      %609 = vst [vmem:[%s275 + $0x80] sm:$0xff] %v577
      %610 = vst [vmem:[%s275 + $0x88] sm:$0xff] %v578
      %611 = vst [vmem:[%s275 + $0x90] sm:$0xff] %v579
      %612 = vst [vmem:[%s275 + $0x98] sm:$0xff] %v580
      %613 = vst [vmem:[%s275 + $0xa0] sm:$0xff] %v581
      %614 = vst [vmem:[%s275 + $0xa8] sm:$0xff] %v582
      %615 = vst [vmem:[%s275 + $0xb0] sm:$0xff] %v583
      %616 = vst [vmem:[%s275 + $0xb8] sm:$0xff] %v584
      %617 = vst [vmem:[%s275 + $0xc0] sm:$0xff] %v585
      %618 = vst [vmem:[%s275 + $0xc8] sm:$0xff] %v586
      %619 = vst [vmem:[%s275 + $0xd0] sm:$0xff] %v587
      %620 = vst [vmem:[%s275 + $0xd8] sm:$0xff] %v588
      %621 = vst [vmem:[%s275 + $0xe0] sm:$0xff] %v589
      %622 = vst [vmem:[%s275 + $0xe8] sm:$0xff] %v590
      %623 = vst [vmem:[%s275 + $0xf0] sm:$0xff] %v591
      %624 = vst [vmem:[%s275 + $0xf8] sm:$0xff] %v592
      %s625 = smul.u32 32, %s17
      %p626 = scmp.lt.s32.totalorder %s625, 63
      %s627 = scalar_select %p626, %s625, 63
      %s628 = smul.addr %s627, 8
      %s629 = scalar_lea.vmem %s6, %s628
      // Predicated region
      $region45: #{resnet_forward.38} parent=43 // pred_check
        %p630 = pneg %p171
      $region46: #{resnet_forward.38} parent=43 // pred_check_branch
        %632 = sbr.rel (%p630) target = $region48
      $region47: #{resnet_forward.38} parent=43 // pred_region
        %s633 = smul.u32 32, %s17
      $region48: #{resnet_forward.38} parent=43 // pred_fallthru
        _
    $region44: #{resnet_forward.38} parent=5 // pred_fallthru
      _
    %p634 = scmp.le.s32.totalorder 2, %s12
    // Predicated region
    $region49: #{resnet_forward.38} parent=5 // pred_check
      %p635 = pneg %p634
    $region50: #{resnet_forward.38} parent=5 // pred_check_branch
      %637 = sbr.rel (%p635) target = $region52
    $region51: #{resnet_forward.38} parent=5 // pred_region
      %s638 = ssub.s32 %s12, 2
      // Predicated region
      $region53: #{resnet_forward.38} parent=51 // pred_check
        %p639 = pneg %p177
      $region54: #{resnet_forward.38} parent=51 // pred_check_branch
        %641 = sbr.rel (%p639) target = $region56
      $region55: #{resnet_forward.38} parent=51 // pred_region
        %s642 = smul.u32 32, %s18
        %p643 = scmp.lt.s32.totalorder %s642, 63
        %s644 = scalar_select %p643, %s642, 63
        %s645 = smul.addr %s644, 8
        %s646 = scalar_lea.vmem %s6, %s645
      $region56: #{resnet_forward.38} parent=51 // pred_fallthru
        _
    $region52: #{resnet_forward.38} parent=5 // pred_fallthru
      _
  $region6: #{resnet_forward.38} parent=0 // loop_footer
    %s16 = sadd.s32 1, %s12
  $region7: #{resnet_forward.38} parent=0 // loop_footer_branch
    %11 = sbr.rel target = $region3
  $region8: #{resnet_forward.38} parent=0 // loop_exit
    _

// kernel: resnet_forward.39
$region0: #{resnet_forward.39}
  #allocation0 [shape = 'u32[]', space=smem, size = 0x4, offset = 0x4, fixed_abs, tag = 'smem constant byte address 0x4 - core index']
  #allocation1 [shape = 'u32[144,128]{1,0:T(1,128)}', space=vmem, size = 0x12000, scoped, tag = 'internal scratch']
  #allocation2 [shape = 'f32[256,128]{1,0:T(8,128)}', space=vmem, size = 0x20000, scoped, tag = 'scratch operand']
  %s0 = inlined_call_operand.vmem [shape: bf16[256,128], index: 0, kind: input, shape index: {}]
  %s1 = inlined_call_operand.vmem [shape: bf16[128,128], index: 1, kind: input, shape index: {}]
  %s2 = inlined_call_operand.vmem [shape: f32[1,128], index: 2, kind: input, shape index: {}]
  %s3 = inlined_call_operand.vmem [shape: f32[256,128], index: 3, kind: output, shape index: {}]
  %s4 = sld [smem:[#allocation0]]
  $region30: #{resnet_forward.39} parent=0
    _
  %s6 = ssub.s32 1, %s4
  %s7 = scalar_select 0, %s6, %s4
  // Predicated region
  $region2: #{resnet_forward.39} parent=0 // pred_check
    _
  $region3: #{resnet_forward.39} parent=0 // pred_check_branch
    %9 = sbr.rel (0) target = $region5
  $region4: #{resnet_forward.39} parent=0 // pred_region
    _
  $region5: #{resnet_forward.39} parent=0 // pred_fallthru
    _
  // Predicated region
  $region6: #{resnet_forward.39} parent=0 // pred_check
    _
  $region7: #{resnet_forward.39} parent=0 // pred_check_branch
    %11 = sbr.rel (0) target = $region9
  $region8: #{resnet_forward.39} parent=0 // pred_region
    _
  $region9: #{resnet_forward.39} parent=0 // pred_fallthru
    _
  // Predicated region
  $region10: #{resnet_forward.39} parent=0 // pred_check
    _
  $region11: #{resnet_forward.39} parent=0 // pred_check_branch
    %13 = sbr.rel (0) target = $region13
  $region12: #{resnet_forward.39} parent=0 // pred_region
    _
  $region13: #{resnet_forward.39} parent=0 // pred_fallthru
    _
  %p15 = scmp.eq.s32.totalorder 0, 0
  // Predicated region
  $region14: #{resnet_forward.39} parent=0 // pred_check
    %p16 = pneg %p15
  $region15: #{resnet_forward.39} parent=0 // pred_check_branch
    %18 = sbr.rel (%p16) target = $region17
  $region16: #{resnet_forward.39} parent=0 // pred_region
    %19 = vst [vmem:[#allocation2] sm:$0xff] 0.0
    %20 = vst [vmem:[#allocation2 + $0x8] sm:$0xff] 0.0
    %21 = vst [vmem:[#allocation2 + $0x10] sm:$0xff] 0.0
    %22 = vst [vmem:[#allocation2 + $0x18] sm:$0xff] 0.0
    %23 = vst [vmem:[#allocation2 + $0x20] sm:$0xff] 0.0
    %24 = vst [vmem:[#allocation2 + $0x28] sm:$0xff] 0.0
    %25 = vst [vmem:[#allocation2 + $0x30] sm:$0xff] 0.0
    %26 = vst [vmem:[#allocation2 + $0x38] sm:$0xff] 0.0
    %27 = vst [vmem:[#allocation2 + $0x40] sm:$0xff] 0.0
    %28 = vst [vmem:[#allocation2 + $0x48] sm:$0xff] 0.0
    %29 = vst [vmem:[#allocation2 + $0x50] sm:$0xff] 0.0
    %30 = vst [vmem:[#allocation2 + $0x58] sm:$0xff] 0.0
    %31 = vst [vmem:[#allocation2 + $0x60] sm:$0xff] 0.0
    %32 = vst [vmem:[#allocation2 + $0x68] sm:$0xff] 0.0
    %33 = vst [vmem:[#allocation2 + $0x70] sm:$0xff] 0.0
    %34 = vst [vmem:[#allocation2 + $0x78] sm:$0xff] 0.0
    %35 = vst [vmem:[#allocation2 + $0x80] sm:$0xff] 0.0
    %36 = vst [vmem:[#allocation2 + $0x88] sm:$0xff] 0.0
    %37 = vst [vmem:[#allocation2 + $0x90] sm:$0xff] 0.0
    %38 = vst [vmem:[#allocation2 + $0x98] sm:$0xff] 0.0
    %39 = vst [vmem:[#allocation2 + $0xa0] sm:$0xff] 0.0
    %40 = vst [vmem:[#allocation2 + $0xa8] sm:$0xff] 0.0
    %41 = vst [vmem:[#allocation2 + $0xb0] sm:$0xff] 0.0
    %42 = vst [vmem:[#allocation2 + $0xb8] sm:$0xff] 0.0
    %43 = vst [vmem:[#allocation2 + $0xc0] sm:$0xff] 0.0
    %44 = vst [vmem:[#allocation2 + $0xc8] sm:$0xff] 0.0
    %45 = vst [vmem:[#allocation2 + $0xd0] sm:$0xff] 0.0
    %46 = vst [vmem:[#allocation2 + $0xd8] sm:$0xff] 0.0
    %47 = vst [vmem:[#allocation2 + $0xe0] sm:$0xff] 0.0
    %48 = vst [vmem:[#allocation2 + $0xe8] sm:$0xff] 0.0
    %49 = vst [vmem:[#allocation2 + $0xf0] sm:$0xff] 0.0
    %50 = vst [vmem:[#allocation2 + $0xf8] sm:$0xff] 0.0
  $region17: #{resnet_forward.39} parent=0 // pred_fallthru
    _
  %v51 = vld [vmem:[#allocation2] sm:$0xff]
  %v52 = vld [vmem:[#allocation2 + $0x8] sm:$0xff]
  %v53 = vld [vmem:[#allocation2 + $0x10] sm:$0xff]
  %v54 = vld [vmem:[#allocation2 + $0x18] sm:$0xff]
  %v55 = vld [vmem:[#allocation2 + $0x20] sm:$0xff]
  %v56 = vld [vmem:[#allocation2 + $0x28] sm:$0xff]
  %v57 = vld [vmem:[#allocation2 + $0x30] sm:$0xff]
  %v58 = vld [vmem:[#allocation2 + $0x38] sm:$0xff]
  %v59 = vld [vmem:[#allocation2 + $0x40] sm:$0xff]
  %v60 = vld [vmem:[#allocation2 + $0x48] sm:$0xff]
  %v61 = vld [vmem:[#allocation2 + $0x50] sm:$0xff]
  %v62 = vld [vmem:[#allocation2 + $0x58] sm:$0xff]
  %v63 = vld [vmem:[#allocation2 + $0x60] sm:$0xff]
  %v64 = vld [vmem:[#allocation2 + $0x68] sm:$0xff]
  %v65 = vld [vmem:[#allocation2 + $0x70] sm:$0xff]
  %v66 = vld [vmem:[#allocation2 + $0x78] sm:$0xff]
  %v67 = vld [vmem:[#allocation2 + $0x80] sm:$0xff]
  %v68 = vld [vmem:[#allocation2 + $0x88] sm:$0xff]
  %v69 = vld [vmem:[#allocation2 + $0x90] sm:$0xff]
  %v70 = vld [vmem:[#allocation2 + $0x98] sm:$0xff]
  %v71 = vld [vmem:[#allocation2 + $0xa0] sm:$0xff]
  %v72 = vld [vmem:[#allocation2 + $0xa8] sm:$0xff]
  %v73 = vld [vmem:[#allocation2 + $0xb0] sm:$0xff]
  %v74 = vld [vmem:[#allocation2 + $0xb8] sm:$0xff]
  %v75 = vld [vmem:[#allocation2 + $0xc0] sm:$0xff]
  %v76 = vld [vmem:[#allocation2 + $0xc8] sm:$0xff]
  %v77 = vld [vmem:[#allocation2 + $0xd0] sm:$0xff]
  %v78 = vld [vmem:[#allocation2 + $0xd8] sm:$0xff]
  %v79 = vld [vmem:[#allocation2 + $0xe0] sm:$0xff]
  %v80 = vld [vmem:[#allocation2 + $0xe8] sm:$0xff]
  %v81 = vld [vmem:[#allocation2 + $0xf0] sm:$0xff]
  %v82 = vld [vmem:[#allocation2 + $0xf8] sm:$0xff]
  %v83 = vld [vmem:[%s0] sm:$0xf]
  %v84 = vld [vmem:[%s0 + $0x4] sm:$0xf]
  %v85 = vld [vmem:[%s0 + $0x8] sm:$0xf]
  %v86 = vld [vmem:[%s0 + $0xc] sm:$0xf]
  %v87 = vld [vmem:[%s0 + $0x10] sm:$0xf]
  %v88 = vld [vmem:[%s0 + $0x14] sm:$0xf]
  %v89 = vld [vmem:[%s0 + $0x18] sm:$0xf]
  %v90 = vld [vmem:[%s0 + $0x1c] sm:$0xf]
  %v91 = vld [vmem:[%s0 + $0x20] sm:$0xf]
  %v92 = vld [vmem:[%s0 + $0x24] sm:$0xf]
  %v93 = vld [vmem:[%s0 + $0x28] sm:$0xf]
  %v94 = vld [vmem:[%s0 + $0x2c] sm:$0xf]
  %v95 = vld [vmem:[%s0 + $0x30] sm:$0xf]
  %v96 = vld [vmem:[%s0 + $0x34] sm:$0xf]
  %v97 = vld [vmem:[%s0 + $0x38] sm:$0xf]
  %v98 = vld [vmem:[%s0 + $0x3c] sm:$0xf]
  %v99 = vld [vmem:[%s0 + $0x40] sm:$0xf]
  %v100 = vld [vmem:[%s0 + $0x44] sm:$0xf]
  %v101 = vld [vmem:[%s0 + $0x48] sm:$0xf]
  %v102 = vld [vmem:[%s0 + $0x4c] sm:$0xf]
  %v103 = vld [vmem:[%s0 + $0x50] sm:$0xf]
  %v104 = vld [vmem:[%s0 + $0x54] sm:$0xf]
  %v105 = vld [vmem:[%s0 + $0x58] sm:$0xf]
  %v106 = vld [vmem:[%s0 + $0x5c] sm:$0xf]
  %v107 = vld [vmem:[%s0 + $0x60] sm:$0xf]
  %v108 = vld [vmem:[%s0 + $0x64] sm:$0xf]
  %v109 = vld [vmem:[%s0 + $0x68] sm:$0xf]
  %v110 = vld [vmem:[%s0 + $0x6c] sm:$0xf]
  %v111 = vld [vmem:[%s0 + $0x70] sm:$0xf]
  %v112 = vld [vmem:[%s0 + $0x74] sm:$0xf]
  %v113 = vld [vmem:[%s0 + $0x78] sm:$0xf]
  %v114 = vld [vmem:[%s0 + $0x7c] sm:$0xf]
  %v115 = vld [vmem:[%s1] sm:$0xf]
  %v116 = vld [vmem:[%s1 + $0x4] sm:$0xf]
  %v117 = vld [vmem:[%s1 + $0x8] sm:$0xf]
  %v118 = vld [vmem:[%s1 + $0xc] sm:$0xf]
  %v119 = vld [vmem:[%s1 + $0x10] sm:$0xf]
  %v120 = vld [vmem:[%s1 + $0x14] sm:$0xf]
  %v121 = vld [vmem:[%s1 + $0x18] sm:$0xf]
  %v122 = vld [vmem:[%s1 + $0x1c] sm:$0xf]
  %v123 = vld [vmem:[%s1 + $0x20] sm:$0xf]
  %v124 = vld [vmem:[%s1 + $0x24] sm:$0xf]
  %v125 = vld [vmem:[%s1 + $0x28] sm:$0xf]
  %v126 = vld [vmem:[%s1 + $0x2c] sm:$0xf]
  %v127 = vld [vmem:[%s1 + $0x30] sm:$0xf]
  %v128 = vld [vmem:[%s1 + $0x34] sm:$0xf]
  %v129 = vld [vmem:[%s1 + $0x38] sm:$0xf]
  %v130 = vld [vmem:[%s1 + $0x3c] sm:$0xf]
  %v163 = vunpack.c.l.b16 %v83
  %v164 = vunpack.c.l.b16 %v84
  %v165 = vunpack.c.l.b16 %v85
  %v166 = vunpack.c.l.b16 %v86
  %v167 = vunpack.c.l.b16 %v87
  %v168 = vunpack.c.l.b16 %v88
  %v169 = vunpack.c.l.b16 %v89
  %v170 = vunpack.c.l.b16 %v90
  %v171 = vunpack.c.l.b16 %v91
  %v172 = vunpack.c.l.b16 %v92
  %v173 = vunpack.c.l.b16 %v93
  %v174 = vunpack.c.l.b16 %v94
  %v175 = vunpack.c.l.b16 %v95
  %v176 = vunpack.c.l.b16 %v96
  %v177 = vunpack.c.l.b16 %v97
  %v178 = vunpack.c.l.b16 %v98
  %v179 = vunpack.c.l.b16 %v99
  %v180 = vunpack.c.l.b16 %v100
  %v181 = vunpack.c.l.b16 %v101
  %v182 = vunpack.c.l.b16 %v102
  %v183 = vunpack.c.l.b16 %v103
  %v184 = vunpack.c.l.b16 %v104
  %v185 = vunpack.c.l.b16 %v105
  %v186 = vunpack.c.l.b16 %v106
  %v187 = vunpack.c.l.b16 %v107
  %v188 = vunpack.c.l.b16 %v108
  %v189 = vunpack.c.l.b16 %v109
  %v190 = vunpack.c.l.b16 %v110
  %v191 = vunpack.c.l.b16 %v111
  %v192 = vunpack.c.l.b16 %v112
  %v193 = vunpack.c.l.b16 %v113
  %v194 = vunpack.c.l.b16 %v114
  %v195 = vpack.c.b16 %v164, %v163
  %v196 = vpack.c.b16 %v166, %v165
  %v197 = vpack.c.b16 %v168, %v167
  %v198 = vpack.c.b16 %v170, %v169
  %v199 = vpack.c.b16 %v172, %v171
  %v200 = vpack.c.b16 %v174, %v173
  %v201 = vpack.c.b16 %v176, %v175
  %v202 = vpack.c.b16 %v178, %v177
  %v203 = vpack.c.b16 %v180, %v179
  %v204 = vpack.c.b16 %v182, %v181
  %v205 = vpack.c.b16 %v184, %v183
  %v206 = vpack.c.b16 %v186, %v185
  %v207 = vpack.c.b16 %v188, %v187
  %v208 = vpack.c.b16 %v190, %v189
  %v209 = vpack.c.b16 %v192, %v191
  %v210 = vpack.c.b16 %v194, %v193
  %v243 = vunpack.c.l.b16 %v115
  %v244 = vunpack.c.l.b16 %v116
  %v245 = vunpack.c.l.b16 %v117
  %v246 = vunpack.c.l.b16 %v118
  %v247 = vunpack.c.l.b16 %v119
  %v248 = vunpack.c.l.b16 %v120
  %v249 = vunpack.c.l.b16 %v121
  %v250 = vunpack.c.l.b16 %v122
  %v251 = vunpack.c.l.b16 %v123
  %v252 = vunpack.c.l.b16 %v124
  %v253 = vunpack.c.l.b16 %v125
  %v254 = vunpack.c.l.b16 %v126
  %v255 = vunpack.c.l.b16 %v127
  %v256 = vunpack.c.l.b16 %v128
  %v257 = vunpack.c.l.b16 %v129
  %v258 = vunpack.c.l.b16 %v130
  %v259 = vpack.c.b16 %v244, %v243
  %v260 = vpack.c.b16 %v246, %v245
  %v261 = vpack.c.b16 %v248, %v247
  %v262 = vpack.c.b16 %v250, %v249
  %v263 = vpack.c.b16 %v252, %v251
  %v264 = vpack.c.b16 %v254, %v253
  %v265 = vpack.c.b16 %v256, %v255
  %v266 = vpack.c.b16 %v258, %v257
  %275 = vmatprep.subr.bf16.mxu0 0
  %276 = vmatpush1.bf16.msra.mxu0 %v266
  %277 = vmatprep.subr.bf16.mxu0 0
  %278 = vmatpush1.bf16.msra.mxu0 %v265
  %279 = vmatprep.subr.bf16.mxu0 0
  %280 = vmatpush1.bf16.msra.mxu0 %v264
  %281 = vmatprep.subr.bf16.mxu0 0
  %282 = vmatpush1.bf16.msra.mxu0 %v263
  %283 = vmatprep.subr.bf16.mxu0 0
  %284 = vmatpush1.bf16.msra.mxu0 %v262
  %285 = vmatprep.subr.bf16.mxu0 0
  %286 = vmatpush1.bf16.msra.mxu0 %v261
  %287 = vmatprep.subr.bf16.mxu0 0
  %288 = vmatpush1.bf16.msra.mxu0 %v260
  %289 = vmatprep.subr.bf16.mxu0 0
  %290 = vmatpush1.bf16.msra.mxu0 %v259
  %291 = vmatprep.subr.bf16.mxu0 0
  %292 = vmatpush2.bf16.msra.mxu0 0
  %293 = vmatprep.subr.bf16.mxu0 0
  %294 = vmatpush2.bf16.msra.mxu0 0
  %295 = vmatprep.subr.bf16.mxu0 0
  %296 = vmatpush2.bf16.msra.mxu0 0
  %297 = vmatprep.subr.bf16.mxu0 0
  %298 = vmatpush2.bf16.msra.mxu0 0
  %299 = vmatprep.subr.bf16.mxu0 0
  %300 = vmatpush2.bf16.msra.mxu0 0
  %301 = vmatprep.subr.bf16.mxu0 0
  %302 = vmatpush2.bf16.msra.mxu0 0
  %303 = vmatprep.subr.bf16.mxu0 0
  %304 = vmatpush2.bf16.msra.mxu0 0
  %305 = vmatprep.subr.bf16.mxu0 0
  %306 = vmatpush2.bf16.msra.mxu0 0
  %307 = vmatprep.mubr.bf16.mxu0 0
  %308 = vmatmul.mubr.bf16.gmra.mxu0 %v195
  %v309 = vpop.f32.mrf.mxu0
  %v310 = vadd.f32 0.0, %v309
  %v311 = vpop.f32.mrf.mxu0
  %v312 = vpop.f32.mrf.mxu0
  %v313 = vadd.f32 0.0, %v312
  %v314 = vpop.f32.mrf.mxu0
  %315 = vmatprep.mubr.bf16.mxu0 0
  %316 = vmatmul.mubr.bf16.gmra.mxu0 %v196
  %v317 = vpop.f32.mrf.mxu0
  %v318 = vadd.f32 0.0, %v317
  %v319 = vpop.f32.mrf.mxu0
  %v320 = vpop.f32.mrf.mxu0
  %v321 = vadd.f32 0.0, %v320
  %v322 = vpop.f32.mrf.mxu0
  %323 = vmatprep.mubr.bf16.mxu0 0
  %324 = vmatmul.mubr.bf16.gmra.mxu0 %v197
  %v325 = vpop.f32.mrf.mxu0
  %v326 = vadd.f32 0.0, %v325
  %v327 = vpop.f32.mrf.mxu0
  %v328 = vpop.f32.mrf.mxu0
  %v329 = vadd.f32 0.0, %v328
  %v330 = vpop.f32.mrf.mxu0
  %331 = vmatprep.mubr.bf16.mxu0 0
  %332 = vmatmul.mubr.bf16.gmra.mxu0 %v198
  %v333 = vpop.f32.mrf.mxu0
  %v334 = vadd.f32 0.0, %v333
  %v335 = vpop.f32.mrf.mxu0
  %v336 = vpop.f32.mrf.mxu0
  %v337 = vadd.f32 0.0, %v336
  %v338 = vpop.f32.mrf.mxu0
  %339 = vmatprep.mubr.bf16.mxu0 0
  %340 = vmatmul.mubr.bf16.gmra.mxu0 %v199
  %v341 = vpop.f32.mrf.mxu0
  %v342 = vadd.f32 0.0, %v341
  %v343 = vpop.f32.mrf.mxu0
  %v344 = vpop.f32.mrf.mxu0
  %v345 = vadd.f32 0.0, %v344
  %v346 = vpop.f32.mrf.mxu0
  %347 = vmatprep.mubr.bf16.mxu0 0
  %348 = vmatmul.mubr.bf16.gmra.mxu0 %v200
  %v349 = vpop.f32.mrf.mxu0
  %v350 = vadd.f32 0.0, %v349
  %v351 = vpop.f32.mrf.mxu0
  %v352 = vpop.f32.mrf.mxu0
  %v353 = vadd.f32 0.0, %v352
  %v354 = vpop.f32.mrf.mxu0
  %355 = vmatprep.mubr.bf16.mxu0 0
  %356 = vmatmul.mubr.bf16.gmra.mxu0 %v201
  %v357 = vpop.f32.mrf.mxu0
  %v358 = vadd.f32 0.0, %v357
  %v359 = vpop.f32.mrf.mxu0
  %v360 = vpop.f32.mrf.mxu0
  %v361 = vadd.f32 0.0, %v360
  %v362 = vpop.f32.mrf.mxu0
  %363 = vmatprep.mubr.bf16.mxu0 0
  %364 = vmatmul.mubr.bf16.gmra.mxu0 %v202
  %v365 = vpop.f32.mrf.mxu0
  %v366 = vadd.f32 0.0, %v365
  %v367 = vpop.f32.mrf.mxu0
  %v368 = vpop.f32.mrf.mxu0
  %v369 = vadd.f32 0.0, %v368
  %v370 = vpop.f32.mrf.mxu0
  %371 = vmatprep.mubr.bf16.mxu0 0
  %372 = vmatmul.mubr.bf16.gmra.mxu0 %v203
  %v373 = vpop.f32.mrf.mxu0
  %v374 = vadd.f32 0.0, %v373
  %v375 = vpop.f32.mrf.mxu0
  %v376 = vpop.f32.mrf.mxu0
  %v377 = vadd.f32 0.0, %v376
  %v378 = vpop.f32.mrf.mxu0
  %379 = vmatprep.mubr.bf16.mxu0 0
  %380 = vmatmul.mubr.bf16.gmra.mxu0 %v204
  %v381 = vpop.f32.mrf.mxu0
  %v382 = vadd.f32 0.0, %v381
  %v383 = vpop.f32.mrf.mxu0
  %v384 = vpop.f32.mrf.mxu0
  %v385 = vadd.f32 0.0, %v384
  %v386 = vpop.f32.mrf.mxu0
  %387 = vmatprep.mubr.bf16.mxu0 0
  %388 = vmatmul.mubr.bf16.gmra.mxu0 %v205
  %v389 = vpop.f32.mrf.mxu0
  %v390 = vadd.f32 0.0, %v389
  %v391 = vpop.f32.mrf.mxu0
  %v392 = vpop.f32.mrf.mxu0
  %v393 = vadd.f32 0.0, %v392
  %v394 = vpop.f32.mrf.mxu0
  %395 = vmatprep.mubr.bf16.mxu0 0
  %396 = vmatmul.mubr.bf16.gmra.mxu0 %v206
  %v397 = vpop.f32.mrf.mxu0
  %v398 = vadd.f32 0.0, %v397
  %v399 = vpop.f32.mrf.mxu0
  %v400 = vpop.f32.mrf.mxu0
  %v401 = vadd.f32 0.0, %v400
  %v402 = vpop.f32.mrf.mxu0
  %403 = vmatprep.mubr.bf16.mxu0 0
  %404 = vmatmul.mubr.bf16.gmra.mxu0 %v207
  %v405 = vpop.f32.mrf.mxu0
  %v406 = vadd.f32 0.0, %v405
  %v407 = vpop.f32.mrf.mxu0
  %v408 = vpop.f32.mrf.mxu0
  %v409 = vadd.f32 0.0, %v408
  %v410 = vpop.f32.mrf.mxu0
  %411 = vmatprep.mubr.bf16.mxu0 0
  %412 = vmatmul.mubr.bf16.gmra.mxu0 %v208
  %v413 = vpop.f32.mrf.mxu0
  %v414 = vadd.f32 0.0, %v413
  %v415 = vpop.f32.mrf.mxu0
  %v416 = vpop.f32.mrf.mxu0
  %v417 = vadd.f32 0.0, %v416
  %v418 = vpop.f32.mrf.mxu0
  %419 = vmatprep.mubr.bf16.mxu0 0
  %420 = vmatmul.mubr.bf16.gmra.mxu0 %v209
  %v421 = vpop.f32.mrf.mxu0
  %v422 = vadd.f32 0.0, %v421
  %v423 = vpop.f32.mrf.mxu0
  %v424 = vpop.f32.mrf.mxu0
  %v425 = vadd.f32 0.0, %v424
  %v426 = vpop.f32.mrf.mxu0
  %427 = vmatprep.mubr.bf16.mxu0 0
  %428 = vmatmul.mubr.bf16.gmra.mxu0 %v210
  %v429 = vpop.f32.mrf.mxu0
  %v430 = vadd.f32 0.0, %v429
  %v431 = vpop.f32.mrf.mxu0
  %v432 = vpop.f32.mrf.mxu0
  %v433 = vadd.f32 0.0, %v432
  %v434 = vpop.f32.mrf.mxu0
  %435 = vdwg.mxu0
  %v436 = vadd.f32 %v51, %v310
  %v437 = vadd.f32 %v52, %v313
  %v438 = vadd.f32 %v53, %v318
  %v439 = vadd.f32 %v54, %v321
  %v440 = vadd.f32 %v55, %v326
  %v441 = vadd.f32 %v56, %v329
  %v442 = vadd.f32 %v57, %v334
  %v443 = vadd.f32 %v58, %v337
  %v444 = vadd.f32 %v59, %v342
  %v445 = vadd.f32 %v60, %v345
  %v446 = vadd.f32 %v61, %v350
  %v447 = vadd.f32 %v62, %v353
  %v448 = vadd.f32 %v63, %v358
  %v449 = vadd.f32 %v64, %v361
  %v450 = vadd.f32 %v65, %v366
  %v451 = vadd.f32 %v66, %v369
  %v452 = vadd.f32 %v67, %v374
  %v453 = vadd.f32 %v68, %v377
  %v454 = vadd.f32 %v69, %v382
  %v455 = vadd.f32 %v70, %v385
  %v456 = vadd.f32 %v71, %v390
  %v457 = vadd.f32 %v72, %v393
  %v458 = vadd.f32 %v73, %v398
  %v459 = vadd.f32 %v74, %v401
  %v460 = vadd.f32 %v75, %v406
  %v461 = vadd.f32 %v76, %v409
  %v462 = vadd.f32 %v77, %v414
  %v463 = vadd.f32 %v78, %v417
  %v464 = vadd.f32 %v79, %v422
  %v465 = vadd.f32 %v80, %v425
  %v466 = vadd.f32 %v81, %v430
  %v467 = vadd.f32 %v82, %v433
  %468 = vst [vmem:[#allocation2] sm:$0xff] %v436
  %469 = vst [vmem:[#allocation2 + $0x8] sm:$0xff] %v437
  %470 = vst [vmem:[#allocation2 + $0x10] sm:$0xff] %v438
  %471 = vst [vmem:[#allocation2 + $0x18] sm:$0xff] %v439
  %472 = vst [vmem:[#allocation2 + $0x20] sm:$0xff] %v440
  %473 = vst [vmem:[#allocation2 + $0x28] sm:$0xff] %v441
  %474 = vst [vmem:[#allocation2 + $0x30] sm:$0xff] %v442
  %475 = vst [vmem:[#allocation2 + $0x38] sm:$0xff] %v443
  %476 = vst [vmem:[#allocation2 + $0x40] sm:$0xff] %v444
  %477 = vst [vmem:[#allocation2 + $0x48] sm:$0xff] %v445
  %478 = vst [vmem:[#allocation2 + $0x50] sm:$0xff] %v446
  %479 = vst [vmem:[#allocation2 + $0x58] sm:$0xff] %v447
  %480 = vst [vmem:[#allocation2 + $0x60] sm:$0xff] %v448
  %481 = vst [vmem:[#allocation2 + $0x68] sm:$0xff] %v449
  %482 = vst [vmem:[#allocation2 + $0x70] sm:$0xff] %v450
  %483 = vst [vmem:[#allocation2 + $0x78] sm:$0xff] %v451
  %484 = vst [vmem:[#allocation2 + $0x80] sm:$0xff] %v452
  %485 = vst [vmem:[#allocation2 + $0x88] sm:$0xff] %v453
  %486 = vst [vmem:[#allocation2 + $0x90] sm:$0xff] %v454
  %487 = vst [vmem:[#allocation2 + $0x98] sm:$0xff] %v455
  %488 = vst [vmem:[#allocation2 + $0xa0] sm:$0xff] %v456
  %489 = vst [vmem:[#allocation2 + $0xa8] sm:$0xff] %v457
  %490 = vst [vmem:[#allocation2 + $0xb0] sm:$0xff] %v458
  %491 = vst [vmem:[#allocation2 + $0xb8] sm:$0xff] %v459
  %492 = vst [vmem:[#allocation2 + $0xc0] sm:$0xff] %v460
  %493 = vst [vmem:[#allocation2 + $0xc8] sm:$0xff] %v461
  %494 = vst [vmem:[#allocation2 + $0xd0] sm:$0xff] %v462
  %495 = vst [vmem:[#allocation2 + $0xd8] sm:$0xff] %v463
  %496 = vst [vmem:[#allocation2 + $0xe0] sm:$0xff] %v464
  %497 = vst [vmem:[#allocation2 + $0xe8] sm:$0xff] %v465
  %498 = vst [vmem:[#allocation2 + $0xf0] sm:$0xff] %v466
  %499 = vst [vmem:[#allocation2 + $0xf8] sm:$0xff] %v467
  // Predicated region
  $region18: #{resnet_forward.39} parent=0 // pred_check
    %p500 = pneg %p15
  $region19: #{resnet_forward.39} parent=0 // pred_check_branch
    %502 = sbr.rel (%p500) target = $region21
  $region20: #{resnet_forward.39} parent=0 // pred_region
    %v503 = vld [vmem:[#allocation2] sm:$0xff]
    %v504 = vld [vmem:[#allocation2 + $0x8] sm:$0xff]
    %v505 = vld [vmem:[#allocation2 + $0x10] sm:$0xff]
    %v506 = vld [vmem:[#allocation2 + $0x18] sm:$0xff]
    %v507 = vld [vmem:[#allocation2 + $0x20] sm:$0xff]
    %v508 = vld [vmem:[#allocation2 + $0x28] sm:$0xff]
    %v509 = vld [vmem:[#allocation2 + $0x30] sm:$0xff]
    %v510 = vld [vmem:[#allocation2 + $0x38] sm:$0xff]
    %v511 = vld [vmem:[#allocation2 + $0x40] sm:$0xff]
    %v512 = vld [vmem:[#allocation2 + $0x48] sm:$0xff]
    %v513 = vld [vmem:[#allocation2 + $0x50] sm:$0xff]
    %v514 = vld [vmem:[#allocation2 + $0x58] sm:$0xff]
    %v515 = vld [vmem:[#allocation2 + $0x60] sm:$0xff]
    %v516 = vld [vmem:[#allocation2 + $0x68] sm:$0xff]
    %v517 = vld [vmem:[#allocation2 + $0x70] sm:$0xff]
    %v518 = vld [vmem:[#allocation2 + $0x78] sm:$0xff]
    %v519 = vld [vmem:[#allocation2 + $0x80] sm:$0xff]
    %v520 = vld [vmem:[#allocation2 + $0x88] sm:$0xff]
    %v521 = vld [vmem:[#allocation2 + $0x90] sm:$0xff]
    %v522 = vld [vmem:[#allocation2 + $0x98] sm:$0xff]
    %v523 = vld [vmem:[#allocation2 + $0xa0] sm:$0xff]
    %v524 = vld [vmem:[#allocation2 + $0xa8] sm:$0xff]
    %v525 = vld [vmem:[#allocation2 + $0xb0] sm:$0xff]
    %v526 = vld [vmem:[#allocation2 + $0xb8] sm:$0xff]
    %v527 = vld [vmem:[#allocation2 + $0xc0] sm:$0xff]
    %v528 = vld [vmem:[#allocation2 + $0xc8] sm:$0xff]
    %v529 = vld [vmem:[#allocation2 + $0xd0] sm:$0xff]
    %v530 = vld [vmem:[#allocation2 + $0xd8] sm:$0xff]
    %v531 = vld [vmem:[#allocation2 + $0xe0] sm:$0xff]
    %v532 = vld [vmem:[#allocation2 + $0xe8] sm:$0xff]
    %v533 = vld [vmem:[#allocation2 + $0xf0] sm:$0xff]
    %v534 = vld [vmem:[#allocation2 + $0xf8] sm:$0xff]
    %v535 = vld [vmem:[%s2] sm:$0x1]
    %v537 = vlaneseq
    %v538 = vshrl.u32 %v537, 7
    %v539 = vsub.s32 0, %v538
    %v540 = vrot.slane %v535, %v539
    %v542 = vmul.f32 %v503, %v540
    %v543 = vmul.f32 %v504, %v540
    %v544 = vmul.f32 %v505, %v540
    %v545 = vmul.f32 %v506, %v540
    %v546 = vmul.f32 %v507, %v540
    %v547 = vmul.f32 %v508, %v540
    %v548 = vmul.f32 %v509, %v540
    %v549 = vmul.f32 %v510, %v540
    %v550 = vmul.f32 %v511, %v540
    %v551 = vmul.f32 %v512, %v540
    %v552 = vmul.f32 %v513, %v540
    %v553 = vmul.f32 %v514, %v540
    %v554 = vmul.f32 %v515, %v540
    %v555 = vmul.f32 %v516, %v540
    %v556 = vmul.f32 %v517, %v540
    %v557 = vmul.f32 %v518, %v540
    %v558 = vmul.f32 %v519, %v540
    %v559 = vmul.f32 %v520, %v540
    %v560 = vmul.f32 %v521, %v540
    %v561 = vmul.f32 %v522, %v540
    %v562 = vmul.f32 %v523, %v540
    %v563 = vmul.f32 %v524, %v540
    %v564 = vmul.f32 %v525, %v540
    %v565 = vmul.f32 %v526, %v540
    %v566 = vmul.f32 %v527, %v540
    %v567 = vmul.f32 %v528, %v540
    %v568 = vmul.f32 %v529, %v540
    %v569 = vmul.f32 %v530, %v540
    %v570 = vmul.f32 %v531, %v540
    %v571 = vmul.f32 %v532, %v540
    %v572 = vmul.f32 %v533, %v540
    %v573 = vmul.f32 %v534, %v540
    %v574 = vmax.f32 %v542, 0.0
    %v575 = vmax.f32 %v543, 0.0
    %v576 = vmax.f32 %v544, 0.0
    %v577 = vmax.f32 %v545, 0.0
    %v578 = vmax.f32 %v546, 0.0
    %v579 = vmax.f32 %v547, 0.0
    %v580 = vmax.f32 %v548, 0.0
    %v581 = vmax.f32 %v549, 0.0
    %v582 = vmax.f32 %v550, 0.0
    %v583 = vmax.f32 %v551, 0.0
    %v584 = vmax.f32 %v552, 0.0
    %v585 = vmax.f32 %v553, 0.0
    %v586 = vmax.f32 %v554, 0.0
    %v587 = vmax.f32 %v555, 0.0
    %v588 = vmax.f32 %v556, 0.0
    %v589 = vmax.f32 %v557, 0.0
    %v590 = vmax.f32 %v558, 0.0
    %v591 = vmax.f32 %v559, 0.0
    %v592 = vmax.f32 %v560, 0.0
    %v593 = vmax.f32 %v561, 0.0
    %v594 = vmax.f32 %v562, 0.0
    %v595 = vmax.f32 %v563, 0.0
    %v596 = vmax.f32 %v564, 0.0
    %v597 = vmax.f32 %v565, 0.0
    %v598 = vmax.f32 %v566, 0.0
    %v599 = vmax.f32 %v567, 0.0
    %v600 = vmax.f32 %v568, 0.0
    %v601 = vmax.f32 %v569, 0.0
    %v602 = vmax.f32 %v570, 0.0
    %v603 = vmax.f32 %v571, 0.0
    %v604 = vmax.f32 %v572, 0.0
    %v605 = vmax.f32 %v573, 0.0
    %606 = vst [vmem:[%s3] sm:$0xff] %v574
    %607 = vst [vmem:[%s3 + $0x8] sm:$0xff] %v575
    %608 = vst [vmem:[%s3 + $0x10] sm:$0xff] %v576
    %609 = vst [vmem:[%s3 + $0x18] sm:$0xff] %v577
    %610 = vst [vmem:[%s3 + $0x20] sm:$0xff] %v578
    %611 = vst [vmem:[%s3 + $0x28] sm:$0xff] %v579
    %612 = vst [vmem:[%s3 + $0x30] sm:$0xff] %v580
    %613 = vst [vmem:[%s3 + $0x38] sm:$0xff] %v581
    %614 = vst [vmem:[%s3 + $0x40] sm:$0xff] %v582
    %615 = vst [vmem:[%s3 + $0x48] sm:$0xff] %v583
    %616 = vst [vmem:[%s3 + $0x50] sm:$0xff] %v584
    %617 = vst [vmem:[%s3 + $0x58] sm:$0xff] %v585
    %618 = vst [vmem:[%s3 + $0x60] sm:$0xff] %v586
    %619 = vst [vmem:[%s3 + $0x68] sm:$0xff] %v587
    %620 = vst [vmem:[%s3 + $0x70] sm:$0xff] %v588
    %621 = vst [vmem:[%s3 + $0x78] sm:$0xff] %v589
    %622 = vst [vmem:[%s3 + $0x80] sm:$0xff] %v590
    %623 = vst [vmem:[%s3 + $0x88] sm:$0xff] %v591
    %624 = vst [vmem:[%s3 + $0x90] sm:$0xff] %v592
    %625 = vst [vmem:[%s3 + $0x98] sm:$0xff] %v593
    %626 = vst [vmem:[%s3 + $0xa0] sm:$0xff] %v594
    %627 = vst [vmem:[%s3 + $0xa8] sm:$0xff] %v595
    %628 = vst [vmem:[%s3 + $0xb0] sm:$0xff] %v596
    %629 = vst [vmem:[%s3 + $0xb8] sm:$0xff] %v597
    %630 = vst [vmem:[%s3 + $0xc0] sm:$0xff] %v598
    %631 = vst [vmem:[%s3 + $0xc8] sm:$0xff] %v599
    %632 = vst [vmem:[%s3 + $0xd0] sm:$0xff] %v600
    %633 = vst [vmem:[%s3 + $0xd8] sm:$0xff] %v601
    %634 = vst [vmem:[%s3 + $0xe0] sm:$0xff] %v602
    %635 = vst [vmem:[%s3 + $0xe8] sm:$0xff] %v603
    %636 = vst [vmem:[%s3 + $0xf0] sm:$0xff] %v604
    %637 = vst [vmem:[%s3 + $0xf8] sm:$0xff] %v605
  $region21: #{resnet_forward.39} parent=0 // pred_fallthru
    _
  // Predicated region
  $region22: #{resnet_forward.39} parent=0 // pred_check
    _
  $region23: #{resnet_forward.39} parent=0 // pred_check_branch
    %639 = sbr.rel (0) target = $region25
  $region24: #{resnet_forward.39} parent=0 // pred_region
    _
  $region25: #{resnet_forward.39} parent=0 // pred_fallthru
    _
  // Predicated region
  $region26: #{resnet_forward.39} parent=0 // pred_check
    _
  $region27: #{resnet_forward.39} parent=0 // pred_check_branch
    %641 = sbr.rel (0) target = $region29
  $region28: #{resnet_forward.39} parent=0 // pred_region
    _
  $region29: #{resnet_forward.39} parent=0 // pred_fallthru
    _

// kernel: resnet_forward.41
$region0: #{resnet_forward.41}
  #allocation0 [shape = 'u32[]', space=smem, size = 0x4, offset = 0x4, fixed_abs, tag = 'smem constant byte address 0x4 - core index']
  #allocation1 [shape = 'u32[144,128]{1,0:T(1,128)}', space=vmem, size = 0x12000, scoped, tag = 'internal scratch']
  %s0 = inlined_call_operand.vmem [shape: f32[256,128], index: 0, kind: input, shape index: {}]
  %s1 = inlined_call_operand.vmem [shape: f32[1,128], index: 1, kind: input, shape index: {}]
  %s2 = inlined_call_operand.vmem [shape: f32[1,128], index: 2, kind: input, shape index: {}]
  %s3 = inlined_call_operand.vmem [shape: f32[256,128], index: 3, kind: output, shape index: {}]
  %s4 = sld [smem:[#allocation0]]
  $region22: #{resnet_forward.41} parent=0
    _
  %s6 = ssub.s32 1, %s4
  %s7 = scalar_select 0, %s6, %s4
  // Predicated region
  $region2: #{resnet_forward.41} parent=0 // pred_check
    _
  $region3: #{resnet_forward.41} parent=0 // pred_check_branch
    %9 = sbr.rel (0) target = $region5
  $region4: #{resnet_forward.41} parent=0 // pred_region
    _
  $region5: #{resnet_forward.41} parent=0 // pred_fallthru
    _
  // Predicated region
  $region6: #{resnet_forward.41} parent=0 // pred_check
    _
  $region7: #{resnet_forward.41} parent=0 // pred_check_branch
    %11 = sbr.rel (0) target = $region9
  $region8: #{resnet_forward.41} parent=0 // pred_region
    _
  $region9: #{resnet_forward.41} parent=0 // pred_fallthru
    _
  // Predicated region
  $region10: #{resnet_forward.41} parent=0 // pred_check
    _
  $region11: #{resnet_forward.41} parent=0 // pred_check_branch
    %13 = sbr.rel (0) target = $region13
  $region12: #{resnet_forward.41} parent=0 // pred_region
    _
  $region13: #{resnet_forward.41} parent=0 // pred_fallthru
    _
  %v14 = vld [vmem:[%s0] sm:$0xff]
  %v15 = vld [vmem:[%s0 + $0x8] sm:$0xff]
  %v16 = vld [vmem:[%s0 + $0x10] sm:$0xff]
  %v17 = vld [vmem:[%s0 + $0x18] sm:$0xff]
  %v18 = vld [vmem:[%s0 + $0x20] sm:$0xff]
  %v19 = vld [vmem:[%s0 + $0x28] sm:$0xff]
  %v20 = vld [vmem:[%s0 + $0x30] sm:$0xff]
  %v21 = vld [vmem:[%s0 + $0x38] sm:$0xff]
  %v22 = vld [vmem:[%s0 + $0x40] sm:$0xff]
  %v23 = vld [vmem:[%s0 + $0x48] sm:$0xff]
  %v24 = vld [vmem:[%s0 + $0x50] sm:$0xff]
  %v25 = vld [vmem:[%s0 + $0x58] sm:$0xff]
  %v26 = vld [vmem:[%s0 + $0x60] sm:$0xff]
  %v27 = vld [vmem:[%s0 + $0x68] sm:$0xff]
  %v28 = vld [vmem:[%s0 + $0x70] sm:$0xff]
  %v29 = vld [vmem:[%s0 + $0x78] sm:$0xff]
  %v30 = vld [vmem:[%s0 + $0x80] sm:$0xff]
  %v31 = vld [vmem:[%s0 + $0x88] sm:$0xff]
  %v32 = vld [vmem:[%s0 + $0x90] sm:$0xff]
  %v33 = vld [vmem:[%s0 + $0x98] sm:$0xff]
  %v34 = vld [vmem:[%s0 + $0xa0] sm:$0xff]
  %v35 = vld [vmem:[%s0 + $0xa8] sm:$0xff]
  %v36 = vld [vmem:[%s0 + $0xb0] sm:$0xff]
  %v37 = vld [vmem:[%s0 + $0xb8] sm:$0xff]
  %v38 = vld [vmem:[%s0 + $0xc0] sm:$0xff]
  %v39 = vld [vmem:[%s0 + $0xc8] sm:$0xff]
  %v40 = vld [vmem:[%s0 + $0xd0] sm:$0xff]
  %v41 = vld [vmem:[%s0 + $0xd8] sm:$0xff]
  %v42 = vld [vmem:[%s0 + $0xe0] sm:$0xff]
  %v43 = vld [vmem:[%s0 + $0xe8] sm:$0xff]
  %v44 = vld [vmem:[%s0 + $0xf0] sm:$0xff]
  %v45 = vld [vmem:[%s0 + $0xf8] sm:$0xff]
  %v46 = vld [vmem:[%s1] sm:$0x1]
  %v48 = vlaneseq
  %v49 = vshrl.u32 %v48, 7
  %v50 = vsub.s32 0, %v49
  %v51 = vrot.slane %v46, %v50
  %v53 = vmul.f32 %v14, %v51
  %v54 = vmul.f32 %v15, %v51
  %v55 = vmul.f32 %v16, %v51
  %v56 = vmul.f32 %v17, %v51
  %v57 = vmul.f32 %v18, %v51
  %v58 = vmul.f32 %v19, %v51
  %v59 = vmul.f32 %v20, %v51
  %v60 = vmul.f32 %v21, %v51
  %v61 = vmul.f32 %v22, %v51
  %v62 = vmul.f32 %v23, %v51
  %v63 = vmul.f32 %v24, %v51
  %v64 = vmul.f32 %v25, %v51
  %v65 = vmul.f32 %v26, %v51
  %v66 = vmul.f32 %v27, %v51
  %v67 = vmul.f32 %v28, %v51
  %v68 = vmul.f32 %v29, %v51
  %v69 = vmul.f32 %v30, %v51
  %v70 = vmul.f32 %v31, %v51
  %v71 = vmul.f32 %v32, %v51
  %v72 = vmul.f32 %v33, %v51
  %v73 = vmul.f32 %v34, %v51
  %v74 = vmul.f32 %v35, %v51
  %v75 = vmul.f32 %v36, %v51
  %v76 = vmul.f32 %v37, %v51
  %v77 = vmul.f32 %v38, %v51
  %v78 = vmul.f32 %v39, %v51
  %v79 = vmul.f32 %v40, %v51
  %v80 = vmul.f32 %v41, %v51
  %v81 = vmul.f32 %v42, %v51
  %v82 = vmul.f32 %v43, %v51
  %v83 = vmul.f32 %v44, %v51
  %v84 = vmul.f32 %v45, %v51
  %v85 = vld [vmem:[%s2] sm:$0x1]
  %v87 = vlaneseq
  %v88 = vshrl.u32 %v87, 7
  %v89 = vsub.s32 0, %v88
  %v90 = vrot.slane %v85, %v89
  %v92 = vadd.f32 %v53, %v90
  %v93 = vadd.f32 %v54, %v90
  %v94 = vadd.f32 %v55, %v90
  %v95 = vadd.f32 %v56, %v90
  %v96 = vadd.f32 %v57, %v90
  %v97 = vadd.f32 %v58, %v90
  %v98 = vadd.f32 %v59, %v90
  %v99 = vadd.f32 %v60, %v90
  %v100 = vadd.f32 %v61, %v90
  %v101 = vadd.f32 %v62, %v90
  %v102 = vadd.f32 %v63, %v90
  %v103 = vadd.f32 %v64, %v90
  %v104 = vadd.f32 %v65, %v90
  %v105 = vadd.f32 %v66, %v90
  %v106 = vadd.f32 %v67, %v90
  %v107 = vadd.f32 %v68, %v90
  %v108 = vadd.f32 %v69, %v90
  %v109 = vadd.f32 %v70, %v90
  %v110 = vadd.f32 %v71, %v90
  %v111 = vadd.f32 %v72, %v90
  %v112 = vadd.f32 %v73, %v90
  %v113 = vadd.f32 %v74, %v90
  %v114 = vadd.f32 %v75, %v90
  %v115 = vadd.f32 %v76, %v90
  %v116 = vadd.f32 %v77, %v90
  %v117 = vadd.f32 %v78, %v90
  %v118 = vadd.f32 %v79, %v90
  %v119 = vadd.f32 %v80, %v90
  %v120 = vadd.f32 %v81, %v90
  %v121 = vadd.f32 %v82, %v90
  %v122 = vadd.f32 %v83, %v90
  %v123 = vadd.f32 %v84, %v90
  %v124 = vmax.f32 %v92, 0.0
  %v125 = vmax.f32 %v93, 0.0
  %v126 = vmax.f32 %v94, 0.0
  %v127 = vmax.f32 %v95, 0.0
  %v128 = vmax.f32 %v96, 0.0
  %v129 = vmax.f32 %v97, 0.0
  %v130 = vmax.f32 %v98, 0.0
  %v131 = vmax.f32 %v99, 0.0
  %v132 = vmax.f32 %v100, 0.0
  %v133 = vmax.f32 %v101, 0.0
  %v134 = vmax.f32 %v102, 0.0
  %v135 = vmax.f32 %v103, 0.0
  %v136 = vmax.f32 %v104, 0.0
  %v137 = vmax.f32 %v105, 0.0
  %v138 = vmax.f32 %v106, 0.0
  %v139 = vmax.f32 %v107, 0.0
  %v140 = vmax.f32 %v108, 0.0
  %v141 = vmax.f32 %v109, 0.0
  %v142 = vmax.f32 %v110, 0.0
  %v143 = vmax.f32 %v111, 0.0
  %v144 = vmax.f32 %v112, 0.0
  %v145 = vmax.f32 %v113, 0.0
  %v146 = vmax.f32 %v114, 0.0
  %v147 = vmax.f32 %v115, 0.0
  %v148 = vmax.f32 %v116, 0.0
  %v149 = vmax.f32 %v117, 0.0
  %v150 = vmax.f32 %v118, 0.0
  %v151 = vmax.f32 %v119, 0.0
  %v152 = vmax.f32 %v120, 0.0
  %v153 = vmax.f32 %v121, 0.0
  %v154 = vmax.f32 %v122, 0.0
  %v155 = vmax.f32 %v123, 0.0
  %v156 = vmin.f32 %v124, 6.0
  %v157 = vmin.f32 %v125, 6.0
  %v158 = vmin.f32 %v126, 6.0
  %v159 = vmin.f32 %v127, 6.0
  %v160 = vmin.f32 %v128, 6.0
  %v161 = vmin.f32 %v129, 6.0
  %v162 = vmin.f32 %v130, 6.0
  %v163 = vmin.f32 %v131, 6.0
  %v164 = vmin.f32 %v132, 6.0
  %v165 = vmin.f32 %v133, 6.0
  %v166 = vmin.f32 %v134, 6.0
  %v167 = vmin.f32 %v135, 6.0
  %v168 = vmin.f32 %v136, 6.0
  %v169 = vmin.f32 %v137, 6.0
  %v170 = vmin.f32 %v138, 6.0
  %v171 = vmin.f32 %v139, 6.0
  %v172 = vmin.f32 %v140, 6.0
  %v173 = vmin.f32 %v141, 6.0
  %v174 = vmin.f32 %v142, 6.0
  %v175 = vmin.f32 %v143, 6.0
  %v176 = vmin.f32 %v144, 6.0
  %v177 = vmin.f32 %v145, 6.0
  %v178 = vmin.f32 %v146, 6.0
  %v179 = vmin.f32 %v147, 6.0
  %v180 = vmin.f32 %v148, 6.0
  %v181 = vmin.f32 %v149, 6.0
  %v182 = vmin.f32 %v150, 6.0
  %v183 = vmin.f32 %v151, 6.0
  %v184 = vmin.f32 %v152, 6.0
  %v185 = vmin.f32 %v153, 6.0
  %v186 = vmin.f32 %v154, 6.0
  %v187 = vmin.f32 %v155, 6.0
  %188 = vst [vmem:[%s3] sm:$0xff] %v156
  %189 = vst [vmem:[%s3 + $0x8] sm:$0xff] %v157
  %190 = vst [vmem:[%s3 + $0x10] sm:$0xff] %v158
  %191 = vst [vmem:[%s3 + $0x18] sm:$0xff] %v159
  %192 = vst [vmem:[%s3 + $0x20] sm:$0xff] %v160
  %193 = vst [vmem:[%s3 + $0x28] sm:$0xff] %v161
  %194 = vst [vmem:[%s3 + $0x30] sm:$0xff] %v162
  %195 = vst [vmem:[%s3 + $0x38] sm:$0xff] %v163
  %196 = vst [vmem:[%s3 + $0x40] sm:$0xff] %v164
  %197 = vst [vmem:[%s3 + $0x48] sm:$0xff] %v165
  %198 = vst [vmem:[%s3 + $0x50] sm:$0xff] %v166
  %199 = vst [vmem:[%s3 + $0x58] sm:$0xff] %v167
  %200 = vst [vmem:[%s3 + $0x60] sm:$0xff] %v168
  %201 = vst [vmem:[%s3 + $0x68] sm:$0xff] %v169
  %202 = vst [vmem:[%s3 + $0x70] sm:$0xff] %v170
  %203 = vst [vmem:[%s3 + $0x78] sm:$0xff] %v171
  %204 = vst [vmem:[%s3 + $0x80] sm:$0xff] %v172
  %205 = vst [vmem:[%s3 + $0x88] sm:$0xff] %v173
  %206 = vst [vmem:[%s3 + $0x90] sm:$0xff] %v174
  %207 = vst [vmem:[%s3 + $0x98] sm:$0xff] %v175
  %208 = vst [vmem:[%s3 + $0xa0] sm:$0xff] %v176
  %209 = vst [vmem:[%s3 + $0xa8] sm:$0xff] %v177
  %210 = vst [vmem:[%s3 + $0xb0] sm:$0xff] %v178
  %211 = vst [vmem:[%s3 + $0xb8] sm:$0xff] %v179
  %212 = vst [vmem:[%s3 + $0xc0] sm:$0xff] %v180
  %213 = vst [vmem:[%s3 + $0xc8] sm:$0xff] %v181
  %214 = vst [vmem:[%s3 + $0xd0] sm:$0xff] %v182
  %215 = vst [vmem:[%s3 + $0xd8] sm:$0xff] %v183
  %216 = vst [vmem:[%s3 + $0xe0] sm:$0xff] %v184
  %217 = vst [vmem:[%s3 + $0xe8] sm:$0xff] %v185
  %218 = vst [vmem:[%s3 + $0xf0] sm:$0xff] %v186
  %219 = vst [vmem:[%s3 + $0xf8] sm:$0xff] %v187
  // Predicated region
  $region14: #{resnet_forward.41} parent=0 // pred_check
    _
  $region15: #{resnet_forward.41} parent=0 // pred_check_branch
    %221 = sbr.rel (0) target = $region17
  $region16: #{resnet_forward.41} parent=0 // pred_region
    _
  $region17: #{resnet_forward.41} parent=0 // pred_fallthru
    _
  // Predicated region
  $region18: #{resnet_forward.41} parent=0 // pred_check
    _
  $region19: #{resnet_forward.41} parent=0 // pred_check_branch
    %223 = sbr.rel (0) target = $region21
  $region20: #{resnet_forward.41} parent=0 // pred_region
    _
  $region21: #{resnet_forward.41} parent=0 // pred_fallthru
    _

// kernel: resnet_forward.40
$region0: #{resnet_forward.40}
  #allocation0 [shape = 'u32[]', space=smem, size = 0x4, offset = 0x4, fixed_abs, tag = 'smem constant byte address 0x4 - core index']
  #allocation1 [shape = 'u32[144,128]{1,0:T(1,128)}', space=vmem, size = 0x12000, scoped, tag = 'internal scratch']
  #allocation2 [shape = 'f32[256,128]{1,0:T(8,128)}', space=vmem, size = 0x20000, scoped, tag = 'scratch operand']
  %s0 = inlined_call_operand.vmem [shape: bf16[256,256], index: 0, kind: input, shape index: {}]
  %s1 = inlined_call_operand.vmem [shape: bf16[256,128], index: 1, kind: input, shape index: {}]
  %s2 = inlined_call_operand.vmem [shape: f32[1,128], index: 2, kind: input, shape index: {}]
  %s3 = inlined_call_operand.vmem [shape: f32[256,128], index: 3, kind: output, shape index: {0}]
  %s4 = inlined_call_operand.vmem [shape: f32[8,128], index: 4, kind: output, shape index: {1}]
  %5 = xla_tuple %s3, %s4
  %s6 = sld [smem:[#allocation0]]
  $region38: #{resnet_forward.40} parent=0
    _
  %s8 = ssub.s32 1, %s6
  %s9 = scalar_select 0, %s8, %s6
  // Predicated region
  $region2: #{resnet_forward.40} parent=0 // pred_check
    _
  $region3: #{resnet_forward.40} parent=0 // pred_check_branch
    %11 = sbr.rel (0) target = $region5
  $region4: #{resnet_forward.40} parent=0 // pred_region
    _
  $region5: #{resnet_forward.40} parent=0 // pred_fallthru
    _
  // Predicated region
  $region6: #{resnet_forward.40} parent=0 // pred_check
    _
  $region7: #{resnet_forward.40} parent=0 // pred_check_branch
    %13 = sbr.rel (0) target = $region9
  $region8: #{resnet_forward.40} parent=0 // pred_region
    _
  $region9: #{resnet_forward.40} parent=0 // pred_fallthru
    _
  // Predicated region
  $region10: #{resnet_forward.40} parent=0 // pred_check
    _
  $region11: #{resnet_forward.40} parent=0 // pred_check_branch
    %15 = sbr.rel (0) target = $region13
  $region12: #{resnet_forward.40} parent=0 // pred_region
    _
  $region13: #{resnet_forward.40} parent=0 // pred_fallthru
    _
  %p17 = scmp.eq.s32.totalorder 0, 0
  // Predicated region
  $region14: #{resnet_forward.40} parent=0 // pred_check
    %p18 = pneg %p17
  $region15: #{resnet_forward.40} parent=0 // pred_check_branch
    %20 = sbr.rel (%p18) target = $region17
  $region16: #{resnet_forward.40} parent=0 // pred_region
    %21 = vst [vmem:[#allocation2] sm:$0xff] 0.0
    %22 = vst [vmem:[#allocation2 + $0x8] sm:$0xff] 0.0
    %23 = vst [vmem:[#allocation2 + $0x10] sm:$0xff] 0.0
    %24 = vst [vmem:[#allocation2 + $0x18] sm:$0xff] 0.0
    %25 = vst [vmem:[#allocation2 + $0x20] sm:$0xff] 0.0
    %26 = vst [vmem:[#allocation2 + $0x28] sm:$0xff] 0.0
    %27 = vst [vmem:[#allocation2 + $0x30] sm:$0xff] 0.0
    %28 = vst [vmem:[#allocation2 + $0x38] sm:$0xff] 0.0
    %29 = vst [vmem:[#allocation2 + $0x40] sm:$0xff] 0.0
    %30 = vst [vmem:[#allocation2 + $0x48] sm:$0xff] 0.0
    %31 = vst [vmem:[#allocation2 + $0x50] sm:$0xff] 0.0
    %32 = vst [vmem:[#allocation2 + $0x58] sm:$0xff] 0.0
    %33 = vst [vmem:[#allocation2 + $0x60] sm:$0xff] 0.0
    %34 = vst [vmem:[#allocation2 + $0x68] sm:$0xff] 0.0
    %35 = vst [vmem:[#allocation2 + $0x70] sm:$0xff] 0.0
    %36 = vst [vmem:[#allocation2 + $0x78] sm:$0xff] 0.0
    %37 = vst [vmem:[#allocation2 + $0x80] sm:$0xff] 0.0
    %38 = vst [vmem:[#allocation2 + $0x88] sm:$0xff] 0.0
    %39 = vst [vmem:[#allocation2 + $0x90] sm:$0xff] 0.0
    %40 = vst [vmem:[#allocation2 + $0x98] sm:$0xff] 0.0
    %41 = vst [vmem:[#allocation2 + $0xa0] sm:$0xff] 0.0
    %42 = vst [vmem:[#allocation2 + $0xa8] sm:$0xff] 0.0
    %43 = vst [vmem:[#allocation2 + $0xb0] sm:$0xff] 0.0
    %44 = vst [vmem:[#allocation2 + $0xb8] sm:$0xff] 0.0
    %45 = vst [vmem:[#allocation2 + $0xc0] sm:$0xff] 0.0
    %46 = vst [vmem:[#allocation2 + $0xc8] sm:$0xff] 0.0
    %47 = vst [vmem:[#allocation2 + $0xd0] sm:$0xff] 0.0
    %48 = vst [vmem:[#allocation2 + $0xd8] sm:$0xff] 0.0
    %49 = vst [vmem:[#allocation2 + $0xe0] sm:$0xff] 0.0
    %50 = vst [vmem:[#allocation2 + $0xe8] sm:$0xff] 0.0
    %51 = vst [vmem:[#allocation2 + $0xf0] sm:$0xff] 0.0
    %52 = vst [vmem:[#allocation2 + $0xf8] sm:$0xff] 0.0
  $region17: #{resnet_forward.40} parent=0 // pred_fallthru
    _
  %v53 = vld [vmem:[#allocation2] sm:$0xff]
  %v54 = vld [vmem:[#allocation2 + $0x8] sm:$0xff]
  %v55 = vld [vmem:[#allocation2 + $0x10] sm:$0xff]
  %v56 = vld [vmem:[#allocation2 + $0x18] sm:$0xff]
  %v57 = vld [vmem:[#allocation2 + $0x20] sm:$0xff]
  %v58 = vld [vmem:[#allocation2 + $0x28] sm:$0xff]
  %v59 = vld [vmem:[#allocation2 + $0x30] sm:$0xff]
  %v60 = vld [vmem:[#allocation2 + $0x38] sm:$0xff]
  %v61 = vld [vmem:[#allocation2 + $0x40] sm:$0xff]
  %v62 = vld [vmem:[#allocation2 + $0x48] sm:$0xff]
  %v63 = vld [vmem:[#allocation2 + $0x50] sm:$0xff]
  %v64 = vld [vmem:[#allocation2 + $0x58] sm:$0xff]
  %v65 = vld [vmem:[#allocation2 + $0x60] sm:$0xff]
  %v66 = vld [vmem:[#allocation2 + $0x68] sm:$0xff]
  %v67 = vld [vmem:[#allocation2 + $0x70] sm:$0xff]
  %v68 = vld [vmem:[#allocation2 + $0x78] sm:$0xff]
  %v69 = vld [vmem:[#allocation2 + $0x80] sm:$0xff]
  %v70 = vld [vmem:[#allocation2 + $0x88] sm:$0xff]
  %v71 = vld [vmem:[#allocation2 + $0x90] sm:$0xff]
  %v72 = vld [vmem:[#allocation2 + $0x98] sm:$0xff]
  %v73 = vld [vmem:[#allocation2 + $0xa0] sm:$0xff]
  %v74 = vld [vmem:[#allocation2 + $0xa8] sm:$0xff]
  %v75 = vld [vmem:[#allocation2 + $0xb0] sm:$0xff]
  %v76 = vld [vmem:[#allocation2 + $0xb8] sm:$0xff]
  %v77 = vld [vmem:[#allocation2 + $0xc0] sm:$0xff]
  %v78 = vld [vmem:[#allocation2 + $0xc8] sm:$0xff]
  %v79 = vld [vmem:[#allocation2 + $0xd0] sm:$0xff]
  %v80 = vld [vmem:[#allocation2 + $0xd8] sm:$0xff]
  %v81 = vld [vmem:[#allocation2 + $0xe0] sm:$0xff]
  %v82 = vld [vmem:[#allocation2 + $0xe8] sm:$0xff]
  %v83 = vld [vmem:[#allocation2 + $0xf0] sm:$0xff]
  %v84 = vld [vmem:[#allocation2 + $0xf8] sm:$0xff]
  %v85 = vld [vmem:[%s0] sm:$0xff]
  %v86 = vld [vmem:[%s0 + $0x8] sm:$0xff]
  %v87 = vld [vmem:[%s0 + $0x10] sm:$0xff]
  %v88 = vld [vmem:[%s0 + $0x18] sm:$0xff]
  %v89 = vld [vmem:[%s0 + $0x20] sm:$0xff]
  %v90 = vld [vmem:[%s0 + $0x28] sm:$0xff]
  %v91 = vld [vmem:[%s0 + $0x30] sm:$0xff]
  %v92 = vld [vmem:[%s0 + $0x38] sm:$0xff]
  %v93 = vld [vmem:[%s0 + $0x40] sm:$0xff]
  %v94 = vld [vmem:[%s0 + $0x48] sm:$0xff]
  %v95 = vld [vmem:[%s0 + $0x50] sm:$0xff]
  %v96 = vld [vmem:[%s0 + $0x58] sm:$0xff]
  %v97 = vld [vmem:[%s0 + $0x60] sm:$0xff]
  %v98 = vld [vmem:[%s0 + $0x68] sm:$0xff]
  %v99 = vld [vmem:[%s0 + $0x70] sm:$0xff]
  %v100 = vld [vmem:[%s0 + $0x78] sm:$0xff]
  %v101 = vld [vmem:[%s0 + $0x80] sm:$0xff]
  %v102 = vld [vmem:[%s0 + $0x88] sm:$0xff]
  %v103 = vld [vmem:[%s0 + $0x90] sm:$0xff]
  %v104 = vld [vmem:[%s0 + $0x98] sm:$0xff]
  %v105 = vld [vmem:[%s0 + $0xa0] sm:$0xff]
  %v106 = vld [vmem:[%s0 + $0xa8] sm:$0xff]
  %v107 = vld [vmem:[%s0 + $0xb0] sm:$0xff]
  %v108 = vld [vmem:[%s0 + $0xb8] sm:$0xff]
  %v109 = vld [vmem:[%s0 + $0xc0] sm:$0xff]
  %v110 = vld [vmem:[%s0 + $0xc8] sm:$0xff]
  %v111 = vld [vmem:[%s0 + $0xd0] sm:$0xff]
  %v112 = vld [vmem:[%s0 + $0xd8] sm:$0xff]
  %v113 = vld [vmem:[%s0 + $0xe0] sm:$0xff]
  %v114 = vld [vmem:[%s0 + $0xe8] sm:$0xff]
  %v115 = vld [vmem:[%s0 + $0xf0] sm:$0xff]
  %v116 = vld [vmem:[%s0 + $0xf8] sm:$0xff]
  %v117 = vld [vmem:[%s1] sm:$0xf]
  %v118 = vld [vmem:[%s1 + $0x4] sm:$0xf]
  %v119 = vld [vmem:[%s1 + $0x8] sm:$0xf]
  %v120 = vld [vmem:[%s1 + $0xc] sm:$0xf]
  %v121 = vld [vmem:[%s1 + $0x10] sm:$0xf]
  %v122 = vld [vmem:[%s1 + $0x14] sm:$0xf]
  %v123 = vld [vmem:[%s1 + $0x18] sm:$0xf]
  %v124 = vld [vmem:[%s1 + $0x1c] sm:$0xf]
  %v125 = vld [vmem:[%s1 + $0x20] sm:$0xf]
  %v126 = vld [vmem:[%s1 + $0x24] sm:$0xf]
  %v127 = vld [vmem:[%s1 + $0x28] sm:$0xf]
  %v128 = vld [vmem:[%s1 + $0x2c] sm:$0xf]
  %v129 = vld [vmem:[%s1 + $0x30] sm:$0xf]
  %v130 = vld [vmem:[%s1 + $0x34] sm:$0xf]
  %v131 = vld [vmem:[%s1 + $0x38] sm:$0xf]
  %v132 = vld [vmem:[%s1 + $0x3c] sm:$0xf]
  %v133 = vld [vmem:[%s1 + $0x40] sm:$0xf]
  %v134 = vld [vmem:[%s1 + $0x44] sm:$0xf]
  %v135 = vld [vmem:[%s1 + $0x48] sm:$0xf]
  %v136 = vld [vmem:[%s1 + $0x4c] sm:$0xf]
  %v137 = vld [vmem:[%s1 + $0x50] sm:$0xf]
  %v138 = vld [vmem:[%s1 + $0x54] sm:$0xf]
  %v139 = vld [vmem:[%s1 + $0x58] sm:$0xf]
  %v140 = vld [vmem:[%s1 + $0x5c] sm:$0xf]
  %v141 = vld [vmem:[%s1 + $0x60] sm:$0xf]
  %v142 = vld [vmem:[%s1 + $0x64] sm:$0xf]
  %v143 = vld [vmem:[%s1 + $0x68] sm:$0xf]
  %v144 = vld [vmem:[%s1 + $0x6c] sm:$0xf]
  %v145 = vld [vmem:[%s1 + $0x70] sm:$0xf]
  %v146 = vld [vmem:[%s1 + $0x74] sm:$0xf]
  %v147 = vld [vmem:[%s1 + $0x78] sm:$0xf]
  %v148 = vld [vmem:[%s1 + $0x7c] sm:$0xf]
  %v181 = vunpack.c.l.b16 %v85
  %v182 = vunpack.c.h.b16 %v85
  %v183 = vunpack.c.l.b16 %v86
  %v184 = vunpack.c.h.b16 %v86
  %v185 = vunpack.c.l.b16 %v87
  %v186 = vunpack.c.h.b16 %v87
  %v187 = vunpack.c.l.b16 %v88
  %v188 = vunpack.c.h.b16 %v88
  %v189 = vunpack.c.l.b16 %v89
  %v190 = vunpack.c.h.b16 %v89
  %v191 = vunpack.c.l.b16 %v90
  %v192 = vunpack.c.h.b16 %v90
  %v193 = vunpack.c.l.b16 %v91
  %v194 = vunpack.c.h.b16 %v91
  %v195 = vunpack.c.l.b16 %v92
  %v196 = vunpack.c.h.b16 %v92
  %v197 = vunpack.c.l.b16 %v93
  %v198 = vunpack.c.h.b16 %v93
  %v199 = vunpack.c.l.b16 %v94
  %v200 = vunpack.c.h.b16 %v94
  %v201 = vunpack.c.l.b16 %v95
  %v202 = vunpack.c.h.b16 %v95
  %v203 = vunpack.c.l.b16 %v96
  %v204 = vunpack.c.h.b16 %v96
  %v205 = vunpack.c.l.b16 %v97
  %v206 = vunpack.c.h.b16 %v97
  %v207 = vunpack.c.l.b16 %v98
  %v208 = vunpack.c.h.b16 %v98
  %v209 = vunpack.c.l.b16 %v99
  %v210 = vunpack.c.h.b16 %v99
  %v211 = vunpack.c.l.b16 %v100
  %v212 = vunpack.c.h.b16 %v100
  %v213 = vunpack.c.l.b16 %v101
  %v214 = vunpack.c.h.b16 %v101
  %v215 = vunpack.c.l.b16 %v102
  %v216 = vunpack.c.h.b16 %v102
  %v217 = vunpack.c.l.b16 %v103
  %v218 = vunpack.c.h.b16 %v103
  %v219 = vunpack.c.l.b16 %v104
  %v220 = vunpack.c.h.b16 %v104
  %v221 = vunpack.c.l.b16 %v105
  %v222 = vunpack.c.h.b16 %v105
  %v223 = vunpack.c.l.b16 %v106
  %v224 = vunpack.c.h.b16 %v106
  %v225 = vunpack.c.l.b16 %v107
  %v226 = vunpack.c.h.b16 %v107
  %v227 = vunpack.c.l.b16 %v108
  %v228 = vunpack.c.h.b16 %v108
  %v229 = vunpack.c.l.b16 %v109
  %v230 = vunpack.c.h.b16 %v109
  %v231 = vunpack.c.l.b16 %v110
  %v232 = vunpack.c.h.b16 %v110
  %v233 = vunpack.c.l.b16 %v111
  %v234 = vunpack.c.h.b16 %v111
  %v235 = vunpack.c.l.b16 %v112
  %v236 = vunpack.c.h.b16 %v112
  %v237 = vunpack.c.l.b16 %v113
  %v238 = vunpack.c.h.b16 %v113
  %v239 = vunpack.c.l.b16 %v114
  %v240 = vunpack.c.h.b16 %v114
  %v241 = vunpack.c.l.b16 %v115
  %v242 = vunpack.c.h.b16 %v115
  %v243 = vunpack.c.l.b16 %v116
  %v244 = vunpack.c.h.b16 %v116
  %v245 = vpack.c.b16 %v183, %v181
  %v246 = vpack.c.b16 %v184, %v182
  %v247 = vpack.c.b16 %v187, %v185
  %v248 = vpack.c.b16 %v188, %v186
  %v249 = vpack.c.b16 %v191, %v189
  %v250 = vpack.c.b16 %v192, %v190
  %v251 = vpack.c.b16 %v195, %v193
  %v252 = vpack.c.b16 %v196, %v194
  %v253 = vpack.c.b16 %v199, %v197
  %v254 = vpack.c.b16 %v200, %v198
  %v255 = vpack.c.b16 %v203, %v201
  %v256 = vpack.c.b16 %v204, %v202
  %v257 = vpack.c.b16 %v207, %v205
  %v258 = vpack.c.b16 %v208, %v206
  %v259 = vpack.c.b16 %v211, %v209
  %v260 = vpack.c.b16 %v212, %v210
  %v261 = vpack.c.b16 %v215, %v213
  %v262 = vpack.c.b16 %v216, %v214
  %v263 = vpack.c.b16 %v219, %v217
  %v264 = vpack.c.b16 %v220, %v218
  %v265 = vpack.c.b16 %v223, %v221
  %v266 = vpack.c.b16 %v224, %v222
  %v267 = vpack.c.b16 %v227, %v225
  %v268 = vpack.c.b16 %v228, %v226
  %v269 = vpack.c.b16 %v231, %v229
  %v270 = vpack.c.b16 %v232, %v230
  %v271 = vpack.c.b16 %v235, %v233
  %v272 = vpack.c.b16 %v236, %v234
  %v273 = vpack.c.b16 %v239, %v237
  %v274 = vpack.c.b16 %v240, %v238
  %v275 = vpack.c.b16 %v243, %v241
  %v276 = vpack.c.b16 %v244, %v242
  %v341 = vunpack.c.l.b16 %v117
  %v342 = vunpack.c.l.b16 %v118
  %v343 = vunpack.c.l.b16 %v119
  %v344 = vunpack.c.l.b16 %v120
  %v345 = vunpack.c.l.b16 %v121
  %v346 = vunpack.c.l.b16 %v122
  %v347 = vunpack.c.l.b16 %v123
  %v348 = vunpack.c.l.b16 %v124
  %v349 = vunpack.c.l.b16 %v125
  %v350 = vunpack.c.l.b16 %v126
  %v351 = vunpack.c.l.b16 %v127
  %v352 = vunpack.c.l.b16 %v128
  %v353 = vunpack.c.l.b16 %v129
  %v354 = vunpack.c.l.b16 %v130
  %v355 = vunpack.c.l.b16 %v131
  %v356 = vunpack.c.l.b16 %v132
  %v357 = vunpack.c.l.b16 %v133
  %v358 = vunpack.c.l.b16 %v134
  %v359 = vunpack.c.l.b16 %v135
  %v360 = vunpack.c.l.b16 %v136
  %v361 = vunpack.c.l.b16 %v137
  %v362 = vunpack.c.l.b16 %v138
  %v363 = vunpack.c.l.b16 %v139
  %v364 = vunpack.c.l.b16 %v140
  %v365 = vunpack.c.l.b16 %v141
  %v366 = vunpack.c.l.b16 %v142
  %v367 = vunpack.c.l.b16 %v143
  %v368 = vunpack.c.l.b16 %v144
  %v369 = vunpack.c.l.b16 %v145
  %v370 = vunpack.c.l.b16 %v146
  %v371 = vunpack.c.l.b16 %v147
  %v372 = vunpack.c.l.b16 %v148
  %v373 = vpack.c.b16 %v342, %v341
  %v374 = vpack.c.b16 %v344, %v343
  %v375 = vpack.c.b16 %v346, %v345
  %v376 = vpack.c.b16 %v348, %v347
  %v377 = vpack.c.b16 %v350, %v349
  %v378 = vpack.c.b16 %v352, %v351
  %v379 = vpack.c.b16 %v354, %v353
  %v380 = vpack.c.b16 %v356, %v355
  %v381 = vpack.c.b16 %v358, %v357
  %v382 = vpack.c.b16 %v360, %v359
  %v383 = vpack.c.b16 %v362, %v361
  %v384 = vpack.c.b16 %v364, %v363
  %v385 = vpack.c.b16 %v366, %v365
  %v386 = vpack.c.b16 %v368, %v367
  %v387 = vpack.c.b16 %v370, %v369
  %v388 = vpack.c.b16 %v372, %v371
  %405 = vmatprep.subr.bf16.mxu0 0
  %406 = vmatpush1.bf16.msra.mxu0 %v380
  %407 = vmatprep.subr.bf16.mxu0 0
  %408 = vmatpush1.bf16.msra.mxu0 %v379
  %409 = vmatprep.subr.bf16.mxu0 0
  %410 = vmatpush1.bf16.msra.mxu0 %v378
  %411 = vmatprep.subr.bf16.mxu0 0
  %412 = vmatpush1.bf16.msra.mxu0 %v377
  %413 = vmatprep.subr.bf16.mxu0 0
  %414 = vmatpush1.bf16.msra.mxu0 %v376
  %415 = vmatprep.subr.bf16.mxu0 0
  %416 = vmatpush1.bf16.msra.mxu0 %v375
  %417 = vmatprep.subr.bf16.mxu0 0
  %418 = vmatpush1.bf16.msra.mxu0 %v374
  %419 = vmatprep.subr.bf16.mxu0 0
  %420 = vmatpush1.bf16.msra.mxu0 %v373
  %421 = vmatprep.subr.bf16.mxu0 0
  %422 = vmatpush2.bf16.msra.mxu0 %v388
  %423 = vmatprep.subr.bf16.mxu0 0
  %424 = vmatpush2.bf16.msra.mxu0 %v387
  %425 = vmatprep.subr.bf16.mxu0 0
  %426 = vmatpush2.bf16.msra.mxu0 %v386
  %427 = vmatprep.subr.bf16.mxu0 0
  %428 = vmatpush2.bf16.msra.mxu0 %v385
  %429 = vmatprep.subr.bf16.mxu0 0
  %430 = vmatpush2.bf16.msra.mxu0 %v384
  %431 = vmatprep.subr.bf16.mxu0 0
  %432 = vmatpush2.bf16.msra.mxu0 %v383
  %433 = vmatprep.subr.bf16.mxu0 0
  %434 = vmatpush2.bf16.msra.mxu0 %v382
  %435 = vmatprep.subr.bf16.mxu0 0
  %436 = vmatpush2.bf16.msra.mxu0 %v381
  %437 = vmatprep.mubr.bf16.mxu0 %v246
  %438 = vmatmul.mubr.bf16.gmra.mxu0 %v245
  %v439 = vpop.f32.mrf.mxu0
  %v440 = vadd.f32 0.0, %v439
  %v441 = vpop.f32.mrf.mxu0
  %v442 = vpop.f32.mrf.mxu0
  %v443 = vadd.f32 0.0, %v442
  %v444 = vpop.f32.mrf.mxu0
  %445 = vmatprep.mubr.bf16.mxu0 %v248
  %446 = vmatmul.mubr.bf16.gmra.mxu0 %v247
  %v447 = vpop.f32.mrf.mxu0
  %v448 = vadd.f32 0.0, %v447
  %v449 = vpop.f32.mrf.mxu0
  %v450 = vpop.f32.mrf.mxu0
  %v451 = vadd.f32 0.0, %v450
  %v452 = vpop.f32.mrf.mxu0
  %453 = vmatprep.mubr.bf16.mxu0 %v250
  %454 = vmatmul.mubr.bf16.gmra.mxu0 %v249
  %v455 = vpop.f32.mrf.mxu0
  %v456 = vadd.f32 0.0, %v455
  %v457 = vpop.f32.mrf.mxu0
  %v458 = vpop.f32.mrf.mxu0
  %v459 = vadd.f32 0.0, %v458
  %v460 = vpop.f32.mrf.mxu0
  %461 = vmatprep.mubr.bf16.mxu0 %v252
  %462 = vmatmul.mubr.bf16.gmra.mxu0 %v251
  %v463 = vpop.f32.mrf.mxu0
  %v464 = vadd.f32 0.0, %v463
  %v465 = vpop.f32.mrf.mxu0
  %v466 = vpop.f32.mrf.mxu0
  %v467 = vadd.f32 0.0, %v466
  %v468 = vpop.f32.mrf.mxu0
  %469 = vmatprep.mubr.bf16.mxu0 %v254
  %470 = vmatmul.mubr.bf16.gmra.mxu0 %v253
  %v471 = vpop.f32.mrf.mxu0
  %v472 = vadd.f32 0.0, %v471
  %v473 = vpop.f32.mrf.mxu0
  %v474 = vpop.f32.mrf.mxu0
  %v475 = vadd.f32 0.0, %v474
  %v476 = vpop.f32.mrf.mxu0
  %477 = vmatprep.mubr.bf16.mxu0 %v256
  %478 = vmatmul.mubr.bf16.gmra.mxu0 %v255
  %v479 = vpop.f32.mrf.mxu0
  %v480 = vadd.f32 0.0, %v479
  %v481 = vpop.f32.mrf.mxu0
  %v482 = vpop.f32.mrf.mxu0
  %v483 = vadd.f32 0.0, %v482
  %v484 = vpop.f32.mrf.mxu0
  %485 = vmatprep.mubr.bf16.mxu0 %v258
  %486 = vmatmul.mubr.bf16.gmra.mxu0 %v257
  %v487 = vpop.f32.mrf.mxu0
  %v488 = vadd.f32 0.0, %v487
  %v489 = vpop.f32.mrf.mxu0
  %v490 = vpop.f32.mrf.mxu0
  %v491 = vadd.f32 0.0, %v490
  %v492 = vpop.f32.mrf.mxu0
  %493 = vmatprep.mubr.bf16.mxu0 %v260
  %494 = vmatmul.mubr.bf16.gmra.mxu0 %v259
  %v495 = vpop.f32.mrf.mxu0
  %v496 = vadd.f32 0.0, %v495
  %v497 = vpop.f32.mrf.mxu0
  %v498 = vpop.f32.mrf.mxu0
  %v499 = vadd.f32 0.0, %v498
  %v500 = vpop.f32.mrf.mxu0
  %501 = vmatprep.mubr.bf16.mxu0 %v262
  %502 = vmatmul.mubr.bf16.gmra.mxu0 %v261
  %v503 = vpop.f32.mrf.mxu0
  %v504 = vadd.f32 0.0, %v503
  %v505 = vpop.f32.mrf.mxu0
  %v506 = vpop.f32.mrf.mxu0
  %v507 = vadd.f32 0.0, %v506
  %v508 = vpop.f32.mrf.mxu0
  %509 = vmatprep.mubr.bf16.mxu0 %v264
  %510 = vmatmul.mubr.bf16.gmra.mxu0 %v263
  %v511 = vpop.f32.mrf.mxu0
  %v512 = vadd.f32 0.0, %v511
  %v513 = vpop.f32.mrf.mxu0
  %v514 = vpop.f32.mrf.mxu0
  %v515 = vadd.f32 0.0, %v514
  %v516 = vpop.f32.mrf.mxu0
  %517 = vmatprep.mubr.bf16.mxu0 %v266
  %518 = vmatmul.mubr.bf16.gmra.mxu0 %v265
  %v519 = vpop.f32.mrf.mxu0
  %v520 = vadd.f32 0.0, %v519
  %v521 = vpop.f32.mrf.mxu0
  %v522 = vpop.f32.mrf.mxu0
  %v523 = vadd.f32 0.0, %v522
  %v524 = vpop.f32.mrf.mxu0
  %525 = vmatprep.mubr.bf16.mxu0 %v268
  %526 = vmatmul.mubr.bf16.gmra.mxu0 %v267
  %v527 = vpop.f32.mrf.mxu0
  %v528 = vadd.f32 0.0, %v527
  %v529 = vpop.f32.mrf.mxu0
  %v530 = vpop.f32.mrf.mxu0
  %v531 = vadd.f32 0.0, %v530
  %v532 = vpop.f32.mrf.mxu0
  %533 = vmatprep.mubr.bf16.mxu0 %v270
  %534 = vmatmul.mubr.bf16.gmra.mxu0 %v269
  %v535 = vpop.f32.mrf.mxu0
  %v536 = vadd.f32 0.0, %v535
  %v537 = vpop.f32.mrf.mxu0
  %v538 = vpop.f32.mrf.mxu0
  %v539 = vadd.f32 0.0, %v538
  %v540 = vpop.f32.mrf.mxu0
  %541 = vmatprep.mubr.bf16.mxu0 %v272
  %542 = vmatmul.mubr.bf16.gmra.mxu0 %v271
  %v543 = vpop.f32.mrf.mxu0
  %v544 = vadd.f32 0.0, %v543
  %v545 = vpop.f32.mrf.mxu0
  %v546 = vpop.f32.mrf.mxu0
  %v547 = vadd.f32 0.0, %v546
  %v548 = vpop.f32.mrf.mxu0
  %549 = vmatprep.mubr.bf16.mxu0 %v274
  %550 = vmatmul.mubr.bf16.gmra.mxu0 %v273
  %v551 = vpop.f32.mrf.mxu0
  %v552 = vadd.f32 0.0, %v551
  %v553 = vpop.f32.mrf.mxu0
  %v554 = vpop.f32.mrf.mxu0
  %v555 = vadd.f32 0.0, %v554
  %v556 = vpop.f32.mrf.mxu0
  %557 = vmatprep.mubr.bf16.mxu0 %v276
  %558 = vmatmul.mubr.bf16.gmra.mxu0 %v275
  %v559 = vpop.f32.mrf.mxu0
  %v560 = vadd.f32 0.0, %v559
  %v561 = vpop.f32.mrf.mxu0
  %v562 = vpop.f32.mrf.mxu0
  %v563 = vadd.f32 0.0, %v562
  %v564 = vpop.f32.mrf.mxu0
  %565 = vdwg.mxu0
  %v566 = vadd.f32 %v53, %v440
  %v567 = vadd.f32 %v54, %v443
  %v568 = vadd.f32 %v55, %v448
  %v569 = vadd.f32 %v56, %v451
  %v570 = vadd.f32 %v57, %v456
  %v571 = vadd.f32 %v58, %v459
  %v572 = vadd.f32 %v59, %v464
  %v573 = vadd.f32 %v60, %v467
  %v574 = vadd.f32 %v61, %v472
  %v575 = vadd.f32 %v62, %v475
  %v576 = vadd.f32 %v63, %v480
  %v577 = vadd.f32 %v64, %v483
  %v578 = vadd.f32 %v65, %v488
  %v579 = vadd.f32 %v66, %v491
  %v580 = vadd.f32 %v67, %v496
  %v581 = vadd.f32 %v68, %v499
  %v582 = vadd.f32 %v69, %v504
  %v583 = vadd.f32 %v70, %v507
  %v584 = vadd.f32 %v71, %v512
  %v585 = vadd.f32 %v72, %v515
  %v586 = vadd.f32 %v73, %v520
  %v587 = vadd.f32 %v74, %v523
  %v588 = vadd.f32 %v75, %v528
  %v589 = vadd.f32 %v76, %v531
  %v590 = vadd.f32 %v77, %v536
  %v591 = vadd.f32 %v78, %v539
  %v592 = vadd.f32 %v79, %v544
  %v593 = vadd.f32 %v80, %v547
  %v594 = vadd.f32 %v81, %v552
  %v595 = vadd.f32 %v82, %v555
  %v596 = vadd.f32 %v83, %v560
  %v597 = vadd.f32 %v84, %v563
  %598 = vst [vmem:[#allocation2] sm:$0xff] %v566
  %599 = vst [vmem:[#allocation2 + $0x8] sm:$0xff] %v567
  %600 = vst [vmem:[#allocation2 + $0x10] sm:$0xff] %v568
  %601 = vst [vmem:[#allocation2 + $0x18] sm:$0xff] %v569
  %602 = vst [vmem:[#allocation2 + $0x20] sm:$0xff] %v570
  %603 = vst [vmem:[#allocation2 + $0x28] sm:$0xff] %v571
  %604 = vst [vmem:[#allocation2 + $0x30] sm:$0xff] %v572
  %605 = vst [vmem:[#allocation2 + $0x38] sm:$0xff] %v573
  %606 = vst [vmem:[#allocation2 + $0x40] sm:$0xff] %v574
  %607 = vst [vmem:[#allocation2 + $0x48] sm:$0xff] %v575
  %608 = vst [vmem:[#allocation2 + $0x50] sm:$0xff] %v576
  %609 = vst [vmem:[#allocation2 + $0x58] sm:$0xff] %v577
  %610 = vst [vmem:[#allocation2 + $0x60] sm:$0xff] %v578
  %611 = vst [vmem:[#allocation2 + $0x68] sm:$0xff] %v579
  %612 = vst [vmem:[#allocation2 + $0x70] sm:$0xff] %v580
  %613 = vst [vmem:[#allocation2 + $0x78] sm:$0xff] %v581
  %614 = vst [vmem:[#allocation2 + $0x80] sm:$0xff] %v582
  %615 = vst [vmem:[#allocation2 + $0x88] sm:$0xff] %v583
  %616 = vst [vmem:[#allocation2 + $0x90] sm:$0xff] %v584
  %617 = vst [vmem:[#allocation2 + $0x98] sm:$0xff] %v585
  %618 = vst [vmem:[#allocation2 + $0xa0] sm:$0xff] %v586
  %619 = vst [vmem:[#allocation2 + $0xa8] sm:$0xff] %v587
  %620 = vst [vmem:[#allocation2 + $0xb0] sm:$0xff] %v588
  %621 = vst [vmem:[#allocation2 + $0xb8] sm:$0xff] %v589
  %622 = vst [vmem:[#allocation2 + $0xc0] sm:$0xff] %v590
  %623 = vst [vmem:[#allocation2 + $0xc8] sm:$0xff] %v591
  %624 = vst [vmem:[#allocation2 + $0xd0] sm:$0xff] %v592
  %625 = vst [vmem:[#allocation2 + $0xd8] sm:$0xff] %v593
  %626 = vst [vmem:[#allocation2 + $0xe0] sm:$0xff] %v594
  %627 = vst [vmem:[#allocation2 + $0xe8] sm:$0xff] %v595
  %628 = vst [vmem:[#allocation2 + $0xf0] sm:$0xff] %v596
  %629 = vst [vmem:[#allocation2 + $0xf8] sm:$0xff] %v597
  // Predicated region
  $region18: #{resnet_forward.40} parent=0 // pred_check
    %p630 = pneg %p17
  $region19: #{resnet_forward.40} parent=0 // pred_check_branch
    %632 = sbr.rel (%p630) target = $region21
  $region20: #{resnet_forward.40} parent=0 // pred_region
    %v633 = vld [vmem:[#allocation2] sm:$0xff]
    %v634 = vld [vmem:[#allocation2 + $0x8] sm:$0xff]
    %v635 = vld [vmem:[#allocation2 + $0x10] sm:$0xff]
    %v636 = vld [vmem:[#allocation2 + $0x18] sm:$0xff]
    %v637 = vld [vmem:[#allocation2 + $0x20] sm:$0xff]
    %v638 = vld [vmem:[#allocation2 + $0x28] sm:$0xff]
    %v639 = vld [vmem:[#allocation2 + $0x30] sm:$0xff]
    %v640 = vld [vmem:[#allocation2 + $0x38] sm:$0xff]
    %v641 = vld [vmem:[#allocation2 + $0x40] sm:$0xff]
    %v642 = vld [vmem:[#allocation2 + $0x48] sm:$0xff]
    %v643 = vld [vmem:[#allocation2 + $0x50] sm:$0xff]
    %v644 = vld [vmem:[#allocation2 + $0x58] sm:$0xff]
    %v645 = vld [vmem:[#allocation2 + $0x60] sm:$0xff]
    %v646 = vld [vmem:[#allocation2 + $0x68] sm:$0xff]
    %v647 = vld [vmem:[#allocation2 + $0x70] sm:$0xff]
    %v648 = vld [vmem:[#allocation2 + $0x78] sm:$0xff]
    %v649 = vld [vmem:[#allocation2 + $0x80] sm:$0xff]
    %v650 = vld [vmem:[#allocation2 + $0x88] sm:$0xff]
    %v651 = vld [vmem:[#allocation2 + $0x90] sm:$0xff]
    %v652 = vld [vmem:[#allocation2 + $0x98] sm:$0xff]
    %v653 = vld [vmem:[#allocation2 + $0xa0] sm:$0xff]
    %v654 = vld [vmem:[#allocation2 + $0xa8] sm:$0xff]
    %v655 = vld [vmem:[#allocation2 + $0xb0] sm:$0xff]
    %v656 = vld [vmem:[#allocation2 + $0xb8] sm:$0xff]
    %v657 = vld [vmem:[#allocation2 + $0xc0] sm:$0xff]
    %v658 = vld [vmem:[#allocation2 + $0xc8] sm:$0xff]
    %v659 = vld [vmem:[#allocation2 + $0xd0] sm:$0xff]
    %v660 = vld [vmem:[#allocation2 + $0xd8] sm:$0xff]
    %v661 = vld [vmem:[#allocation2 + $0xe0] sm:$0xff]
    %v662 = vld [vmem:[#allocation2 + $0xe8] sm:$0xff]
    %v663 = vld [vmem:[#allocation2 + $0xf0] sm:$0xff]
    %v664 = vld [vmem:[#allocation2 + $0xf8] sm:$0xff]
    %v665 = vld [vmem:[%s2] sm:$0x1]
    %v667 = vlaneseq
    %v668 = vshrl.u32 %v667, 7
    %v669 = vsub.s32 0, %v668
    %v670 = vrot.slane %v665, %v669
    %v672 = vmul.f32 %v633, %v670
    %v673 = vmul.f32 %v634, %v670
    %v674 = vmul.f32 %v635, %v670
    %v675 = vmul.f32 %v636, %v670
    %v676 = vmul.f32 %v637, %v670
    %v677 = vmul.f32 %v638, %v670
    %v678 = vmul.f32 %v639, %v670
    %v679 = vmul.f32 %v640, %v670
    %v680 = vmul.f32 %v641, %v670
    %v681 = vmul.f32 %v642, %v670
    %v682 = vmul.f32 %v643, %v670
    %v683 = vmul.f32 %v644, %v670
    %v684 = vmul.f32 %v645, %v670
    %v685 = vmul.f32 %v646, %v670
    %v686 = vmul.f32 %v647, %v670
    %v687 = vmul.f32 %v648, %v670
    %v688 = vmul.f32 %v649, %v670
    %v689 = vmul.f32 %v650, %v670
    %v690 = vmul.f32 %v651, %v670
    %v691 = vmul.f32 %v652, %v670
    %v692 = vmul.f32 %v653, %v670
    %v693 = vmul.f32 %v654, %v670
    %v694 = vmul.f32 %v655, %v670
    %v695 = vmul.f32 %v656, %v670
    %v696 = vmul.f32 %v657, %v670
    %v697 = vmul.f32 %v658, %v670
    %v698 = vmul.f32 %v659, %v670
    %v699 = vmul.f32 %v660, %v670
    %v700 = vmul.f32 %v661, %v670
    %v701 = vmul.f32 %v662, %v670
    %v702 = vmul.f32 %v663, %v670
    %v703 = vmul.f32 %v664, %v670
    %704 = vst [vmem:[%s3] sm:$0xff] %v672
    %705 = vst [vmem:[%s3 + $0x8] sm:$0xff] %v673
    %706 = vst [vmem:[%s3 + $0x10] sm:$0xff] %v674
    %707 = vst [vmem:[%s3 + $0x18] sm:$0xff] %v675
    %708 = vst [vmem:[%s3 + $0x20] sm:$0xff] %v676
    %709 = vst [vmem:[%s3 + $0x28] sm:$0xff] %v677
    %710 = vst [vmem:[%s3 + $0x30] sm:$0xff] %v678
    %711 = vst [vmem:[%s3 + $0x38] sm:$0xff] %v679
    %712 = vst [vmem:[%s3 + $0x40] sm:$0xff] %v680
    %713 = vst [vmem:[%s3 + $0x48] sm:$0xff] %v681
    %714 = vst [vmem:[%s3 + $0x50] sm:$0xff] %v682
    %715 = vst [vmem:[%s3 + $0x58] sm:$0xff] %v683
    %716 = vst [vmem:[%s3 + $0x60] sm:$0xff] %v684
    %717 = vst [vmem:[%s3 + $0x68] sm:$0xff] %v685
    %718 = vst [vmem:[%s3 + $0x70] sm:$0xff] %v686
    %719 = vst [vmem:[%s3 + $0x78] sm:$0xff] %v687
    %720 = vst [vmem:[%s3 + $0x80] sm:$0xff] %v688
    %721 = vst [vmem:[%s3 + $0x88] sm:$0xff] %v689
    %722 = vst [vmem:[%s3 + $0x90] sm:$0xff] %v690
    %723 = vst [vmem:[%s3 + $0x98] sm:$0xff] %v691
    %724 = vst [vmem:[%s3 + $0xa0] sm:$0xff] %v692
    %725 = vst [vmem:[%s3 + $0xa8] sm:$0xff] %v693
    %726 = vst [vmem:[%s3 + $0xb0] sm:$0xff] %v694
    %727 = vst [vmem:[%s3 + $0xb8] sm:$0xff] %v695
    %728 = vst [vmem:[%s3 + $0xc0] sm:$0xff] %v696
    %729 = vst [vmem:[%s3 + $0xc8] sm:$0xff] %v697
    %730 = vst [vmem:[%s3 + $0xd0] sm:$0xff] %v698
    %731 = vst [vmem:[%s3 + $0xd8] sm:$0xff] %v699
    %732 = vst [vmem:[%s3 + $0xe0] sm:$0xff] %v700
    %733 = vst [vmem:[%s3 + $0xe8] sm:$0xff] %v701
    %734 = vst [vmem:[%s3 + $0xf0] sm:$0xff] %v702
    %735 = vst [vmem:[%s3 + $0xf8] sm:$0xff] %v703
    %v736 = vadd.f32 %v672, %v673
    %v737 = vadd.f32 %v736, %v674
    %v738 = vadd.f32 %v737, %v675
    %v739 = vadd.f32 %v738, %v676
    %v740 = vadd.f32 %v739, %v677
    %v741 = vadd.f32 %v740, %v678
    %v742 = vadd.f32 %v741, %v679
    %v743 = vadd.f32 %v742, %v680
    %v744 = vadd.f32 %v743, %v681
    %v745 = vadd.f32 %v744, %v682
    %v746 = vadd.f32 %v745, %v683
    %v747 = vadd.f32 %v746, %v684
    %v748 = vadd.f32 %v747, %v685
    %v749 = vadd.f32 %v748, %v686
    %v750 = vadd.f32 %v749, %v687
    %v751 = vadd.f32 %v750, %v688
    %v752 = vadd.f32 %v751, %v689
    %v753 = vadd.f32 %v752, %v690
    %v754 = vadd.f32 %v753, %v691
    %v755 = vadd.f32 %v754, %v692
    %v756 = vadd.f32 %v755, %v693
    %v757 = vadd.f32 %v756, %v694
    %v758 = vadd.f32 %v757, %v695
    %v759 = vadd.f32 %v758, %v696
    %v760 = vadd.f32 %v759, %v697
    %v761 = vadd.f32 %v760, %v698
    %v762 = vadd.f32 %v761, %v699
    %v763 = vadd.f32 %v762, %v700
    %v764 = vadd.f32 %v763, %v701
    %v765 = vadd.f32 %v764, %v702
    %v766 = vadd.f32 %v765, %v703
    %v767 = vrot.slane %v766, 4
    %v768 = vadd.f32 %v766, %v767
    %v769 = vrot.slane %v768, 2
    %v770 = vadd.f32 %v768, %v769
    %v771 = vrot.slane %v770, 1
    %v772 = vadd.f32 %v770, %v771
    %v773 = vmul.f32 %v672, %v672
    %v774 = vmul.f32 %v673, %v673
    %v775 = vmul.f32 %v674, %v674
    %v776 = vmul.f32 %v675, %v675
    %v777 = vmul.f32 %v676, %v676
    %v778 = vmul.f32 %v677, %v677
    %v779 = vmul.f32 %v678, %v678
    %v780 = vmul.f32 %v679, %v679
    %v781 = vmul.f32 %v680, %v680
    %v782 = vmul.f32 %v681, %v681
    %v783 = vmul.f32 %v682, %v682
    %v784 = vmul.f32 %v683, %v683
    %v785 = vmul.f32 %v684, %v684
    %v786 = vmul.f32 %v685, %v685
    %v787 = vmul.f32 %v686, %v686
    %v788 = vmul.f32 %v687, %v687
    %v789 = vmul.f32 %v688, %v688
    %v790 = vmul.f32 %v689, %v689
    %v791 = vmul.f32 %v690, %v690
    %v792 = vmul.f32 %v691, %v691
    %v793 = vmul.f32 %v692, %v692
    %v794 = vmul.f32 %v693, %v693
    %v795 = vmul.f32 %v694, %v694
    %v796 = vmul.f32 %v695, %v695
    %v797 = vmul.f32 %v696, %v696
    %v798 = vmul.f32 %v697, %v697
    %v799 = vmul.f32 %v698, %v698
    %v800 = vmul.f32 %v699, %v699
    %v801 = vmul.f32 %v700, %v700
    %v802 = vmul.f32 %v701, %v701
    %v803 = vmul.f32 %v702, %v702
    %v804 = vmul.f32 %v703, %v703
    %v805 = vadd.f32 %v773, %v774
    %v806 = vadd.f32 %v805, %v775
    %v807 = vadd.f32 %v806, %v776
    %v808 = vadd.f32 %v807, %v777
    %v809 = vadd.f32 %v808, %v778
    %v810 = vadd.f32 %v809, %v779
    %v811 = vadd.f32 %v810, %v780
    %v812 = vadd.f32 %v811, %v781
    %v813 = vadd.f32 %v812, %v782
    %v814 = vadd.f32 %v813, %v783
    %v815 = vadd.f32 %v814, %v784
    %v816 = vadd.f32 %v815, %v785
    %v817 = vadd.f32 %v816, %v786
    %v818 = vadd.f32 %v817, %v787
    %v819 = vadd.f32 %v818, %v788
    %v820 = vadd.f32 %v819, %v789
    %v821 = vadd.f32 %v820, %v790
    %v822 = vadd.f32 %v821, %v791
    %v823 = vadd.f32 %v822, %v792
    %v824 = vadd.f32 %v823, %v793
    %v825 = vadd.f32 %v824, %v794
    %v826 = vadd.f32 %v825, %v795
    %v827 = vadd.f32 %v826, %v796
    %v828 = vadd.f32 %v827, %v797
    %v829 = vadd.f32 %v828, %v798
    %v830 = vadd.f32 %v829, %v799
    %v831 = vadd.f32 %v830, %v800
    %v832 = vadd.f32 %v831, %v801
    %v833 = vadd.f32 %v832, %v802
    %v834 = vadd.f32 %v833, %v803
    %v835 = vadd.f32 %v834, %v804
    %v836 = vrot.slane %v835, 4
    %v837 = vadd.f32 %v835, %v836
    %v838 = vrot.slane %v837, 2
    %v839 = vadd.f32 %v837, %v838
    %v840 = vrot.slane %v839, 1
    %v841 = vadd.f32 %v839, %v840
    %vm842 = vcmask 1040384
    %v843 = vsel %vm842, %v772, %v841
    %vm844 = vcmask 1041408
    %v845 = vsel %vm844, %v843, 0.0
    %846 = vst [vmem:[%s4] sm:$0xff] %v845
  $region21: #{resnet_forward.40} parent=0 // pred_fallthru
    _
  // Predicated region
  $region22: #{resnet_forward.40} parent=0 // pred_check
    _
  $region23: #{resnet_forward.40} parent=0 // pred_check_branch
    %848 = sbr.rel (0) target = $region25
  $region24: #{resnet_forward.40} parent=0 // pred_region
    _
  $region25: #{resnet_forward.40} parent=0 // pred_fallthru
    _
  // Predicated region
  $region26: #{resnet_forward.40} parent=0 // pred_check
    _
  $region27: #{resnet_forward.40} parent=0 // pred_check_branch
    %850 = sbr.rel (0) target = $region29
  $region28: #{resnet_forward.40} parent=0 // pred_region
    _
  $region29: #{resnet_forward.40} parent=0 // pred_fallthru
    _
  // Predicated region
  $region30: #{resnet_forward.40} parent=0 // pred_check
    _
  $region31: #{resnet_forward.40} parent=0 // pred_check_branch
    %852 = sbr.rel (0) target = $region33
  $region32: #{resnet_forward.40} parent=0 // pred_region
    _
  $region33: #{resnet_forward.40} parent=0 // pred_fallthru
    _
  // Predicated region
  $region34: #{resnet_forward.40} parent=0 // pred_check
    _
  $region35: #{resnet_forward.40} parent=0 // pred_check_branch
    %854 = sbr.rel (0) target = $region37
  $region36: #{resnet_forward.40} parent=0 // pred_region
    _
  $region37: #{resnet_forward.40} parent=0 // pred_fallthru
    _

// kernel: resnet_forward.43
$region0: #{resnet_forward.43}
  #allocation0 [shape = 'u32[]', space=smem, size = 0x4, offset = 0x4, fixed_abs, tag = 'smem constant byte address 0x4 - core index']
  #allocation1 [shape = 'u32[144,128]{1,0:T(1,128)}', space=vmem, size = 0x12000, scoped, tag = 'internal scratch']
  #allocation2 [shape = 'f32[256,128]{1,0:T(8,128)}', space=vmem, size = 0x20000, scoped, tag = 'scratch operand']
  %s0 = inlined_call_operand.vmem [shape: bf16[256,128], index: 0, kind: input, shape index: {}]
  %s1 = inlined_call_operand.vmem [shape: bf16[128,128], index: 1, kind: input, shape index: {}]
  %s2 = inlined_call_operand.vmem [shape: f32[1,128], index: 2, kind: input, shape index: {}]
  %s3 = inlined_call_operand.vmem [shape: f32[256,128], index: 3, kind: output, shape index: {0}]
  %s4 = inlined_call_operand.vmem [shape: f32[8,128], index: 4, kind: output, shape index: {1}]
  %5 = xla_tuple %s3, %s4
  %s6 = sld [smem:[#allocation0]]
  $region38: #{resnet_forward.43} parent=0
    _
  %s8 = ssub.s32 1, %s6
  %s9 = scalar_select 0, %s8, %s6
  // Predicated region
  $region2: #{resnet_forward.43} parent=0 // pred_check
    _
  $region3: #{resnet_forward.43} parent=0 // pred_check_branch
    %11 = sbr.rel (0) target = $region5
  $region4: #{resnet_forward.43} parent=0 // pred_region
    _
  $region5: #{resnet_forward.43} parent=0 // pred_fallthru
    _
  // Predicated region
  $region6: #{resnet_forward.43} parent=0 // pred_check
    _
  $region7: #{resnet_forward.43} parent=0 // pred_check_branch
    %13 = sbr.rel (0) target = $region9
  $region8: #{resnet_forward.43} parent=0 // pred_region
    _
  $region9: #{resnet_forward.43} parent=0 // pred_fallthru
    _
  // Predicated region
  $region10: #{resnet_forward.43} parent=0 // pred_check
    _
  $region11: #{resnet_forward.43} parent=0 // pred_check_branch
    %15 = sbr.rel (0) target = $region13
  $region12: #{resnet_forward.43} parent=0 // pred_region
    _
  $region13: #{resnet_forward.43} parent=0 // pred_fallthru
    _
  %p17 = scmp.eq.s32.totalorder 0, 0
  // Predicated region
  $region14: #{resnet_forward.43} parent=0 // pred_check
    %p18 = pneg %p17
  $region15: #{resnet_forward.43} parent=0 // pred_check_branch
    %20 = sbr.rel (%p18) target = $region17
  $region16: #{resnet_forward.43} parent=0 // pred_region
    %21 = vst [vmem:[#allocation2] sm:$0xff] 0.0
    %22 = vst [vmem:[#allocation2 + $0x8] sm:$0xff] 0.0
    %23 = vst [vmem:[#allocation2 + $0x10] sm:$0xff] 0.0
    %24 = vst [vmem:[#allocation2 + $0x18] sm:$0xff] 0.0
    %25 = vst [vmem:[#allocation2 + $0x20] sm:$0xff] 0.0
    %26 = vst [vmem:[#allocation2 + $0x28] sm:$0xff] 0.0
    %27 = vst [vmem:[#allocation2 + $0x30] sm:$0xff] 0.0
    %28 = vst [vmem:[#allocation2 + $0x38] sm:$0xff] 0.0
    %29 = vst [vmem:[#allocation2 + $0x40] sm:$0xff] 0.0
    %30 = vst [vmem:[#allocation2 + $0x48] sm:$0xff] 0.0
    %31 = vst [vmem:[#allocation2 + $0x50] sm:$0xff] 0.0
    %32 = vst [vmem:[#allocation2 + $0x58] sm:$0xff] 0.0
    %33 = vst [vmem:[#allocation2 + $0x60] sm:$0xff] 0.0
    %34 = vst [vmem:[#allocation2 + $0x68] sm:$0xff] 0.0
    %35 = vst [vmem:[#allocation2 + $0x70] sm:$0xff] 0.0
    %36 = vst [vmem:[#allocation2 + $0x78] sm:$0xff] 0.0
    %37 = vst [vmem:[#allocation2 + $0x80] sm:$0xff] 0.0
    %38 = vst [vmem:[#allocation2 + $0x88] sm:$0xff] 0.0
    %39 = vst [vmem:[#allocation2 + $0x90] sm:$0xff] 0.0
    %40 = vst [vmem:[#allocation2 + $0x98] sm:$0xff] 0.0
    %41 = vst [vmem:[#allocation2 + $0xa0] sm:$0xff] 0.0
    %42 = vst [vmem:[#allocation2 + $0xa8] sm:$0xff] 0.0
    %43 = vst [vmem:[#allocation2 + $0xb0] sm:$0xff] 0.0
    %44 = vst [vmem:[#allocation2 + $0xb8] sm:$0xff] 0.0
    %45 = vst [vmem:[#allocation2 + $0xc0] sm:$0xff] 0.0
    %46 = vst [vmem:[#allocation2 + $0xc8] sm:$0xff] 0.0
    %47 = vst [vmem:[#allocation2 + $0xd0] sm:$0xff] 0.0
    %48 = vst [vmem:[#allocation2 + $0xd8] sm:$0xff] 0.0
    %49 = vst [vmem:[#allocation2 + $0xe0] sm:$0xff] 0.0
    %50 = vst [vmem:[#allocation2 + $0xe8] sm:$0xff] 0.0
    %51 = vst [vmem:[#allocation2 + $0xf0] sm:$0xff] 0.0
    %52 = vst [vmem:[#allocation2 + $0xf8] sm:$0xff] 0.0
  $region17: #{resnet_forward.43} parent=0 // pred_fallthru
    _
  %v53 = vld [vmem:[#allocation2] sm:$0xff]
  %v54 = vld [vmem:[#allocation2 + $0x8] sm:$0xff]
  %v55 = vld [vmem:[#allocation2 + $0x10] sm:$0xff]
  %v56 = vld [vmem:[#allocation2 + $0x18] sm:$0xff]
  %v57 = vld [vmem:[#allocation2 + $0x20] sm:$0xff]
  %v58 = vld [vmem:[#allocation2 + $0x28] sm:$0xff]
  %v59 = vld [vmem:[#allocation2 + $0x30] sm:$0xff]
  %v60 = vld [vmem:[#allocation2 + $0x38] sm:$0xff]
  %v61 = vld [vmem:[#allocation2 + $0x40] sm:$0xff]
  %v62 = vld [vmem:[#allocation2 + $0x48] sm:$0xff]
  %v63 = vld [vmem:[#allocation2 + $0x50] sm:$0xff]
  %v64 = vld [vmem:[#allocation2 + $0x58] sm:$0xff]
  %v65 = vld [vmem:[#allocation2 + $0x60] sm:$0xff]
  %v66 = vld [vmem:[#allocation2 + $0x68] sm:$0xff]
  %v67 = vld [vmem:[#allocation2 + $0x70] sm:$0xff]
  %v68 = vld [vmem:[#allocation2 + $0x78] sm:$0xff]
  %v69 = vld [vmem:[#allocation2 + $0x80] sm:$0xff]
  %v70 = vld [vmem:[#allocation2 + $0x88] sm:$0xff]
  %v71 = vld [vmem:[#allocation2 + $0x90] sm:$0xff]
  %v72 = vld [vmem:[#allocation2 + $0x98] sm:$0xff]
  %v73 = vld [vmem:[#allocation2 + $0xa0] sm:$0xff]
  %v74 = vld [vmem:[#allocation2 + $0xa8] sm:$0xff]
  %v75 = vld [vmem:[#allocation2 + $0xb0] sm:$0xff]
  %v76 = vld [vmem:[#allocation2 + $0xb8] sm:$0xff]
  %v77 = vld [vmem:[#allocation2 + $0xc0] sm:$0xff]
  %v78 = vld [vmem:[#allocation2 + $0xc8] sm:$0xff]
  %v79 = vld [vmem:[#allocation2 + $0xd0] sm:$0xff]
  %v80 = vld [vmem:[#allocation2 + $0xd8] sm:$0xff]
  %v81 = vld [vmem:[#allocation2 + $0xe0] sm:$0xff]
  %v82 = vld [vmem:[#allocation2 + $0xe8] sm:$0xff]
  %v83 = vld [vmem:[#allocation2 + $0xf0] sm:$0xff]
  %v84 = vld [vmem:[#allocation2 + $0xf8] sm:$0xff]
  %v85 = vld [vmem:[%s0] sm:$0xf]
  %v86 = vld [vmem:[%s0 + $0x4] sm:$0xf]
  %v87 = vld [vmem:[%s0 + $0x8] sm:$0xf]
  %v88 = vld [vmem:[%s0 + $0xc] sm:$0xf]
  %v89 = vld [vmem:[%s0 + $0x10] sm:$0xf]
  %v90 = vld [vmem:[%s0 + $0x14] sm:$0xf]
  %v91 = vld [vmem:[%s0 + $0x18] sm:$0xf]
  %v92 = vld [vmem:[%s0 + $0x1c] sm:$0xf]
  %v93 = vld [vmem:[%s0 + $0x20] sm:$0xf]
  %v94 = vld [vmem:[%s0 + $0x24] sm:$0xf]
  %v95 = vld [vmem:[%s0 + $0x28] sm:$0xf]
  %v96 = vld [vmem:[%s0 + $0x2c] sm:$0xf]
  %v97 = vld [vmem:[%s0 + $0x30] sm:$0xf]
  %v98 = vld [vmem:[%s0 + $0x34] sm:$0xf]
  %v99 = vld [vmem:[%s0 + $0x38] sm:$0xf]
  %v100 = vld [vmem:[%s0 + $0x3c] sm:$0xf]
  %v101 = vld [vmem:[%s0 + $0x40] sm:$0xf]
  %v102 = vld [vmem:[%s0 + $0x44] sm:$0xf]
  %v103 = vld [vmem:[%s0 + $0x48] sm:$0xf]
  %v104 = vld [vmem:[%s0 + $0x4c] sm:$0xf]
  %v105 = vld [vmem:[%s0 + $0x50] sm:$0xf]
  %v106 = vld [vmem:[%s0 + $0x54] sm:$0xf]
  %v107 = vld [vmem:[%s0 + $0x58] sm:$0xf]
  %v108 = vld [vmem:[%s0 + $0x5c] sm:$0xf]
  %v109 = vld [vmem:[%s0 + $0x60] sm:$0xf]
  %v110 = vld [vmem:[%s0 + $0x64] sm:$0xf]
  %v111 = vld [vmem:[%s0 + $0x68] sm:$0xf]
  %v112 = vld [vmem:[%s0 + $0x6c] sm:$0xf]
  %v113 = vld [vmem:[%s0 + $0x70] sm:$0xf]
  %v114 = vld [vmem:[%s0 + $0x74] sm:$0xf]
  %v115 = vld [vmem:[%s0 + $0x78] sm:$0xf]
  %v116 = vld [vmem:[%s0 + $0x7c] sm:$0xf]
  %v117 = vld [vmem:[%s1] sm:$0xf]
  %v118 = vld [vmem:[%s1 + $0x4] sm:$0xf]
  %v119 = vld [vmem:[%s1 + $0x8] sm:$0xf]
  %v120 = vld [vmem:[%s1 + $0xc] sm:$0xf]
  %v121 = vld [vmem:[%s1 + $0x10] sm:$0xf]
  %v122 = vld [vmem:[%s1 + $0x14] sm:$0xf]
  %v123 = vld [vmem:[%s1 + $0x18] sm:$0xf]
  %v124 = vld [vmem:[%s1 + $0x1c] sm:$0xf]
  %v125 = vld [vmem:[%s1 + $0x20] sm:$0xf]
  %v126 = vld [vmem:[%s1 + $0x24] sm:$0xf]
  %v127 = vld [vmem:[%s1 + $0x28] sm:$0xf]
  %v128 = vld [vmem:[%s1 + $0x2c] sm:$0xf]
  %v129 = vld [vmem:[%s1 + $0x30] sm:$0xf]
  %v130 = vld [vmem:[%s1 + $0x34] sm:$0xf]
  %v131 = vld [vmem:[%s1 + $0x38] sm:$0xf]
  %v132 = vld [vmem:[%s1 + $0x3c] sm:$0xf]
  %v165 = vunpack.c.l.b16 %v85
  %v166 = vunpack.c.l.b16 %v86
  %v167 = vunpack.c.l.b16 %v87
  %v168 = vunpack.c.l.b16 %v88
  %v169 = vunpack.c.l.b16 %v89
  %v170 = vunpack.c.l.b16 %v90
  %v171 = vunpack.c.l.b16 %v91
  %v172 = vunpack.c.l.b16 %v92
  %v173 = vunpack.c.l.b16 %v93
  %v174 = vunpack.c.l.b16 %v94
  %v175 = vunpack.c.l.b16 %v95
  %v176 = vunpack.c.l.b16 %v96
  %v177 = vunpack.c.l.b16 %v97
  %v178 = vunpack.c.l.b16 %v98
  %v179 = vunpack.c.l.b16 %v99
  %v180 = vunpack.c.l.b16 %v100
  %v181 = vunpack.c.l.b16 %v101
  %v182 = vunpack.c.l.b16 %v102
  %v183 = vunpack.c.l.b16 %v103
  %v184 = vunpack.c.l.b16 %v104
  %v185 = vunpack.c.l.b16 %v105
  %v186 = vunpack.c.l.b16 %v106
  %v187 = vunpack.c.l.b16 %v107
  %v188 = vunpack.c.l.b16 %v108
  %v189 = vunpack.c.l.b16 %v109
  %v190 = vunpack.c.l.b16 %v110
  %v191 = vunpack.c.l.b16 %v111
  %v192 = vunpack.c.l.b16 %v112
  %v193 = vunpack.c.l.b16 %v113
  %v194 = vunpack.c.l.b16 %v114
  %v195 = vunpack.c.l.b16 %v115
  %v196 = vunpack.c.l.b16 %v116
  %v197 = vpack.c.b16 %v166, %v165
  %v198 = vpack.c.b16 %v168, %v167
  %v199 = vpack.c.b16 %v170, %v169
  %v200 = vpack.c.b16 %v172, %v171
  %v201 = vpack.c.b16 %v174, %v173
  %v202 = vpack.c.b16 %v176, %v175
  %v203 = vpack.c.b16 %v178, %v177
  %v204 = vpack.c.b16 %v180, %v179
  %v205 = vpack.c.b16 %v182, %v181
  %v206 = vpack.c.b16 %v184, %v183
  %v207 = vpack.c.b16 %v186, %v185
  %v208 = vpack.c.b16 %v188, %v187
  %v209 = vpack.c.b16 %v190, %v189
  %v210 = vpack.c.b16 %v192, %v191
  %v211 = vpack.c.b16 %v194, %v193
  %v212 = vpack.c.b16 %v196, %v195
  %v245 = vunpack.c.l.b16 %v117
  %v246 = vunpack.c.l.b16 %v118
  %v247 = vunpack.c.l.b16 %v119
  %v248 = vunpack.c.l.b16 %v120
  %v249 = vunpack.c.l.b16 %v121
  %v250 = vunpack.c.l.b16 %v122
  %v251 = vunpack.c.l.b16 %v123
  %v252 = vunpack.c.l.b16 %v124
  %v253 = vunpack.c.l.b16 %v125
  %v254 = vunpack.c.l.b16 %v126
  %v255 = vunpack.c.l.b16 %v127
  %v256 = vunpack.c.l.b16 %v128
  %v257 = vunpack.c.l.b16 %v129
  %v258 = vunpack.c.l.b16 %v130
  %v259 = vunpack.c.l.b16 %v131
  %v260 = vunpack.c.l.b16 %v132
  %v261 = vpack.c.b16 %v246, %v245
  %v262 = vpack.c.b16 %v248, %v247
  %v263 = vpack.c.b16 %v250, %v249
  %v264 = vpack.c.b16 %v252, %v251
  %v265 = vpack.c.b16 %v254, %v253
  %v266 = vpack.c.b16 %v256, %v255
  %v267 = vpack.c.b16 %v258, %v257
  %v268 = vpack.c.b16 %v260, %v259
  %277 = vmatprep.subr.bf16.mxu0 0
  %278 = vmatpush1.bf16.msra.mxu0 %v268
  %279 = vmatprep.subr.bf16.mxu0 0
  %280 = vmatpush1.bf16.msra.mxu0 %v267
  %281 = vmatprep.subr.bf16.mxu0 0
  %282 = vmatpush1.bf16.msra.mxu0 %v266
  %283 = vmatprep.subr.bf16.mxu0 0
  %284 = vmatpush1.bf16.msra.mxu0 %v265
  %285 = vmatprep.subr.bf16.mxu0 0
  %286 = vmatpush1.bf16.msra.mxu0 %v264
  %287 = vmatprep.subr.bf16.mxu0 0
  %288 = vmatpush1.bf16.msra.mxu0 %v263
  %289 = vmatprep.subr.bf16.mxu0 0
  %290 = vmatpush1.bf16.msra.mxu0 %v262
  %291 = vmatprep.subr.bf16.mxu0 0
  %292 = vmatpush1.bf16.msra.mxu0 %v261
  %293 = vmatprep.subr.bf16.mxu0 0
  %294 = vmatpush2.bf16.msra.mxu0 0
  %295 = vmatprep.subr.bf16.mxu0 0
  %296 = vmatpush2.bf16.msra.mxu0 0
  %297 = vmatprep.subr.bf16.mxu0 0
  %298 = vmatpush2.bf16.msra.mxu0 0
  %299 = vmatprep.subr.bf16.mxu0 0
  %300 = vmatpush2.bf16.msra.mxu0 0
  %301 = vmatprep.subr.bf16.mxu0 0
  %302 = vmatpush2.bf16.msra.mxu0 0
  %303 = vmatprep.subr.bf16.mxu0 0
  %304 = vmatpush2.bf16.msra.mxu0 0
  %305 = vmatprep.subr.bf16.mxu0 0
  %306 = vmatpush2.bf16.msra.mxu0 0
  %307 = vmatprep.subr.bf16.mxu0 0
  %308 = vmatpush2.bf16.msra.mxu0 0
  %309 = vmatprep.mubr.bf16.mxu0 0
  %310 = vmatmul.mubr.bf16.gmra.mxu0 %v197
  %v311 = vpop.f32.mrf.mxu0
  %v312 = vadd.f32 0.0, %v311
  %v313 = vpop.f32.mrf.mxu0
  %v314 = vpop.f32.mrf.mxu0
  %v315 = vadd.f32 0.0, %v314
  %v316 = vpop.f32.mrf.mxu0
  %317 = vmatprep.mubr.bf16.mxu0 0
  %318 = vmatmul.mubr.bf16.gmra.mxu0 %v198
  %v319 = vpop.f32.mrf.mxu0
  %v320 = vadd.f32 0.0, %v319
  %v321 = vpop.f32.mrf.mxu0
  %v322 = vpop.f32.mrf.mxu0
  %v323 = vadd.f32 0.0, %v322
  %v324 = vpop.f32.mrf.mxu0
  %325 = vmatprep.mubr.bf16.mxu0 0
  %326 = vmatmul.mubr.bf16.gmra.mxu0 %v199
  %v327 = vpop.f32.mrf.mxu0
  %v328 = vadd.f32 0.0, %v327
  %v329 = vpop.f32.mrf.mxu0
  %v330 = vpop.f32.mrf.mxu0
  %v331 = vadd.f32 0.0, %v330
  %v332 = vpop.f32.mrf.mxu0
  %333 = vmatprep.mubr.bf16.mxu0 0
  %334 = vmatmul.mubr.bf16.gmra.mxu0 %v200
  %v335 = vpop.f32.mrf.mxu0
  %v336 = vadd.f32 0.0, %v335
  %v337 = vpop.f32.mrf.mxu0
  %v338 = vpop.f32.mrf.mxu0
  %v339 = vadd.f32 0.0, %v338
  %v340 = vpop.f32.mrf.mxu0
  %341 = vmatprep.mubr.bf16.mxu0 0
  %342 = vmatmul.mubr.bf16.gmra.mxu0 %v201
  %v343 = vpop.f32.mrf.mxu0
  %v344 = vadd.f32 0.0, %v343
  %v345 = vpop.f32.mrf.mxu0
  %v346 = vpop.f32.mrf.mxu0
  %v347 = vadd.f32 0.0, %v346
  %v348 = vpop.f32.mrf.mxu0
  %349 = vmatprep.mubr.bf16.mxu0 0
  %350 = vmatmul.mubr.bf16.gmra.mxu0 %v202
  %v351 = vpop.f32.mrf.mxu0
  %v352 = vadd.f32 0.0, %v351
  %v353 = vpop.f32.mrf.mxu0
  %v354 = vpop.f32.mrf.mxu0
  %v355 = vadd.f32 0.0, %v354
  %v356 = vpop.f32.mrf.mxu0
  %357 = vmatprep.mubr.bf16.mxu0 0
  %358 = vmatmul.mubr.bf16.gmra.mxu0 %v203
  %v359 = vpop.f32.mrf.mxu0
  %v360 = vadd.f32 0.0, %v359
  %v361 = vpop.f32.mrf.mxu0
  %v362 = vpop.f32.mrf.mxu0
  %v363 = vadd.f32 0.0, %v362
  %v364 = vpop.f32.mrf.mxu0
  %365 = vmatprep.mubr.bf16.mxu0 0
  %366 = vmatmul.mubr.bf16.gmra.mxu0 %v204
  %v367 = vpop.f32.mrf.mxu0
  %v368 = vadd.f32 0.0, %v367
  %v369 = vpop.f32.mrf.mxu0
  %v370 = vpop.f32.mrf.mxu0
  %v371 = vadd.f32 0.0, %v370
  %v372 = vpop.f32.mrf.mxu0
  %373 = vmatprep.mubr.bf16.mxu0 0
  %374 = vmatmul.mubr.bf16.gmra.mxu0 %v205
  %v375 = vpop.f32.mrf.mxu0
  %v376 = vadd.f32 0.0, %v375
  %v377 = vpop.f32.mrf.mxu0
  %v378 = vpop.f32.mrf.mxu0
  %v379 = vadd.f32 0.0, %v378
  %v380 = vpop.f32.mrf.mxu0
  %381 = vmatprep.mubr.bf16.mxu0 0
  %382 = vmatmul.mubr.bf16.gmra.mxu0 %v206
  %v383 = vpop.f32.mrf.mxu0
  %v384 = vadd.f32 0.0, %v383
  %v385 = vpop.f32.mrf.mxu0
  %v386 = vpop.f32.mrf.mxu0
  %v387 = vadd.f32 0.0, %v386
  %v388 = vpop.f32.mrf.mxu0
  %389 = vmatprep.mubr.bf16.mxu0 0
  %390 = vmatmul.mubr.bf16.gmra.mxu0 %v207
  %v391 = vpop.f32.mrf.mxu0
  %v392 = vadd.f32 0.0, %v391
  %v393 = vpop.f32.mrf.mxu0
  %v394 = vpop.f32.mrf.mxu0
  %v395 = vadd.f32 0.0, %v394
  %v396 = vpop.f32.mrf.mxu0
  %397 = vmatprep.mubr.bf16.mxu0 0
  %398 = vmatmul.mubr.bf16.gmra.mxu0 %v208
  %v399 = vpop.f32.mrf.mxu0
  %v400 = vadd.f32 0.0, %v399
  %v401 = vpop.f32.mrf.mxu0
  %v402 = vpop.f32.mrf.mxu0
  %v403 = vadd.f32 0.0, %v402
  %v404 = vpop.f32.mrf.mxu0
  %405 = vmatprep.mubr.bf16.mxu0 0
  %406 = vmatmul.mubr.bf16.gmra.mxu0 %v209
  %v407 = vpop.f32.mrf.mxu0
  %v408 = vadd.f32 0.0, %v407
  %v409 = vpop.f32.mrf.mxu0
  %v410 = vpop.f32.mrf.mxu0
  %v411 = vadd.f32 0.0, %v410
  %v412 = vpop.f32.mrf.mxu0
  %413 = vmatprep.mubr.bf16.mxu0 0
  %414 = vmatmul.mubr.bf16.gmra.mxu0 %v210
  %v415 = vpop.f32.mrf.mxu0
  %v416 = vadd.f32 0.0, %v415
  %v417 = vpop.f32.mrf.mxu0
  %v418 = vpop.f32.mrf.mxu0
  %v419 = vadd.f32 0.0, %v418
  %v420 = vpop.f32.mrf.mxu0
  %421 = vmatprep.mubr.bf16.mxu0 0
  %422 = vmatmul.mubr.bf16.gmra.mxu0 %v211
  %v423 = vpop.f32.mrf.mxu0
  %v424 = vadd.f32 0.0, %v423
  %v425 = vpop.f32.mrf.mxu0
  %v426 = vpop.f32.mrf.mxu0
  %v427 = vadd.f32 0.0, %v426
  %v428 = vpop.f32.mrf.mxu0
  %429 = vmatprep.mubr.bf16.mxu0 0
  %430 = vmatmul.mubr.bf16.gmra.mxu0 %v212
  %v431 = vpop.f32.mrf.mxu0
  %v432 = vadd.f32 0.0, %v431
  %v433 = vpop.f32.mrf.mxu0
  %v434 = vpop.f32.mrf.mxu0
  %v435 = vadd.f32 0.0, %v434
  %v436 = vpop.f32.mrf.mxu0
  %437 = vdwg.mxu0
  %v438 = vadd.f32 %v53, %v312
  %v439 = vadd.f32 %v54, %v315
  %v440 = vadd.f32 %v55, %v320
  %v441 = vadd.f32 %v56, %v323
  %v442 = vadd.f32 %v57, %v328
  %v443 = vadd.f32 %v58, %v331
  %v444 = vadd.f32 %v59, %v336
  %v445 = vadd.f32 %v60, %v339
  %v446 = vadd.f32 %v61, %v344
  %v447 = vadd.f32 %v62, %v347
  %v448 = vadd.f32 %v63, %v352
  %v449 = vadd.f32 %v64, %v355
  %v450 = vadd.f32 %v65, %v360
  %v451 = vadd.f32 %v66, %v363
  %v452 = vadd.f32 %v67, %v368
  %v453 = vadd.f32 %v68, %v371
  %v454 = vadd.f32 %v69, %v376
  %v455 = vadd.f32 %v70, %v379
  %v456 = vadd.f32 %v71, %v384
  %v457 = vadd.f32 %v72, %v387
  %v458 = vadd.f32 %v73, %v392
  %v459 = vadd.f32 %v74, %v395
  %v460 = vadd.f32 %v75, %v400
  %v461 = vadd.f32 %v76, %v403
  %v462 = vadd.f32 %v77, %v408
  %v463 = vadd.f32 %v78, %v411
  %v464 = vadd.f32 %v79, %v416
  %v465 = vadd.f32 %v80, %v419
  %v466 = vadd.f32 %v81, %v424
  %v467 = vadd.f32 %v82, %v427
  %v468 = vadd.f32 %v83, %v432
  %v469 = vadd.f32 %v84, %v435
  %470 = vst [vmem:[#allocation2] sm:$0xff] %v438
  %471 = vst [vmem:[#allocation2 + $0x8] sm:$0xff] %v439
  %472 = vst [vmem:[#allocation2 + $0x10] sm:$0xff] %v440
  %473 = vst [vmem:[#allocation2 + $0x18] sm:$0xff] %v441
  %474 = vst [vmem:[#allocation2 + $0x20] sm:$0xff] %v442
  %475 = vst [vmem:[#allocation2 + $0x28] sm:$0xff] %v443
  %476 = vst [vmem:[#allocation2 + $0x30] sm:$0xff] %v444
  %477 = vst [vmem:[#allocation2 + $0x38] sm:$0xff] %v445
  %478 = vst [vmem:[#allocation2 + $0x40] sm:$0xff] %v446
  %479 = vst [vmem:[#allocation2 + $0x48] sm:$0xff] %v447
  %480 = vst [vmem:[#allocation2 + $0x50] sm:$0xff] %v448
  %481 = vst [vmem:[#allocation2 + $0x58] sm:$0xff] %v449
  %482 = vst [vmem:[#allocation2 + $0x60] sm:$0xff] %v450
  %483 = vst [vmem:[#allocation2 + $0x68] sm:$0xff] %v451
  %484 = vst [vmem:[#allocation2 + $0x70] sm:$0xff] %v452
  %485 = vst [vmem:[#allocation2 + $0x78] sm:$0xff] %v453
  %486 = vst [vmem:[#allocation2 + $0x80] sm:$0xff] %v454
  %487 = vst [vmem:[#allocation2 + $0x88] sm:$0xff] %v455
  %488 = vst [vmem:[#allocation2 + $0x90] sm:$0xff] %v456
  %489 = vst [vmem:[#allocation2 + $0x98] sm:$0xff] %v457
  %490 = vst [vmem:[#allocation2 + $0xa0] sm:$0xff] %v458
  %491 = vst [vmem:[#allocation2 + $0xa8] sm:$0xff] %v459
  %492 = vst [vmem:[#allocation2 + $0xb0] sm:$0xff] %v460
  %493 = vst [vmem:[#allocation2 + $0xb8] sm:$0xff] %v461
  %494 = vst [vmem:[#allocation2 + $0xc0] sm:$0xff] %v462
  %495 = vst [vmem:[#allocation2 + $0xc8] sm:$0xff] %v463
  %496 = vst [vmem:[#allocation2 + $0xd0] sm:$0xff] %v464
  %497 = vst [vmem:[#allocation2 + $0xd8] sm:$0xff] %v465
  %498 = vst [vmem:[#allocation2 + $0xe0] sm:$0xff] %v466
  %499 = vst [vmem:[#allocation2 + $0xe8] sm:$0xff] %v467
  %500 = vst [vmem:[#allocation2 + $0xf0] sm:$0xff] %v468
  %501 = vst [vmem:[#allocation2 + $0xf8] sm:$0xff] %v469
  // Predicated region
  $region18: #{resnet_forward.43} parent=0 // pred_check
    %p502 = pneg %p17
  $region19: #{resnet_forward.43} parent=0 // pred_check_branch
    %504 = sbr.rel (%p502) target = $region21
  $region20: #{resnet_forward.43} parent=0 // pred_region
    %v505 = vld [vmem:[#allocation2] sm:$0xff]
    %v506 = vld [vmem:[#allocation2 + $0x8] sm:$0xff]
    %v507 = vld [vmem:[#allocation2 + $0x10] sm:$0xff]
    %v508 = vld [vmem:[#allocation2 + $0x18] sm:$0xff]
    %v509 = vld [vmem:[#allocation2 + $0x20] sm:$0xff]
    %v510 = vld [vmem:[#allocation2 + $0x28] sm:$0xff]
    %v511 = vld [vmem:[#allocation2 + $0x30] sm:$0xff]
    %v512 = vld [vmem:[#allocation2 + $0x38] sm:$0xff]
    %v513 = vld [vmem:[#allocation2 + $0x40] sm:$0xff]
    %v514 = vld [vmem:[#allocation2 + $0x48] sm:$0xff]
    %v515 = vld [vmem:[#allocation2 + $0x50] sm:$0xff]
    %v516 = vld [vmem:[#allocation2 + $0x58] sm:$0xff]
    %v517 = vld [vmem:[#allocation2 + $0x60] sm:$0xff]
    %v518 = vld [vmem:[#allocation2 + $0x68] sm:$0xff]
    %v519 = vld [vmem:[#allocation2 + $0x70] sm:$0xff]
    %v520 = vld [vmem:[#allocation2 + $0x78] sm:$0xff]
    %v521 = vld [vmem:[#allocation2 + $0x80] sm:$0xff]
    %v522 = vld [vmem:[#allocation2 + $0x88] sm:$0xff]
    %v523 = vld [vmem:[#allocation2 + $0x90] sm:$0xff]
    %v524 = vld [vmem:[#allocation2 + $0x98] sm:$0xff]
    %v525 = vld [vmem:[#allocation2 + $0xa0] sm:$0xff]
    %v526 = vld [vmem:[#allocation2 + $0xa8] sm:$0xff]
    %v527 = vld [vmem:[#allocation2 + $0xb0] sm:$0xff]
    %v528 = vld [vmem:[#allocation2 + $0xb8] sm:$0xff]
    %v529 = vld [vmem:[#allocation2 + $0xc0] sm:$0xff]
    %v530 = vld [vmem:[#allocation2 + $0xc8] sm:$0xff]
    %v531 = vld [vmem:[#allocation2 + $0xd0] sm:$0xff]
    %v532 = vld [vmem:[#allocation2 + $0xd8] sm:$0xff]
    %v533 = vld [vmem:[#allocation2 + $0xe0] sm:$0xff]
    %v534 = vld [vmem:[#allocation2 + $0xe8] sm:$0xff]
    %v535 = vld [vmem:[#allocation2 + $0xf0] sm:$0xff]
    %v536 = vld [vmem:[#allocation2 + $0xf8] sm:$0xff]
    %v537 = vld [vmem:[%s2] sm:$0x1]
    %v539 = vlaneseq
    %v540 = vshrl.u32 %v539, 7
    %v541 = vsub.s32 0, %v540
    %v542 = vrot.slane %v537, %v541
    %v544 = vmul.f32 %v505, %v542
    %v545 = vmul.f32 %v506, %v542
    %v546 = vmul.f32 %v507, %v542
    %v547 = vmul.f32 %v508, %v542
    %v548 = vmul.f32 %v509, %v542
    %v549 = vmul.f32 %v510, %v542
    %v550 = vmul.f32 %v511, %v542
    %v551 = vmul.f32 %v512, %v542
    %v552 = vmul.f32 %v513, %v542
    %v553 = vmul.f32 %v514, %v542
    %v554 = vmul.f32 %v515, %v542
    %v555 = vmul.f32 %v516, %v542
    %v556 = vmul.f32 %v517, %v542
    %v557 = vmul.f32 %v518, %v542
    %v558 = vmul.f32 %v519, %v542
    %v559 = vmul.f32 %v520, %v542
    %v560 = vmul.f32 %v521, %v542
    %v561 = vmul.f32 %v522, %v542
    %v562 = vmul.f32 %v523, %v542
    %v563 = vmul.f32 %v524, %v542
    %v564 = vmul.f32 %v525, %v542
    %v565 = vmul.f32 %v526, %v542
    %v566 = vmul.f32 %v527, %v542
    %v567 = vmul.f32 %v528, %v542
    %v568 = vmul.f32 %v529, %v542
    %v569 = vmul.f32 %v530, %v542
    %v570 = vmul.f32 %v531, %v542
    %v571 = vmul.f32 %v532, %v542
    %v572 = vmul.f32 %v533, %v542
    %v573 = vmul.f32 %v534, %v542
    %v574 = vmul.f32 %v535, %v542
    %v575 = vmul.f32 %v536, %v542
    %576 = vst [vmem:[%s3] sm:$0xff] %v544
    %577 = vst [vmem:[%s3 + $0x8] sm:$0xff] %v545
    %578 = vst [vmem:[%s3 + $0x10] sm:$0xff] %v546
    %579 = vst [vmem:[%s3 + $0x18] sm:$0xff] %v547
    %580 = vst [vmem:[%s3 + $0x20] sm:$0xff] %v548
    %581 = vst [vmem:[%s3 + $0x28] sm:$0xff] %v549
    %582 = vst [vmem:[%s3 + $0x30] sm:$0xff] %v550
    %583 = vst [vmem:[%s3 + $0x38] sm:$0xff] %v551
    %584 = vst [vmem:[%s3 + $0x40] sm:$0xff] %v552
    %585 = vst [vmem:[%s3 + $0x48] sm:$0xff] %v553
    %586 = vst [vmem:[%s3 + $0x50] sm:$0xff] %v554
    %587 = vst [vmem:[%s3 + $0x58] sm:$0xff] %v555
    %588 = vst [vmem:[%s3 + $0x60] sm:$0xff] %v556
    %589 = vst [vmem:[%s3 + $0x68] sm:$0xff] %v557
    %590 = vst [vmem:[%s3 + $0x70] sm:$0xff] %v558
    %591 = vst [vmem:[%s3 + $0x78] sm:$0xff] %v559
    %592 = vst [vmem:[%s3 + $0x80] sm:$0xff] %v560
    %593 = vst [vmem:[%s3 + $0x88] sm:$0xff] %v561
    %594 = vst [vmem:[%s3 + $0x90] sm:$0xff] %v562
    %595 = vst [vmem:[%s3 + $0x98] sm:$0xff] %v563
    %596 = vst [vmem:[%s3 + $0xa0] sm:$0xff] %v564
    %597 = vst [vmem:[%s3 + $0xa8] sm:$0xff] %v565
    %598 = vst [vmem:[%s3 + $0xb0] sm:$0xff] %v566
    %599 = vst [vmem:[%s3 + $0xb8] sm:$0xff] %v567
    %600 = vst [vmem:[%s3 + $0xc0] sm:$0xff] %v568
    %601 = vst [vmem:[%s3 + $0xc8] sm:$0xff] %v569
    %602 = vst [vmem:[%s3 + $0xd0] sm:$0xff] %v570
    %603 = vst [vmem:[%s3 + $0xd8] sm:$0xff] %v571
    %604 = vst [vmem:[%s3 + $0xe0] sm:$0xff] %v572
    %605 = vst [vmem:[%s3 + $0xe8] sm:$0xff] %v573
    %606 = vst [vmem:[%s3 + $0xf0] sm:$0xff] %v574
    %607 = vst [vmem:[%s3 + $0xf8] sm:$0xff] %v575
    %v608 = vadd.f32 %v544, %v545
    %v609 = vadd.f32 %v608, %v546
    %v610 = vadd.f32 %v609, %v547
    %v611 = vadd.f32 %v610, %v548
    %v612 = vadd.f32 %v611, %v549
    %v613 = vadd.f32 %v612, %v550
    %v614 = vadd.f32 %v613, %v551
    %v615 = vadd.f32 %v614, %v552
    %v616 = vadd.f32 %v615, %v553
    %v617 = vadd.f32 %v616, %v554
    %v618 = vadd.f32 %v617, %v555
    %v619 = vadd.f32 %v618, %v556
    %v620 = vadd.f32 %v619, %v557
    %v621 = vadd.f32 %v620, %v558
    %v622 = vadd.f32 %v621, %v559
    %v623 = vadd.f32 %v622, %v560
    %v624 = vadd.f32 %v623, %v561
    %v625 = vadd.f32 %v624, %v562
    %v626 = vadd.f32 %v625, %v563
    %v627 = vadd.f32 %v626, %v564
    %v628 = vadd.f32 %v627, %v565
    %v629 = vadd.f32 %v628, %v566
    %v630 = vadd.f32 %v629, %v567
    %v631 = vadd.f32 %v630, %v568
    %v632 = vadd.f32 %v631, %v569
    %v633 = vadd.f32 %v632, %v570
    %v634 = vadd.f32 %v633, %v571
    %v635 = vadd.f32 %v634, %v572
    %v636 = vadd.f32 %v635, %v573
    %v637 = vadd.f32 %v636, %v574
    %v638 = vadd.f32 %v637, %v575
    %v639 = vrot.slane %v638, 4
    %v640 = vadd.f32 %v638, %v639
    %v641 = vrot.slane %v640, 2
    %v642 = vadd.f32 %v640, %v641
    %v643 = vrot.slane %v642, 1
    %v644 = vadd.f32 %v642, %v643
    %v645 = vmul.f32 %v544, %v544
    %v646 = vmul.f32 %v545, %v545
    %v647 = vmul.f32 %v546, %v546
    %v648 = vmul.f32 %v547, %v547
    %v649 = vmul.f32 %v548, %v548
    %v650 = vmul.f32 %v549, %v549
    %v651 = vmul.f32 %v550, %v550
    %v652 = vmul.f32 %v551, %v551
    %v653 = vmul.f32 %v552, %v552
    %v654 = vmul.f32 %v553, %v553
    %v655 = vmul.f32 %v554, %v554
    %v656 = vmul.f32 %v555, %v555
    %v657 = vmul.f32 %v556, %v556
    %v658 = vmul.f32 %v557, %v557
    %v659 = vmul.f32 %v558, %v558
    %v660 = vmul.f32 %v559, %v559
    %v661 = vmul.f32 %v560, %v560
    %v662 = vmul.f32 %v561, %v561
    %v663 = vmul.f32 %v562, %v562
    %v664 = vmul.f32 %v563, %v563
    %v665 = vmul.f32 %v564, %v564
    %v666 = vmul.f32 %v565, %v565
    %v667 = vmul.f32 %v566, %v566
    %v668 = vmul.f32 %v567, %v567
    %v669 = vmul.f32 %v568, %v568
    %v670 = vmul.f32 %v569, %v569
    %v671 = vmul.f32 %v570, %v570
    %v672 = vmul.f32 %v571, %v571
    %v673 = vmul.f32 %v572, %v572
    %v674 = vmul.f32 %v573, %v573
    %v675 = vmul.f32 %v574, %v574
    %v676 = vmul.f32 %v575, %v575
    %v677 = vadd.f32 %v645, %v646
    %v678 = vadd.f32 %v677, %v647
    %v679 = vadd.f32 %v678, %v648
    %v680 = vadd.f32 %v679, %v649
    %v681 = vadd.f32 %v680, %v650
    %v682 = vadd.f32 %v681, %v651
    %v683 = vadd.f32 %v682, %v652
    %v684 = vadd.f32 %v683, %v653
    %v685 = vadd.f32 %v684, %v654
    %v686 = vadd.f32 %v685, %v655
    %v687 = vadd.f32 %v686, %v656
    %v688 = vadd.f32 %v687, %v657
    %v689 = vadd.f32 %v688, %v658
    %v690 = vadd.f32 %v689, %v659
    %v691 = vadd.f32 %v690, %v660
    %v692 = vadd.f32 %v691, %v661
    %v693 = vadd.f32 %v692, %v662
    %v694 = vadd.f32 %v693, %v663
    %v695 = vadd.f32 %v694, %v664
    %v696 = vadd.f32 %v695, %v665
    %v697 = vadd.f32 %v696, %v666
    %v698 = vadd.f32 %v697, %v667
    %v699 = vadd.f32 %v698, %v668
    %v700 = vadd.f32 %v699, %v669
    %v701 = vadd.f32 %v700, %v670
    %v702 = vadd.f32 %v701, %v671
    %v703 = vadd.f32 %v702, %v672
    %v704 = vadd.f32 %v703, %v673
    %v705 = vadd.f32 %v704, %v674
    %v706 = vadd.f32 %v705, %v675
    %v707 = vadd.f32 %v706, %v676
    %v708 = vrot.slane %v707, 4
    %v709 = vadd.f32 %v707, %v708
    %v710 = vrot.slane %v709, 2
    %v711 = vadd.f32 %v709, %v710
    %v712 = vrot.slane %v711, 1
    %v713 = vadd.f32 %v711, %v712
    %vm714 = vcmask 1040384
    %v715 = vsel %vm714, %v644, %v713
    %vm716 = vcmask 1041408
    %v717 = vsel %vm716, %v715, 0.0
    %718 = vst [vmem:[%s4] sm:$0xff] %v717
  $region21: #{resnet_forward.43} parent=0 // pred_fallthru
    _
  // Predicated region
  $region22: #{resnet_forward.43} parent=0 // pred_check
    _
  $region23: #{resnet_forward.43} parent=0 // pred_check_branch
    %720 = sbr.rel (0) target = $region25
  $region24: #{resnet_forward.43} parent=0 // pred_region
    _
  $region25: #{resnet_forward.43} parent=0 // pred_fallthru
    _
  // Predicated region
  $region26: #{resnet_forward.43} parent=0 // pred_check
    _
  $region27: #{resnet_forward.43} parent=0 // pred_check_branch
    %722 = sbr.rel (0) target = $region29
  $region28: #{resnet_forward.43} parent=0 // pred_region
    _
  $region29: #{resnet_forward.43} parent=0 // pred_fallthru
    _
  // Predicated region
  $region30: #{resnet_forward.43} parent=0 // pred_check
    _
  $region31: #{resnet_forward.43} parent=0 // pred_check_branch
    %724 = sbr.rel (0) target = $region33
  $region32: #{resnet_forward.43} parent=0 // pred_region
    _
  $region33: #{resnet_forward.43} parent=0 // pred_fallthru
    _
  // Predicated region
  $region34: #{resnet_forward.43} parent=0 // pred_check
    _
  $region35: #{resnet_forward.43} parent=0 // pred_check_branch
    %726 = sbr.rel (0) target = $region37
  $region36: #{resnet_forward.43} parent=0 // pred_region
    _
  $region37: #{resnet_forward.43} parent=0 // pred_fallthru
    _

// kernel: resnet_forward.45
$region0: #{resnet_forward.45}
  #allocation0 [shape = 'u32[]', space=smem, size = 0x4, offset = 0x4, fixed_abs, tag = 'smem constant byte address 0x4 - core index']
  #allocation1 [shape = 'u32[144,128]{1,0:T(1,128)}', space=vmem, size = 0x12000, scoped, tag = 'internal scratch']
  %s0 = inlined_call_operand.vmem [shape: f32[256,128], index: 0, kind: input, shape index: {}]
  %s1 = inlined_call_operand.vmem [shape: f32[1,128], index: 1, kind: input, shape index: {}]
  %s2 = inlined_call_operand.vmem [shape: f32[1,128], index: 2, kind: input, shape index: {}]
  %s3 = inlined_call_operand.vmem [shape: f32[256,128], index: 3, kind: output, shape index: {}]
  %s4 = sld [smem:[#allocation0]]
  $region22: #{resnet_forward.45} parent=0
    _
  %s6 = ssub.s32 1, %s4
  %s7 = scalar_select 0, %s6, %s4
  // Predicated region
  $region2: #{resnet_forward.45} parent=0 // pred_check
    _
  $region3: #{resnet_forward.45} parent=0 // pred_check_branch
    %9 = sbr.rel (0) target = $region5
  $region4: #{resnet_forward.45} parent=0 // pred_region
    _
  $region5: #{resnet_forward.45} parent=0 // pred_fallthru
    _
  // Predicated region
  $region6: #{resnet_forward.45} parent=0 // pred_check
    _
  $region7: #{resnet_forward.45} parent=0 // pred_check_branch
    %11 = sbr.rel (0) target = $region9
  $region8: #{resnet_forward.45} parent=0 // pred_region
    _
  $region9: #{resnet_forward.45} parent=0 // pred_fallthru
    _
  // Predicated region
  $region10: #{resnet_forward.45} parent=0 // pred_check
    _
  $region11: #{resnet_forward.45} parent=0 // pred_check_branch
    %13 = sbr.rel (0) target = $region13
  $region12: #{resnet_forward.45} parent=0 // pred_region
    _
  $region13: #{resnet_forward.45} parent=0 // pred_fallthru
    _
  %v14 = vld [vmem:[%s0] sm:$0xff]
  %v15 = vld [vmem:[%s0 + $0x8] sm:$0xff]
  %v16 = vld [vmem:[%s0 + $0x10] sm:$0xff]
  %v17 = vld [vmem:[%s0 + $0x18] sm:$0xff]
  %v18 = vld [vmem:[%s0 + $0x20] sm:$0xff]
  %v19 = vld [vmem:[%s0 + $0x28] sm:$0xff]
  %v20 = vld [vmem:[%s0 + $0x30] sm:$0xff]
  %v21 = vld [vmem:[%s0 + $0x38] sm:$0xff]
  %v22 = vld [vmem:[%s0 + $0x40] sm:$0xff]
  %v23 = vld [vmem:[%s0 + $0x48] sm:$0xff]
  %v24 = vld [vmem:[%s0 + $0x50] sm:$0xff]
  %v25 = vld [vmem:[%s0 + $0x58] sm:$0xff]
  %v26 = vld [vmem:[%s0 + $0x60] sm:$0xff]
  %v27 = vld [vmem:[%s0 + $0x68] sm:$0xff]
  %v28 = vld [vmem:[%s0 + $0x70] sm:$0xff]
  %v29 = vld [vmem:[%s0 + $0x78] sm:$0xff]
  %v30 = vld [vmem:[%s0 + $0x80] sm:$0xff]
  %v31 = vld [vmem:[%s0 + $0x88] sm:$0xff]
  %v32 = vld [vmem:[%s0 + $0x90] sm:$0xff]
  %v33 = vld [vmem:[%s0 + $0x98] sm:$0xff]
  %v34 = vld [vmem:[%s0 + $0xa0] sm:$0xff]
  %v35 = vld [vmem:[%s0 + $0xa8] sm:$0xff]
  %v36 = vld [vmem:[%s0 + $0xb0] sm:$0xff]
  %v37 = vld [vmem:[%s0 + $0xb8] sm:$0xff]
  %v38 = vld [vmem:[%s0 + $0xc0] sm:$0xff]
  %v39 = vld [vmem:[%s0 + $0xc8] sm:$0xff]
  %v40 = vld [vmem:[%s0 + $0xd0] sm:$0xff]
  %v41 = vld [vmem:[%s0 + $0xd8] sm:$0xff]
  %v42 = vld [vmem:[%s0 + $0xe0] sm:$0xff]
  %v43 = vld [vmem:[%s0 + $0xe8] sm:$0xff]
  %v44 = vld [vmem:[%s0 + $0xf0] sm:$0xff]
  %v45 = vld [vmem:[%s0 + $0xf8] sm:$0xff]
  %v46 = vld [vmem:[%s1] sm:$0x1]
  %v48 = vlaneseq
  %v49 = vshrl.u32 %v48, 7
  %v50 = vsub.s32 0, %v49
  %v51 = vrot.slane %v46, %v50
  %v53 = vmul.f32 %v14, %v51
  %v54 = vmul.f32 %v15, %v51
  %v55 = vmul.f32 %v16, %v51
  %v56 = vmul.f32 %v17, %v51
  %v57 = vmul.f32 %v18, %v51
  %v58 = vmul.f32 %v19, %v51
  %v59 = vmul.f32 %v20, %v51
  %v60 = vmul.f32 %v21, %v51
  %v61 = vmul.f32 %v22, %v51
  %v62 = vmul.f32 %v23, %v51
  %v63 = vmul.f32 %v24, %v51
  %v64 = vmul.f32 %v25, %v51
  %v65 = vmul.f32 %v26, %v51
  %v66 = vmul.f32 %v27, %v51
  %v67 = vmul.f32 %v28, %v51
  %v68 = vmul.f32 %v29, %v51
  %v69 = vmul.f32 %v30, %v51
  %v70 = vmul.f32 %v31, %v51
  %v71 = vmul.f32 %v32, %v51
  %v72 = vmul.f32 %v33, %v51
  %v73 = vmul.f32 %v34, %v51
  %v74 = vmul.f32 %v35, %v51
  %v75 = vmul.f32 %v36, %v51
  %v76 = vmul.f32 %v37, %v51
  %v77 = vmul.f32 %v38, %v51
  %v78 = vmul.f32 %v39, %v51
  %v79 = vmul.f32 %v40, %v51
  %v80 = vmul.f32 %v41, %v51
  %v81 = vmul.f32 %v42, %v51
  %v82 = vmul.f32 %v43, %v51
  %v83 = vmul.f32 %v44, %v51
  %v84 = vmul.f32 %v45, %v51
  %v85 = vld [vmem:[%s2] sm:$0x1]
  %v87 = vlaneseq
  %v88 = vshrl.u32 %v87, 7
  %v89 = vsub.s32 0, %v88
  %v90 = vrot.slane %v85, %v89
  %v92 = vadd.f32 %v53, %v90
  %v93 = vadd.f32 %v54, %v90
  %v94 = vadd.f32 %v55, %v90
  %v95 = vadd.f32 %v56, %v90
  %v96 = vadd.f32 %v57, %v90
  %v97 = vadd.f32 %v58, %v90
  %v98 = vadd.f32 %v59, %v90
  %v99 = vadd.f32 %v60, %v90
  %v100 = vadd.f32 %v61, %v90
  %v101 = vadd.f32 %v62, %v90
  %v102 = vadd.f32 %v63, %v90
  %v103 = vadd.f32 %v64, %v90
  %v104 = vadd.f32 %v65, %v90
  %v105 = vadd.f32 %v66, %v90
  %v106 = vadd.f32 %v67, %v90
  %v107 = vadd.f32 %v68, %v90
  %v108 = vadd.f32 %v69, %v90
  %v109 = vadd.f32 %v70, %v90
  %v110 = vadd.f32 %v71, %v90
  %v111 = vadd.f32 %v72, %v90
  %v112 = vadd.f32 %v73, %v90
  %v113 = vadd.f32 %v74, %v90
  %v114 = vadd.f32 %v75, %v90
  %v115 = vadd.f32 %v76, %v90
  %v116 = vadd.f32 %v77, %v90
  %v117 = vadd.f32 %v78, %v90
  %v118 = vadd.f32 %v79, %v90
  %v119 = vadd.f32 %v80, %v90
  %v120 = vadd.f32 %v81, %v90
  %v121 = vadd.f32 %v82, %v90
  %v122 = vadd.f32 %v83, %v90
  %v123 = vadd.f32 %v84, %v90
  %124 = vst [vmem:[%s3] sm:$0xff] %v92
  %125 = vst [vmem:[%s3 + $0x8] sm:$0xff] %v93
  %126 = vst [vmem:[%s3 + $0x10] sm:$0xff] %v94
  %127 = vst [vmem:[%s3 + $0x18] sm:$0xff] %v95
  %128 = vst [vmem:[%s3 + $0x20] sm:$0xff] %v96
  %129 = vst [vmem:[%s3 + $0x28] sm:$0xff] %v97
  %130 = vst [vmem:[%s3 + $0x30] sm:$0xff] %v98
  %131 = vst [vmem:[%s3 + $0x38] sm:$0xff] %v99
  %132 = vst [vmem:[%s3 + $0x40] sm:$0xff] %v100
  %133 = vst [vmem:[%s3 + $0x48] sm:$0xff] %v101
  %134 = vst [vmem:[%s3 + $0x50] sm:$0xff] %v102
  %135 = vst [vmem:[%s3 + $0x58] sm:$0xff] %v103
  %136 = vst [vmem:[%s3 + $0x60] sm:$0xff] %v104
  %137 = vst [vmem:[%s3 + $0x68] sm:$0xff] %v105
  %138 = vst [vmem:[%s3 + $0x70] sm:$0xff] %v106
  %139 = vst [vmem:[%s3 + $0x78] sm:$0xff] %v107
  %140 = vst [vmem:[%s3 + $0x80] sm:$0xff] %v108
  %141 = vst [vmem:[%s3 + $0x88] sm:$0xff] %v109
  %142 = vst [vmem:[%s3 + $0x90] sm:$0xff] %v110
  %143 = vst [vmem:[%s3 + $0x98] sm:$0xff] %v111
  %144 = vst [vmem:[%s3 + $0xa0] sm:$0xff] %v112
  %145 = vst [vmem:[%s3 + $0xa8] sm:$0xff] %v113
  %146 = vst [vmem:[%s3 + $0xb0] sm:$0xff] %v114
  %147 = vst [vmem:[%s3 + $0xb8] sm:$0xff] %v115
  %148 = vst [vmem:[%s3 + $0xc0] sm:$0xff] %v116
  %149 = vst [vmem:[%s3 + $0xc8] sm:$0xff] %v117
  %150 = vst [vmem:[%s3 + $0xd0] sm:$0xff] %v118
  %151 = vst [vmem:[%s3 + $0xd8] sm:$0xff] %v119
  %152 = vst [vmem:[%s3 + $0xe0] sm:$0xff] %v120
  %153 = vst [vmem:[%s3 + $0xe8] sm:$0xff] %v121
  %154 = vst [vmem:[%s3 + $0xf0] sm:$0xff] %v122
  %155 = vst [vmem:[%s3 + $0xf8] sm:$0xff] %v123
  // Predicated region
  $region14: #{resnet_forward.45} parent=0 // pred_check
    _
  $region15: #{resnet_forward.45} parent=0 // pred_check_branch
    %157 = sbr.rel (0) target = $region17
  $region16: #{resnet_forward.45} parent=0 // pred_region
    _
  $region17: #{resnet_forward.45} parent=0 // pred_fallthru
    _
  // Predicated region
  $region18: #{resnet_forward.45} parent=0 // pred_check
    _
  $region19: #{resnet_forward.45} parent=0 // pred_check_branch
    %159 = sbr.rel (0) target = $region21
  $region20: #{resnet_forward.45} parent=0 // pred_region
    _
  $region21: #{resnet_forward.45} parent=0 // pred_fallthru
    _

// kernel: resnet_forward.44
$region0: #{resnet_forward.44}
  #allocation0 [shape = 'u32[]', space=smem, size = 0x4, offset = 0x4, fixed_abs, tag = 'smem constant byte address 0x4 - core index']
  #allocation1 [shape = 'u32[144,128]{1,0:T(1,128)}', space=vmem, size = 0x12000, scoped, tag = 'internal scratch']
  %s0 = inlined_call_operand.vmem [shape: f32[256,128], index: 0, kind: input, shape index: {}]
  %s1 = inlined_call_operand.vmem [shape: f32[1,128], index: 1, kind: input, shape index: {}]
  %s2 = inlined_call_operand.vmem [shape: f32[1,128], index: 2, kind: input, shape index: {}]
  %s3 = inlined_call_operand.vmem [shape: f32[256,128], index: 3, kind: input, shape index: {}]
  %s4 = inlined_call_operand.vmem [shape: f32[1,128], index: 4, kind: input, shape index: {}]
  %s5 = inlined_call_operand.vmem [shape: f32[1,128], index: 5, kind: input, shape index: {}]
  %s6 = inlined_call_operand.vmem [shape: f32[256,128], index: 6, kind: output, shape index: {0}]
  %s7 = inlined_call_operand.vmem [shape: f32[8,128], index: 7, kind: output, shape index: {1}]
  %8 = xla_tuple %s6, %s7
  %s9 = sld [smem:[#allocation0]]
  $region42: #{resnet_forward.44} parent=0
    _
  %s11 = ssub.s32 1, %s9
  %s12 = scalar_select 0, %s11, %s9
  // Predicated region
  $region2: #{resnet_forward.44} parent=0 // pred_check
    _
  $region3: #{resnet_forward.44} parent=0 // pred_check_branch
    %14 = sbr.rel (0) target = $region5
  $region4: #{resnet_forward.44} parent=0 // pred_region
    _
  $region5: #{resnet_forward.44} parent=0 // pred_fallthru
    _
  // Predicated region
  $region6: #{resnet_forward.44} parent=0 // pred_check
    _
  $region7: #{resnet_forward.44} parent=0 // pred_check_branch
    %16 = sbr.rel (0) target = $region9
  $region8: #{resnet_forward.44} parent=0 // pred_region
    _
  $region9: #{resnet_forward.44} parent=0 // pred_fallthru
    _
  // Predicated region
  $region10: #{resnet_forward.44} parent=0 // pred_check
    _
  $region11: #{resnet_forward.44} parent=0 // pred_check_branch
    %18 = sbr.rel (0) target = $region13
  $region12: #{resnet_forward.44} parent=0 // pred_region
    _
  $region13: #{resnet_forward.44} parent=0 // pred_fallthru
    _
  // Predicated region
  $region14: #{resnet_forward.44} parent=0 // pred_check
    _
  $region15: #{resnet_forward.44} parent=0 // pred_check_branch
    %20 = sbr.rel (0) target = $region17
  $region16: #{resnet_forward.44} parent=0 // pred_region
    _
  $region17: #{resnet_forward.44} parent=0 // pred_fallthru
    _
  // Predicated region
  $region18: #{resnet_forward.44} parent=0 // pred_check
    _
  $region19: #{resnet_forward.44} parent=0 // pred_check_branch
    %22 = sbr.rel (0) target = $region21
  $region20: #{resnet_forward.44} parent=0 // pred_region
    _
  $region21: #{resnet_forward.44} parent=0 // pred_fallthru
    _
  // Predicated region
  $region22: #{resnet_forward.44} parent=0 // pred_check
    _
  $region23: #{resnet_forward.44} parent=0 // pred_check_branch
    %24 = sbr.rel (0) target = $region25
  $region24: #{resnet_forward.44} parent=0 // pred_region
    _
  $region25: #{resnet_forward.44} parent=0 // pred_fallthru
    _
  %v25 = vld [vmem:[%s0] sm:$0xff]
  %v26 = vld [vmem:[%s0 + $0x8] sm:$0xff]
  %v27 = vld [vmem:[%s0 + $0x10] sm:$0xff]
  %v28 = vld [vmem:[%s0 + $0x18] sm:$0xff]
  %v29 = vld [vmem:[%s0 + $0x20] sm:$0xff]
  %v30 = vld [vmem:[%s0 + $0x28] sm:$0xff]
  %v31 = vld [vmem:[%s0 + $0x30] sm:$0xff]
  %v32 = vld [vmem:[%s0 + $0x38] sm:$0xff]
  %v33 = vld [vmem:[%s0 + $0x40] sm:$0xff]
  %v34 = vld [vmem:[%s0 + $0x48] sm:$0xff]
  %v35 = vld [vmem:[%s0 + $0x50] sm:$0xff]
  %v36 = vld [vmem:[%s0 + $0x58] sm:$0xff]
  %v37 = vld [vmem:[%s0 + $0x60] sm:$0xff]
  %v38 = vld [vmem:[%s0 + $0x68] sm:$0xff]
  %v39 = vld [vmem:[%s0 + $0x70] sm:$0xff]
  %v40 = vld [vmem:[%s0 + $0x78] sm:$0xff]
  %v41 = vld [vmem:[%s0 + $0x80] sm:$0xff]
  %v42 = vld [vmem:[%s0 + $0x88] sm:$0xff]
  %v43 = vld [vmem:[%s0 + $0x90] sm:$0xff]
  %v44 = vld [vmem:[%s0 + $0x98] sm:$0xff]
  %v45 = vld [vmem:[%s0 + $0xa0] sm:$0xff]
  %v46 = vld [vmem:[%s0 + $0xa8] sm:$0xff]
  %v47 = vld [vmem:[%s0 + $0xb0] sm:$0xff]
  %v48 = vld [vmem:[%s0 + $0xb8] sm:$0xff]
  %v49 = vld [vmem:[%s0 + $0xc0] sm:$0xff]
  %v50 = vld [vmem:[%s0 + $0xc8] sm:$0xff]
  %v51 = vld [vmem:[%s0 + $0xd0] sm:$0xff]
  %v52 = vld [vmem:[%s0 + $0xd8] sm:$0xff]
  %v53 = vld [vmem:[%s0 + $0xe0] sm:$0xff]
  %v54 = vld [vmem:[%s0 + $0xe8] sm:$0xff]
  %v55 = vld [vmem:[%s0 + $0xf0] sm:$0xff]
  %v56 = vld [vmem:[%s0 + $0xf8] sm:$0xff]
  %v57 = vld [vmem:[%s1] sm:$0x1]
  %v59 = vlaneseq
  %v60 = vshrl.u32 %v59, 7
  %v61 = vsub.s32 0, %v60
  %v62 = vrot.slane %v57, %v61
  %v64 = vmul.f32 %v25, %v62
  %v65 = vmul.f32 %v26, %v62
  %v66 = vmul.f32 %v27, %v62
  %v67 = vmul.f32 %v28, %v62
  %v68 = vmul.f32 %v29, %v62
  %v69 = vmul.f32 %v30, %v62
  %v70 = vmul.f32 %v31, %v62
  %v71 = vmul.f32 %v32, %v62
  %v72 = vmul.f32 %v33, %v62
  %v73 = vmul.f32 %v34, %v62
  %v74 = vmul.f32 %v35, %v62
  %v75 = vmul.f32 %v36, %v62
  %v76 = vmul.f32 %v37, %v62
  %v77 = vmul.f32 %v38, %v62
  %v78 = vmul.f32 %v39, %v62
  %v79 = vmul.f32 %v40, %v62
  %v80 = vmul.f32 %v41, %v62
  %v81 = vmul.f32 %v42, %v62
  %v82 = vmul.f32 %v43, %v62
  %v83 = vmul.f32 %v44, %v62
  %v84 = vmul.f32 %v45, %v62
  %v85 = vmul.f32 %v46, %v62
  %v86 = vmul.f32 %v47, %v62
  %v87 = vmul.f32 %v48, %v62
  %v88 = vmul.f32 %v49, %v62
  %v89 = vmul.f32 %v50, %v62
  %v90 = vmul.f32 %v51, %v62
  %v91 = vmul.f32 %v52, %v62
  %v92 = vmul.f32 %v53, %v62
  %v93 = vmul.f32 %v54, %v62
  %v94 = vmul.f32 %v55, %v62
  %v95 = vmul.f32 %v56, %v62
  %v96 = vld [vmem:[%s2] sm:$0x1]
  %v98 = vlaneseq
  %v99 = vshrl.u32 %v98, 7
  %v100 = vsub.s32 0, %v99
  %v101 = vrot.slane %v96, %v100
  %v103 = vadd.f32 %v64, %v101
  %v104 = vadd.f32 %v65, %v101
  %v105 = vadd.f32 %v66, %v101
  %v106 = vadd.f32 %v67, %v101
  %v107 = vadd.f32 %v68, %v101
  %v108 = vadd.f32 %v69, %v101
  %v109 = vadd.f32 %v70, %v101
  %v110 = vadd.f32 %v71, %v101
  %v111 = vadd.f32 %v72, %v101
  %v112 = vadd.f32 %v73, %v101
  %v113 = vadd.f32 %v74, %v101
  %v114 = vadd.f32 %v75, %v101
  %v115 = vadd.f32 %v76, %v101
  %v116 = vadd.f32 %v77, %v101
  %v117 = vadd.f32 %v78, %v101
  %v118 = vadd.f32 %v79, %v101
  %v119 = vadd.f32 %v80, %v101
  %v120 = vadd.f32 %v81, %v101
  %v121 = vadd.f32 %v82, %v101
  %v122 = vadd.f32 %v83, %v101
  %v123 = vadd.f32 %v84, %v101
  %v124 = vadd.f32 %v85, %v101
  %v125 = vadd.f32 %v86, %v101
  %v126 = vadd.f32 %v87, %v101
  %v127 = vadd.f32 %v88, %v101
  %v128 = vadd.f32 %v89, %v101
  %v129 = vadd.f32 %v90, %v101
  %v130 = vadd.f32 %v91, %v101
  %v131 = vadd.f32 %v92, %v101
  %v132 = vadd.f32 %v93, %v101
  %v133 = vadd.f32 %v94, %v101
  %v134 = vadd.f32 %v95, %v101
  %v135 = vld [vmem:[%s3] sm:$0xff]
  %v136 = vld [vmem:[%s3 + $0x8] sm:$0xff]
  %v137 = vld [vmem:[%s3 + $0x10] sm:$0xff]
  %v138 = vld [vmem:[%s3 + $0x18] sm:$0xff]
  %v139 = vld [vmem:[%s3 + $0x20] sm:$0xff]
  %v140 = vld [vmem:[%s3 + $0x28] sm:$0xff]
  %v141 = vld [vmem:[%s3 + $0x30] sm:$0xff]
  %v142 = vld [vmem:[%s3 + $0x38] sm:$0xff]
  %v143 = vld [vmem:[%s3 + $0x40] sm:$0xff]
  %v144 = vld [vmem:[%s3 + $0x48] sm:$0xff]
  %v145 = vld [vmem:[%s3 + $0x50] sm:$0xff]
  %v146 = vld [vmem:[%s3 + $0x58] sm:$0xff]
  %v147 = vld [vmem:[%s3 + $0x60] sm:$0xff]
  %v148 = vld [vmem:[%s3 + $0x68] sm:$0xff]
  %v149 = vld [vmem:[%s3 + $0x70] sm:$0xff]
  %v150 = vld [vmem:[%s3 + $0x78] sm:$0xff]
  %v151 = vld [vmem:[%s3 + $0x80] sm:$0xff]
  %v152 = vld [vmem:[%s3 + $0x88] sm:$0xff]
  %v153 = vld [vmem:[%s3 + $0x90] sm:$0xff]
  %v154 = vld [vmem:[%s3 + $0x98] sm:$0xff]
  %v155 = vld [vmem:[%s3 + $0xa0] sm:$0xff]
  %v156 = vld [vmem:[%s3 + $0xa8] sm:$0xff]
  %v157 = vld [vmem:[%s3 + $0xb0] sm:$0xff]
  %v158 = vld [vmem:[%s3 + $0xb8] sm:$0xff]
  %v159 = vld [vmem:[%s3 + $0xc0] sm:$0xff]
  %v160 = vld [vmem:[%s3 + $0xc8] sm:$0xff]
  %v161 = vld [vmem:[%s3 + $0xd0] sm:$0xff]
  %v162 = vld [vmem:[%s3 + $0xd8] sm:$0xff]
  %v163 = vld [vmem:[%s3 + $0xe0] sm:$0xff]
  %v164 = vld [vmem:[%s3 + $0xe8] sm:$0xff]
  %v165 = vld [vmem:[%s3 + $0xf0] sm:$0xff]
  %v166 = vld [vmem:[%s3 + $0xf8] sm:$0xff]
  %v167 = vld [vmem:[%s4] sm:$0x1]
  %v169 = vlaneseq
  %v170 = vshrl.u32 %v169, 7
  %v171 = vsub.s32 0, %v170
  %v172 = vrot.slane %v167, %v171
  %v174 = vmul.f32 %v135, %v172
  %v175 = vmul.f32 %v136, %v172
  %v176 = vmul.f32 %v137, %v172
  %v177 = vmul.f32 %v138, %v172
  %v178 = vmul.f32 %v139, %v172
  %v179 = vmul.f32 %v140, %v172
  %v180 = vmul.f32 %v141, %v172
  %v181 = vmul.f32 %v142, %v172
  %v182 = vmul.f32 %v143, %v172
  %v183 = vmul.f32 %v144, %v172
  %v184 = vmul.f32 %v145, %v172
  %v185 = vmul.f32 %v146, %v172
  %v186 = vmul.f32 %v147, %v172
  %v187 = vmul.f32 %v148, %v172
  %v188 = vmul.f32 %v149, %v172
  %v189 = vmul.f32 %v150, %v172
  %v190 = vmul.f32 %v151, %v172
  %v191 = vmul.f32 %v152, %v172
  %v192 = vmul.f32 %v153, %v172
  %v193 = vmul.f32 %v154, %v172
  %v194 = vmul.f32 %v155, %v172
  %v195 = vmul.f32 %v156, %v172
  %v196 = vmul.f32 %v157, %v172
  %v197 = vmul.f32 %v158, %v172
  %v198 = vmul.f32 %v159, %v172
  %v199 = vmul.f32 %v160, %v172
  %v200 = vmul.f32 %v161, %v172
  %v201 = vmul.f32 %v162, %v172
  %v202 = vmul.f32 %v163, %v172
  %v203 = vmul.f32 %v164, %v172
  %v204 = vmul.f32 %v165, %v172
  %v205 = vmul.f32 %v166, %v172
  %v206 = vadd.f32 %v103, %v174
  %v207 = vadd.f32 %v104, %v175
  %v208 = vadd.f32 %v105, %v176
  %v209 = vadd.f32 %v106, %v177
  %v210 = vadd.f32 %v107, %v178
  %v211 = vadd.f32 %v108, %v179
  %v212 = vadd.f32 %v109, %v180
  %v213 = vadd.f32 %v110, %v181
  %v214 = vadd.f32 %v111, %v182
  %v215 = vadd.f32 %v112, %v183
  %v216 = vadd.f32 %v113, %v184
  %v217 = vadd.f32 %v114, %v185
  %v218 = vadd.f32 %v115, %v186
  %v219 = vadd.f32 %v116, %v187
  %v220 = vadd.f32 %v117, %v188
  %v221 = vadd.f32 %v118, %v189
  %v222 = vadd.f32 %v119, %v190
  %v223 = vadd.f32 %v120, %v191
  %v224 = vadd.f32 %v121, %v192
  %v225 = vadd.f32 %v122, %v193
  %v226 = vadd.f32 %v123, %v194
  %v227 = vadd.f32 %v124, %v195
  %v228 = vadd.f32 %v125, %v196
  %v229 = vadd.f32 %v126, %v197
  %v230 = vadd.f32 %v127, %v198
  %v231 = vadd.f32 %v128, %v199
  %v232 = vadd.f32 %v129, %v200
  %v233 = vadd.f32 %v130, %v201
  %v234 = vadd.f32 %v131, %v202
  %v235 = vadd.f32 %v132, %v203
  %v236 = vadd.f32 %v133, %v204
  %v237 = vadd.f32 %v134, %v205
  %v238 = vld [vmem:[%s5] sm:$0x1]
  %v240 = vlaneseq
  %v241 = vshrl.u32 %v240, 7
  %v242 = vsub.s32 0, %v241
  %v243 = vrot.slane %v238, %v242
  %v245 = vadd.f32 %v206, %v243
  %v246 = vadd.f32 %v207, %v243
  %v247 = vadd.f32 %v208, %v243
  %v248 = vadd.f32 %v209, %v243
  %v249 = vadd.f32 %v210, %v243
  %v250 = vadd.f32 %v211, %v243
  %v251 = vadd.f32 %v212, %v243
  %v252 = vadd.f32 %v213, %v243
  %v253 = vadd.f32 %v214, %v243
  %v254 = vadd.f32 %v215, %v243
  %v255 = vadd.f32 %v216, %v243
  %v256 = vadd.f32 %v217, %v243
  %v257 = vadd.f32 %v218, %v243
  %v258 = vadd.f32 %v219, %v243
  %v259 = vadd.f32 %v220, %v243
  %v260 = vadd.f32 %v221, %v243
  %v261 = vadd.f32 %v222, %v243
  %v262 = vadd.f32 %v223, %v243
  %v263 = vadd.f32 %v224, %v243
  %v264 = vadd.f32 %v225, %v243
  %v265 = vadd.f32 %v226, %v243
  %v266 = vadd.f32 %v227, %v243
  %v267 = vadd.f32 %v228, %v243
  %v268 = vadd.f32 %v229, %v243
  %v269 = vadd.f32 %v230, %v243
  %v270 = vadd.f32 %v231, %v243
  %v271 = vadd.f32 %v232, %v243
  %v272 = vadd.f32 %v233, %v243
  %v273 = vadd.f32 %v234, %v243
  %v274 = vadd.f32 %v235, %v243
  %v275 = vadd.f32 %v236, %v243
  %v276 = vadd.f32 %v237, %v243
  %v277 = vmax.f32 %v245, 0.0
  %v278 = vmax.f32 %v246, 0.0
  %v279 = vmax.f32 %v247, 0.0
  %v280 = vmax.f32 %v248, 0.0
  %v281 = vmax.f32 %v249, 0.0
  %v282 = vmax.f32 %v250, 0.0
  %v283 = vmax.f32 %v251, 0.0
  %v284 = vmax.f32 %v252, 0.0
  %v285 = vmax.f32 %v253, 0.0
  %v286 = vmax.f32 %v254, 0.0
  %v287 = vmax.f32 %v255, 0.0
  %v288 = vmax.f32 %v256, 0.0
  %v289 = vmax.f32 %v257, 0.0
  %v290 = vmax.f32 %v258, 0.0
  %v291 = vmax.f32 %v259, 0.0
  %v292 = vmax.f32 %v260, 0.0
  %v293 = vmax.f32 %v261, 0.0
  %v294 = vmax.f32 %v262, 0.0
  %v295 = vmax.f32 %v263, 0.0
  %v296 = vmax.f32 %v264, 0.0
  %v297 = vmax.f32 %v265, 0.0
  %v298 = vmax.f32 %v266, 0.0
  %v299 = vmax.f32 %v267, 0.0
  %v300 = vmax.f32 %v268, 0.0
  %v301 = vmax.f32 %v269, 0.0
  %v302 = vmax.f32 %v270, 0.0
  %v303 = vmax.f32 %v271, 0.0
  %v304 = vmax.f32 %v272, 0.0
  %v305 = vmax.f32 %v273, 0.0
  %v306 = vmax.f32 %v274, 0.0
  %v307 = vmax.f32 %v275, 0.0
  %v308 = vmax.f32 %v276, 0.0
  %v309 = vmin.f32 %v277, 6.0
  %v310 = vmin.f32 %v278, 6.0
  %v311 = vmin.f32 %v279, 6.0
  %v312 = vmin.f32 %v280, 6.0
  %v313 = vmin.f32 %v281, 6.0
  %v314 = vmin.f32 %v282, 6.0
  %v315 = vmin.f32 %v283, 6.0
  %v316 = vmin.f32 %v284, 6.0
  %v317 = vmin.f32 %v285, 6.0
  %v318 = vmin.f32 %v286, 6.0
  %v319 = vmin.f32 %v287, 6.0
  %v320 = vmin.f32 %v288, 6.0
  %v321 = vmin.f32 %v289, 6.0
  %v322 = vmin.f32 %v290, 6.0
  %v323 = vmin.f32 %v291, 6.0
  %v324 = vmin.f32 %v292, 6.0
  %v325 = vmin.f32 %v293, 6.0
  %v326 = vmin.f32 %v294, 6.0
  %v327 = vmin.f32 %v295, 6.0
  %v328 = vmin.f32 %v296, 6.0
  %v329 = vmin.f32 %v297, 6.0
  %v330 = vmin.f32 %v298, 6.0
  %v331 = vmin.f32 %v299, 6.0
  %v332 = vmin.f32 %v300, 6.0
  %v333 = vmin.f32 %v301, 6.0
  %v334 = vmin.f32 %v302, 6.0
  %v335 = vmin.f32 %v303, 6.0
  %v336 = vmin.f32 %v304, 6.0
  %v337 = vmin.f32 %v305, 6.0
  %v338 = vmin.f32 %v306, 6.0
  %v339 = vmin.f32 %v307, 6.0
  %v340 = vmin.f32 %v308, 6.0
  %341 = vst [vmem:[%s6] sm:$0xff] %v309
  %342 = vst [vmem:[%s6 + $0x8] sm:$0xff] %v310
  %343 = vst [vmem:[%s6 + $0x10] sm:$0xff] %v311
  %344 = vst [vmem:[%s6 + $0x18] sm:$0xff] %v312
  %345 = vst [vmem:[%s6 + $0x20] sm:$0xff] %v313
  %346 = vst [vmem:[%s6 + $0x28] sm:$0xff] %v314
  %347 = vst [vmem:[%s6 + $0x30] sm:$0xff] %v315
  %348 = vst [vmem:[%s6 + $0x38] sm:$0xff] %v316
  %349 = vst [vmem:[%s6 + $0x40] sm:$0xff] %v317
  %350 = vst [vmem:[%s6 + $0x48] sm:$0xff] %v318
  %351 = vst [vmem:[%s6 + $0x50] sm:$0xff] %v319
  %352 = vst [vmem:[%s6 + $0x58] sm:$0xff] %v320
  %353 = vst [vmem:[%s6 + $0x60] sm:$0xff] %v321
  %354 = vst [vmem:[%s6 + $0x68] sm:$0xff] %v322
  %355 = vst [vmem:[%s6 + $0x70] sm:$0xff] %v323
  %356 = vst [vmem:[%s6 + $0x78] sm:$0xff] %v324
  %357 = vst [vmem:[%s6 + $0x80] sm:$0xff] %v325
  %358 = vst [vmem:[%s6 + $0x88] sm:$0xff] %v326
  %359 = vst [vmem:[%s6 + $0x90] sm:$0xff] %v327
  %360 = vst [vmem:[%s6 + $0x98] sm:$0xff] %v328
  %361 = vst [vmem:[%s6 + $0xa0] sm:$0xff] %v329
  %362 = vst [vmem:[%s6 + $0xa8] sm:$0xff] %v330
  %363 = vst [vmem:[%s6 + $0xb0] sm:$0xff] %v331
  %364 = vst [vmem:[%s6 + $0xb8] sm:$0xff] %v332
  %365 = vst [vmem:[%s6 + $0xc0] sm:$0xff] %v333
  %366 = vst [vmem:[%s6 + $0xc8] sm:$0xff] %v334
  %367 = vst [vmem:[%s6 + $0xd0] sm:$0xff] %v335
  %368 = vst [vmem:[%s6 + $0xd8] sm:$0xff] %v336
  %369 = vst [vmem:[%s6 + $0xe0] sm:$0xff] %v337
  %370 = vst [vmem:[%s6 + $0xe8] sm:$0xff] %v338
  %371 = vst [vmem:[%s6 + $0xf0] sm:$0xff] %v339
  %372 = vst [vmem:[%s6 + $0xf8] sm:$0xff] %v340
  %v373 = vlaneseq
  %v374 = vshrl.u32 %v373, 7
  %v375 = vadd.s32 %v374, 8
  %v376 = vadd.s32 %v374, 16
  %v377 = vadd.s32 %v374, 24
  %v378 = vadd.s32 %v374, 32
  %v379 = vadd.s32 %v374, 40
  %v380 = vadd.s32 %v374, 48
  %v381 = vadd.s32 %v374, 56
  %v382 = vadd.s32 %v374, 64
  %v383 = vadd.s32 %v374, 72
  %v384 = vadd.s32 %v374, 80
  %v385 = vadd.s32 %v374, 88
  %v386 = vadd.s32 %v374, 96
  %v387 = vadd.s32 %v374, 104
  %v388 = vadd.s32 %v374, 112
  %v389 = vadd.s32 %v374, 120
  %v390 = vadd.s32 %v374, 128
  %v391 = vadd.s32 %v374, 136
  %v392 = vadd.s32 %v374, 144
  %v393 = vadd.s32 %v374, 152
  %v394 = vadd.s32 %v374, 160
  %v395 = vadd.s32 %v374, 168
  %v396 = vadd.s32 %v374, 176
  %v397 = vadd.s32 %v374, 184
  %v398 = vadd.s32 %v374, 192
  %v399 = vadd.s32 %v374, 200
  %v400 = vadd.s32 %v374, 208
  %v401 = vadd.s32 %v374, 216
  %v402 = vadd.s32 %v374, 224
  %v403 = vadd.s32 %v374, 232
  %v404 = vadd.s32 %v374, 240
  %v405 = vadd.s32 %v374, 248
  %s406 = smul.u32 0, 256
  %v407 = vstv %s406
  %v408 = vadd.s32 %v374, %v407
  %v409 = vadd.s32 %v375, %v407
  %v410 = vadd.s32 %v376, %v407
  %v411 = vadd.s32 %v377, %v407
  %v412 = vadd.s32 %v378, %v407
  %v413 = vadd.s32 %v379, %v407
  %v414 = vadd.s32 %v380, %v407
  %v415 = vadd.s32 %v381, %v407
  %v416 = vadd.s32 %v382, %v407
  %v417 = vadd.s32 %v383, %v407
  %v418 = vadd.s32 %v384, %v407
  %v419 = vadd.s32 %v385, %v407
  %v420 = vadd.s32 %v386, %v407
  %v421 = vadd.s32 %v387, %v407
  %v422 = vadd.s32 %v388, %v407
  %v423 = vadd.s32 %v389, %v407
  %v424 = vadd.s32 %v390, %v407
  %v425 = vadd.s32 %v391, %v407
  %v426 = vadd.s32 %v392, %v407
  %v427 = vadd.s32 %v393, %v407
  %v428 = vadd.s32 %v394, %v407
  %v429 = vadd.s32 %v395, %v407
  %v430 = vadd.s32 %v396, %v407
  %v431 = vadd.s32 %v397, %v407
  %v432 = vadd.s32 %v398, %v407
  %v433 = vadd.s32 %v399, %v407
  %v434 = vadd.s32 %v400, %v407
  %v435 = vadd.s32 %v401, %v407
  %v436 = vadd.s32 %v402, %v407
  %v437 = vadd.s32 %v403, %v407
  %v438 = vadd.s32 %v404, %v407
  %v439 = vadd.s32 %v405, %v407
  %vm440 = vcmp.lt.s32.totalorder %v408, 98
  %vm441 = vcmp.lt.s32.totalorder %v409, 98
  %vm442 = vcmp.lt.s32.totalorder %v410, 98
  %vm443 = vcmp.lt.s32.totalorder %v411, 98
  %vm444 = vcmp.lt.s32.totalorder %v412, 98
  %vm445 = vcmp.lt.s32.totalorder %v413, 98
  %vm446 = vcmp.lt.s32.totalorder %v414, 98
  %vm447 = vcmp.lt.s32.totalorder %v415, 98
  %vm448 = vcmp.lt.s32.totalorder %v416, 98
  %vm449 = vcmp.lt.s32.totalorder %v417, 98
  %vm450 = vcmp.lt.s32.totalorder %v418, 98
  %vm451 = vcmp.lt.s32.totalorder %v419, 98
  %vm452 = vcmp.lt.s32.totalorder %v420, 98
  %vm453 = vcmp.lt.s32.totalorder %v421, 98
  %vm454 = vcmp.lt.s32.totalorder %v422, 98
  %vm455 = vcmp.lt.s32.totalorder %v423, 98
  %vm456 = vcmp.lt.s32.totalorder %v424, 98
  %vm457 = vcmp.lt.s32.totalorder %v425, 98
  %vm458 = vcmp.lt.s32.totalorder %v426, 98
  %vm459 = vcmp.lt.s32.totalorder %v427, 98
  %vm460 = vcmp.lt.s32.totalorder %v428, 98
  %vm461 = vcmp.lt.s32.totalorder %v429, 98
  %vm462 = vcmp.lt.s32.totalorder %v430, 98
  %vm463 = vcmp.lt.s32.totalorder %v431, 98
  %vm464 = vcmp.lt.s32.totalorder %v432, 98
  %vm465 = vcmp.lt.s32.totalorder %v433, 98
  %vm466 = vcmp.lt.s32.totalorder %v434, 98
  %vm467 = vcmp.lt.s32.totalorder %v435, 98
  %vm468 = vcmp.lt.s32.totalorder %v436, 98
  %vm469 = vcmp.lt.s32.totalorder %v437, 98
  %vm470 = vcmp.lt.s32.totalorder %v438, 98
  %vm471 = vcmp.lt.s32.totalorder %v439, 98
  %v472 = vsel %vm440, %v309, 0.0
  %v473 = vsel %vm441, %v310, 0.0
  %v474 = vsel %vm442, %v311, 0.0
  %v475 = vsel %vm443, %v312, 0.0
  %v476 = vsel %vm444, %v313, 0.0
  %v477 = vsel %vm445, %v314, 0.0
  %v478 = vsel %vm446, %v315, 0.0
  %v479 = vsel %vm447, %v316, 0.0
  %v480 = vsel %vm448, %v317, 0.0
  %v481 = vsel %vm449, %v318, 0.0
  %v482 = vsel %vm450, %v319, 0.0
  %v483 = vsel %vm451, %v320, 0.0
  %v484 = vsel %vm452, %v321, 0.0
  %v485 = vsel %vm453, %v322, 0.0
  %v486 = vsel %vm454, %v323, 0.0
  %v487 = vsel %vm455, %v324, 0.0
  %v488 = vsel %vm456, %v325, 0.0
  %v489 = vsel %vm457, %v326, 0.0
  %v490 = vsel %vm458, %v327, 0.0
  %v491 = vsel %vm459, %v328, 0.0
  %v492 = vsel %vm460, %v329, 0.0
  %v493 = vsel %vm461, %v330, 0.0
  %v494 = vsel %vm462, %v331, 0.0
  %v495 = vsel %vm463, %v332, 0.0
  %v496 = vsel %vm464, %v333, 0.0
  %v497 = vsel %vm465, %v334, 0.0
  %v498 = vsel %vm466, %v335, 0.0
  %v499 = vsel %vm467, %v336, 0.0
  %v500 = vsel %vm468, %v337, 0.0
  %v501 = vsel %vm469, %v338, 0.0
  %v502 = vsel %vm470, %v339, 0.0
  %v503 = vsel %vm471, %v340, 0.0
  %v504 = vadd.f32 %v472, %v473
  %v505 = vadd.f32 %v504, %v474
  %v506 = vadd.f32 %v505, %v475
  %v507 = vadd.f32 %v506, %v476
  %v508 = vadd.f32 %v507, %v477
  %v509 = vadd.f32 %v508, %v478
  %v510 = vadd.f32 %v509, %v479
  %v511 = vadd.f32 %v510, %v480
  %v512 = vadd.f32 %v511, %v481
  %v513 = vadd.f32 %v512, %v482
  %v514 = vadd.f32 %v513, %v483
  %v515 = vadd.f32 %v514, %v484
  %v516 = vadd.f32 %v515, %v485
  %v517 = vadd.f32 %v516, %v486
  %v518 = vadd.f32 %v517, %v487
  %v519 = vadd.f32 %v518, %v488
  %v520 = vadd.f32 %v519, %v489
  %v521 = vadd.f32 %v520, %v490
  %v522 = vadd.f32 %v521, %v491
  %v523 = vadd.f32 %v522, %v492
  %v524 = vadd.f32 %v523, %v493
  %v525 = vadd.f32 %v524, %v494
  %v526 = vadd.f32 %v525, %v495
  %v527 = vadd.f32 %v526, %v496
  %v528 = vadd.f32 %v527, %v497
  %v529 = vadd.f32 %v528, %v498
  %v530 = vadd.f32 %v529, %v499
  %v531 = vadd.f32 %v530, %v500
  %v532 = vadd.f32 %v531, %v501
  %v533 = vadd.f32 %v532, %v502
  %v534 = vadd.f32 %v533, %v503
  %v535 = vrot.slane %v534, 4
  %v536 = vadd.f32 %v534, %v535
  %v537 = vrot.slane %v536, 2
  %v538 = vadd.f32 %v536, %v537
  %v539 = vrot.slane %v538, 1
  %v540 = vadd.f32 %v538, %v539
  %v541 = vmul.f32 %v472, %v472
  %v542 = vmul.f32 %v473, %v473
  %v543 = vmul.f32 %v474, %v474
  %v544 = vmul.f32 %v475, %v475
  %v545 = vmul.f32 %v476, %v476
  %v546 = vmul.f32 %v477, %v477
  %v547 = vmul.f32 %v478, %v478
  %v548 = vmul.f32 %v479, %v479
  %v549 = vmul.f32 %v480, %v480
  %v550 = vmul.f32 %v481, %v481
  %v551 = vmul.f32 %v482, %v482
  %v552 = vmul.f32 %v483, %v483
  %v553 = vmul.f32 %v484, %v484
  %v554 = vmul.f32 %v485, %v485
  %v555 = vmul.f32 %v486, %v486
  %v556 = vmul.f32 %v487, %v487
  %v557 = vmul.f32 %v488, %v488
  %v558 = vmul.f32 %v489, %v489
  %v559 = vmul.f32 %v490, %v490
  %v560 = vmul.f32 %v491, %v491
  %v561 = vmul.f32 %v492, %v492
  %v562 = vmul.f32 %v493, %v493
  %v563 = vmul.f32 %v494, %v494
  %v564 = vmul.f32 %v495, %v495
  %v565 = vmul.f32 %v496, %v496
  %v566 = vmul.f32 %v497, %v497
  %v567 = vmul.f32 %v498, %v498
  %v568 = vmul.f32 %v499, %v499
  %v569 = vmul.f32 %v500, %v500
  %v570 = vmul.f32 %v501, %v501
  %v571 = vmul.f32 %v502, %v502
  %v572 = vmul.f32 %v503, %v503
  %v573 = vadd.f32 %v541, %v542
  %v574 = vadd.f32 %v573, %v543
  %v575 = vadd.f32 %v574, %v544
  %v576 = vadd.f32 %v575, %v545
  %v577 = vadd.f32 %v576, %v546
  %v578 = vadd.f32 %v577, %v547
  %v579 = vadd.f32 %v578, %v548
  %v580 = vadd.f32 %v579, %v549
  %v581 = vadd.f32 %v580, %v550
  %v582 = vadd.f32 %v581, %v551
  %v583 = vadd.f32 %v582, %v552
  %v584 = vadd.f32 %v583, %v553
  %v585 = vadd.f32 %v584, %v554
  %v586 = vadd.f32 %v585, %v555
  %v587 = vadd.f32 %v586, %v556
  %v588 = vadd.f32 %v587, %v557
  %v589 = vadd.f32 %v588, %v558
  %v590 = vadd.f32 %v589, %v559
  %v591 = vadd.f32 %v590, %v560
  %v592 = vadd.f32 %v591, %v561
  %v593 = vadd.f32 %v592, %v562
  %v594 = vadd.f32 %v593, %v563
  %v595 = vadd.f32 %v594, %v564
  %v596 = vadd.f32 %v595, %v565
  %v597 = vadd.f32 %v596, %v566
  %v598 = vadd.f32 %v597, %v567
  %v599 = vadd.f32 %v598, %v568
  %v600 = vadd.f32 %v599, %v569
  %v601 = vadd.f32 %v600, %v570
  %v602 = vadd.f32 %v601, %v571
  %v603 = vadd.f32 %v602, %v572
  %v604 = vrot.slane %v603, 4
  %v605 = vadd.f32 %v603, %v604
  %v606 = vrot.slane %v605, 2
  %v607 = vadd.f32 %v605, %v606
  %v608 = vrot.slane %v607, 1
  %v609 = vadd.f32 %v607, %v608
  %vm610 = vcmask 1040384
  %v611 = vsel %vm610, %v540, %v609
  %vm612 = vcmask 1041408
  %v613 = vsel %vm612, %v611, 0.0
  %614 = vst [vmem:[%s7] sm:$0xff] %v613
  // Predicated region
  $region26: #{resnet_forward.44} parent=0 // pred_check
    _
  $region27: #{resnet_forward.44} parent=0 // pred_check_branch
    %616 = sbr.rel (0) target = $region29
  $region28: #{resnet_forward.44} parent=0 // pred_region
    _
  $region29: #{resnet_forward.44} parent=0 // pred_fallthru
    _
  // Predicated region
  $region30: #{resnet_forward.44} parent=0 // pred_check
    _
  $region31: #{resnet_forward.44} parent=0 // pred_check_branch
    %618 = sbr.rel (0) target = $region33
  $region32: #{resnet_forward.44} parent=0 // pred_region
    _
  $region33: #{resnet_forward.44} parent=0 // pred_fallthru
    _
  // Predicated region
  $region34: #{resnet_forward.44} parent=0 // pred_check
    _
  $region35: #{resnet_forward.44} parent=0 // pred_check_branch
    %620 = sbr.rel (0) target = $region37
  $region36: #{resnet_forward.44} parent=0 // pred_region
    _
  $region37: #{resnet_forward.44} parent=0 // pred_fallthru
    _
  // Predicated region
  $region38: #{resnet_forward.44} parent=0 // pred_check
    _
  $region39: #{resnet_forward.44} parent=0 // pred_check_branch
    %622 = sbr.rel (0) target = $region41
  $region40: #{resnet_forward.44} parent=0 // pred_region
    _
  $region41: #{resnet_forward.44} parent=0 // pred_fallthru
    _

// kernel: resnet_forward.50
$region0: #{resnet_forward.50}
  #allocation0 [shape = 'u32[]', space=smem, size = 0x4, offset = 0x4, fixed_abs, tag = 'smem constant byte address 0x4 - core index']
  #allocation1 [shape = 'u32[144,128]{1,0:T(1,128)}', space=vmem, size = 0x12000, scoped, tag = 'internal scratch']
  %s0 = inlined_call_operand.vmem [shape: f32[256,128], index: 0, kind: input, shape index: {}]
  %s1 = inlined_call_operand.vmem [shape: f32[1,128], index: 1, kind: input, shape index: {}]
  %s2 = inlined_call_operand.vmem [shape: f32[1,128], index: 2, kind: input, shape index: {}]
  %s3 = inlined_call_operand.vmem [shape: f32[256,128], index: 3, kind: input, shape index: {}]
  %s4 = inlined_call_operand.vmem [shape: f32[1,128], index: 4, kind: input, shape index: {}]
  %s5 = inlined_call_operand.vmem [shape: f32[1,128], index: 5, kind: input, shape index: {}]
  %s6 = inlined_call_operand.vmem [shape: f32[256,128], index: 6, kind: output, shape index: {}]
  %s7 = sld [smem:[#allocation0]]
  $region34: #{resnet_forward.50} parent=0
    _
  %s9 = ssub.s32 1, %s7
  %s10 = scalar_select 0, %s9, %s7
  // Predicated region
  $region2: #{resnet_forward.50} parent=0 // pred_check
    _
  $region3: #{resnet_forward.50} parent=0 // pred_check_branch
    %12 = sbr.rel (0) target = $region5
  $region4: #{resnet_forward.50} parent=0 // pred_region
    _
  $region5: #{resnet_forward.50} parent=0 // pred_fallthru
    _
  // Predicated region
  $region6: #{resnet_forward.50} parent=0 // pred_check
    _
  $region7: #{resnet_forward.50} parent=0 // pred_check_branch
    %14 = sbr.rel (0) target = $region9
  $region8: #{resnet_forward.50} parent=0 // pred_region
    _
  $region9: #{resnet_forward.50} parent=0 // pred_fallthru
    _
  // Predicated region
  $region10: #{resnet_forward.50} parent=0 // pred_check
    _
  $region11: #{resnet_forward.50} parent=0 // pred_check_branch
    %16 = sbr.rel (0) target = $region13
  $region12: #{resnet_forward.50} parent=0 // pred_region
    _
  $region13: #{resnet_forward.50} parent=0 // pred_fallthru
    _
  // Predicated region
  $region14: #{resnet_forward.50} parent=0 // pred_check
    _
  $region15: #{resnet_forward.50} parent=0 // pred_check_branch
    %18 = sbr.rel (0) target = $region17
  $region16: #{resnet_forward.50} parent=0 // pred_region
    _
  $region17: #{resnet_forward.50} parent=0 // pred_fallthru
    _
  // Predicated region
  $region18: #{resnet_forward.50} parent=0 // pred_check
    _
  $region19: #{resnet_forward.50} parent=0 // pred_check_branch
    %20 = sbr.rel (0) target = $region21
  $region20: #{resnet_forward.50} parent=0 // pred_region
    _
  $region21: #{resnet_forward.50} parent=0 // pred_fallthru
    _
  // Predicated region
  $region22: #{resnet_forward.50} parent=0 // pred_check
    _
  $region23: #{resnet_forward.50} parent=0 // pred_check_branch
    %22 = sbr.rel (0) target = $region25
  $region24: #{resnet_forward.50} parent=0 // pred_region
    _
  $region25: #{resnet_forward.50} parent=0 // pred_fallthru
    _
  %v23 = vld [vmem:[%s0] sm:$0xff]
  %v24 = vld [vmem:[%s0 + $0x8] sm:$0xff]
  %v25 = vld [vmem:[%s0 + $0x10] sm:$0xff]
  %v26 = vld [vmem:[%s0 + $0x18] sm:$0xff]
  %v27 = vld [vmem:[%s0 + $0x20] sm:$0xff]
  %v28 = vld [vmem:[%s0 + $0x28] sm:$0xff]
  %v29 = vld [vmem:[%s0 + $0x30] sm:$0xff]
  %v30 = vld [vmem:[%s0 + $0x38] sm:$0xff]
  %v31 = vld [vmem:[%s0 + $0x40] sm:$0xff]
  %v32 = vld [vmem:[%s0 + $0x48] sm:$0xff]
  %v33 = vld [vmem:[%s0 + $0x50] sm:$0xff]
  %v34 = vld [vmem:[%s0 + $0x58] sm:$0xff]
  %v35 = vld [vmem:[%s0 + $0x60] sm:$0xff]
  %v36 = vld [vmem:[%s0 + $0x68] sm:$0xff]
  %v37 = vld [vmem:[%s0 + $0x70] sm:$0xff]
  %v38 = vld [vmem:[%s0 + $0x78] sm:$0xff]
  %v39 = vld [vmem:[%s0 + $0x80] sm:$0xff]
  %v40 = vld [vmem:[%s0 + $0x88] sm:$0xff]
  %v41 = vld [vmem:[%s0 + $0x90] sm:$0xff]
  %v42 = vld [vmem:[%s0 + $0x98] sm:$0xff]
  %v43 = vld [vmem:[%s0 + $0xa0] sm:$0xff]
  %v44 = vld [vmem:[%s0 + $0xa8] sm:$0xff]
  %v45 = vld [vmem:[%s0 + $0xb0] sm:$0xff]
  %v46 = vld [vmem:[%s0 + $0xb8] sm:$0xff]
  %v47 = vld [vmem:[%s0 + $0xc0] sm:$0xff]
  %v48 = vld [vmem:[%s0 + $0xc8] sm:$0xff]
  %v49 = vld [vmem:[%s0 + $0xd0] sm:$0xff]
  %v50 = vld [vmem:[%s0 + $0xd8] sm:$0xff]
  %v51 = vld [vmem:[%s0 + $0xe0] sm:$0xff]
  %v52 = vld [vmem:[%s0 + $0xe8] sm:$0xff]
  %v53 = vld [vmem:[%s0 + $0xf0] sm:$0xff]
  %v54 = vld [vmem:[%s0 + $0xf8] sm:$0xff]
  %v55 = vld [vmem:[%s1] sm:$0x1]
  %v57 = vlaneseq
  %v58 = vshrl.u32 %v57, 7
  %v59 = vsub.s32 0, %v58
  %v60 = vrot.slane %v55, %v59
  %v62 = vmul.f32 %v23, %v60
  %v63 = vmul.f32 %v24, %v60
  %v64 = vmul.f32 %v25, %v60
  %v65 = vmul.f32 %v26, %v60
  %v66 = vmul.f32 %v27, %v60
  %v67 = vmul.f32 %v28, %v60
  %v68 = vmul.f32 %v29, %v60
  %v69 = vmul.f32 %v30, %v60
  %v70 = vmul.f32 %v31, %v60
  %v71 = vmul.f32 %v32, %v60
  %v72 = vmul.f32 %v33, %v60
  %v73 = vmul.f32 %v34, %v60
  %v74 = vmul.f32 %v35, %v60
  %v75 = vmul.f32 %v36, %v60
  %v76 = vmul.f32 %v37, %v60
  %v77 = vmul.f32 %v38, %v60
  %v78 = vmul.f32 %v39, %v60
  %v79 = vmul.f32 %v40, %v60
  %v80 = vmul.f32 %v41, %v60
  %v81 = vmul.f32 %v42, %v60
  %v82 = vmul.f32 %v43, %v60
  %v83 = vmul.f32 %v44, %v60
  %v84 = vmul.f32 %v45, %v60
  %v85 = vmul.f32 %v46, %v60
  %v86 = vmul.f32 %v47, %v60
  %v87 = vmul.f32 %v48, %v60
  %v88 = vmul.f32 %v49, %v60
  %v89 = vmul.f32 %v50, %v60
  %v90 = vmul.f32 %v51, %v60
  %v91 = vmul.f32 %v52, %v60
  %v92 = vmul.f32 %v53, %v60
  %v93 = vmul.f32 %v54, %v60
  %v94 = vld [vmem:[%s2] sm:$0x1]
  %v96 = vlaneseq
  %v97 = vshrl.u32 %v96, 7
  %v98 = vsub.s32 0, %v97
  %v99 = vrot.slane %v94, %v98
  %v101 = vadd.f32 %v62, %v99
  %v102 = vadd.f32 %v63, %v99
  %v103 = vadd.f32 %v64, %v99
  %v104 = vadd.f32 %v65, %v99
  %v105 = vadd.f32 %v66, %v99
  %v106 = vadd.f32 %v67, %v99
  %v107 = vadd.f32 %v68, %v99
  %v108 = vadd.f32 %v69, %v99
  %v109 = vadd.f32 %v70, %v99
  %v110 = vadd.f32 %v71, %v99
  %v111 = vadd.f32 %v72, %v99
  %v112 = vadd.f32 %v73, %v99
  %v113 = vadd.f32 %v74, %v99
  %v114 = vadd.f32 %v75, %v99
  %v115 = vadd.f32 %v76, %v99
  %v116 = vadd.f32 %v77, %v99
  %v117 = vadd.f32 %v78, %v99
  %v118 = vadd.f32 %v79, %v99
  %v119 = vadd.f32 %v80, %v99
  %v120 = vadd.f32 %v81, %v99
  %v121 = vadd.f32 %v82, %v99
  %v122 = vadd.f32 %v83, %v99
  %v123 = vadd.f32 %v84, %v99
  %v124 = vadd.f32 %v85, %v99
  %v125 = vadd.f32 %v86, %v99
  %v126 = vadd.f32 %v87, %v99
  %v127 = vadd.f32 %v88, %v99
  %v128 = vadd.f32 %v89, %v99
  %v129 = vadd.f32 %v90, %v99
  %v130 = vadd.f32 %v91, %v99
  %v131 = vadd.f32 %v92, %v99
  %v132 = vadd.f32 %v93, %v99
  %v133 = vld [vmem:[%s3] sm:$0xff]
  %v134 = vld [vmem:[%s3 + $0x8] sm:$0xff]
  %v135 = vld [vmem:[%s3 + $0x10] sm:$0xff]
  %v136 = vld [vmem:[%s3 + $0x18] sm:$0xff]
  %v137 = vld [vmem:[%s3 + $0x20] sm:$0xff]
  %v138 = vld [vmem:[%s3 + $0x28] sm:$0xff]
  %v139 = vld [vmem:[%s3 + $0x30] sm:$0xff]
  %v140 = vld [vmem:[%s3 + $0x38] sm:$0xff]
  %v141 = vld [vmem:[%s3 + $0x40] sm:$0xff]
  %v142 = vld [vmem:[%s3 + $0x48] sm:$0xff]
  %v143 = vld [vmem:[%s3 + $0x50] sm:$0xff]
  %v144 = vld [vmem:[%s3 + $0x58] sm:$0xff]
  %v145 = vld [vmem:[%s3 + $0x60] sm:$0xff]
  %v146 = vld [vmem:[%s3 + $0x68] sm:$0xff]
  %v147 = vld [vmem:[%s3 + $0x70] sm:$0xff]
  %v148 = vld [vmem:[%s3 + $0x78] sm:$0xff]
  %v149 = vld [vmem:[%s3 + $0x80] sm:$0xff]
  %v150 = vld [vmem:[%s3 + $0x88] sm:$0xff]
  %v151 = vld [vmem:[%s3 + $0x90] sm:$0xff]
  %v152 = vld [vmem:[%s3 + $0x98] sm:$0xff]
  %v153 = vld [vmem:[%s3 + $0xa0] sm:$0xff]
  %v154 = vld [vmem:[%s3 + $0xa8] sm:$0xff]
  %v155 = vld [vmem:[%s3 + $0xb0] sm:$0xff]
  %v156 = vld [vmem:[%s3 + $0xb8] sm:$0xff]
  %v157 = vld [vmem:[%s3 + $0xc0] sm:$0xff]
  %v158 = vld [vmem:[%s3 + $0xc8] sm:$0xff]
  %v159 = vld [vmem:[%s3 + $0xd0] sm:$0xff]
  %v160 = vld [vmem:[%s3 + $0xd8] sm:$0xff]
  %v161 = vld [vmem:[%s3 + $0xe0] sm:$0xff]
  %v162 = vld [vmem:[%s3 + $0xe8] sm:$0xff]
  %v163 = vld [vmem:[%s3 + $0xf0] sm:$0xff]
  %v164 = vld [vmem:[%s3 + $0xf8] sm:$0xff]
  %v165 = vld [vmem:[%s4] sm:$0x1]
  %v167 = vlaneseq
  %v168 = vshrl.u32 %v167, 7
  %v169 = vsub.s32 0, %v168
  %v170 = vrot.slane %v165, %v169
  %v172 = vmul.f32 %v133, %v170
  %v173 = vmul.f32 %v134, %v170
  %v174 = vmul.f32 %v135, %v170
  %v175 = vmul.f32 %v136, %v170
  %v176 = vmul.f32 %v137, %v170
  %v177 = vmul.f32 %v138, %v170
  %v178 = vmul.f32 %v139, %v170
  %v179 = vmul.f32 %v140, %v170
  %v180 = vmul.f32 %v141, %v170
  %v181 = vmul.f32 %v142, %v170
  %v182 = vmul.f32 %v143, %v170
  %v183 = vmul.f32 %v144, %v170
  %v184 = vmul.f32 %v145, %v170
  %v185 = vmul.f32 %v146, %v170
  %v186 = vmul.f32 %v147, %v170
  %v187 = vmul.f32 %v148, %v170
  %v188 = vmul.f32 %v149, %v170
  %v189 = vmul.f32 %v150, %v170
  %v190 = vmul.f32 %v151, %v170
  %v191 = vmul.f32 %v152, %v170
  %v192 = vmul.f32 %v153, %v170
  %v193 = vmul.f32 %v154, %v170
  %v194 = vmul.f32 %v155, %v170
  %v195 = vmul.f32 %v156, %v170
  %v196 = vmul.f32 %v157, %v170
  %v197 = vmul.f32 %v158, %v170
  %v198 = vmul.f32 %v159, %v170
  %v199 = vmul.f32 %v160, %v170
  %v200 = vmul.f32 %v161, %v170
  %v201 = vmul.f32 %v162, %v170
  %v202 = vmul.f32 %v163, %v170
  %v203 = vmul.f32 %v164, %v170
  %v204 = vadd.f32 %v101, %v172
  %v205 = vadd.f32 %v102, %v173
  %v206 = vadd.f32 %v103, %v174
  %v207 = vadd.f32 %v104, %v175
  %v208 = vadd.f32 %v105, %v176
  %v209 = vadd.f32 %v106, %v177
  %v210 = vadd.f32 %v107, %v178
  %v211 = vadd.f32 %v108, %v179
  %v212 = vadd.f32 %v109, %v180
  %v213 = vadd.f32 %v110, %v181
  %v214 = vadd.f32 %v111, %v182
  %v215 = vadd.f32 %v112, %v183
  %v216 = vadd.f32 %v113, %v184
  %v217 = vadd.f32 %v114, %v185
  %v218 = vadd.f32 %v115, %v186
  %v219 = vadd.f32 %v116, %v187
  %v220 = vadd.f32 %v117, %v188
  %v221 = vadd.f32 %v118, %v189
  %v222 = vadd.f32 %v119, %v190
  %v223 = vadd.f32 %v120, %v191
  %v224 = vadd.f32 %v121, %v192
  %v225 = vadd.f32 %v122, %v193
  %v226 = vadd.f32 %v123, %v194
  %v227 = vadd.f32 %v124, %v195
  %v228 = vadd.f32 %v125, %v196
  %v229 = vadd.f32 %v126, %v197
  %v230 = vadd.f32 %v127, %v198
  %v231 = vadd.f32 %v128, %v199
  %v232 = vadd.f32 %v129, %v200
  %v233 = vadd.f32 %v130, %v201
  %v234 = vadd.f32 %v131, %v202
  %v235 = vadd.f32 %v132, %v203
  %v236 = vld [vmem:[%s5] sm:$0x1]
  %v238 = vlaneseq
  %v239 = vshrl.u32 %v238, 7
  %v240 = vsub.s32 0, %v239
  %v241 = vrot.slane %v236, %v240
  %v243 = vadd.f32 %v204, %v241
  %v244 = vadd.f32 %v205, %v241
  %v245 = vadd.f32 %v206, %v241
  %v246 = vadd.f32 %v207, %v241
  %v247 = vadd.f32 %v208, %v241
  %v248 = vadd.f32 %v209, %v241
  %v249 = vadd.f32 %v210, %v241
  %v250 = vadd.f32 %v211, %v241
  %v251 = vadd.f32 %v212, %v241
  %v252 = vadd.f32 %v213, %v241
  %v253 = vadd.f32 %v214, %v241
  %v254 = vadd.f32 %v215, %v241
  %v255 = vadd.f32 %v216, %v241
  %v256 = vadd.f32 %v217, %v241
  %v257 = vadd.f32 %v218, %v241
  %v258 = vadd.f32 %v219, %v241
  %v259 = vadd.f32 %v220, %v241
  %v260 = vadd.f32 %v221, %v241
  %v261 = vadd.f32 %v222, %v241
  %v262 = vadd.f32 %v223, %v241
  %v263 = vadd.f32 %v224, %v241
  %v264 = vadd.f32 %v225, %v241
  %v265 = vadd.f32 %v226, %v241
  %v266 = vadd.f32 %v227, %v241
  %v267 = vadd.f32 %v228, %v241
  %v268 = vadd.f32 %v229, %v241
  %v269 = vadd.f32 %v230, %v241
  %v270 = vadd.f32 %v231, %v241
  %v271 = vadd.f32 %v232, %v241
  %v272 = vadd.f32 %v233, %v241
  %v273 = vadd.f32 %v234, %v241
  %v274 = vadd.f32 %v235, %v241
  %v275 = vmax.f32 %v243, 0.0
  %v276 = vmax.f32 %v244, 0.0
  %v277 = vmax.f32 %v245, 0.0
  %v278 = vmax.f32 %v246, 0.0
  %v279 = vmax.f32 %v247, 0.0
  %v280 = vmax.f32 %v248, 0.0
  %v281 = vmax.f32 %v249, 0.0
  %v282 = vmax.f32 %v250, 0.0
  %v283 = vmax.f32 %v251, 0.0
  %v284 = vmax.f32 %v252, 0.0
  %v285 = vmax.f32 %v253, 0.0
  %v286 = vmax.f32 %v254, 0.0
  %v287 = vmax.f32 %v255, 0.0
  %v288 = vmax.f32 %v256, 0.0
  %v289 = vmax.f32 %v257, 0.0
  %v290 = vmax.f32 %v258, 0.0
  %v291 = vmax.f32 %v259, 0.0
  %v292 = vmax.f32 %v260, 0.0
  %v293 = vmax.f32 %v261, 0.0
  %v294 = vmax.f32 %v262, 0.0
  %v295 = vmax.f32 %v263, 0.0
  %v296 = vmax.f32 %v264, 0.0
  %v297 = vmax.f32 %v265, 0.0
  %v298 = vmax.f32 %v266, 0.0
  %v299 = vmax.f32 %v267, 0.0
  %v300 = vmax.f32 %v268, 0.0
  %v301 = vmax.f32 %v269, 0.0
  %v302 = vmax.f32 %v270, 0.0
  %v303 = vmax.f32 %v271, 0.0
  %v304 = vmax.f32 %v272, 0.0
  %v305 = vmax.f32 %v273, 0.0
  %v306 = vmax.f32 %v274, 0.0
  %v307 = vmin.f32 %v275, 6.0
  %v308 = vmin.f32 %v276, 6.0
  %v309 = vmin.f32 %v277, 6.0
  %v310 = vmin.f32 %v278, 6.0
  %v311 = vmin.f32 %v279, 6.0
  %v312 = vmin.f32 %v280, 6.0
  %v313 = vmin.f32 %v281, 6.0
  %v314 = vmin.f32 %v282, 6.0
  %v315 = vmin.f32 %v283, 6.0
  %v316 = vmin.f32 %v284, 6.0
  %v317 = vmin.f32 %v285, 6.0
  %v318 = vmin.f32 %v286, 6.0
  %v319 = vmin.f32 %v287, 6.0
  %v320 = vmin.f32 %v288, 6.0
  %v321 = vmin.f32 %v289, 6.0
  %v322 = vmin.f32 %v290, 6.0
  %v323 = vmin.f32 %v291, 6.0
  %v324 = vmin.f32 %v292, 6.0
  %v325 = vmin.f32 %v293, 6.0
  %v326 = vmin.f32 %v294, 6.0
  %v327 = vmin.f32 %v295, 6.0
  %v328 = vmin.f32 %v296, 6.0
  %v329 = vmin.f32 %v297, 6.0
  %v330 = vmin.f32 %v298, 6.0
  %v331 = vmin.f32 %v299, 6.0
  %v332 = vmin.f32 %v300, 6.0
  %v333 = vmin.f32 %v301, 6.0
  %v334 = vmin.f32 %v302, 6.0
  %v335 = vmin.f32 %v303, 6.0
  %v336 = vmin.f32 %v304, 6.0
  %v337 = vmin.f32 %v305, 6.0
  %v338 = vmin.f32 %v306, 6.0
  %339 = vst [vmem:[%s6] sm:$0xff] %v307
  %340 = vst [vmem:[%s6 + $0x8] sm:$0xff] %v308
  %341 = vst [vmem:[%s6 + $0x10] sm:$0xff] %v309
  %342 = vst [vmem:[%s6 + $0x18] sm:$0xff] %v310
  %343 = vst [vmem:[%s6 + $0x20] sm:$0xff] %v311
  %344 = vst [vmem:[%s6 + $0x28] sm:$0xff] %v312
  %345 = vst [vmem:[%s6 + $0x30] sm:$0xff] %v313
  %346 = vst [vmem:[%s6 + $0x38] sm:$0xff] %v314
  %347 = vst [vmem:[%s6 + $0x40] sm:$0xff] %v315
  %348 = vst [vmem:[%s6 + $0x48] sm:$0xff] %v316
  %349 = vst [vmem:[%s6 + $0x50] sm:$0xff] %v317
  %350 = vst [vmem:[%s6 + $0x58] sm:$0xff] %v318
  %351 = vst [vmem:[%s6 + $0x60] sm:$0xff] %v319
  %352 = vst [vmem:[%s6 + $0x68] sm:$0xff] %v320
  %353 = vst [vmem:[%s6 + $0x70] sm:$0xff] %v321
  %354 = vst [vmem:[%s6 + $0x78] sm:$0xff] %v322
  %355 = vst [vmem:[%s6 + $0x80] sm:$0xff] %v323
  %356 = vst [vmem:[%s6 + $0x88] sm:$0xff] %v324
  %357 = vst [vmem:[%s6 + $0x90] sm:$0xff] %v325
  %358 = vst [vmem:[%s6 + $0x98] sm:$0xff] %v326
  %359 = vst [vmem:[%s6 + $0xa0] sm:$0xff] %v327
  %360 = vst [vmem:[%s6 + $0xa8] sm:$0xff] %v328
  %361 = vst [vmem:[%s6 + $0xb0] sm:$0xff] %v329
  %362 = vst [vmem:[%s6 + $0xb8] sm:$0xff] %v330
  %363 = vst [vmem:[%s6 + $0xc0] sm:$0xff] %v331
  %364 = vst [vmem:[%s6 + $0xc8] sm:$0xff] %v332
  %365 = vst [vmem:[%s6 + $0xd0] sm:$0xff] %v333
  %366 = vst [vmem:[%s6 + $0xd8] sm:$0xff] %v334
  %367 = vst [vmem:[%s6 + $0xe0] sm:$0xff] %v335
  %368 = vst [vmem:[%s6 + $0xe8] sm:$0xff] %v336
  %369 = vst [vmem:[%s6 + $0xf0] sm:$0xff] %v337
  %370 = vst [vmem:[%s6 + $0xf8] sm:$0xff] %v338
  // Predicated region
  $region26: #{resnet_forward.50} parent=0 // pred_check
    _
  $region27: #{resnet_forward.50} parent=0 // pred_check_branch
    %372 = sbr.rel (0) target = $region29
  $region28: #{resnet_forward.50} parent=0 // pred_region
    _
  $region29: #{resnet_forward.50} parent=0 // pred_fallthru
    _
  // Predicated region
  $region30: #{resnet_forward.50} parent=0 // pred_check
    _
  $region31: #{resnet_forward.50} parent=0 // pred_check_branch
    %374 = sbr.rel (0) target = $region33
  $region32: #{resnet_forward.50} parent=0 // pred_region
    _
  $region33: #{resnet_forward.50} parent=0 // pred_fallthru
    _

// kernel: resnet_forward.51
$region0: #{resnet_forward.51}
  #allocation0 [shape = 'u32[]', space=smem, size = 0x4, offset = 0x4, fixed_abs, tag = 'smem constant byte address 0x4 - core index']
  #allocation1 [shape = 'u32[144,128]{1,0:T(1,128)}', space=vmem, size = 0x12000, scoped, tag = 'internal scratch']
  %s0 = inlined_call_operand.vmem [shape: f32[2,56,128], index: 0, kind: input, shape index: {}]
  %s1 = inlined_call_operand.vmem [shape: f32[2,8,128], index: 1, kind: output, shape index: {}]
  %s2 = sld [smem:[#allocation0]]
  $region37: #{resnet_forward.51} parent=0
    _
  %s4 = ssub.s32 1, %s2
  %s5 = scalar_select 0, %s4, %s2
  loop: start=0, step=1, limit=4
  $region2: #{resnet_forward.51} parent=0 // loop_pre_header
    _
  $region3: #{resnet_forward.51} parent=0 // loop_header
    %s7 = sphi 0, %s11
    %p8 = scmp.ge.s32.totalorder %s7, 4
    %s17 = sphi 0, %s19
    %s20 = sphi 0, %s17
    %s21 = sphi 0, %s20
    %s37 = sphi 0, %s21
    %s43 = sphi 0, %s45
    %s46 = sphi 0, %s43
    %s47 = sphi 0, %s46
    %s63 = sphi 0, %s47
  $region4: #{resnet_forward.51} parent=0 // loop_header_branch
    %10 = sbr.rel (%p8) target = $region8
  $region5: #{resnet_forward.51} parent=0 // loop_body
    %s12 = ssub.s32 %s7, 1
    %s13 = ssub.s32 %s7, 2
    %s14 = sadd.s32 %s7, 1
    %s15 = ssub.s32 %s7, %s14
    %p16 = scmp.eq.s32.totalorder %s15, 0
    %s18 = sadd.s32 %s17, 1
    %s19 = scalar_select %p16, %s17, %s18
    %p22 = pneg %p16
    %p23 = scmp.eq.s32.totalorder %s7, 1
    %p24 = por %p22, %p23
    %p25 = scmp.ne.s32.totalorder %s17, %s20
    %p26 = scmp.eq.s32.totalorder %s7, 0
    %p27 = por %p25, %p26
    %p28 = scmp.ne.s32.totalorder %s17, %s20
    %p29 = scmp.eq.s32.totalorder %s12, 1
    %p30 = por %p28, %p29
    %p31 = scmp.ne.s32.totalorder %s20, %s21
    %p32 = scmp.eq.s32.totalorder %s12, 0
    %p33 = por %p31, %p32
    %p34 = scmp.ne.s32.totalorder %s20, %s21
    %p35 = scmp.eq.s32.totalorder %s13, 1
    %p36 = por %p34, %p35
    %p38 = scmp.ne.s32.totalorder %s21, %s37
    %p39 = scmp.eq.s32.totalorder %s13, 0
    %p40 = por %p38, %p39
    %s41 = ssub.s32 %s7, %s14
    %p42 = scmp.eq.s32.totalorder %s41, 0
    %s44 = sadd.s32 %s43, 1
    %s45 = scalar_select %p42, %s43, %s44
    %p48 = pneg %p42
    %p49 = scmp.eq.s32.totalorder %s7, 1
    %p50 = por %p48, %p49
    %p51 = scmp.ne.s32.totalorder %s43, %s46
    %p52 = scmp.eq.s32.totalorder %s7, 0
    %p53 = por %p51, %p52
    %p54 = scmp.ne.s32.totalorder %s43, %s46
    %p55 = scmp.eq.s32.totalorder %s12, 1
    %p56 = por %p54, %p55
    %p57 = scmp.ne.s32.totalorder %s46, %s47
    %p58 = scmp.eq.s32.totalorder %s12, 0
    %p59 = por %p57, %p58
    %p60 = scmp.ne.s32.totalorder %s46, %s47
    %p61 = scmp.eq.s32.totalorder %s13, 1
    %p62 = por %p60, %p61
    %p64 = scmp.ne.s32.totalorder %s47, %s63
    %p65 = scmp.eq.s32.totalorder %s13, 0
    %p66 = por %p64, %p65
    %p67 = scmp.le.s32.totalorder 1, %s7
    %p68 = scmp.lt.s32.totalorder %s7, 3
    %p69 = pnand %p67, %p68
    %p70 = pneg %p69
    // Predicated region
    $region9: #{resnet_forward.51} parent=5 // pred_check
      _
    $region10: #{resnet_forward.51} parent=5 // pred_check_branch
      %72 = sbr.rel (%p69) target = $region12
    $region11: #{resnet_forward.51} parent=5 // pred_region
      %s73 = ssub.s32 %s7, 1
    $region12: #{resnet_forward.51} parent=5 // pred_fallthru
      _
    %p74 = scmp.lt.s32.totalorder %s7, 2
    // Predicated region
    $region13: #{resnet_forward.51} parent=5 // pred_check
      %p75 = pneg %p74
    $region14: #{resnet_forward.51} parent=5 // pred_check_branch
      %77 = sbr.rel (%p75) target = $region16
    $region15: #{resnet_forward.51} parent=5 // pred_region
      // Predicated region
      $region17: #{resnet_forward.51} parent=15 // pred_check
        %p78 = pneg %p27
      $region18: #{resnet_forward.51} parent=15 // pred_check_branch
        %80 = sbr.rel (%p78) target = $region20
      $region19: #{resnet_forward.51} parent=15 // pred_region
        %p81 = scmp.lt.s32.totalorder %s7, 1
        %s82 = scalar_select %p81, %s7, 1
        %s83 = smul.addr %s82, 7
        %s84 = smul.addr %s83, 8
        %s85 = scalar_lea.vmem %s0, %s84
      $region20: #{resnet_forward.51} parent=15 // pred_fallthru
        _
    $region16: #{resnet_forward.51} parent=5 // pred_fallthru
      _
    %p86 = scmp.le.s32.totalorder 1, %s7
    %p87 = scmp.lt.s32.totalorder %s7, 3
    %p88 = pnand %p86, %p87
    %p89 = pneg %p88
    // Predicated region
    $region21: #{resnet_forward.51} parent=5 // pred_check
      _
    $region22: #{resnet_forward.51} parent=5 // pred_check_branch
      %91 = sbr.rel (%p88) target = $region24
    $region23: #{resnet_forward.51} parent=5 // pred_region
      %s92 = ssub.s32 %s7, 1
      %p93 = scmp.lt.s32.totalorder %s12, 1
      %s94 = scalar_select %p93, %s12, 1
      %s95 = smul.addr %s94, 7
      %s96 = smul.addr %s95, 8
      %s97 = scalar_lea.vmem %s0, %s96
      %p98 = pneg %p33
      %p99 = pneg %p30
      %p100 = pneg %p59
      %p101 = pneg %p56
      %p102 = scmp.lt.s32.totalorder %s12, 1
      %s103 = scalar_select %p102, %s12, 1
      %s104 = smul.addr %s103, 8
      %s105 = scalar_lea.vmem %s1, %s104
      %p106 = scmp.lt.s32.totalorder %s12, 1
      %s107 = scalar_select %p106, %s12, 1
      %s108 = smul.addr %s107, 7
      %s109 = smul.addr %s108, 8
      %s110 = scalar_lea.vmem %s0, %s109
      %p111 = scmp.lt.s32.totalorder %s12, 1
      %s112 = scalar_select %p111, %s12, 1
      %s113 = smul.addr %s112, 8
      %s114 = scalar_lea.vmem %s1, %s113
      %v115 = vld [vmem:[%s110] sm:$0xff]
      %v116 = vld [vmem:[%s110 + $0x8] sm:$0xff]
      %v117 = vld [vmem:[%s110 + $0x10] sm:$0xff]
      %v118 = vld [vmem:[%s110 + $0x18] sm:$0xff]
      %v119 = vld [vmem:[%s110 + $0x20] sm:$0xff]
      %v120 = vld [vmem:[%s110 + $0x28] sm:$0xff]
      %v121 = vld [vmem:[%s110 + $0x30] sm:$0xff]
      %v122 = vadd.f32 %v115, %v116
      %v123 = vadd.f32 %v122, %v117
      %v124 = vadd.f32 %v123, %v118
      %v125 = vadd.f32 %v124, %v119
      %v126 = vadd.f32 %v125, %v120
      %v127 = vadd.f32 %v126, %v121
      %v128 = vrot.slane %v127, 4
      %v129 = vadd.f32 %v127, %v128
      %v130 = vrot.slane %v129, 2
      %v131 = vadd.f32 %v129, %v130
      %v132 = vrot.slane %v131, 1
      %v133 = vadd.f32 %v131, %v132
      %v134 = vmul.f32 %v133, 0.020408163
      %vm135 = vcmask 1040384
      %v136 = vsel %vm135, %v134, 0.0
      %137 = vst [vmem:[%s114] sm:$0xff] %v136
      %p138 = scmp.lt.s32.totalorder %s12, 1
      %s139 = scalar_select %p138, %s12, 1
      %s140 = smul.addr %s139, 8
      %s141 = scalar_lea.vmem %s1, %s140
      // Predicated region
      $region25: #{resnet_forward.51} parent=23 // pred_check
        %p142 = pneg %p56
      $region26: #{resnet_forward.51} parent=23 // pred_check_branch
        %144 = sbr.rel (%p142) target = $region28
      $region27: #{resnet_forward.51} parent=23 // pred_region
        _
      $region28: #{resnet_forward.51} parent=23 // pred_fallthru
        _
    $region24: #{resnet_forward.51} parent=5 // pred_fallthru
      _
    %p145 = scmp.le.s32.totalorder 2, %s7
    // Predicated region
    $region29: #{resnet_forward.51} parent=5 // pred_check
      %p146 = pneg %p145
    $region30: #{resnet_forward.51} parent=5 // pred_check_branch
      %148 = sbr.rel (%p146) target = $region32
    $region31: #{resnet_forward.51} parent=5 // pred_region
      %s149 = ssub.s32 %s7, 2
      // Predicated region
      $region33: #{resnet_forward.51} parent=31 // pred_check
        %p150 = pneg %p62
      $region34: #{resnet_forward.51} parent=31 // pred_check_branch
        %152 = sbr.rel (%p150) target = $region36
      $region35: #{resnet_forward.51} parent=31 // pred_region
        %p153 = scmp.lt.s32.totalorder %s13, 1
        %s154 = scalar_select %p153, %s13, 1
        %s155 = smul.addr %s154, 8
        %s156 = scalar_lea.vmem %s1, %s155
      $region36: #{resnet_forward.51} parent=31 // pred_fallthru
        _
    $region32: #{resnet_forward.51} parent=5 // pred_fallthru
      _
  $region6: #{resnet_forward.51} parent=0 // loop_footer
    %s11 = sadd.s32 1, %s7
  $region7: #{resnet_forward.51} parent=0 // loop_footer_branch
    %6 = sbr.rel target = $region3
  $region8: #{resnet_forward.51} parent=0 // loop_exit
    _

// kernel: resnet_forward.52
$region0: #{resnet_forward.52}
  #allocation0 [shape = 'u32[]', space=smem, size = 0x4, offset = 0x4, fixed_abs, tag = 'smem constant byte address 0x4 - core index']
  #allocation1 [shape = 'u32[144,128]{1,0:T(1,128)}', space=vmem, size = 0x12000, scoped, tag = 'internal scratch']
  #allocation2 [shape = 'f32[256,128]{1,0:T(8,128)}', space=vmem, size = 0x20000, scoped, tag = 'scratch operand']
  %s0 = inlined_call_operand.vmem [shape: bf16[256,128], index: 0, kind: input, shape index: {}]
  %s1 = inlined_call_operand.vmem [shape: bf16[128,128], index: 1, kind: input, shape index: {}]
  %s2 = inlined_call_operand.vmem [shape: f32[1,128], index: 2, kind: input, shape index: {}]
  %s3 = inlined_call_operand.vmem [shape: f32[256,128], index: 3, kind: output, shape index: {}]
  %s4 = sld [smem:[#allocation0]]
  $region30: #{resnet_forward.52} parent=0
    _
  %s6 = ssub.s32 1, %s4
  %s7 = scalar_select 0, %s6, %s4
  // Predicated region
  $region2: #{resnet_forward.52} parent=0 // pred_check
    _
  $region3: #{resnet_forward.52} parent=0 // pred_check_branch
    %9 = sbr.rel (0) target = $region5
  $region4: #{resnet_forward.52} parent=0 // pred_region
    _
  $region5: #{resnet_forward.52} parent=0 // pred_fallthru
    _
  // Predicated region
  $region6: #{resnet_forward.52} parent=0 // pred_check
    _
  $region7: #{resnet_forward.52} parent=0 // pred_check_branch
    %11 = sbr.rel (0) target = $region9
  $region8: #{resnet_forward.52} parent=0 // pred_region
    _
  $region9: #{resnet_forward.52} parent=0 // pred_fallthru
    _
  // Predicated region
  $region10: #{resnet_forward.52} parent=0 // pred_check
    _
  $region11: #{resnet_forward.52} parent=0 // pred_check_branch
    %13 = sbr.rel (0) target = $region13
  $region12: #{resnet_forward.52} parent=0 // pred_region
    _
  $region13: #{resnet_forward.52} parent=0 // pred_fallthru
    _
  %p15 = scmp.eq.s32.totalorder 0, 0
  // Predicated region
  $region14: #{resnet_forward.52} parent=0 // pred_check
    %p16 = pneg %p15
  $region15: #{resnet_forward.52} parent=0 // pred_check_branch
    %18 = sbr.rel (%p16) target = $region17
  $region16: #{resnet_forward.52} parent=0 // pred_region
    %19 = vst [vmem:[#allocation2] sm:$0xff] 0.0
    %20 = vst [vmem:[#allocation2 + $0x8] sm:$0xff] 0.0
    %21 = vst [vmem:[#allocation2 + $0x10] sm:$0xff] 0.0
    %22 = vst [vmem:[#allocation2 + $0x18] sm:$0xff] 0.0
    %23 = vst [vmem:[#allocation2 + $0x20] sm:$0xff] 0.0
    %24 = vst [vmem:[#allocation2 + $0x28] sm:$0xff] 0.0
    %25 = vst [vmem:[#allocation2 + $0x30] sm:$0xff] 0.0
    %26 = vst [vmem:[#allocation2 + $0x38] sm:$0xff] 0.0
    %27 = vst [vmem:[#allocation2 + $0x40] sm:$0xff] 0.0
    %28 = vst [vmem:[#allocation2 + $0x48] sm:$0xff] 0.0
    %29 = vst [vmem:[#allocation2 + $0x50] sm:$0xff] 0.0
    %30 = vst [vmem:[#allocation2 + $0x58] sm:$0xff] 0.0
    %31 = vst [vmem:[#allocation2 + $0x60] sm:$0xff] 0.0
    %32 = vst [vmem:[#allocation2 + $0x68] sm:$0xff] 0.0
    %33 = vst [vmem:[#allocation2 + $0x70] sm:$0xff] 0.0
    %34 = vst [vmem:[#allocation2 + $0x78] sm:$0xff] 0.0
    %35 = vst [vmem:[#allocation2 + $0x80] sm:$0xff] 0.0
    %36 = vst [vmem:[#allocation2 + $0x88] sm:$0xff] 0.0
    %37 = vst [vmem:[#allocation2 + $0x90] sm:$0xff] 0.0
    %38 = vst [vmem:[#allocation2 + $0x98] sm:$0xff] 0.0
    %39 = vst [vmem:[#allocation2 + $0xa0] sm:$0xff] 0.0
    %40 = vst [vmem:[#allocation2 + $0xa8] sm:$0xff] 0.0
    %41 = vst [vmem:[#allocation2 + $0xb0] sm:$0xff] 0.0
    %42 = vst [vmem:[#allocation2 + $0xb8] sm:$0xff] 0.0
    %43 = vst [vmem:[#allocation2 + $0xc0] sm:$0xff] 0.0
    %44 = vst [vmem:[#allocation2 + $0xc8] sm:$0xff] 0.0
    %45 = vst [vmem:[#allocation2 + $0xd0] sm:$0xff] 0.0
    %46 = vst [vmem:[#allocation2 + $0xd8] sm:$0xff] 0.0
    %47 = vst [vmem:[#allocation2 + $0xe0] sm:$0xff] 0.0
    %48 = vst [vmem:[#allocation2 + $0xe8] sm:$0xff] 0.0
    %49 = vst [vmem:[#allocation2 + $0xf0] sm:$0xff] 0.0
    %50 = vst [vmem:[#allocation2 + $0xf8] sm:$0xff] 0.0
  $region17: #{resnet_forward.52} parent=0 // pred_fallthru
    _
  %v51 = vld [vmem:[#allocation2] sm:$0xff]
  %v52 = vld [vmem:[#allocation2 + $0x8] sm:$0xff]
  %v53 = vld [vmem:[#allocation2 + $0x10] sm:$0xff]
  %v54 = vld [vmem:[#allocation2 + $0x18] sm:$0xff]
  %v55 = vld [vmem:[#allocation2 + $0x20] sm:$0xff]
  %v56 = vld [vmem:[#allocation2 + $0x28] sm:$0xff]
  %v57 = vld [vmem:[#allocation2 + $0x30] sm:$0xff]
  %v58 = vld [vmem:[#allocation2 + $0x38] sm:$0xff]
  %v59 = vld [vmem:[#allocation2 + $0x40] sm:$0xff]
  %v60 = vld [vmem:[#allocation2 + $0x48] sm:$0xff]
  %v61 = vld [vmem:[#allocation2 + $0x50] sm:$0xff]
  %v62 = vld [vmem:[#allocation2 + $0x58] sm:$0xff]
  %v63 = vld [vmem:[#allocation2 + $0x60] sm:$0xff]
  %v64 = vld [vmem:[#allocation2 + $0x68] sm:$0xff]
  %v65 = vld [vmem:[#allocation2 + $0x70] sm:$0xff]
  %v66 = vld [vmem:[#allocation2 + $0x78] sm:$0xff]
  %v67 = vld [vmem:[#allocation2 + $0x80] sm:$0xff]
  %v68 = vld [vmem:[#allocation2 + $0x88] sm:$0xff]
  %v69 = vld [vmem:[#allocation2 + $0x90] sm:$0xff]
  %v70 = vld [vmem:[#allocation2 + $0x98] sm:$0xff]
  %v71 = vld [vmem:[#allocation2 + $0xa0] sm:$0xff]
  %v72 = vld [vmem:[#allocation2 + $0xa8] sm:$0xff]
  %v73 = vld [vmem:[#allocation2 + $0xb0] sm:$0xff]
  %v74 = vld [vmem:[#allocation2 + $0xb8] sm:$0xff]
  %v75 = vld [vmem:[#allocation2 + $0xc0] sm:$0xff]
  %v76 = vld [vmem:[#allocation2 + $0xc8] sm:$0xff]
  %v77 = vld [vmem:[#allocation2 + $0xd0] sm:$0xff]
  %v78 = vld [vmem:[#allocation2 + $0xd8] sm:$0xff]
  %v79 = vld [vmem:[#allocation2 + $0xe0] sm:$0xff]
  %v80 = vld [vmem:[#allocation2 + $0xe8] sm:$0xff]
  %v81 = vld [vmem:[#allocation2 + $0xf0] sm:$0xff]
  %v82 = vld [vmem:[#allocation2 + $0xf8] sm:$0xff]
  %v83 = vld [vmem:[%s0] sm:$0xf]
  %v84 = vld [vmem:[%s0 + $0x4] sm:$0xf]
  %v85 = vld [vmem:[%s0 + $0x8] sm:$0xf]
  %v86 = vld [vmem:[%s0 + $0xc] sm:$0xf]
  %v87 = vld [vmem:[%s0 + $0x10] sm:$0xf]
  %v88 = vld [vmem:[%s0 + $0x14] sm:$0xf]
  %v89 = vld [vmem:[%s0 + $0x18] sm:$0xf]
  %v90 = vld [vmem:[%s0 + $0x1c] sm:$0xf]
  %v91 = vld [vmem:[%s0 + $0x20] sm:$0xf]
  %v92 = vld [vmem:[%s0 + $0x24] sm:$0xf]
  %v93 = vld [vmem:[%s0 + $0x28] sm:$0xf]
  %v94 = vld [vmem:[%s0 + $0x2c] sm:$0xf]
  %v95 = vld [vmem:[%s0 + $0x30] sm:$0xf]
  %v96 = vld [vmem:[%s0 + $0x34] sm:$0xf]
  %v97 = vld [vmem:[%s0 + $0x38] sm:$0xf]
  %v98 = vld [vmem:[%s0 + $0x3c] sm:$0xf]
  %v99 = vld [vmem:[%s0 + $0x40] sm:$0xf]
  %v100 = vld [vmem:[%s0 + $0x44] sm:$0xf]
  %v101 = vld [vmem:[%s0 + $0x48] sm:$0xf]
  %v102 = vld [vmem:[%s0 + $0x4c] sm:$0xf]
  %v103 = vld [vmem:[%s0 + $0x50] sm:$0xf]
  %v104 = vld [vmem:[%s0 + $0x54] sm:$0xf]
  %v105 = vld [vmem:[%s0 + $0x58] sm:$0xf]
  %v106 = vld [vmem:[%s0 + $0x5c] sm:$0xf]
  %v107 = vld [vmem:[%s0 + $0x60] sm:$0xf]
  %v108 = vld [vmem:[%s0 + $0x64] sm:$0xf]
  %v109 = vld [vmem:[%s0 + $0x68] sm:$0xf]
  %v110 = vld [vmem:[%s0 + $0x6c] sm:$0xf]
  %v111 = vld [vmem:[%s0 + $0x70] sm:$0xf]
  %v112 = vld [vmem:[%s0 + $0x74] sm:$0xf]
  %v113 = vld [vmem:[%s0 + $0x78] sm:$0xf]
  %v114 = vld [vmem:[%s0 + $0x7c] sm:$0xf]
  %v115 = vld [vmem:[%s1] sm:$0xf]
  %v116 = vld [vmem:[%s1 + $0x4] sm:$0xf]
  %v117 = vld [vmem:[%s1 + $0x8] sm:$0xf]
  %v118 = vld [vmem:[%s1 + $0xc] sm:$0xf]
  %v119 = vld [vmem:[%s1 + $0x10] sm:$0xf]
  %v120 = vld [vmem:[%s1 + $0x14] sm:$0xf]
  %v121 = vld [vmem:[%s1 + $0x18] sm:$0xf]
  %v122 = vld [vmem:[%s1 + $0x1c] sm:$0xf]
  %v123 = vld [vmem:[%s1 + $0x20] sm:$0xf]
  %v124 = vld [vmem:[%s1 + $0x24] sm:$0xf]
  %v125 = vld [vmem:[%s1 + $0x28] sm:$0xf]
  %v126 = vld [vmem:[%s1 + $0x2c] sm:$0xf]
  %v127 = vld [vmem:[%s1 + $0x30] sm:$0xf]
  %v128 = vld [vmem:[%s1 + $0x34] sm:$0xf]
  %v129 = vld [vmem:[%s1 + $0x38] sm:$0xf]
  %v130 = vld [vmem:[%s1 + $0x3c] sm:$0xf]
  %v163 = vunpack.c.l.b16 %v83
  %v164 = vunpack.c.l.b16 %v84
  %v165 = vunpack.c.l.b16 %v85
  %v166 = vunpack.c.l.b16 %v86
  %v167 = vunpack.c.l.b16 %v87
  %v168 = vunpack.c.l.b16 %v88
  %v169 = vunpack.c.l.b16 %v89
  %v170 = vunpack.c.l.b16 %v90
  %v171 = vunpack.c.l.b16 %v91
  %v172 = vunpack.c.l.b16 %v92
  %v173 = vunpack.c.l.b16 %v93
  %v174 = vunpack.c.l.b16 %v94
  %v175 = vunpack.c.l.b16 %v95
  %v176 = vunpack.c.l.b16 %v96
  %v177 = vunpack.c.l.b16 %v97
  %v178 = vunpack.c.l.b16 %v98
  %v179 = vunpack.c.l.b16 %v99
  %v180 = vunpack.c.l.b16 %v100
  %v181 = vunpack.c.l.b16 %v101
  %v182 = vunpack.c.l.b16 %v102
  %v183 = vunpack.c.l.b16 %v103
  %v184 = vunpack.c.l.b16 %v104
  %v185 = vunpack.c.l.b16 %v105
  %v186 = vunpack.c.l.b16 %v106
  %v187 = vunpack.c.l.b16 %v107
  %v188 = vunpack.c.l.b16 %v108
  %v189 = vunpack.c.l.b16 %v109
  %v190 = vunpack.c.l.b16 %v110
  %v191 = vunpack.c.l.b16 %v111
  %v192 = vunpack.c.l.b16 %v112
  %v193 = vunpack.c.l.b16 %v113
  %v194 = vunpack.c.l.b16 %v114
  %v195 = vpack.c.b16 %v164, %v163
  %v196 = vpack.c.b16 %v166, %v165
  %v197 = vpack.c.b16 %v168, %v167
  %v198 = vpack.c.b16 %v170, %v169
  %v199 = vpack.c.b16 %v172, %v171
  %v200 = vpack.c.b16 %v174, %v173
  %v201 = vpack.c.b16 %v176, %v175
  %v202 = vpack.c.b16 %v178, %v177
  %v203 = vpack.c.b16 %v180, %v179
  %v204 = vpack.c.b16 %v182, %v181
  %v205 = vpack.c.b16 %v184, %v183
  %v206 = vpack.c.b16 %v186, %v185
  %v207 = vpack.c.b16 %v188, %v187
  %v208 = vpack.c.b16 %v190, %v189
  %v209 = vpack.c.b16 %v192, %v191
  %v210 = vpack.c.b16 %v194, %v193
  %v243 = vunpack.c.l.b16 %v115
  %v244 = vunpack.c.l.b16 %v116
  %v245 = vunpack.c.l.b16 %v117
  %v246 = vunpack.c.l.b16 %v118
  %v247 = vunpack.c.l.b16 %v119
  %v248 = vunpack.c.l.b16 %v120
  %v249 = vunpack.c.l.b16 %v121
  %v250 = vunpack.c.l.b16 %v122
  %v251 = vunpack.c.l.b16 %v123
  %v252 = vunpack.c.l.b16 %v124
  %v253 = vunpack.c.l.b16 %v125
  %v254 = vunpack.c.l.b16 %v126
  %v255 = vunpack.c.l.b16 %v127
  %v256 = vunpack.c.l.b16 %v128
  %v257 = vunpack.c.l.b16 %v129
  %v258 = vunpack.c.l.b16 %v130
  %v259 = vpack.c.b16 %v244, %v243
  %v260 = vpack.c.b16 %v246, %v245
  %v261 = vpack.c.b16 %v248, %v247
  %v262 = vpack.c.b16 %v250, %v249
  %v263 = vpack.c.b16 %v252, %v251
  %v264 = vpack.c.b16 %v254, %v253
  %v265 = vpack.c.b16 %v256, %v255
  %v266 = vpack.c.b16 %v258, %v257
  %275 = vmatprep.subr.bf16.mxu0 0
  %276 = vmatpush1.bf16.msra.mxu0 %v266
  %277 = vmatprep.subr.bf16.mxu0 0
  %278 = vmatpush1.bf16.msra.mxu0 %v265
  %279 = vmatprep.subr.bf16.mxu0 0
  %280 = vmatpush1.bf16.msra.mxu0 %v264
  %281 = vmatprep.subr.bf16.mxu0 0
  %282 = vmatpush1.bf16.msra.mxu0 %v263
  %283 = vmatprep.subr.bf16.mxu0 0
  %284 = vmatpush1.bf16.msra.mxu0 %v262
  %285 = vmatprep.subr.bf16.mxu0 0
  %286 = vmatpush1.bf16.msra.mxu0 %v261
  %287 = vmatprep.subr.bf16.mxu0 0
  %288 = vmatpush1.bf16.msra.mxu0 %v260
  %289 = vmatprep.subr.bf16.mxu0 0
  %290 = vmatpush1.bf16.msra.mxu0 %v259
  %291 = vmatprep.subr.bf16.mxu0 0
  %292 = vmatpush2.bf16.msra.mxu0 0
  %293 = vmatprep.subr.bf16.mxu0 0
  %294 = vmatpush2.bf16.msra.mxu0 0
  %295 = vmatprep.subr.bf16.mxu0 0
  %296 = vmatpush2.bf16.msra.mxu0 0
  %297 = vmatprep.subr.bf16.mxu0 0
  %298 = vmatpush2.bf16.msra.mxu0 0
  %299 = vmatprep.subr.bf16.mxu0 0
  %300 = vmatpush2.bf16.msra.mxu0 0
  %301 = vmatprep.subr.bf16.mxu0 0
  %302 = vmatpush2.bf16.msra.mxu0 0
  %303 = vmatprep.subr.bf16.mxu0 0
  %304 = vmatpush2.bf16.msra.mxu0 0
  %305 = vmatprep.subr.bf16.mxu0 0
  %306 = vmatpush2.bf16.msra.mxu0 0
  %307 = vmatprep.mubr.bf16.mxu0 0
  %308 = vmatmul.mubr.bf16.gmra.mxu0 %v195
  %v309 = vpop.f32.mrf.mxu0
  %v310 = vadd.f32 0.0, %v309
  %v311 = vpop.f32.mrf.mxu0
  %v312 = vpop.f32.mrf.mxu0
  %v313 = vadd.f32 0.0, %v312
  %v314 = vpop.f32.mrf.mxu0
  %315 = vmatprep.mubr.bf16.mxu0 0
  %316 = vmatmul.mubr.bf16.gmra.mxu0 %v196
  %v317 = vpop.f32.mrf.mxu0
  %v318 = vadd.f32 0.0, %v317
  %v319 = vpop.f32.mrf.mxu0
  %v320 = vpop.f32.mrf.mxu0
  %v321 = vadd.f32 0.0, %v320
  %v322 = vpop.f32.mrf.mxu0
  %323 = vmatprep.mubr.bf16.mxu0 0
  %324 = vmatmul.mubr.bf16.gmra.mxu0 %v197
  %v325 = vpop.f32.mrf.mxu0
  %v326 = vadd.f32 0.0, %v325
  %v327 = vpop.f32.mrf.mxu0
  %v328 = vpop.f32.mrf.mxu0
  %v329 = vadd.f32 0.0, %v328
  %v330 = vpop.f32.mrf.mxu0
  %331 = vmatprep.mubr.bf16.mxu0 0
  %332 = vmatmul.mubr.bf16.gmra.mxu0 %v198
  %v333 = vpop.f32.mrf.mxu0
  %v334 = vadd.f32 0.0, %v333
  %v335 = vpop.f32.mrf.mxu0
  %v336 = vpop.f32.mrf.mxu0
  %v337 = vadd.f32 0.0, %v336
  %v338 = vpop.f32.mrf.mxu0
  %339 = vmatprep.mubr.bf16.mxu0 0
  %340 = vmatmul.mubr.bf16.gmra.mxu0 %v199
  %v341 = vpop.f32.mrf.mxu0
  %v342 = vadd.f32 0.0, %v341
  %v343 = vpop.f32.mrf.mxu0
  %v344 = vpop.f32.mrf.mxu0
  %v345 = vadd.f32 0.0, %v344
  %v346 = vpop.f32.mrf.mxu0
  %347 = vmatprep.mubr.bf16.mxu0 0
  %348 = vmatmul.mubr.bf16.gmra.mxu0 %v200
  %v349 = vpop.f32.mrf.mxu0
  %v350 = vadd.f32 0.0, %v349
  %v351 = vpop.f32.mrf.mxu0
  %v352 = vpop.f32.mrf.mxu0
  %v353 = vadd.f32 0.0, %v352
  %v354 = vpop.f32.mrf.mxu0
  %355 = vmatprep.mubr.bf16.mxu0 0
  %356 = vmatmul.mubr.bf16.gmra.mxu0 %v201
  %v357 = vpop.f32.mrf.mxu0
  %v358 = vadd.f32 0.0, %v357
  %v359 = vpop.f32.mrf.mxu0
  %v360 = vpop.f32.mrf.mxu0
  %v361 = vadd.f32 0.0, %v360
  %v362 = vpop.f32.mrf.mxu0
  %363 = vmatprep.mubr.bf16.mxu0 0
  %364 = vmatmul.mubr.bf16.gmra.mxu0 %v202
  %v365 = vpop.f32.mrf.mxu0
  %v366 = vadd.f32 0.0, %v365
  %v367 = vpop.f32.mrf.mxu0
  %v368 = vpop.f32.mrf.mxu0
  %v369 = vadd.f32 0.0, %v368
  %v370 = vpop.f32.mrf.mxu0
  %371 = vmatprep.mubr.bf16.mxu0 0
  %372 = vmatmul.mubr.bf16.gmra.mxu0 %v203
  %v373 = vpop.f32.mrf.mxu0
  %v374 = vadd.f32 0.0, %v373
  %v375 = vpop.f32.mrf.mxu0
  %v376 = vpop.f32.mrf.mxu0
  %v377 = vadd.f32 0.0, %v376
  %v378 = vpop.f32.mrf.mxu0
  %379 = vmatprep.mubr.bf16.mxu0 0
  %380 = vmatmul.mubr.bf16.gmra.mxu0 %v204
  %v381 = vpop.f32.mrf.mxu0
  %v382 = vadd.f32 0.0, %v381
  %v383 = vpop.f32.mrf.mxu0
  %v384 = vpop.f32.mrf.mxu0
  %v385 = vadd.f32 0.0, %v384
  %v386 = vpop.f32.mrf.mxu0
  %387 = vmatprep.mubr.bf16.mxu0 0
  %388 = vmatmul.mubr.bf16.gmra.mxu0 %v205
  %v389 = vpop.f32.mrf.mxu0
  %v390 = vadd.f32 0.0, %v389
  %v391 = vpop.f32.mrf.mxu0
  %v392 = vpop.f32.mrf.mxu0
  %v393 = vadd.f32 0.0, %v392
  %v394 = vpop.f32.mrf.mxu0
  %395 = vmatprep.mubr.bf16.mxu0 0
  %396 = vmatmul.mubr.bf16.gmra.mxu0 %v206
  %v397 = vpop.f32.mrf.mxu0
  %v398 = vadd.f32 0.0, %v397
  %v399 = vpop.f32.mrf.mxu0
  %v400 = vpop.f32.mrf.mxu0
  %v401 = vadd.f32 0.0, %v400
  %v402 = vpop.f32.mrf.mxu0
  %403 = vmatprep.mubr.bf16.mxu0 0
  %404 = vmatmul.mubr.bf16.gmra.mxu0 %v207
  %v405 = vpop.f32.mrf.mxu0
  %v406 = vadd.f32 0.0, %v405
  %v407 = vpop.f32.mrf.mxu0
  %v408 = vpop.f32.mrf.mxu0
  %v409 = vadd.f32 0.0, %v408
  %v410 = vpop.f32.mrf.mxu0
  %411 = vmatprep.mubr.bf16.mxu0 0
  %412 = vmatmul.mubr.bf16.gmra.mxu0 %v208
  %v413 = vpop.f32.mrf.mxu0
  %v414 = vadd.f32 0.0, %v413
  %v415 = vpop.f32.mrf.mxu0
  %v416 = vpop.f32.mrf.mxu0
  %v417 = vadd.f32 0.0, %v416
  %v418 = vpop.f32.mrf.mxu0
  %419 = vmatprep.mubr.bf16.mxu0 0
  %420 = vmatmul.mubr.bf16.gmra.mxu0 %v209
  %v421 = vpop.f32.mrf.mxu0
  %v422 = vadd.f32 0.0, %v421
  %v423 = vpop.f32.mrf.mxu0
  %v424 = vpop.f32.mrf.mxu0
  %v425 = vadd.f32 0.0, %v424
  %v426 = vpop.f32.mrf.mxu0
  %427 = vmatprep.mubr.bf16.mxu0 0
  %428 = vmatmul.mubr.bf16.gmra.mxu0 %v210
  %v429 = vpop.f32.mrf.mxu0
  %v430 = vadd.f32 0.0, %v429
  %v431 = vpop.f32.mrf.mxu0
  %v432 = vpop.f32.mrf.mxu0
  %v433 = vadd.f32 0.0, %v432
  %v434 = vpop.f32.mrf.mxu0
  %435 = vdwg.mxu0
  %v436 = vadd.f32 %v51, %v310
  %v437 = vadd.f32 %v52, %v313
  %v438 = vadd.f32 %v53, %v318
  %v439 = vadd.f32 %v54, %v321
  %v440 = vadd.f32 %v55, %v326
  %v441 = vadd.f32 %v56, %v329
  %v442 = vadd.f32 %v57, %v334
  %v443 = vadd.f32 %v58, %v337
  %v444 = vadd.f32 %v59, %v342
  %v445 = vadd.f32 %v60, %v345
  %v446 = vadd.f32 %v61, %v350
  %v447 = vadd.f32 %v62, %v353
  %v448 = vadd.f32 %v63, %v358
  %v449 = vadd.f32 %v64, %v361
  %v450 = vadd.f32 %v65, %v366
  %v451 = vadd.f32 %v66, %v369
  %v452 = vadd.f32 %v67, %v374
  %v453 = vadd.f32 %v68, %v377
  %v454 = vadd.f32 %v69, %v382
  %v455 = vadd.f32 %v70, %v385
  %v456 = vadd.f32 %v71, %v390
  %v457 = vadd.f32 %v72, %v393
  %v458 = vadd.f32 %v73, %v398
  %v459 = vadd.f32 %v74, %v401
  %v460 = vadd.f32 %v75, %v406
  %v461 = vadd.f32 %v76, %v409
  %v462 = vadd.f32 %v77, %v414
  %v463 = vadd.f32 %v78, %v417
  %v464 = vadd.f32 %v79, %v422
  %v465 = vadd.f32 %v80, %v425
  %v466 = vadd.f32 %v81, %v430
  %v467 = vadd.f32 %v82, %v433
  %468 = vst [vmem:[#allocation2] sm:$0xff] %v436
  %469 = vst [vmem:[#allocation2 + $0x8] sm:$0xff] %v437
  %470 = vst [vmem:[#allocation2 + $0x10] sm:$0xff] %v438
  %471 = vst [vmem:[#allocation2 + $0x18] sm:$0xff] %v439
  %472 = vst [vmem:[#allocation2 + $0x20] sm:$0xff] %v440
  %473 = vst [vmem:[#allocation2 + $0x28] sm:$0xff] %v441
  %474 = vst [vmem:[#allocation2 + $0x30] sm:$0xff] %v442
  %475 = vst [vmem:[#allocation2 + $0x38] sm:$0xff] %v443
  %476 = vst [vmem:[#allocation2 + $0x40] sm:$0xff] %v444
  %477 = vst [vmem:[#allocation2 + $0x48] sm:$0xff] %v445
  %478 = vst [vmem:[#allocation2 + $0x50] sm:$0xff] %v446
  %479 = vst [vmem:[#allocation2 + $0x58] sm:$0xff] %v447
  %480 = vst [vmem:[#allocation2 + $0x60] sm:$0xff] %v448
  %481 = vst [vmem:[#allocation2 + $0x68] sm:$0xff] %v449
  %482 = vst [vmem:[#allocation2 + $0x70] sm:$0xff] %v450
  %483 = vst [vmem:[#allocation2 + $0x78] sm:$0xff] %v451
  %484 = vst [vmem:[#allocation2 + $0x80] sm:$0xff] %v452
  %485 = vst [vmem:[#allocation2 + $0x88] sm:$0xff] %v453
  %486 = vst [vmem:[#allocation2 + $0x90] sm:$0xff] %v454
  %487 = vst [vmem:[#allocation2 + $0x98] sm:$0xff] %v455
  %488 = vst [vmem:[#allocation2 + $0xa0] sm:$0xff] %v456
  %489 = vst [vmem:[#allocation2 + $0xa8] sm:$0xff] %v457
  %490 = vst [vmem:[#allocation2 + $0xb0] sm:$0xff] %v458
  %491 = vst [vmem:[#allocation2 + $0xb8] sm:$0xff] %v459
  %492 = vst [vmem:[#allocation2 + $0xc0] sm:$0xff] %v460
  %493 = vst [vmem:[#allocation2 + $0xc8] sm:$0xff] %v461
  %494 = vst [vmem:[#allocation2 + $0xd0] sm:$0xff] %v462
  %495 = vst [vmem:[#allocation2 + $0xd8] sm:$0xff] %v463
  %496 = vst [vmem:[#allocation2 + $0xe0] sm:$0xff] %v464
  %497 = vst [vmem:[#allocation2 + $0xe8] sm:$0xff] %v465
  %498 = vst [vmem:[#allocation2 + $0xf0] sm:$0xff] %v466
  %499 = vst [vmem:[#allocation2 + $0xf8] sm:$0xff] %v467
  // Predicated region
  $region18: #{resnet_forward.52} parent=0 // pred_check
    %p500 = pneg %p15
  $region19: #{resnet_forward.52} parent=0 // pred_check_branch
    %502 = sbr.rel (%p500) target = $region21
  $region20: #{resnet_forward.52} parent=0 // pred_region
    %v503 = vld [vmem:[#allocation2] sm:$0xff]
    %v504 = vld [vmem:[#allocation2 + $0x8] sm:$0xff]
    %v505 = vld [vmem:[#allocation2 + $0x10] sm:$0xff]
    %v506 = vld [vmem:[#allocation2 + $0x18] sm:$0xff]
    %v507 = vld [vmem:[#allocation2 + $0x20] sm:$0xff]
    %v508 = vld [vmem:[#allocation2 + $0x28] sm:$0xff]
    %v509 = vld [vmem:[#allocation2 + $0x30] sm:$0xff]
    %v510 = vld [vmem:[#allocation2 + $0x38] sm:$0xff]
    %v511 = vld [vmem:[#allocation2 + $0x40] sm:$0xff]
    %v512 = vld [vmem:[#allocation2 + $0x48] sm:$0xff]
    %v513 = vld [vmem:[#allocation2 + $0x50] sm:$0xff]
    %v514 = vld [vmem:[#allocation2 + $0x58] sm:$0xff]
    %v515 = vld [vmem:[#allocation2 + $0x60] sm:$0xff]
    %v516 = vld [vmem:[#allocation2 + $0x68] sm:$0xff]
    %v517 = vld [vmem:[#allocation2 + $0x70] sm:$0xff]
    %v518 = vld [vmem:[#allocation2 + $0x78] sm:$0xff]
    %v519 = vld [vmem:[#allocation2 + $0x80] sm:$0xff]
    %v520 = vld [vmem:[#allocation2 + $0x88] sm:$0xff]
    %v521 = vld [vmem:[#allocation2 + $0x90] sm:$0xff]
    %v522 = vld [vmem:[#allocation2 + $0x98] sm:$0xff]
    %v523 = vld [vmem:[#allocation2 + $0xa0] sm:$0xff]
    %v524 = vld [vmem:[#allocation2 + $0xa8] sm:$0xff]
    %v525 = vld [vmem:[#allocation2 + $0xb0] sm:$0xff]
    %v526 = vld [vmem:[#allocation2 + $0xb8] sm:$0xff]
    %v527 = vld [vmem:[#allocation2 + $0xc0] sm:$0xff]
    %v528 = vld [vmem:[#allocation2 + $0xc8] sm:$0xff]
    %v529 = vld [vmem:[#allocation2 + $0xd0] sm:$0xff]
    %v530 = vld [vmem:[#allocation2 + $0xd8] sm:$0xff]
    %v531 = vld [vmem:[#allocation2 + $0xe0] sm:$0xff]
    %v532 = vld [vmem:[#allocation2 + $0xe8] sm:$0xff]
    %v533 = vld [vmem:[#allocation2 + $0xf0] sm:$0xff]
    %v534 = vld [vmem:[#allocation2 + $0xf8] sm:$0xff]
    %v535 = vld [vmem:[%s2] sm:$0x1]
    %v537 = vlaneseq
    %v538 = vshrl.u32 %v537, 7
    %v539 = vsub.s32 0, %v538
    %v540 = vrot.slane %v535, %v539
    %v542 = vmul.f32 %v503, %v540
    %v543 = vmul.f32 %v504, %v540
    %v544 = vmul.f32 %v505, %v540
    %v545 = vmul.f32 %v506, %v540
    %v546 = vmul.f32 %v507, %v540
    %v547 = vmul.f32 %v508, %v540
    %v548 = vmul.f32 %v509, %v540
    %v549 = vmul.f32 %v510, %v540
    %v550 = vmul.f32 %v511, %v540
    %v551 = vmul.f32 %v512, %v540
    %v552 = vmul.f32 %v513, %v540
    %v553 = vmul.f32 %v514, %v540
    %v554 = vmul.f32 %v515, %v540
    %v555 = vmul.f32 %v516, %v540
    %v556 = vmul.f32 %v517, %v540
    %v557 = vmul.f32 %v518, %v540
    %v558 = vmul.f32 %v519, %v540
    %v559 = vmul.f32 %v520, %v540
    %v560 = vmul.f32 %v521, %v540
    %v561 = vmul.f32 %v522, %v540
    %v562 = vmul.f32 %v523, %v540
    %v563 = vmul.f32 %v524, %v540
    %v564 = vmul.f32 %v525, %v540
    %v565 = vmul.f32 %v526, %v540
    %v566 = vmul.f32 %v527, %v540
    %v567 = vmul.f32 %v528, %v540
    %v568 = vmul.f32 %v529, %v540
    %v569 = vmul.f32 %v530, %v540
    %v570 = vmul.f32 %v531, %v540
    %v571 = vmul.f32 %v532, %v540
    %v572 = vmul.f32 %v533, %v540
    %v573 = vmul.f32 %v534, %v540
    %574 = vst [vmem:[%s3] sm:$0xff] %v542
    %575 = vst [vmem:[%s3 + $0x8] sm:$0xff] %v543
    %576 = vst [vmem:[%s3 + $0x10] sm:$0xff] %v544
    %577 = vst [vmem:[%s3 + $0x18] sm:$0xff] %v545
    %578 = vst [vmem:[%s3 + $0x20] sm:$0xff] %v546
    %579 = vst [vmem:[%s3 + $0x28] sm:$0xff] %v547
    %580 = vst [vmem:[%s3 + $0x30] sm:$0xff] %v548
    %581 = vst [vmem:[%s3 + $0x38] sm:$0xff] %v549
    %582 = vst [vmem:[%s3 + $0x40] sm:$0xff] %v550
    %583 = vst [vmem:[%s3 + $0x48] sm:$0xff] %v551
    %584 = vst [vmem:[%s3 + $0x50] sm:$0xff] %v552
    %585 = vst [vmem:[%s3 + $0x58] sm:$0xff] %v553
    %586 = vst [vmem:[%s3 + $0x60] sm:$0xff] %v554
    %587 = vst [vmem:[%s3 + $0x68] sm:$0xff] %v555
    %588 = vst [vmem:[%s3 + $0x70] sm:$0xff] %v556
    %589 = vst [vmem:[%s3 + $0x78] sm:$0xff] %v557
    %590 = vst [vmem:[%s3 + $0x80] sm:$0xff] %v558
    %591 = vst [vmem:[%s3 + $0x88] sm:$0xff] %v559
    %592 = vst [vmem:[%s3 + $0x90] sm:$0xff] %v560
    %593 = vst [vmem:[%s3 + $0x98] sm:$0xff] %v561
    %594 = vst [vmem:[%s3 + $0xa0] sm:$0xff] %v562
    %595 = vst [vmem:[%s3 + $0xa8] sm:$0xff] %v563
    %596 = vst [vmem:[%s3 + $0xb0] sm:$0xff] %v564
    %597 = vst [vmem:[%s3 + $0xb8] sm:$0xff] %v565
    %598 = vst [vmem:[%s3 + $0xc0] sm:$0xff] %v566
    %599 = vst [vmem:[%s3 + $0xc8] sm:$0xff] %v567
    %600 = vst [vmem:[%s3 + $0xd0] sm:$0xff] %v568
    %601 = vst [vmem:[%s3 + $0xd8] sm:$0xff] %v569
    %602 = vst [vmem:[%s3 + $0xe0] sm:$0xff] %v570
    %603 = vst [vmem:[%s3 + $0xe8] sm:$0xff] %v571
    %604 = vst [vmem:[%s3 + $0xf0] sm:$0xff] %v572
    %605 = vst [vmem:[%s3 + $0xf8] sm:$0xff] %v573
  $region21: #{resnet_forward.52} parent=0 // pred_fallthru
    _
  // Predicated region
  $region22: #{resnet_forward.52} parent=0 // pred_check
    _
  $region23: #{resnet_forward.52} parent=0 // pred_check_branch
    %607 = sbr.rel (0) target = $region25
  $region24: #{resnet_forward.52} parent=0 // pred_region
    _
  $region25: #{resnet_forward.52} parent=0 // pred_fallthru
    _
  // Predicated region
  $region26: #{resnet_forward.52} parent=0 // pred_check
    _
  $region27: #{resnet_forward.52} parent=0 // pred_check_branch
    %609 = sbr.rel (0) target = $region29
  $region28: #{resnet_forward.52} parent=0 // pred_region
    _
  $region29: #{resnet_forward.52} parent=0 // pred_fallthru
    _

</llo_original>
